<compile_context>
chip_gen: v7x
topology: tpu7x:2x2x1
jax: 0.10.0
libtpu: 0.0.40
codegen_flags: <defaults>
</compile_context>

<pallas_src>
import math

import jax
import jax.numpy as jnp
from jax.experimental import pallas as pl
from jax.experimental.pallas import tpu as pltpu


# ----------------------------------------------------------------------------
# Host helpers
# ----------------------------------------------------------------------------

def positional_encoding(L, D):
    pos = jnp.arange(L, dtype=jnp.float32)[:, None]
    div = jnp.exp(jnp.arange(0, D, 2, dtype=jnp.float32) * (-math.log(10000.0) / D))
    return jnp.stack([jnp.sin(pos * div), jnp.cos(pos * div)], axis=-1).reshape(L, D)


def init_params(key, cfg):
    """Deterministic synthetic parameters, stacked per-feature for the fused kernel."""
    H = cfg["n_heads"]
    D = cfg["d_model"] - cfg["d_model"] % H
    F = cfg["d_feature"]
    dff = cfg["d_ff"]
    S = cfg["d_dimension"]
    E, DL = cfg["e_layers"], cfg["d_layers"]
    seq, pre = cfg["seq_len"], cfg["pred_len"]
    d_mark = cfg["d_mark"]
    Mk = d_mark - 1

    kit = iter(jax.random.split(key, 64))

    def w(shape, fan_in):
        return jax.random.normal(next(kit), shape, jnp.float32) / math.sqrt(fan_in)

    def b(shape):
        return jax.random.normal(next(kit), shape, jnp.float32) * 0.02

    def ones(shape):
        return jnp.ones(shape, jnp.float32)

    def zeros(shape):
        return jnp.zeros(shape, jnp.float32)

    enc = {
        "qkv_w": w((F, E, D, 3 * D), D),   "qkv_b": b((F, E, 1, 3 * D)),
        "o_w":   w((F, E, D, D), D),       "o_b":   b((F, E, 1, D)),
        "ln1_g": ones((F, E, 1, D)),       "ln1_b": zeros((F, E, 1, D)),
        "ff1_w": w((F, E, D, dff), D),     "ff1_b": b((F, E, 1, dff)),
        "ff2_w": w((F, E, dff, D), dff),   "ff2_b": b((F, E, 1, D)),
        "ln2_g": ones((F, E, 1, D)),       "ln2_b": zeros((F, E, 1, D)),
    }
    dec = {
        "sqkv_w": w((F, DL, D, 3 * D), D), "sqkv_b": b((F, DL, 1, 3 * D)),
        "so_w":   w((F, DL, D, D), D),     "so_b":   b((F, DL, 1, D)),
        "ln1_g":  ones((F, DL, 1, D)),     "ln1_b":  zeros((F, DL, 1, D)),
        "cq_w":   w((F, DL, D, D), D),     "cq_b":   b((F, DL, 1, D)),
        "ckv_w":  w((F, DL, D, 2 * D), D), "ckv_b":  b((F, DL, 1, 2 * D)),
        "co_w":   w((F, DL, D, D), D),     "co_b":   b((F, DL, 1, D)),
        "ln2_g":  ones((F, DL, 1, D)),     "ln2_b":  zeros((F, DL, 1, D)),
        "ff1_w":  w((F, DL, D, dff), D),   "ff1_b":  b((F, DL, 1, dff)),
        "ff2_w":  w((F, DL, dff, D), dff), "ff2_b":  b((F, DL, 1, D)),
        "ln3_g":  ones((F, DL, 1, D)),     "ln3_b":  zeros((F, DL, 1, D)),
    }
    return {
        "input_fc": {"w": w((d_mark, D), d_mark), "b": b((1, D))},
        "co_embedding": {"w": w((Mk, D), Mk), "b": b((1, D))},
        "enc": enc,
        # pre-transposed Linear(seq->pred): memory_b = W @ enc_out_b + bias
        "enc_lin_w": w((F, pre, seq), seq),
        "enc_lin_b": b((F, pre, 1)),
        "dec": dec,
        # g_c (D->S, Hardsigmoid) and g_s (D->1, Softplus) folded into one projection
        "g_cs": {"w": w((D, S + 1), D), "b": b((1, S + 1))},
    }


# ----------------------------------------------------------------------------
# Full SSD forward: one fused Pallas kernel over grid=(F,)
# ----------------------------------------------------------------------------

def ssd_forward(params, batch_x, batch_x_mark, batch_y, batch_y_mark, cfg):
    seq, pre = cfg["seq_len"], cfg["pred_len"]
    H = cfg["n_heads"]
    D = cfg["d_model"] - cfg["d_model"] % H
    Dh = D // H
    E, DL = cfg["e_layers"], cfg["d_layers"]
    S = cfg["d_dimension"]
    B = batch_x.shape[0]
    F = batch_x.shape[-1]
    Mk = batch_x_mark.shape[-1]          # d_mark - 1
    d_mark = Mk + 1
    scale = 1.0 / math.sqrt(Dh)

    # ---- input assembly (pure broadcasting; replaces the PyTorch concat loops) ----
    xm = batch_x_mark[:, -seq:]
    hist = jnp.concatenate(
        [batch_x[..., None],
         jnp.broadcast_to(xm[:, :, None, :], (B, seq, F, Mk))], axis=-1)
    hist = hist.transpose(2, 0, 1, 3)                       # [F, B, seq, d_mark]

    ym = batch_y_mark[:, -pre:]
    fut = jnp.broadcast_to(ym[:, :, None, :], (B, pre, batch_y.shape[-1], Mk))
    fut = fut.transpose(2, 0, 1, 3)                         # [F, B, pre, Mk]

    pe = positional_encoding(max(seq, pre), D)
    pe_seq, pe_pre = pe[:seq], pe[:pre]

    # ---- SSD state matrices (identical construction to the PyTorch module) ----
    tao = jnp.ones((S, S), jnp.float32)
    tao = tao.at[:, 0].set(0.0)
    tao = tao.at[:, -1].set(0.0)
    tao = tao.at[1].multiply(-1.0)
    tao = tao.at[0].set(0.0)
    tao = tao.at[0, 0].set(1.0)
    tao = tao.at[2:, 1:-1].set(jnp.eye(S - 2, dtype=jnp.float32))
    taot = tao.T                                            # kernel does row-vec @ tao^T
    z = jnp.zeros((1, S), jnp.float32).at[:, :2].set(1.0)

    # ---- flat (name, array, per_feature?) operand list -> specs built consistently ----
    enc, dec = params["enc"], params["dec"]
    items = [
        ("hist", hist, True), ("fut", fut, True),
        ("pe_seq", pe_seq, False), ("pe_pre", pe_pre, False),
        ("in_w", params["input_fc"]["w"], False), ("in_b", params["input_fc"]["b"], False),
        ("co_w", params["co_embedding"]["w"], False), ("co_b", params["co_embedding"]["b"], False),
    ]
    items += [("enc_" + k, v, True) for k, v in enc.items()]
    items += [("elin_w", params["enc_lin_w"], True), ("elin_b", params["enc_lin_b"], True)]
    items += [("dec_" + k, v, True) for k, v in dec.items()]
    items += [("gcs_w", params["g_cs"]["w"], False), ("gcs_b", params["g_cs"]["b"], False),
              ("taot", taot, False), ("z", z, False)]

    names = [n for n, _, _ in items]
    arrays = [a for _, a, _ in items]

    in_specs = []
    for _, a, per_feat in items:
        if per_feat:
            # leading F axis: block size 1, indexed by the grid position
            in_specs.append(pl.BlockSpec(
                (1,) + a.shape[1:], lambda f, _n=a.ndim - 1: (f,) + (0,) * _n))
        else:
            # shared array: one full block
            in_specs.append(pl.BlockSpec(
                a.shape, lambda f, _n=a.ndim: (0,) * _n))

    # ----------------- in-kernel helpers (operate on values, stay in VMEM/vregs) -----
    def mm(x2, w, b):                        # [M,K] @ [K,N] + [1,N]
        return jnp.dot(x2, w, preferred_element_type=jnp.float32) + b

    def layer_norm(x2, g, b):                # PyTorch default eps=1e-5, affine
        mu = jnp.mean(x2, axis=-1, keepdims=True)
        xc = x2 - mu
        var = jnp.mean(xc * xc, axis=-1, keepdims=True)
        return xc * jax.lax.rsqrt(var + 1e-5) * g + b

    def attention(q2, k2, v2, lq, lk, mask):
        # q2: [B*lq, D], k2/v2: [B*lk, D] -> [B*lq, D]; all heads inside the kernel.
        heads = []
        for h in range(H):
            qh = q2[:, h * Dh:(h + 1) * Dh].reshape(B, lq, Dh)
            kh = k2[:, h * Dh:(h + 1) * Dh].reshape(B, lk, Dh)
            vh = v2[:, h * Dh:(h + 1) * Dh].reshape(B, lk, Dh)
            s = jnp.einsum("bqd,bkd->bqk", qh, kh,
                           preferred_element_type=jnp.float32) * scale
            if mask is not None:
                s = s + mask
            s = s - jnp.max(s, axis=-1, keepdims=True)
            p = jnp.exp(s)
            p = p / jnp.sum(p, axis=-1, keepdims=True)
            o = jnp.einsum("bqk,bkd->bqd", p, vh, preferred_element_type=jnp.float32)
            heads.append(o.reshape(B * lq, Dh))
        return jnp.concatenate(heads, axis=-1)

    def kernel(*args):
        out_ref = args[len(names)]
        val = {n: r[...] for n, r in zip(names, args)}     # load full (tiny) blocks

        # ---- embeddings + positional encoding ----
        x = mm(val["hist"].reshape(B * seq, d_mark), val["in_w"], val["in_b"])
        x = x + jnp.tile(val["pe_seq"], (B, 1))            # [B*seq, D]
        y = mm(val["fut"].reshape(B * pre, Mk), val["co_w"], val["co_b"])
        y = y + jnp.tile(val["pe_pre"], (B, 1))            # [B*pre, D]

        # ---- encoder stack (post-norm, relu FFN, dropout=0) ----
        for l in range(E):
            qkv = mm(x, val["enc_qkv_w"][0, l], val["enc_qkv_b"][0, l])
            a = attention(qkv[:, :D], qkv[:, D:2 * D], qkv[:, 2 * D:], seq, seq, None)
            a = mm(a, val["enc_o_w"][0, l], val["enc_o_b"][0, l])
            x = layer_norm(x + a, val["enc_ln1_g"][0, l], val["enc_ln1_b"][0, l])
            h1 = jnp.maximum(mm(x, val["enc_ff1_w"][0, l], val["enc_ff1_b"][0, l]), 0.0)
            x = layer_norm(x + mm(h1, val["enc_ff2_w"][0, l], val["enc_ff2_b"][0, l]),
                           val["enc_ln2_g"][0, l], val["enc_ln2_b"][0, l])

        # ---- seq -> pred memory: contract the sequence axis in-kernel (no transposes) -
        wt, eb = val["elin_w"][0], val["elin_b"][0]        # [pre, seq], [pre, 1]
        mem = jnp.concatenate(
            [jnp.dot(wt, x[b * seq:(b + 1) * seq, :],
                     preferred_element_type=jnp.float32) + eb for b in range(B)],
            axis=0)                                        # [B*pre, D]

        # ---- causal mask generated in-kernel (finite negative, no NaN risk) ----
        ri = jax.lax.broadcasted_iota(jnp.int32, (pre, pre), 0)
        ci = jax.lax.broadcasted_iota(jnp.int32, (pre, pre), 1)
        causal = (ci > ri).astype(jnp.float32) * (-1e30)

        # ---- decoder stack ----
        for l in range(DL):
            qkv = mm(y, val["dec_sqkv_w"][0, l], val["dec_sqkv_b"][0, l])
            a = attention(qkv[:, :D], qkv[:, D:2 * D], qkv[:, 2 * D:], pre, pre, causal)
            a = mm(a, val["dec_so_w"][0, l], val["dec_so_b"][0, l])
            y = layer_norm(y + a, val["dec_ln1_g"][0, l], val["dec_ln1_b"][0, l])

            q2 = mm(y, val["dec_cq_w"][0, l], val["dec_cq_b"][0, l])
            kv = mm(mem, val["dec_ckv_w"][0, l], val["dec_ckv_b"][0, l])
            a2 = attention(q2, kv[:, :D], kv[:, D:], pre, pre, None)
            a2 = mm(a2, val["dec_co_w"][0, l], val["dec_co_b"][0, l])
            y = layer_norm(y + a2, val["dec_ln2_g"][0, l], val["dec_ln2_b"][0, l])

            h1 = jnp.maximum(mm(y, val["dec_ff1_w"][0, l], val["dec_ff1_b"][0, l]), 0.0)
            y = layer_norm(y + mm(h1, val["dec_ff2_w"][0, l], val["dec_ff2_b"][0, l]),
                           val["dec_ln3_g"][0, l], val["dec_ln3_b"][0, l])

        # ---- SSD recurrence: g_c + g_s applied to ALL days with one matmul; only the
        #      tiny SxS state update is serial.  Day-0 matches PyTorch: a0 = tao@c0 + c0.
        lin = mm(y, val["gcs_w"], val["gcs_b"]).reshape(B, pre, S + 1)
        c_all = jnp.clip((lin[..., :S] + 3.0) / 6.0, 0.0, 1.0)     # Hardsigmoid [B, pre, S]
        sp_all = jnp.logaddexp(lin[..., S], 0.0)                   # Softplus   [B, pre]
        taot_v, z_v = val["taot"], val["z"]
        a = c_all[:, 0, :]                                         # [B, S]
        ycols = []
        for day in range(pre):
            c = c_all[:, day, :]
            a = jnp.dot(a, taot_v, preferred_element_type=jnp.float32) + c
            ycols.append(jnp.sum(a * z_v, axis=-1, keepdims=True))  # [B, 1]
        pred = jnp.concatenate(ycols, axis=-1) + sp_all             # [B, pre] single slab
        out_ref[0] = pred.astype(out_ref.dtype)

    out = pl.pallas_call(
        kernel,
        out_shape=jax.ShapeDtypeStruct((F, B, pre), jnp.float32),
        grid=(F,),
        in_specs=in_specs,
        out_specs=pl.BlockSpec((1, B, pre), lambda f: (f, 0, 0)),
        compiler_params=pltpu.CompilerParams(
            dimension_semantics=("parallel",)),   # features shard across v7x's 2 TCs
    )(*arrays)

    return out.transpose(1, 2, 0)                 # [B, pred_len, F]


# ----------------------------------------------------------------------------

if __name__ == "__main__":
    cfg = dict(seq_len=8, pred_len=4, d_feature=2, d_model=32, n_heads=4,
               d_ff=64, d_dimension=4, d_mark=5, e_layers=1, d_layers=1, dropout=0.0)

    key = jax.random.PRNGKey(0)
    kp, kx, kxm, ky, kym = jax.random.split(key, 5)
    params = init_params(kp, cfg)

    B = 2
    batch_x = jax.random.normal(kx, (B, cfg["seq_len"], cfg["d_feature"]), jnp.float32)
    batch_x_mark = jax.random.normal(kxm, (B, cfg["seq_len"], cfg["d_mark"] - 1), jnp.float32)
    batch_y = jax.random.normal(ky, (B, cfg["pred_len"], cfg["d_feature"]), jnp.float32)
    batch_y_mark = jax.random.normal(kym, (B, cfg["pred_len"], cfg["d_mark"] - 1), jnp.float32)

    fwd = jax.jit(lambda p, bx, bxm, by, bym: ssd_forward(p, bx, bxm, by, bym, cfg))
    prediction = fwd(params, batch_x, batch_x_mark, batch_y, batch_y_mark)
    jax.block_until_ready(prediction)

    assert prediction.shape == (B, cfg["pred_len"], cfg["d_feature"])
    assert bool(jnp.all(jnp.isfinite(prediction)))
    print("KERNEL_OK")
</pallas_src>

<mosaic_0001>
module attributes {stable_mosaic.version = 11 : i64} {
  func.func @kernel(%arg0: i32, %arg1: memref<1x2x8x5xf32, #tpu.memory_space<vmem>>, %arg2: memref<1x2x4x4xf32, #tpu.memory_space<vmem>>, %arg3: memref<8x32xf32, #tpu.memory_space<vmem>>, %arg4: memref<4x32xf32, #tpu.memory_space<vmem>>, %arg5: memref<5x32xf32, #tpu.memory_space<vmem>>, %arg6: memref<1x32xf32, #tpu.memory_space<vmem>>, %arg7: memref<4x32xf32, #tpu.memory_space<vmem>>, %arg8: memref<1x32xf32, #tpu.memory_space<vmem>>, %arg9: memref<1x1x1x64xf32, #tpu.memory_space<vmem>>, %arg10: memref<1x1x32x64xf32, #tpu.memory_space<vmem>>, %arg11: memref<1x1x1x32xf32, #tpu.memory_space<vmem>>, %arg12: memref<1x1x64x32xf32, #tpu.memory_space<vmem>>, %arg13: memref<1x1x1x32xf32, #tpu.memory_space<vmem>>, %arg14: memref<1x1x1x32xf32, #tpu.memory_space<vmem>>, %arg15: memref<1x1x1x32xf32, #tpu.memory_space<vmem>>, %arg16: memref<1x1x1x32xf32, #tpu.memory_space<vmem>>, %arg17: memref<1x1x1x32xf32, #tpu.memory_space<vmem>>, %arg18: memref<1x1x32x32xf32, #tpu.memory_space<vmem>>, %arg19: memref<1x1x1x96xf32, #tpu.memory_space<vmem>>, %arg20: memref<1x1x32x96xf32, #tpu.memory_space<vmem>>, %arg21: memref<1x4x8xf32, #tpu.memory_space<vmem>>, %arg22: memref<1x4x1xf32, #tpu.memory_space<vmem>>, %arg23: memref<1x1x1x64xf32, #tpu.memory_space<vmem>>, %arg24: memref<1x1x32x64xf32, #tpu.memory_space<vmem>>, %arg25: memref<1x1x1x32xf32, #tpu.memory_space<vmem>>, %arg26: memref<1x1x32x32xf32, #tpu.memory_space<vmem>>, %arg27: memref<1x1x1x32xf32, #tpu.memory_space<vmem>>, %arg28: memref<1x1x32x32xf32, #tpu.memory_space<vmem>>, %arg29: memref<1x1x1x64xf32, #tpu.memory_space<vmem>>, %arg30: memref<1x1x32x64xf32, #tpu.memory_space<vmem>>, %arg31: memref<1x1x1x32xf32, #tpu.memory_space<vmem>>, %arg32: memref<1x1x64x32xf32, #tpu.memory_space<vmem>>, %arg33: memref<1x1x1x32xf32, #tpu.memory_space<vmem>>, %arg34: memref<1x1x1x32xf32, #tpu.memory_space<vmem>>, %arg35: memref<1x1x1x32xf32, #tpu.memory_space<vmem>>, %arg36: memref<1x1x1x32xf32, #tpu.memory_space<vmem>>, %arg37: memref<1x1x1x32xf32, #tpu.memory_space<vmem>>, %arg38: memref<1x1x1x32xf32, #tpu.memory_space<vmem>>, %arg39: memref<1x1x1x32xf32, #tpu.memory_space<vmem>>, %arg40: memref<1x1x32x32xf32, #tpu.memory_space<vmem>>, %arg41: memref<1x1x1x96xf32, #tpu.memory_space<vmem>>, %arg42: memref<1x1x32x96xf32, #tpu.memory_space<vmem>>, %arg43: memref<32x5xf32, #tpu.memory_space<vmem>>, %arg44: memref<1x5xf32, #tpu.memory_space<vmem>>, %arg45: memref<4x4xf32, #tpu.memory_space<vmem>>, %arg46: memref<1x4xf32, #tpu.memory_space<vmem>>, %arg47: memref<1x2x4xf32, #tpu.memory_space<vmem>>) attributes {dimension_semantics = [#tpu.dimension_semantics<parallel>], iteration_bounds = array<i64: 2>, scalar_prefetch = 0 : i64, scratch_operands = 0 : i64, tpu.core_type = #tpu.core_type<tc>, window_params = [{transform_indices = @transform_0, window_bounds = array<i64: 1, 2, 8, 5>}, {transform_indices = @transform_1, window_bounds = array<i64: 1, 2, 4, 4>}, {pipeline_mode = #tpu.pipeline_mode<synchronous>, transform_indices = @transform_2, window_bounds = array<i64: 8, 32>}, {pipeline_mode = #tpu.pipeline_mode<synchronous>, transform_indices = @transform_3, window_bounds = array<i64: 4, 32>}, {pipeline_mode = #tpu.pipeline_mode<synchronous>, transform_indices = @transform_4, window_bounds = array<i64: 5, 32>}, {pipeline_mode = #tpu.pipeline_mode<synchronous>, transform_indices = @transform_5, window_bounds = array<i64: 1, 32>}, {pipeline_mode = #tpu.pipeline_mode<synchronous>, transform_indices = @transform_6, window_bounds = array<i64: 4, 32>}, {pipeline_mode = #tpu.pipeline_mode<synchronous>, transform_indices = @transform_7, window_bounds = array<i64: 1, 32>}, {transform_indices = @transform_8, window_bounds = array<i64: 1, 1, 1, 64>}, {transform_indices = @transform_9, window_bounds = array<i64: 1, 1, 32, 64>}, {transform_indices = @transform_10, window_bounds = array<i64: 1, 1, 1, 32>}, {transform_indices = @transform_11, window_bounds = array<i64: 1, 1, 64, 32>}, {transform_indices = @transform_12, window_bounds = array<i64: 1, 1, 1, 32>}, {transform_indices = @transform_13, window_bounds = array<i64: 1, 1, 1, 32>}, {transform_indices = @transform_14, window_bounds = array<i64: 1, 1, 1, 32>}, {transform_indices = @transform_15, window_bounds = array<i64: 1, 1, 1, 32>}, {transform_indices = @transform_16, window_bounds = array<i64: 1, 1, 1, 32>}, {transform_indices = @transform_17, window_bounds = array<i64: 1, 1, 32, 32>}, {transform_indices = @transform_18, window_bounds = array<i64: 1, 1, 1, 96>}, {transform_indices = @transform_19, window_bounds = array<i64: 1, 1, 32, 96>}, {transform_indices = @transform_20, window_bounds = array<i64: 1, 4, 8>}, {transform_indices = @transform_21, window_bounds = array<i64: 1, 4, 1>}, {transform_indices = @transform_22, window_bounds = array<i64: 1, 1, 1, 64>}, {transform_indices = @transform_23, window_bounds = array<i64: 1, 1, 32, 64>}, {transform_indices = @transform_24, window_bounds = array<i64: 1, 1, 1, 32>}, {transform_indices = @transform_25, window_bounds = array<i64: 1, 1, 32, 32>}, {transform_indices = @transform_26, window_bounds = array<i64: 1, 1, 1, 32>}, {transform_indices = @transform_27, window_bounds = array<i64: 1, 1, 32, 32>}, {transform_indices = @transform_28, window_bounds = array<i64: 1, 1, 1, 64>}, {transform_indices = @transform_29, window_bounds = array<i64: 1, 1, 32, 64>}, {transform_indices = @transform_30, window_bounds = array<i64: 1, 1, 1, 32>}, {transform_indices = @transform_31, window_bounds = array<i64: 1, 1, 64, 32>}, {transform_indices = @transform_32, window_bounds = array<i64: 1, 1, 1, 32>}, {transform_indices = @transform_33, window_bounds = array<i64: 1, 1, 1, 32>}, {transform_indices = @transform_34, window_bounds = array<i64: 1, 1, 1, 32>}, {transform_indices = @transform_35, window_bounds = array<i64: 1, 1, 1, 32>}, {transform_indices = @transform_36, window_bounds = array<i64: 1, 1, 1, 32>}, {transform_indices = @transform_37, window_bounds = array<i64: 1, 1, 1, 32>}, {transform_indices = @transform_38, window_bounds = array<i64: 1, 1, 1, 32>}, {transform_indices = @transform_39, window_bounds = array<i64: 1, 1, 32, 32>}, {transform_indices = @transform_40, window_bounds = array<i64: 1, 1, 1, 96>}, {transform_indices = @transform_41, window_bounds = array<i64: 1, 1, 32, 96>}, {pipeline_mode = #tpu.pipeline_mode<synchronous>, transform_indices = @transform_42, window_bounds = array<i64: 32, 5>}, {pipeline_mode = #tpu.pipeline_mode<synchronous>, transform_indices = @transform_43, window_bounds = array<i64: 1, 5>}, {pipeline_mode = #tpu.pipeline_mode<synchronous>, transform_indices = @transform_44, window_bounds = array<i64: 4, 4>}, {pipeline_mode = #tpu.pipeline_mode<synchronous>, transform_indices = @transform_45, window_bounds = array<i64: 1, 4>}, {transform_indices = @transform_46, window_bounds = array<i64: 1, 2, 4>}]} {
    %c0 = arith.constant 0 : index
    %c0_0 = arith.constant 0 : index
    %c0_1 = arith.constant 0 : index
    %c0_2 = arith.constant 0 : index
    %0 = vector.load %arg1[%c0, %c0_0, %c0_1, %c0_2] : memref<1x2x8x5xf32, #tpu.memory_space<vmem>>, vector<1x2x8x5xf32>
    %c0_3 = arith.constant 0 : index
    %c0_4 = arith.constant 0 : index
    %c0_5 = arith.constant 0 : index
    %c0_6 = arith.constant 0 : index
    %1 = vector.load %arg2[%c0_3, %c0_4, %c0_5, %c0_6] : memref<1x2x4x4xf32, #tpu.memory_space<vmem>>, vector<1x2x4x4xf32>
    %c0_7 = arith.constant 0 : index
    %c0_8 = arith.constant 0 : index
    %2 = vector.load %arg3[%c0_7, %c0_8] : memref<8x32xf32, #tpu.memory_space<vmem>>, vector<8x32xf32>
    %c0_9 = arith.constant 0 : index
    %c0_10 = arith.constant 0 : index
    %3 = vector.load %arg4[%c0_9, %c0_10] : memref<4x32xf32, #tpu.memory_space<vmem>>, vector<4x32xf32>
    %c0_11 = arith.constant 0 : index
    %c0_12 = arith.constant 0 : index
    %4 = vector.load %arg5[%c0_11, %c0_12] : memref<5x32xf32, #tpu.memory_space<vmem>>, vector<5x32xf32>
    %c0_13 = arith.constant 0 : index
    %c0_14 = arith.constant 0 : index
    %5 = vector.load %arg6[%c0_13, %c0_14] : memref<1x32xf32, #tpu.memory_space<vmem>>, vector<1x32xf32>
    %c0_15 = arith.constant 0 : index
    %c0_16 = arith.constant 0 : index
    %6 = vector.load %arg7[%c0_15, %c0_16] : memref<4x32xf32, #tpu.memory_space<vmem>>, vector<4x32xf32>
    %c0_17 = arith.constant 0 : index
    %c0_18 = arith.constant 0 : index
    %7 = vector.load %arg8[%c0_17, %c0_18] : memref<1x32xf32, #tpu.memory_space<vmem>>, vector<1x32xf32>
    %c0_19 = arith.constant 0 : index
    %c0_20 = arith.constant 0 : index
    %c0_21 = arith.constant 0 : index
    %c0_22 = arith.constant 0 : index
    %8 = vector.load %arg9[%c0_19, %c0_20, %c0_21, %c0_22] : memref<1x1x1x64xf32, #tpu.memory_space<vmem>>, vector<1x1x1x64xf32>
    %c0_23 = arith.constant 0 : index
    %c0_24 = arith.constant 0 : index
    %c0_25 = arith.constant 0 : index
    %c0_26 = arith.constant 0 : index
    %9 = vector.load %arg10[%c0_23, %c0_24, %c0_25, %c0_26] : memref<1x1x32x64xf32, #tpu.memory_space<vmem>>, vector<1x1x32x64xf32>
    %c0_27 = arith.constant 0 : index
    %c0_28 = arith.constant 0 : index
    %c0_29 = arith.constant 0 : index
    %c0_30 = arith.constant 0 : index
    %10 = vector.load %arg11[%c0_27, %c0_28, %c0_29, %c0_30] : memref<1x1x1x32xf32, #tpu.memory_space<vmem>>, vector<1x1x1x32xf32>
    %c0_31 = arith.constant 0 : index
    %c0_32 = arith.constant 0 : index
    %c0_33 = arith.constant 0 : index
    %c0_34 = arith.constant 0 : index
    %11 = vector.load %arg12[%c0_31, %c0_32, %c0_33, %c0_34] : memref<1x1x64x32xf32, #tpu.memory_space<vmem>>, vector<1x1x64x32xf32>
    %c0_35 = arith.constant 0 : index
    %c0_36 = arith.constant 0 : index
    %c0_37 = arith.constant 0 : index
    %c0_38 = arith.constant 0 : index
    %12 = vector.load %arg13[%c0_35, %c0_36, %c0_37, %c0_38] : memref<1x1x1x32xf32, #tpu.memory_space<vmem>>, vector<1x1x1x32xf32>
    %c0_39 = arith.constant 0 : index
    %c0_40 = arith.constant 0 : index
    %c0_41 = arith.constant 0 : index
    %c0_42 = arith.constant 0 : index
    %13 = vector.load %arg14[%c0_39, %c0_40, %c0_41, %c0_42] : memref<1x1x1x32xf32, #tpu.memory_space<vmem>>, vector<1x1x1x32xf32>
    %c0_43 = arith.constant 0 : index
    %c0_44 = arith.constant 0 : index
    %c0_45 = arith.constant 0 : index
    %c0_46 = arith.constant 0 : index
    %14 = vector.load %arg15[%c0_43, %c0_44, %c0_45, %c0_46] : memref<1x1x1x32xf32, #tpu.memory_space<vmem>>, vector<1x1x1x32xf32>
    %c0_47 = arith.constant 0 : index
    %c0_48 = arith.constant 0 : index
    %c0_49 = arith.constant 0 : index
    %c0_50 = arith.constant 0 : index
    %15 = vector.load %arg16[%c0_47, %c0_48, %c0_49, %c0_50] : memref<1x1x1x32xf32, #tpu.memory_space<vmem>>, vector<1x1x1x32xf32>
    %c0_51 = arith.constant 0 : index
    %c0_52 = arith.constant 0 : index
    %c0_53 = arith.constant 0 : index
    %c0_54 = arith.constant 0 : index
    %16 = vector.load %arg17[%c0_51, %c0_52, %c0_53, %c0_54] : memref<1x1x1x32xf32, #tpu.memory_space<vmem>>, vector<1x1x1x32xf32>
    %c0_55 = arith.constant 0 : index
    %c0_56 = arith.constant 0 : index
    %c0_57 = arith.constant 0 : index
    %c0_58 = arith.constant 0 : index
    %17 = vector.load %arg18[%c0_55, %c0_56, %c0_57, %c0_58] : memref<1x1x32x32xf32, #tpu.memory_space<vmem>>, vector<1x1x32x32xf32>
    %c0_59 = arith.constant 0 : index
    %c0_60 = arith.constant 0 : index
    %c0_61 = arith.constant 0 : index
    %c0_62 = arith.constant 0 : index
    %18 = vector.load %arg19[%c0_59, %c0_60, %c0_61, %c0_62] : memref<1x1x1x96xf32, #tpu.memory_space<vmem>>, vector<1x1x1x96xf32>
    %c0_63 = arith.constant 0 : index
    %c0_64 = arith.constant 0 : index
    %c0_65 = arith.constant 0 : index
    %c0_66 = arith.constant 0 : index
    %19 = vector.load %arg20[%c0_63, %c0_64, %c0_65, %c0_66] : memref<1x1x32x96xf32, #tpu.memory_space<vmem>>, vector<1x1x32x96xf32>
    %c0_67 = arith.constant 0 : index
    %c0_68 = arith.constant 0 : index
    %c0_69 = arith.constant 0 : index
    %20 = vector.load %arg21[%c0_67, %c0_68, %c0_69] : memref<1x4x8xf32, #tpu.memory_space<vmem>>, vector<1x4x8xf32>
    %c0_70 = arith.constant 0 : index
    %c0_71 = arith.constant 0 : index
    %c0_72 = arith.constant 0 : index
    %21 = vector.load %arg22[%c0_70, %c0_71, %c0_72] : memref<1x4x1xf32, #tpu.memory_space<vmem>>, vector<1x4x1xf32>
    %c0_73 = arith.constant 0 : index
    %c0_74 = arith.constant 0 : index
    %c0_75 = arith.constant 0 : index
    %c0_76 = arith.constant 0 : index
    %22 = vector.load %arg23[%c0_73, %c0_74, %c0_75, %c0_76] : memref<1x1x1x64xf32, #tpu.memory_space<vmem>>, vector<1x1x1x64xf32>
    %c0_77 = arith.constant 0 : index
    %c0_78 = arith.constant 0 : index
    %c0_79 = arith.constant 0 : index
    %c0_80 = arith.constant 0 : index
    %23 = vector.load %arg24[%c0_77, %c0_78, %c0_79, %c0_80] : memref<1x1x32x64xf32, #tpu.memory_space<vmem>>, vector<1x1x32x64xf32>
    %c0_81 = arith.constant 0 : index
    %c0_82 = arith.constant 0 : index
    %c0_83 = arith.constant 0 : index
    %c0_84 = arith.constant 0 : index
    %24 = vector.load %arg25[%c0_81, %c0_82, %c0_83, %c0_84] : memref<1x1x1x32xf32, #tpu.memory_space<vmem>>, vector<1x1x1x32xf32>
    %c0_85 = arith.constant 0 : index
    %c0_86 = arith.constant 0 : index
    %c0_87 = arith.constant 0 : index
    %c0_88 = arith.constant 0 : index
    %25 = vector.load %arg26[%c0_85, %c0_86, %c0_87, %c0_88] : memref<1x1x32x32xf32, #tpu.memory_space<vmem>>, vector<1x1x32x32xf32>
    %c0_89 = arith.constant 0 : index
    %c0_90 = arith.constant 0 : index
    %c0_91 = arith.constant 0 : index
    %c0_92 = arith.constant 0 : index
    %26 = vector.load %arg27[%c0_89, %c0_90, %c0_91, %c0_92] : memref<1x1x1x32xf32, #tpu.memory_space<vmem>>, vector<1x1x1x32xf32>
    %c0_93 = arith.constant 0 : index
    %c0_94 = arith.constant 0 : index
    %c0_95 = arith.constant 0 : index
    %c0_96 = arith.constant 0 : index
    %27 = vector.load %arg28[%c0_93, %c0_94, %c0_95, %c0_96] : memref<1x1x32x32xf32, #tpu.memory_space<vmem>>, vector<1x1x32x32xf32>
    %c0_97 = arith.constant 0 : index
    %c0_98 = arith.constant 0 : index
    %c0_99 = arith.constant 0 : index
    %c0_100 = arith.constant 0 : index
    %28 = vector.load %arg29[%c0_97, %c0_98, %c0_99, %c0_100] : memref<1x1x1x64xf32, #tpu.memory_space<vmem>>, vector<1x1x1x64xf32>
    %c0_101 = arith.constant 0 : index
    %c0_102 = arith.constant 0 : index
    %c0_103 = arith.constant 0 : index
    %c0_104 = arith.constant 0 : index
    %29 = vector.load %arg30[%c0_101, %c0_102, %c0_103, %c0_104] : memref<1x1x32x64xf32, #tpu.memory_space<vmem>>, vector<1x1x32x64xf32>
    %c0_105 = arith.constant 0 : index
    %c0_106 = arith.constant 0 : index
    %c0_107 = arith.constant 0 : index
    %c0_108 = arith.constant 0 : index
    %30 = vector.load %arg31[%c0_105, %c0_106, %c0_107, %c0_108] : memref<1x1x1x32xf32, #tpu.memory_space<vmem>>, vector<1x1x1x32xf32>
    %c0_109 = arith.constant 0 : index
    %c0_110 = arith.constant 0 : index
    %c0_111 = arith.constant 0 : index
    %c0_112 = arith.constant 0 : index
    %31 = vector.load %arg32[%c0_109, %c0_110, %c0_111, %c0_112] : memref<1x1x64x32xf32, #tpu.memory_space<vmem>>, vector<1x1x64x32xf32>
    %c0_113 = arith.constant 0 : index
    %c0_114 = arith.constant 0 : index
    %c0_115 = arith.constant 0 : index
    %c0_116 = arith.constant 0 : index
    %32 = vector.load %arg33[%c0_113, %c0_114, %c0_115, %c0_116] : memref<1x1x1x32xf32, #tpu.memory_space<vmem>>, vector<1x1x1x32xf32>
    %c0_117 = arith.constant 0 : index
    %c0_118 = arith.constant 0 : index
    %c0_119 = arith.constant 0 : index
    %c0_120 = arith.constant 0 : index
    %33 = vector.load %arg34[%c0_117, %c0_118, %c0_119, %c0_120] : memref<1x1x1x32xf32, #tpu.memory_space<vmem>>, vector<1x1x1x32xf32>
    %c0_121 = arith.constant 0 : index
    %c0_122 = arith.constant 0 : index
    %c0_123 = arith.constant 0 : index
    %c0_124 = arith.constant 0 : index
    %34 = vector.load %arg35[%c0_121, %c0_122, %c0_123, %c0_124] : memref<1x1x1x32xf32, #tpu.memory_space<vmem>>, vector<1x1x1x32xf32>
    %c0_125 = arith.constant 0 : index
    %c0_126 = arith.constant 0 : index
    %c0_127 = arith.constant 0 : index
    %c0_128 = arith.constant 0 : index
    %35 = vector.load %arg36[%c0_125, %c0_126, %c0_127, %c0_128] : memref<1x1x1x32xf32, #tpu.memory_space<vmem>>, vector<1x1x1x32xf32>
    %c0_129 = arith.constant 0 : index
    %c0_130 = arith.constant 0 : index
    %c0_131 = arith.constant 0 : index
    %c0_132 = arith.constant 0 : index
    %36 = vector.load %arg37[%c0_129, %c0_130, %c0_131, %c0_132] : memref<1x1x1x32xf32, #tpu.memory_space<vmem>>, vector<1x1x1x32xf32>
    %c0_133 = arith.constant 0 : index
    %c0_134 = arith.constant 0 : index
    %c0_135 = arith.constant 0 : index
    %c0_136 = arith.constant 0 : index
    %37 = vector.load %arg38[%c0_133, %c0_134, %c0_135, %c0_136] : memref<1x1x1x32xf32, #tpu.memory_space<vmem>>, vector<1x1x1x32xf32>
    %c0_137 = arith.constant 0 : index
    %c0_138 = arith.constant 0 : index
    %c0_139 = arith.constant 0 : index
    %c0_140 = arith.constant 0 : index
    %38 = vector.load %arg39[%c0_137, %c0_138, %c0_139, %c0_140] : memref<1x1x1x32xf32, #tpu.memory_space<vmem>>, vector<1x1x1x32xf32>
    %c0_141 = arith.constant 0 : index
    %c0_142 = arith.constant 0 : index
    %c0_143 = arith.constant 0 : index
    %c0_144 = arith.constant 0 : index
    %39 = vector.load %arg40[%c0_141, %c0_142, %c0_143, %c0_144] : memref<1x1x32x32xf32, #tpu.memory_space<vmem>>, vector<1x1x32x32xf32>
    %c0_145 = arith.constant 0 : index
    %c0_146 = arith.constant 0 : index
    %c0_147 = arith.constant 0 : index
    %c0_148 = arith.constant 0 : index
    %40 = vector.load %arg41[%c0_145, %c0_146, %c0_147, %c0_148] : memref<1x1x1x96xf32, #tpu.memory_space<vmem>>, vector<1x1x1x96xf32>
    %c0_149 = arith.constant 0 : index
    %c0_150 = arith.constant 0 : index
    %c0_151 = arith.constant 0 : index
    %c0_152 = arith.constant 0 : index
    %41 = vector.load %arg42[%c0_149, %c0_150, %c0_151, %c0_152] : memref<1x1x32x96xf32, #tpu.memory_space<vmem>>, vector<1x1x32x96xf32>
    %c0_153 = arith.constant 0 : index
    %c0_154 = arith.constant 0 : index
    %42 = vector.load %arg43[%c0_153, %c0_154] : memref<32x5xf32, #tpu.memory_space<vmem>>, vector<32x5xf32>
    %c0_155 = arith.constant 0 : index
    %c0_156 = arith.constant 0 : index
    %43 = vector.load %arg44[%c0_155, %c0_156] : memref<1x5xf32, #tpu.memory_space<vmem>>, vector<1x5xf32>
    %c0_157 = arith.constant 0 : index
    %c0_158 = arith.constant 0 : index
    %44 = vector.load %arg45[%c0_157, %c0_158] : memref<4x4xf32, #tpu.memory_space<vmem>>, vector<4x4xf32>
    %c0_159 = arith.constant 0 : index
    %c0_160 = arith.constant 0 : index
    %45 = vector.load %arg46[%c0_159, %c0_160] : memref<1x4xf32, #tpu.memory_space<vmem>>, vector<1x4xf32>
    %46 = vector.shape_cast %0 : vector<1x2x8x5xf32> to vector<16x5xf32>
    %cst = arith.constant dense<0.000000e+00> : vector<16x32xf32>
    %47 = tpu.matmul %46, %4, %cst {dimension_numbers = #tpu.dot_dimension_numbers<[1], [0], [0], [1], [0, 0, 1, 1], [], []>} : vector<16x5xf32>, vector<5x32xf32>, vector<16x32xf32> -> vector<16x32xf32>
    %48 = vector.broadcast %5 : vector<1x32xf32> to vector<16x32xf32>
    %49 = arith.addf %47, %48 : vector<16x32xf32>
    %50 = tpu.concatenate %2, %2 in 0 : vector<8x32xf32>, vector<8x32xf32> -> vector<16x32xf32>
    %51 = arith.addf %49, %50 : vector<16x32xf32>
    %52 = vector.shape_cast %1 : vector<1x2x4x4xf32> to vector<8x4xf32>
    %cst_161 = arith.constant dense<0.000000e+00> : vector<8x32xf32>
    %53 = tpu.matmul %52, %6, %cst_161 {dimension_numbers = #tpu.dot_dimension_numbers<[1], [0], [0], [1], [0, 0, 1, 1], [], []>} : vector<8x4xf32>, vector<4x32xf32>, vector<8x32xf32> -> vector<8x32xf32>
    %54 = vector.broadcast %7 : vector<1x32xf32> to vector<8x32xf32>
    %55 = arith.addf %53, %54 : vector<8x32xf32>
    %56 = tpu.concatenate %3, %3 in 0 : vector<4x32xf32>, vector<4x32xf32> -> vector<8x32xf32>
    %57 = arith.addf %55, %56 : vector<8x32xf32>
    %58 = vector.shape_cast %19 : vector<1x1x32x96xf32> to vector<32x96xf32>
    %59 = vector.shape_cast %18 : vector<1x1x1x96xf32> to vector<1x96xf32>
    %cst_162 = arith.constant dense<0.000000e+00> : vector<16x96xf32>
    %60 = tpu.matmul %51, %58, %cst_162 {dimension_numbers = #tpu.dot_dimension_numbers<[1], [0], [0], [1], [0, 0, 1, 1], [], []>} : vector<16x32xf32>, vector<32x96xf32>, vector<16x96xf32> -> vector<16x96xf32>
    %61 = vector.broadcast %59 : vector<1x96xf32> to vector<16x96xf32>
    %62 = arith.addf %60, %61 : vector<16x96xf32>
    %63 = vector.extract_strided_slice %62 {offsets = [0, 0], sizes = [16, 32], strides = [1, 1]} : vector<16x96xf32> to vector<16x32xf32>
    %64 = vector.extract_strided_slice %62 {offsets = [0, 32], sizes = [16, 32], strides = [1, 1]} : vector<16x96xf32> to vector<16x32xf32>
    %65 = vector.extract_strided_slice %62 {offsets = [0, 64], sizes = [16, 32], strides = [1, 1]} : vector<16x96xf32> to vector<16x32xf32>
    %66 = vector.extract_strided_slice %63 {offsets = [0, 0], sizes = [16, 8], strides = [1, 1]} : vector<16x32xf32> to vector<16x8xf32>
    %67 = vector.shape_cast %66 : vector<16x8xf32> to vector<2x8x8xf32>
    %68 = vector.extract_strided_slice %64 {offsets = [0, 0], sizes = [16, 8], strides = [1, 1]} : vector<16x32xf32> to vector<16x8xf32>
    %69 = vector.shape_cast %68 : vector<16x8xf32> to vector<2x8x8xf32>
    %70 = vector.extract_strided_slice %65 {offsets = [0, 0], sizes = [16, 8], strides = [1, 1]} : vector<16x32xf32> to vector<16x8xf32>
    %71 = vector.shape_cast %70 : vector<16x8xf32> to vector<2x8x8xf32>
    "tpu.trace_start"() <{level = 10 : i32, message = "bqd,bkd->bqk"}> : () -> ()
    %cst_163 = arith.constant dense<0.000000e+00> : vector<2x8x8xf32>
    %72 = tpu.matmul %67, %69, %cst_163 {dimension_numbers = #tpu.dot_dimension_numbers<[2], [2], [1], [1], [0, 0, 0, 1, 1, 1], [0], [0]>} : vector<2x8x8xf32>, vector<2x8x8xf32>, vector<2x8x8xf32> -> vector<2x8x8xf32>
    "tpu.trace_stop"() : () -> ()
    %cst_164 = arith.constant 0.353553385 : f32
    %73 = vector.broadcast %cst_164 : f32 to vector<2x8x8xf32>
    %74 = arith.mulf %72, %73 : vector<2x8x8xf32>
    %cst_165 = arith.constant dense<0xFF800000> : vector<2x8xf32>
    %75 = vector.multi_reduction <maximumf>, %74, %cst_165 [2] : vector<2x8x8xf32> to vector<2x8xf32>
    %76 = vector.shape_cast %75 : vector<2x8xf32> to vector<2x8x1xf32>
    %77 = vector.broadcast %76 : vector<2x8x1xf32> to vector<2x8x8xf32>
    %78 = arith.subf %74, %77 : vector<2x8x8xf32>
    %79 = math.exp %78 : vector<2x8x8xf32>
    %cst_166 = arith.constant dense<0.000000e+00> : vector<2x8xf32>
    %80 = vector.multi_reduction <add>, %79, %cst_166 [2] : vector<2x8x8xf32> to vector<2x8xf32>
    %81 = vector.shape_cast %80 : vector<2x8xf32> to vector<2x8x1xf32>
    %82 = vector.broadcast %81 : vector<2x8x1xf32> to vector<2x8x8xf32>
    %83 = arith.divf %79, %82 : vector<2x8x8xf32>
    "tpu.trace_start"() <{level = 10 : i32, message = "bqk,bkd->bqd"}> : () -> ()
    %cst_167 = arith.constant dense<0.000000e+00> : vector<2x8x8xf32>
    %84 = tpu.matmul %83, %71, %cst_167 {dimension_numbers = #tpu.dot_dimension_numbers<[2], [1], [1], [2], [0, 0, 0, 1, 1, 2], [0], [0]>} : vector<2x8x8xf32>, vector<2x8x8xf32>, vector<2x8x8xf32> -> vector<2x8x8xf32>
    "tpu.trace_stop"() : () -> ()
    %85 = vector.shape_cast %84 : vector<2x8x8xf32> to vector<16x8xf32>
    %86 = vector.extract_strided_slice %63 {offsets = [0, 8], sizes = [16, 8], strides = [1, 1]} : vector<16x32xf32> to vector<16x8xf32>
    %87 = vector.shape_cast %86 : vector<16x8xf32> to vector<2x8x8xf32>
    %88 = vector.extract_strided_slice %64 {offsets = [0, 8], sizes = [16, 8], strides = [1, 1]} : vector<16x32xf32> to vector<16x8xf32>
    %89 = vector.shape_cast %88 : vector<16x8xf32> to vector<2x8x8xf32>
    %90 = vector.extract_strided_slice %65 {offsets = [0, 8], sizes = [16, 8], strides = [1, 1]} : vector<16x32xf32> to vector<16x8xf32>
    %91 = vector.shape_cast %90 : vector<16x8xf32> to vector<2x8x8xf32>
    "tpu.trace_start"() <{level = 10 : i32, message = "bqd,bkd->bqk"}> : () -> ()
    %cst_168 = arith.constant dense<0.000000e+00> : vector<2x8x8xf32>
    %92 = tpu.matmul %87, %89, %cst_168 {dimension_numbers = #tpu.dot_dimension_numbers<[2], [2], [1], [1], [0, 0, 0, 1, 1, 1], [0], [0]>} : vector<2x8x8xf32>, vector<2x8x8xf32>, vector<2x8x8xf32> -> vector<2x8x8xf32>
    "tpu.trace_stop"() : () -> ()
    %cst_169 = arith.constant 0.353553385 : f32
    %93 = vector.broadcast %cst_169 : f32 to vector<2x8x8xf32>
    %94 = arith.mulf %92, %93 : vector<2x8x8xf32>
    %cst_170 = arith.constant dense<0xFF800000> : vector<2x8xf32>
    %95 = vector.multi_reduction <maximumf>, %94, %cst_170 [2] : vector<2x8x8xf32> to vector<2x8xf32>
    %96 = vector.shape_cast %95 : vector<2x8xf32> to vector<2x8x1xf32>
    %97 = vector.broadcast %96 : vector<2x8x1xf32> to vector<2x8x8xf32>
    %98 = arith.subf %94, %97 : vector<2x8x8xf32>
    %99 = math.exp %98 : vector<2x8x8xf32>
    %cst_171 = arith.constant dense<0.000000e+00> : vector<2x8xf32>
    %100 = vector.multi_reduction <add>, %99, %cst_171 [2] : vector<2x8x8xf32> to vector<2x8xf32>
    %101 = vector.shape_cast %100 : vector<2x8xf32> to vector<2x8x1xf32>
    %102 = vector.broadcast %101 : vector<2x8x1xf32> to vector<2x8x8xf32>
    %103 = arith.divf %99, %102 : vector<2x8x8xf32>
    "tpu.trace_start"() <{level = 10 : i32, message = "bqk,bkd->bqd"}> : () -> ()
    %cst_172 = arith.constant dense<0.000000e+00> : vector<2x8x8xf32>
    %104 = tpu.matmul %103, %91, %cst_172 {dimension_numbers = #tpu.dot_dimension_numbers<[2], [1], [1], [2], [0, 0, 0, 1, 1, 2], [0], [0]>} : vector<2x8x8xf32>, vector<2x8x8xf32>, vector<2x8x8xf32> -> vector<2x8x8xf32>
    "tpu.trace_stop"() : () -> ()
    %105 = vector.shape_cast %104 : vector<2x8x8xf32> to vector<16x8xf32>
    %106 = vector.extract_strided_slice %63 {offsets = [0, 16], sizes = [16, 8], strides = [1, 1]} : vector<16x32xf32> to vector<16x8xf32>
    %107 = vector.shape_cast %106 : vector<16x8xf32> to vector<2x8x8xf32>
    %108 = vector.extract_strided_slice %64 {offsets = [0, 16], sizes = [16, 8], strides = [1, 1]} : vector<16x32xf32> to vector<16x8xf32>
    %109 = vector.shape_cast %108 : vector<16x8xf32> to vector<2x8x8xf32>
    %110 = vector.extract_strided_slice %65 {offsets = [0, 16], sizes = [16, 8], strides = [1, 1]} : vector<16x32xf32> to vector<16x8xf32>
    %111 = vector.shape_cast %110 : vector<16x8xf32> to vector<2x8x8xf32>
    "tpu.trace_start"() <{level = 10 : i32, message = "bqd,bkd->bqk"}> : () -> ()
    %cst_173 = arith.constant dense<0.000000e+00> : vector<2x8x8xf32>
    %112 = tpu.matmul %107, %109, %cst_173 {dimension_numbers = #tpu.dot_dimension_numbers<[2], [2], [1], [1], [0, 0, 0, 1, 1, 1], [0], [0]>} : vector<2x8x8xf32>, vector<2x8x8xf32>, vector<2x8x8xf32> -> vector<2x8x8xf32>
    "tpu.trace_stop"() : () -> ()
    %cst_174 = arith.constant 0.353553385 : f32
    %113 = vector.broadcast %cst_174 : f32 to vector<2x8x8xf32>
    %114 = arith.mulf %112, %113 : vector<2x8x8xf32>
    %cst_175 = arith.constant dense<0xFF800000> : vector<2x8xf32>
    %115 = vector.multi_reduction <maximumf>, %114, %cst_175 [2] : vector<2x8x8xf32> to vector<2x8xf32>
    %116 = vector.shape_cast %115 : vector<2x8xf32> to vector<2x8x1xf32>
    %117 = vector.broadcast %116 : vector<2x8x1xf32> to vector<2x8x8xf32>
    %118 = arith.subf %114, %117 : vector<2x8x8xf32>
    %119 = math.exp %118 : vector<2x8x8xf32>
    %cst_176 = arith.constant dense<0.000000e+00> : vector<2x8xf32>
    %120 = vector.multi_reduction <add>, %119, %cst_176 [2] : vector<2x8x8xf32> to vector<2x8xf32>
    %121 = vector.shape_cast %120 : vector<2x8xf32> to vector<2x8x1xf32>
    %122 = vector.broadcast %121 : vector<2x8x1xf32> to vector<2x8x8xf32>
    %123 = arith.divf %119, %122 : vector<2x8x8xf32>
    "tpu.trace_start"() <{level = 10 : i32, message = "bqk,bkd->bqd"}> : () -> ()
    %cst_177 = arith.constant dense<0.000000e+00> : vector<2x8x8xf32>
    %124 = tpu.matmul %123, %111, %cst_177 {dimension_numbers = #tpu.dot_dimension_numbers<[2], [1], [1], [2], [0, 0, 0, 1, 1, 2], [0], [0]>} : vector<2x8x8xf32>, vector<2x8x8xf32>, vector<2x8x8xf32> -> vector<2x8x8xf32>
    "tpu.trace_stop"() : () -> ()
    %125 = vector.shape_cast %124 : vector<2x8x8xf32> to vector<16x8xf32>
    %126 = vector.extract_strided_slice %63 {offsets = [0, 24], sizes = [16, 8], strides = [1, 1]} : vector<16x32xf32> to vector<16x8xf32>
    %127 = vector.shape_cast %126 : vector<16x8xf32> to vector<2x8x8xf32>
    %128 = vector.extract_strided_slice %64 {offsets = [0, 24], sizes = [16, 8], strides = [1, 1]} : vector<16x32xf32> to vector<16x8xf32>
    %129 = vector.shape_cast %128 : vector<16x8xf32> to vector<2x8x8xf32>
    %130 = vector.extract_strided_slice %65 {offsets = [0, 24], sizes = [16, 8], strides = [1, 1]} : vector<16x32xf32> to vector<16x8xf32>
    %131 = vector.shape_cast %130 : vector<16x8xf32> to vector<2x8x8xf32>
    "tpu.trace_start"() <{level = 10 : i32, message = "bqd,bkd->bqk"}> : () -> ()
    %cst_178 = arith.constant dense<0.000000e+00> : vector<2x8x8xf32>
    %132 = tpu.matmul %127, %129, %cst_178 {dimension_numbers = #tpu.dot_dimension_numbers<[2], [2], [1], [1], [0, 0, 0, 1, 1, 1], [0], [0]>} : vector<2x8x8xf32>, vector<2x8x8xf32>, vector<2x8x8xf32> -> vector<2x8x8xf32>
    "tpu.trace_stop"() : () -> ()
    %cst_179 = arith.constant 0.353553385 : f32
    %133 = vector.broadcast %cst_179 : f32 to vector<2x8x8xf32>
    %134 = arith.mulf %132, %133 : vector<2x8x8xf32>
    %cst_180 = arith.constant dense<0xFF800000> : vector<2x8xf32>
    %135 = vector.multi_reduction <maximumf>, %134, %cst_180 [2] : vector<2x8x8xf32> to vector<2x8xf32>
    %136 = vector.shape_cast %135 : vector<2x8xf32> to vector<2x8x1xf32>
    %137 = vector.broadcast %136 : vector<2x8x1xf32> to vector<2x8x8xf32>
    %138 = arith.subf %134, %137 : vector<2x8x8xf32>
    %139 = math.exp %138 : vector<2x8x8xf32>
    %cst_181 = arith.constant dense<0.000000e+00> : vector<2x8xf32>
    %140 = vector.multi_reduction <add>, %139, %cst_181 [2] : vector<2x8x8xf32> to vector<2x8xf32>
    %141 = vector.shape_cast %140 : vector<2x8xf32> to vector<2x8x1xf32>
    %142 = vector.broadcast %141 : vector<2x8x1xf32> to vector<2x8x8xf32>
    %143 = arith.divf %139, %142 : vector<2x8x8xf32>
    "tpu.trace_start"() <{level = 10 : i32, message = "bqk,bkd->bqd"}> : () -> ()
    %cst_182 = arith.constant dense<0.000000e+00> : vector<2x8x8xf32>
    %144 = tpu.matmul %143, %131, %cst_182 {dimension_numbers = #tpu.dot_dimension_numbers<[2], [1], [1], [2], [0, 0, 0, 1, 1, 2], [0], [0]>} : vector<2x8x8xf32>, vector<2x8x8xf32>, vector<2x8x8xf32> -> vector<2x8x8xf32>
    "tpu.trace_stop"() : () -> ()
    %145 = vector.shape_cast %144 : vector<2x8x8xf32> to vector<16x8xf32>
    %146 = tpu.concatenate %85, %105, %125, %145 in 1 : vector<16x8xf32>, vector<16x8xf32>, vector<16x8xf32>, vector<16x8xf32> -> vector<16x32xf32>
    %147 = vector.shape_cast %17 : vector<1x1x32x32xf32> to vector<32x32xf32>
    %148 = vector.shape_cast %16 : vector<1x1x1x32xf32> to vector<1x32xf32>
    %cst_183 = arith.constant dense<0.000000e+00> : vector<16x32xf32>
    %149 = tpu.matmul %146, %147, %cst_183 {dimension_numbers = #tpu.dot_dimension_numbers<[1], [0], [0], [1], [0, 0, 1, 1], [], []>} : vector<16x32xf32>, vector<32x32xf32>, vector<16x32xf32> -> vector<16x32xf32>
    %150 = vector.broadcast %148 : vector<1x32xf32> to vector<16x32xf32>
    %151 = arith.addf %149, %150 : vector<16x32xf32>
    %152 = arith.addf %51, %151 : vector<16x32xf32>
    %153 = vector.shape_cast %13 : vector<1x1x1x32xf32> to vector<1x32xf32>
    %154 = vector.shape_cast %12 : vector<1x1x1x32xf32> to vector<1x32xf32>
    %cst_184 = arith.constant dense<0.000000e+00> : vector<16xf32>
    %155 = vector.multi_reduction <add>, %152, %cst_184 [1] : vector<16x32xf32> to vector<16xf32>
    %156 = vector.shape_cast %155 : vector<16xf32> to vector<16x1xf32>
    %cst_185 = arith.constant 3.200000e+01 : f32
    %157 = vector.broadcast %cst_185 : f32 to vector<16x1xf32>
    %158 = arith.divf %156, %157 : vector<16x1xf32>
    %159 = vector.broadcast %158 : vector<16x1xf32> to vector<16x32xf32>
    %160 = arith.subf %152, %159 : vector<16x32xf32>
    %161 = arith.mulf %160, %160 : vector<16x32xf32>
    %cst_186 = arith.constant dense<0.000000e+00> : vector<16xf32>
    %162 = vector.multi_reduction <add>, %161, %cst_186 [1] : vector<16x32xf32> to vector<16xf32>
    %163 = vector.shape_cast %162 : vector<16xf32> to vector<16x1xf32>
    %cst_187 = arith.constant 3.200000e+01 : f32
    %164 = vector.broadcast %cst_187 : f32 to vector<16x1xf32>
    %165 = arith.divf %163, %164 : vector<16x1xf32>
    %cst_188 = arith.constant 9.99999974E-6 : f32
    %166 = vector.broadcast %cst_188 : f32 to vector<16x1xf32>
    %167 = arith.addf %165, %166 : vector<16x1xf32>
    %168 = math.rsqrt %167 : vector<16x1xf32>
    %169 = vector.broadcast %168 : vector<16x1xf32> to vector<16x32xf32>
    %170 = arith.mulf %160, %169 : vector<16x32xf32>
    %171 = vector.broadcast %153 : vector<1x32xf32> to vector<16x32xf32>
    %172 = arith.mulf %170, %171 : vector<16x32xf32>
    %173 = vector.broadcast %154 : vector<1x32xf32> to vector<16x32xf32>
    %174 = arith.addf %172, %173 : vector<16x32xf32>
    %175 = vector.shape_cast %9 : vector<1x1x32x64xf32> to vector<32x64xf32>
    %176 = vector.shape_cast %8 : vector<1x1x1x64xf32> to vector<1x64xf32>
    %cst_189 = arith.constant dense<0.000000e+00> : vector<16x64xf32>
    %177 = tpu.matmul %174, %175, %cst_189 {dimension_numbers = #tpu.dot_dimension_numbers<[1], [0], [0], [1], [0, 0, 1, 1], [], []>} : vector<16x32xf32>, vector<32x64xf32>, vector<16x64xf32> -> vector<16x64xf32>
    %178 = vector.broadcast %176 : vector<1x64xf32> to vector<16x64xf32>
    %179 = arith.addf %177, %178 : vector<16x64xf32>
    %cst_190 = arith.constant 0.000000e+00 : f32
    %180 = vector.broadcast %cst_190 : f32 to vector<16x64xf32>
    %181 = arith.maximumf %179, %180 : vector<16x64xf32>
    %182 = vector.shape_cast %11 : vector<1x1x64x32xf32> to vector<64x32xf32>
    %183 = vector.shape_cast %10 : vector<1x1x1x32xf32> to vector<1x32xf32>
    %cst_191 = arith.constant dense<0.000000e+00> : vector<16x32xf32>
    %184 = tpu.matmul %181, %182, %cst_191 {dimension_numbers = #tpu.dot_dimension_numbers<[1], [0], [0], [1], [0, 0, 1, 1], [], []>} : vector<16x64xf32>, vector<64x32xf32>, vector<16x32xf32> -> vector<16x32xf32>
    %185 = vector.broadcast %183 : vector<1x32xf32> to vector<16x32xf32>
    %186 = arith.addf %184, %185 : vector<16x32xf32>
    %187 = arith.addf %174, %186 : vector<16x32xf32>
    %188 = vector.shape_cast %15 : vector<1x1x1x32xf32> to vector<1x32xf32>
    %189 = vector.shape_cast %14 : vector<1x1x1x32xf32> to vector<1x32xf32>
    %cst_192 = arith.constant dense<0.000000e+00> : vector<16xf32>
    %190 = vector.multi_reduction <add>, %187, %cst_192 [1] : vector<16x32xf32> to vector<16xf32>
    %191 = vector.shape_cast %190 : vector<16xf32> to vector<16x1xf32>
    %cst_193 = arith.constant 3.200000e+01 : f32
    %192 = vector.broadcast %cst_193 : f32 to vector<16x1xf32>
    %193 = arith.divf %191, %192 : vector<16x1xf32>
    %194 = vector.broadcast %193 : vector<16x1xf32> to vector<16x32xf32>
    %195 = arith.subf %187, %194 : vector<16x32xf32>
    %196 = arith.mulf %195, %195 : vector<16x32xf32>
    %cst_194 = arith.constant dense<0.000000e+00> : vector<16xf32>
    %197 = vector.multi_reduction <add>, %196, %cst_194 [1] : vector<16x32xf32> to vector<16xf32>
    %198 = vector.shape_cast %197 : vector<16xf32> to vector<16x1xf32>
    %cst_195 = arith.constant 3.200000e+01 : f32
    %199 = vector.broadcast %cst_195 : f32 to vector<16x1xf32>
    %200 = arith.divf %198, %199 : vector<16x1xf32>
    %cst_196 = arith.constant 9.99999974E-6 : f32
    %201 = vector.broadcast %cst_196 : f32 to vector<16x1xf32>
    %202 = arith.addf %200, %201 : vector<16x1xf32>
    %203 = math.rsqrt %202 : vector<16x1xf32>
    %204 = vector.broadcast %203 : vector<16x1xf32> to vector<16x32xf32>
    %205 = arith.mulf %195, %204 : vector<16x32xf32>
    %206 = vector.broadcast %188 : vector<1x32xf32> to vector<16x32xf32>
    %207 = arith.mulf %205, %206 : vector<16x32xf32>
    %208 = vector.broadcast %189 : vector<1x32xf32> to vector<16x32xf32>
    %209 = arith.addf %207, %208 : vector<16x32xf32>
    %210 = vector.shape_cast %20 : vector<1x4x8xf32> to vector<4x8xf32>
    %211 = vector.shape_cast %21 : vector<1x4x1xf32> to vector<4x1xf32>
    %212 = vector.extract_strided_slice %209 {offsets = [0, 0], sizes = [8, 32], strides = [1, 1]} : vector<16x32xf32> to vector<8x32xf32>
    %cst_197 = arith.constant dense<0.000000e+00> : vector<4x32xf32>
    %213 = tpu.matmul %210, %212, %cst_197 {dimension_numbers = #tpu.dot_dimension_numbers<[1], [0], [0], [1], [0, 0, 1, 1], [], []>} : vector<4x8xf32>, vector<8x32xf32>, vector<4x32xf32> -> vector<4x32xf32>
    %214 = vector.broadcast %211 : vector<4x1xf32> to vector<4x32xf32>
    %215 = arith.addf %213, %214 : vector<4x32xf32>
    %216 = vector.extract_strided_slice %209 {offsets = [8, 0], sizes = [8, 32], strides = [1, 1]} : vector<16x32xf32> to vector<8x32xf32>
    %cst_198 = arith.constant dense<0.000000e+00> : vector<4x32xf32>
    %217 = tpu.matmul %210, %216, %cst_198 {dimension_numbers = #tpu.dot_dimension_numbers<[1], [0], [0], [1], [0, 0, 1, 1], [], []>} : vector<4x8xf32>, vector<8x32xf32>, vector<4x32xf32> -> vector<4x32xf32>
    %218 = vector.broadcast %211 : vector<4x1xf32> to vector<4x32xf32>
    %219 = arith.addf %217, %218 : vector<4x32xf32>
    %220 = tpu.concatenate %215, %219 in 0 : vector<4x32xf32>, vector<4x32xf32> -> vector<8x32xf32>
    %221 = tpu.iota {dimensions = array<i32: 0>} : vector<4x4xi32>
    %222 = tpu.iota {dimensions = array<i32: 1>} : vector<4x4xi32>
    %223 = arith.cmpi sgt, %222, %221 : vector<4x4xi32>
    %224 = arith.extui %223 : vector<4x4xi1> to vector<4x4xi32>
    %225 = arith.sitofp %224 : vector<4x4xi32> to vector<4x4xf32>
    %cst_199 = arith.constant -1.000000e+30 : f32
    %226 = vector.broadcast %cst_199 : f32 to vector<4x4xf32>
    %227 = arith.mulf %225, %226 : vector<4x4xf32>
    %228 = vector.shape_cast %41 : vector<1x1x32x96xf32> to vector<32x96xf32>
    %229 = vector.shape_cast %40 : vector<1x1x1x96xf32> to vector<1x96xf32>
    %cst_200 = arith.constant dense<0.000000e+00> : vector<8x96xf32>
    %230 = tpu.matmul %57, %228, %cst_200 {dimension_numbers = #tpu.dot_dimension_numbers<[1], [0], [0], [1], [0, 0, 1, 1], [], []>} : vector<8x32xf32>, vector<32x96xf32>, vector<8x96xf32> -> vector<8x96xf32>
    %231 = vector.broadcast %229 : vector<1x96xf32> to vector<8x96xf32>
    %232 = arith.addf %230, %231 : vector<8x96xf32>
    %233 = vector.extract_strided_slice %232 {offsets = [0, 0], sizes = [8, 32], strides = [1, 1]} : vector<8x96xf32> to vector<8x32xf32>
    %234 = vector.extract_strided_slice %232 {offsets = [0, 32], sizes = [8, 32], strides = [1, 1]} : vector<8x96xf32> to vector<8x32xf32>
    %235 = vector.extract_strided_slice %232 {offsets = [0, 64], sizes = [8, 32], strides = [1, 1]} : vector<8x96xf32> to vector<8x32xf32>
    %236 = vector.extract_strided_slice %233 {offsets = [0, 0], sizes = [8, 8], strides = [1, 1]} : vector<8x32xf32> to vector<8x8xf32>
    %237 = vector.shape_cast %236 : vector<8x8xf32> to vector<2x4x8xf32>
    %238 = vector.extract_strided_slice %234 {offsets = [0, 0], sizes = [8, 8], strides = [1, 1]} : vector<8x32xf32> to vector<8x8xf32>
    %239 = vector.shape_cast %238 : vector<8x8xf32> to vector<2x4x8xf32>
    %240 = vector.extract_strided_slice %235 {offsets = [0, 0], sizes = [8, 8], strides = [1, 1]} : vector<8x32xf32> to vector<8x8xf32>
    %241 = vector.shape_cast %240 : vector<8x8xf32> to vector<2x4x8xf32>
    "tpu.trace_start"() <{level = 10 : i32, message = "bqd,bkd->bqk"}> : () -> ()
    %cst_201 = arith.constant dense<0.000000e+00> : vector<2x4x4xf32>
    %242 = tpu.matmul %237, %239, %cst_201 {dimension_numbers = #tpu.dot_dimension_numbers<[2], [2], [1], [1], [0, 0, 0, 1, 1, 1], [0], [0]>} : vector<2x4x8xf32>, vector<2x4x8xf32>, vector<2x4x4xf32> -> vector<2x4x4xf32>
    "tpu.trace_stop"() : () -> ()
    %cst_202 = arith.constant 0.353553385 : f32
    %243 = vector.broadcast %cst_202 : f32 to vector<2x4x4xf32>
    %244 = arith.mulf %242, %243 : vector<2x4x4xf32>
    %245 = vector.shape_cast %227 : vector<4x4xf32> to vector<1x4x4xf32>
    %246 = vector.broadcast %245 : vector<1x4x4xf32> to vector<2x4x4xf32>
    %247 = arith.addf %244, %246 : vector<2x4x4xf32>
    %cst_203 = arith.constant dense<0xFF800000> : vector<2x4xf32>
    %248 = vector.multi_reduction <maximumf>, %247, %cst_203 [2] : vector<2x4x4xf32> to vector<2x4xf32>
    %249 = vector.shape_cast %248 : vector<2x4xf32> to vector<2x4x1xf32>
    %250 = vector.broadcast %249 : vector<2x4x1xf32> to vector<2x4x4xf32>
    %251 = arith.subf %247, %250 : vector<2x4x4xf32>
    %252 = math.exp %251 : vector<2x4x4xf32>
    %cst_204 = arith.constant dense<0.000000e+00> : vector<2x4xf32>
    %253 = vector.multi_reduction <add>, %252, %cst_204 [2] : vector<2x4x4xf32> to vector<2x4xf32>
    %254 = vector.shape_cast %253 : vector<2x4xf32> to vector<2x4x1xf32>
    %255 = vector.broadcast %254 : vector<2x4x1xf32> to vector<2x4x4xf32>
    %256 = arith.divf %252, %255 : vector<2x4x4xf32>
    "tpu.trace_start"() <{level = 10 : i32, message = "bqk,bkd->bqd"}> : () -> ()
    %cst_205 = arith.constant dense<0.000000e+00> : vector<2x4x8xf32>
    %257 = tpu.matmul %256, %241, %cst_205 {dimension_numbers = #tpu.dot_dimension_numbers<[2], [1], [1], [2], [0, 0, 0, 1, 1, 2], [0], [0]>} : vector<2x4x4xf32>, vector<2x4x8xf32>, vector<2x4x8xf32> -> vector<2x4x8xf32>
    "tpu.trace_stop"() : () -> ()
    %258 = vector.shape_cast %257 : vector<2x4x8xf32> to vector<8x8xf32>
    %259 = vector.extract_strided_slice %233 {offsets = [0, 8], sizes = [8, 8], strides = [1, 1]} : vector<8x32xf32> to vector<8x8xf32>
    %260 = vector.shape_cast %259 : vector<8x8xf32> to vector<2x4x8xf32>
    %261 = vector.extract_strided_slice %234 {offsets = [0, 8], sizes = [8, 8], strides = [1, 1]} : vector<8x32xf32> to vector<8x8xf32>
    %262 = vector.shape_cast %261 : vector<8x8xf32> to vector<2x4x8xf32>
    %263 = vector.extract_strided_slice %235 {offsets = [0, 8], sizes = [8, 8], strides = [1, 1]} : vector<8x32xf32> to vector<8x8xf32>
    %264 = vector.shape_cast %263 : vector<8x8xf32> to vector<2x4x8xf32>
    "tpu.trace_start"() <{level = 10 : i32, message = "bqd,bkd->bqk"}> : () -> ()
    %cst_206 = arith.constant dense<0.000000e+00> : vector<2x4x4xf32>
    %265 = tpu.matmul %260, %262, %cst_206 {dimension_numbers = #tpu.dot_dimension_numbers<[2], [2], [1], [1], [0, 0, 0, 1, 1, 1], [0], [0]>} : vector<2x4x8xf32>, vector<2x4x8xf32>, vector<2x4x4xf32> -> vector<2x4x4xf32>
    "tpu.trace_stop"() : () -> ()
    %cst_207 = arith.constant 0.353553385 : f32
    %266 = vector.broadcast %cst_207 : f32 to vector<2x4x4xf32>
    %267 = arith.mulf %265, %266 : vector<2x4x4xf32>
    %268 = vector.shape_cast %227 : vector<4x4xf32> to vector<1x4x4xf32>
    %269 = vector.broadcast %268 : vector<1x4x4xf32> to vector<2x4x4xf32>
    %270 = arith.addf %267, %269 : vector<2x4x4xf32>
    %cst_208 = arith.constant dense<0xFF800000> : vector<2x4xf32>
    %271 = vector.multi_reduction <maximumf>, %270, %cst_208 [2] : vector<2x4x4xf32> to vector<2x4xf32>
    %272 = vector.shape_cast %271 : vector<2x4xf32> to vector<2x4x1xf32>
    %273 = vector.broadcast %272 : vector<2x4x1xf32> to vector<2x4x4xf32>
    %274 = arith.subf %270, %273 : vector<2x4x4xf32>
    %275 = math.exp %274 : vector<2x4x4xf32>
    %cst_209 = arith.constant dense<0.000000e+00> : vector<2x4xf32>
    %276 = vector.multi_reduction <add>, %275, %cst_209 [2] : vector<2x4x4xf32> to vector<2x4xf32>
    %277 = vector.shape_cast %276 : vector<2x4xf32> to vector<2x4x1xf32>
    %278 = vector.broadcast %277 : vector<2x4x1xf32> to vector<2x4x4xf32>
    %279 = arith.divf %275, %278 : vector<2x4x4xf32>
    "tpu.trace_start"() <{level = 10 : i32, message = "bqk,bkd->bqd"}> : () -> ()
    %cst_210 = arith.constant dense<0.000000e+00> : vector<2x4x8xf32>
    %280 = tpu.matmul %279, %264, %cst_210 {dimension_numbers = #tpu.dot_dimension_numbers<[2], [1], [1], [2], [0, 0, 0, 1, 1, 2], [0], [0]>} : vector<2x4x4xf32>, vector<2x4x8xf32>, vector<2x4x8xf32> -> vector<2x4x8xf32>
    "tpu.trace_stop"() : () -> ()
    %281 = vector.shape_cast %280 : vector<2x4x8xf32> to vector<8x8xf32>
    %282 = vector.extract_strided_slice %233 {offsets = [0, 16], sizes = [8, 8], strides = [1, 1]} : vector<8x32xf32> to vector<8x8xf32>
    %283 = vector.shape_cast %282 : vector<8x8xf32> to vector<2x4x8xf32>
    %284 = vector.extract_strided_slice %234 {offsets = [0, 16], sizes = [8, 8], strides = [1, 1]} : vector<8x32xf32> to vector<8x8xf32>
    %285 = vector.shape_cast %284 : vector<8x8xf32> to vector<2x4x8xf32>
    %286 = vector.extract_strided_slice %235 {offsets = [0, 16], sizes = [8, 8], strides = [1, 1]} : vector<8x32xf32> to vector<8x8xf32>
    %287 = vector.shape_cast %286 : vector<8x8xf32> to vector<2x4x8xf32>
    "tpu.trace_start"() <{level = 10 : i32, message = "bqd,bkd->bqk"}> : () -> ()
    %cst_211 = arith.constant dense<0.000000e+00> : vector<2x4x4xf32>
    %288 = tpu.matmul %283, %285, %cst_211 {dimension_numbers = #tpu.dot_dimension_numbers<[2], [2], [1], [1], [0, 0, 0, 1, 1, 1], [0], [0]>} : vector<2x4x8xf32>, vector<2x4x8xf32>, vector<2x4x4xf32> -> vector<2x4x4xf32>
    "tpu.trace_stop"() : () -> ()
    %cst_212 = arith.constant 0.353553385 : f32
    %289 = vector.broadcast %cst_212 : f32 to vector<2x4x4xf32>
    %290 = arith.mulf %288, %289 : vector<2x4x4xf32>
    %291 = vector.shape_cast %227 : vector<4x4xf32> to vector<1x4x4xf32>
    %292 = vector.broadcast %291 : vector<1x4x4xf32> to vector<2x4x4xf32>
    %293 = arith.addf %290, %292 : vector<2x4x4xf32>
    %cst_213 = arith.constant dense<0xFF800000> : vector<2x4xf32>
    %294 = vector.multi_reduction <maximumf>, %293, %cst_213 [2] : vector<2x4x4xf32> to vector<2x4xf32>
    %295 = vector.shape_cast %294 : vector<2x4xf32> to vector<2x4x1xf32>
    %296 = vector.broadcast %295 : vector<2x4x1xf32> to vector<2x4x4xf32>
    %297 = arith.subf %293, %296 : vector<2x4x4xf32>
    %298 = math.exp %297 : vector<2x4x4xf32>
    %cst_214 = arith.constant dense<0.000000e+00> : vector<2x4xf32>
    %299 = vector.multi_reduction <add>, %298, %cst_214 [2] : vector<2x4x4xf32> to vector<2x4xf32>
    %300 = vector.shape_cast %299 : vector<2x4xf32> to vector<2x4x1xf32>
    %301 = vector.broadcast %300 : vector<2x4x1xf32> to vector<2x4x4xf32>
    %302 = arith.divf %298, %301 : vector<2x4x4xf32>
    "tpu.trace_start"() <{level = 10 : i32, message = "bqk,bkd->bqd"}> : () -> ()
    %cst_215 = arith.constant dense<0.000000e+00> : vector<2x4x8xf32>
    %303 = tpu.matmul %302, %287, %cst_215 {dimension_numbers = #tpu.dot_dimension_numbers<[2], [1], [1], [2], [0, 0, 0, 1, 1, 2], [0], [0]>} : vector<2x4x4xf32>, vector<2x4x8xf32>, vector<2x4x8xf32> -> vector<2x4x8xf32>
    "tpu.trace_stop"() : () -> ()
    %304 = vector.shape_cast %303 : vector<2x4x8xf32> to vector<8x8xf32>
    %305 = vector.extract_strided_slice %233 {offsets = [0, 24], sizes = [8, 8], strides = [1, 1]} : vector<8x32xf32> to vector<8x8xf32>
    %306 = vector.shape_cast %305 : vector<8x8xf32> to vector<2x4x8xf32>
    %307 = vector.extract_strided_slice %234 {offsets = [0, 24], sizes = [8, 8], strides = [1, 1]} : vector<8x32xf32> to vector<8x8xf32>
    %308 = vector.shape_cast %307 : vector<8x8xf32> to vector<2x4x8xf32>
    %309 = vector.extract_strided_slice %235 {offsets = [0, 24], sizes = [8, 8], strides = [1, 1]} : vector<8x32xf32> to vector<8x8xf32>
    %310 = vector.shape_cast %309 : vector<8x8xf32> to vector<2x4x8xf32>
    "tpu.trace_start"() <{level = 10 : i32, message = "bqd,bkd->bqk"}> : () -> ()
    %cst_216 = arith.constant dense<0.000000e+00> : vector<2x4x4xf32>
    %311 = tpu.matmul %306, %308, %cst_216 {dimension_numbers = #tpu.dot_dimension_numbers<[2], [2], [1], [1], [0, 0, 0, 1, 1, 1], [0], [0]>} : vector<2x4x8xf32>, vector<2x4x8xf32>, vector<2x4x4xf32> -> vector<2x4x4xf32>
    "tpu.trace_stop"() : () -> ()
    %cst_217 = arith.constant 0.353553385 : f32
    %312 = vector.broadcast %cst_217 : f32 to vector<2x4x4xf32>
    %313 = arith.mulf %311, %312 : vector<2x4x4xf32>
    %314 = vector.shape_cast %227 : vector<4x4xf32> to vector<1x4x4xf32>
    %315 = vector.broadcast %314 : vector<1x4x4xf32> to vector<2x4x4xf32>
    %316 = arith.addf %313, %315 : vector<2x4x4xf32>
    %cst_218 = arith.constant dense<0xFF800000> : vector<2x4xf32>
    %317 = vector.multi_reduction <maximumf>, %316, %cst_218 [2] : vector<2x4x4xf32> to vector<2x4xf32>
    %318 = vector.shape_cast %317 : vector<2x4xf32> to vector<2x4x1xf32>
    %319 = vector.broadcast %318 : vector<2x4x1xf32> to vector<2x4x4xf32>
    %320 = arith.subf %316, %319 : vector<2x4x4xf32>
    %321 = math.exp %320 : vector<2x4x4xf32>
    %cst_219 = arith.constant dense<0.000000e+00> : vector<2x4xf32>
    %322 = vector.multi_reduction <add>, %321, %cst_219 [2] : vector<2x4x4xf32> to vector<2x4xf32>
    %323 = vector.shape_cast %322 : vector<2x4xf32> to vector<2x4x1xf32>
    %324 = vector.broadcast %323 : vector<2x4x1xf32> to vector<2x4x4xf32>
    %325 = arith.divf %321, %324 : vector<2x4x4xf32>
    "tpu.trace_start"() <{level = 10 : i32, message = "bqk,bkd->bqd"}> : () -> ()
    %cst_220 = arith.constant dense<0.000000e+00> : vector<2x4x8xf32>
    %326 = tpu.matmul %325, %310, %cst_220 {dimension_numbers = #tpu.dot_dimension_numbers<[2], [1], [1], [2], [0, 0, 0, 1, 1, 2], [0], [0]>} : vector<2x4x4xf32>, vector<2x4x8xf32>, vector<2x4x8xf32> -> vector<2x4x8xf32>
    "tpu.trace_stop"() : () -> ()
    %327 = vector.shape_cast %326 : vector<2x4x8xf32> to vector<8x8xf32>
    %328 = tpu.concatenate %258, %281, %304, %327 in 1 : vector<8x8xf32>, vector<8x8xf32>, vector<8x8xf32>, vector<8x8xf32> -> vector<8x32xf32>
    %329 = vector.shape_cast %39 : vector<1x1x32x32xf32> to vector<32x32xf32>
    %330 = vector.shape_cast %38 : vector<1x1x1x32xf32> to vector<1x32xf32>
    %cst_221 = arith.constant dense<0.000000e+00> : vector<8x32xf32>
    %331 = tpu.matmul %328, %329, %cst_221 {dimension_numbers = #tpu.dot_dimension_numbers<[1], [0], [0], [1], [0, 0, 1, 1], [], []>} : vector<8x32xf32>, vector<32x32xf32>, vector<8x32xf32> -> vector<8x32xf32>
    %332 = vector.broadcast %330 : vector<1x32xf32> to vector<8x32xf32>
    %333 = arith.addf %331, %332 : vector<8x32xf32>
    %334 = arith.addf %57, %333 : vector<8x32xf32>
    %335 = vector.shape_cast %33 : vector<1x1x1x32xf32> to vector<1x32xf32>
    %336 = vector.shape_cast %32 : vector<1x1x1x32xf32> to vector<1x32xf32>
    %cst_222 = arith.constant dense<0.000000e+00> : vector<8xf32>
    %337 = vector.multi_reduction <add>, %334, %cst_222 [1] : vector<8x32xf32> to vector<8xf32>
    %338 = vector.shape_cast %337 : vector<8xf32> to vector<8x1xf32>
    %cst_223 = arith.constant 3.200000e+01 : f32
    %339 = vector.broadcast %cst_223 : f32 to vector<8x1xf32>
    %340 = arith.divf %338, %339 : vector<8x1xf32>
    %341 = vector.broadcast %340 : vector<8x1xf32> to vector<8x32xf32>
    %342 = arith.subf %334, %341 : vector<8x32xf32>
    %343 = arith.mulf %342, %342 : vector<8x32xf32>
    %cst_224 = arith.constant dense<0.000000e+00> : vector<8xf32>
    %344 = vector.multi_reduction <add>, %343, %cst_224 [1] : vector<8x32xf32> to vector<8xf32>
    %345 = vector.shape_cast %344 : vector<8xf32> to vector<8x1xf32>
    %cst_225 = arith.constant 3.200000e+01 : f32
    %346 = vector.broadcast %cst_225 : f32 to vector<8x1xf32>
    %347 = arith.divf %345, %346 : vector<8x1xf32>
    %cst_226 = arith.constant 9.99999974E-6 : f32
    %348 = vector.broadcast %cst_226 : f32 to vector<8x1xf32>
    %349 = arith.addf %347, %348 : vector<8x1xf32>
    %350 = math.rsqrt %349 : vector<8x1xf32>
    %351 = vector.broadcast %350 : vector<8x1xf32> to vector<8x32xf32>
    %352 = arith.mulf %342, %351 : vector<8x32xf32>
    %353 = vector.broadcast %335 : vector<1x32xf32> to vector<8x32xf32>
    %354 = arith.mulf %352, %353 : vector<8x32xf32>
    %355 = vector.broadcast %336 : vector<1x32xf32> to vector<8x32xf32>
    %356 = arith.addf %354, %355 : vector<8x32xf32>
    %357 = vector.shape_cast %27 : vector<1x1x32x32xf32> to vector<32x32xf32>
    %358 = vector.shape_cast %26 : vector<1x1x1x32xf32> to vector<1x32xf32>
    %cst_227 = arith.constant dense<0.000000e+00> : vector<8x32xf32>
    %359 = tpu.matmul %356, %357, %cst_227 {dimension_numbers = #tpu.dot_dimension_numbers<[1], [0], [0], [1], [0, 0, 1, 1], [], []>} : vector<8x32xf32>, vector<32x32xf32>, vector<8x32xf32> -> vector<8x32xf32>
    %360 = vector.broadcast %358 : vector<1x32xf32> to vector<8x32xf32>
    %361 = arith.addf %359, %360 : vector<8x32xf32>
    %362 = vector.shape_cast %23 : vector<1x1x32x64xf32> to vector<32x64xf32>
    %363 = vector.shape_cast %22 : vector<1x1x1x64xf32> to vector<1x64xf32>
    %cst_228 = arith.constant dense<0.000000e+00> : vector<8x64xf32>
    %364 = tpu.matmul %220, %362, %cst_228 {dimension_numbers = #tpu.dot_dimension_numbers<[1], [0], [0], [1], [0, 0, 1, 1], [], []>} : vector<8x32xf32>, vector<32x64xf32>, vector<8x64xf32> -> vector<8x64xf32>
    %365 = vector.broadcast %363 : vector<1x64xf32> to vector<8x64xf32>
    %366 = arith.addf %364, %365 : vector<8x64xf32>
    %367 = vector.extract_strided_slice %366 {offsets = [0, 0], sizes = [8, 32], strides = [1, 1]} : vector<8x64xf32> to vector<8x32xf32>
    %368 = vector.extract_strided_slice %366 {offsets = [0, 32], sizes = [8, 32], strides = [1, 1]} : vector<8x64xf32> to vector<8x32xf32>
    %369 = vector.extract_strided_slice %361 {offsets = [0, 0], sizes = [8, 8], strides = [1, 1]} : vector<8x32xf32> to vector<8x8xf32>
    %370 = vector.shape_cast %369 : vector<8x8xf32> to vector<2x4x8xf32>
    %371 = vector.extract_strided_slice %367 {offsets = [0, 0], sizes = [8, 8], strides = [1, 1]} : vector<8x32xf32> to vector<8x8xf32>
    %372 = vector.shape_cast %371 : vector<8x8xf32> to vector<2x4x8xf32>
    %373 = vector.extract_strided_slice %368 {offsets = [0, 0], sizes = [8, 8], strides = [1, 1]} : vector<8x32xf32> to vector<8x8xf32>
    %374 = vector.shape_cast %373 : vector<8x8xf32> to vector<2x4x8xf32>
    "tpu.trace_start"() <{level = 10 : i32, message = "bqd,bkd->bqk"}> : () -> ()
    %cst_229 = arith.constant dense<0.000000e+00> : vector<2x4x4xf32>
    %375 = tpu.matmul %370, %372, %cst_229 {dimension_numbers = #tpu.dot_dimension_numbers<[2], [2], [1], [1], [0, 0, 0, 1, 1, 1], [0], [0]>} : vector<2x4x8xf32>, vector<2x4x8xf32>, vector<2x4x4xf32> -> vector<2x4x4xf32>
    "tpu.trace_stop"() : () -> ()
    %cst_230 = arith.constant 0.353553385 : f32
    %376 = vector.broadcast %cst_230 : f32 to vector<2x4x4xf32>
    %377 = arith.mulf %375, %376 : vector<2x4x4xf32>
    %cst_231 = arith.constant dense<0xFF800000> : vector<2x4xf32>
    %378 = vector.multi_reduction <maximumf>, %377, %cst_231 [2] : vector<2x4x4xf32> to vector<2x4xf32>
    %379 = vector.shape_cast %378 : vector<2x4xf32> to vector<2x4x1xf32>
    %380 = vector.broadcast %379 : vector<2x4x1xf32> to vector<2x4x4xf32>
    %381 = arith.subf %377, %380 : vector<2x4x4xf32>
    %382 = math.exp %381 : vector<2x4x4xf32>
    %cst_232 = arith.constant dense<0.000000e+00> : vector<2x4xf32>
    %383 = vector.multi_reduction <add>, %382, %cst_232 [2] : vector<2x4x4xf32> to vector<2x4xf32>
    %384 = vector.shape_cast %383 : vector<2x4xf32> to vector<2x4x1xf32>
    %385 = vector.broadcast %384 : vector<2x4x1xf32> to vector<2x4x4xf32>
    %386 = arith.divf %382, %385 : vector<2x4x4xf32>
    "tpu.trace_start"() <{level = 10 : i32, message = "bqk,bkd->bqd"}> : () -> ()
    %cst_233 = arith.constant dense<0.000000e+00> : vector<2x4x8xf32>
    %387 = tpu.matmul %386, %374, %cst_233 {dimension_numbers = #tpu.dot_dimension_numbers<[2], [1], [1], [2], [0, 0, 0, 1, 1, 2], [0], [0]>} : vector<2x4x4xf32>, vector<2x4x8xf32>, vector<2x4x8xf32> -> vector<2x4x8xf32>
    "tpu.trace_stop"() : () -> ()
    %388 = vector.shape_cast %387 : vector<2x4x8xf32> to vector<8x8xf32>
    %389 = vector.extract_strided_slice %361 {offsets = [0, 8], sizes = [8, 8], strides = [1, 1]} : vector<8x32xf32> to vector<8x8xf32>
    %390 = vector.shape_cast %389 : vector<8x8xf32> to vector<2x4x8xf32>
    %391 = vector.extract_strided_slice %367 {offsets = [0, 8], sizes = [8, 8], strides = [1, 1]} : vector<8x32xf32> to vector<8x8xf32>
    %392 = vector.shape_cast %391 : vector<8x8xf32> to vector<2x4x8xf32>
    %393 = vector.extract_strided_slice %368 {offsets = [0, 8], sizes = [8, 8], strides = [1, 1]} : vector<8x32xf32> to vector<8x8xf32>
    %394 = vector.shape_cast %393 : vector<8x8xf32> to vector<2x4x8xf32>
    "tpu.trace_start"() <{level = 10 : i32, message = "bqd,bkd->bqk"}> : () -> ()
    %cst_234 = arith.constant dense<0.000000e+00> : vector<2x4x4xf32>
    %395 = tpu.matmul %390, %392, %cst_234 {dimension_numbers = #tpu.dot_dimension_numbers<[2], [2], [1], [1], [0, 0, 0, 1, 1, 1], [0], [0]>} : vector<2x4x8xf32>, vector<2x4x8xf32>, vector<2x4x4xf32> -> vector<2x4x4xf32>
    "tpu.trace_stop"() : () -> ()
    %cst_235 = arith.constant 0.353553385 : f32
    %396 = vector.broadcast %cst_235 : f32 to vector<2x4x4xf32>
    %397 = arith.mulf %395, %396 : vector<2x4x4xf32>
    %cst_236 = arith.constant dense<0xFF800000> : vector<2x4xf32>
    %398 = vector.multi_reduction <maximumf>, %397, %cst_236 [2] : vector<2x4x4xf32> to vector<2x4xf32>
    %399 = vector.shape_cast %398 : vector<2x4xf32> to vector<2x4x1xf32>
    %400 = vector.broadcast %399 : vector<2x4x1xf32> to vector<2x4x4xf32>
    %401 = arith.subf %397, %400 : vector<2x4x4xf32>
    %402 = math.exp %401 : vector<2x4x4xf32>
    %cst_237 = arith.constant dense<0.000000e+00> : vector<2x4xf32>
    %403 = vector.multi_reduction <add>, %402, %cst_237 [2] : vector<2x4x4xf32> to vector<2x4xf32>
    %404 = vector.shape_cast %403 : vector<2x4xf32> to vector<2x4x1xf32>
    %405 = vector.broadcast %404 : vector<2x4x1xf32> to vector<2x4x4xf32>
    %406 = arith.divf %402, %405 : vector<2x4x4xf32>
    "tpu.trace_start"() <{level = 10 : i32, message = "bqk,bkd->bqd"}> : () -> ()
    %cst_238 = arith.constant dense<0.000000e+00> : vector<2x4x8xf32>
    %407 = tpu.matmul %406, %394, %cst_238 {dimension_numbers = #tpu.dot_dimension_numbers<[2], [1], [1], [2], [0, 0, 0, 1, 1, 2], [0], [0]>} : vector<2x4x4xf32>, vector<2x4x8xf32>, vector<2x4x8xf32> -> vector<2x4x8xf32>
    "tpu.trace_stop"() : () -> ()
    %408 = vector.shape_cast %407 : vector<2x4x8xf32> to vector<8x8xf32>
    %409 = vector.extract_strided_slice %361 {offsets = [0, 16], sizes = [8, 8], strides = [1, 1]} : vector<8x32xf32> to vector<8x8xf32>
    %410 = vector.shape_cast %409 : vector<8x8xf32> to vector<2x4x8xf32>
    %411 = vector.extract_strided_slice %367 {offsets = [0, 16], sizes = [8, 8], strides = [1, 1]} : vector<8x32xf32> to vector<8x8xf32>
    %412 = vector.shape_cast %411 : vector<8x8xf32> to vector<2x4x8xf32>
    %413 = vector.extract_strided_slice %368 {offsets = [0, 16], sizes = [8, 8], strides = [1, 1]} : vector<8x32xf32> to vector<8x8xf32>
    %414 = vector.shape_cast %413 : vector<8x8xf32> to vector<2x4x8xf32>
    "tpu.trace_start"() <{level = 10 : i32, message = "bqd,bkd->bqk"}> : () -> ()
    %cst_239 = arith.constant dense<0.000000e+00> : vector<2x4x4xf32>
    %415 = tpu.matmul %410, %412, %cst_239 {dimension_numbers = #tpu.dot_dimension_numbers<[2], [2], [1], [1], [0, 0, 0, 1, 1, 1], [0], [0]>} : vector<2x4x8xf32>, vector<2x4x8xf32>, vector<2x4x4xf32> -> vector<2x4x4xf32>
    "tpu.trace_stop"() : () -> ()
    %cst_240 = arith.constant 0.353553385 : f32
    %416 = vector.broadcast %cst_240 : f32 to vector<2x4x4xf32>
    %417 = arith.mulf %415, %416 : vector<2x4x4xf32>
    %cst_241 = arith.constant dense<0xFF800000> : vector<2x4xf32>
    %418 = vector.multi_reduction <maximumf>, %417, %cst_241 [2] : vector<2x4x4xf32> to vector<2x4xf32>
    %419 = vector.shape_cast %418 : vector<2x4xf32> to vector<2x4x1xf32>
    %420 = vector.broadcast %419 : vector<2x4x1xf32> to vector<2x4x4xf32>
    %421 = arith.subf %417, %420 : vector<2x4x4xf32>
    %422 = math.exp %421 : vector<2x4x4xf32>
    %cst_242 = arith.constant dense<0.000000e+00> : vector<2x4xf32>
    %423 = vector.multi_reduction <add>, %422, %cst_242 [2] : vector<2x4x4xf32> to vector<2x4xf32>
    %424 = vector.shape_cast %423 : vector<2x4xf32> to vector<2x4x1xf32>
    %425 = vector.broadcast %424 : vector<2x4x1xf32> to vector<2x4x4xf32>
    %426 = arith.divf %422, %425 : vector<2x4x4xf32>
    "tpu.trace_start"() <{level = 10 : i32, message = "bqk,bkd->bqd"}> : () -> ()
    %cst_243 = arith.constant dense<0.000000e+00> : vector<2x4x8xf32>
    %427 = tpu.matmul %426, %414, %cst_243 {dimension_numbers = #tpu.dot_dimension_numbers<[2], [1], [1], [2], [0, 0, 0, 1, 1, 2], [0], [0]>} : vector<2x4x4xf32>, vector<2x4x8xf32>, vector<2x4x8xf32> -> vector<2x4x8xf32>
    "tpu.trace_stop"() : () -> ()
    %428 = vector.shape_cast %427 : vector<2x4x8xf32> to vector<8x8xf32>
    %429 = vector.extract_strided_slice %361 {offsets = [0, 24], sizes = [8, 8], strides = [1, 1]} : vector<8x32xf32> to vector<8x8xf32>
    %430 = vector.shape_cast %429 : vector<8x8xf32> to vector<2x4x8xf32>
    %431 = vector.extract_strided_slice %367 {offsets = [0, 24], sizes = [8, 8], strides = [1, 1]} : vector<8x32xf32> to vector<8x8xf32>
    %432 = vector.shape_cast %431 : vector<8x8xf32> to vector<2x4x8xf32>
    %433 = vector.extract_strided_slice %368 {offsets = [0, 24], sizes = [8, 8], strides = [1, 1]} : vector<8x32xf32> to vector<8x8xf32>
    %434 = vector.shape_cast %433 : vector<8x8xf32> to vector<2x4x8xf32>
    "tpu.trace_start"() <{level = 10 : i32, message = "bqd,bkd->bqk"}> : () -> ()
    %cst_244 = arith.constant dense<0.000000e+00> : vector<2x4x4xf32>
    %435 = tpu.matmul %430, %432, %cst_244 {dimension_numbers = #tpu.dot_dimension_numbers<[2], [2], [1], [1], [0, 0, 0, 1, 1, 1], [0], [0]>} : vector<2x4x8xf32>, vector<2x4x8xf32>, vector<2x4x4xf32> -> vector<2x4x4xf32>
    "tpu.trace_stop"() : () -> ()
    %cst_245 = arith.constant 0.353553385 : f32
    %436 = vector.broadcast %cst_245 : f32 to vector<2x4x4xf32>
    %437 = arith.mulf %435, %436 : vector<2x4x4xf32>
    %cst_246 = arith.constant dense<0xFF800000> : vector<2x4xf32>
    %438 = vector.multi_reduction <maximumf>, %437, %cst_246 [2] : vector<2x4x4xf32> to vector<2x4xf32>
    %439 = vector.shape_cast %438 : vector<2x4xf32> to vector<2x4x1xf32>
    %440 = vector.broadcast %439 : vector<2x4x1xf32> to vector<2x4x4xf32>
    %441 = arith.subf %437, %440 : vector<2x4x4xf32>
    %442 = math.exp %441 : vector<2x4x4xf32>
    %cst_247 = arith.constant dense<0.000000e+00> : vector<2x4xf32>
    %443 = vector.multi_reduction <add>, %442, %cst_247 [2] : vector<2x4x4xf32> to vector<2x4xf32>
    %444 = vector.shape_cast %443 : vector<2x4xf32> to vector<2x4x1xf32>
    %445 = vector.broadcast %444 : vector<2x4x1xf32> to vector<2x4x4xf32>
    %446 = arith.divf %442, %445 : vector<2x4x4xf32>
    "tpu.trace_start"() <{level = 10 : i32, message = "bqk,bkd->bqd"}> : () -> ()
    %cst_248 = arith.constant dense<0.000000e+00> : vector<2x4x8xf32>
    %447 = tpu.matmul %446, %434, %cst_248 {dimension_numbers = #tpu.dot_dimension_numbers<[2], [1], [1], [2], [0, 0, 0, 1, 1, 2], [0], [0]>} : vector<2x4x4xf32>, vector<2x4x8xf32>, vector<2x4x8xf32> -> vector<2x4x8xf32>
    "tpu.trace_stop"() : () -> ()
    %448 = vector.shape_cast %447 : vector<2x4x8xf32> to vector<8x8xf32>
    %449 = tpu.concatenate %388, %408, %428, %448 in 1 : vector<8x8xf32>, vector<8x8xf32>, vector<8x8xf32>, vector<8x8xf32> -> vector<8x32xf32>
    %450 = vector.shape_cast %25 : vector<1x1x32x32xf32> to vector<32x32xf32>
    %451 = vector.shape_cast %24 : vector<1x1x1x32xf32> to vector<1x32xf32>
    %cst_249 = arith.constant dense<0.000000e+00> : vector<8x32xf32>
    %452 = tpu.matmul %449, %450, %cst_249 {dimension_numbers = #tpu.dot_dimension_numbers<[1], [0], [0], [1], [0, 0, 1, 1], [], []>} : vector<8x32xf32>, vector<32x32xf32>, vector<8x32xf32> -> vector<8x32xf32>
    %453 = vector.broadcast %451 : vector<1x32xf32> to vector<8x32xf32>
    %454 = arith.addf %452, %453 : vector<8x32xf32>
    %455 = arith.addf %356, %454 : vector<8x32xf32>
    %456 = vector.shape_cast %35 : vector<1x1x1x32xf32> to vector<1x32xf32>
    %457 = vector.shape_cast %34 : vector<1x1x1x32xf32> to vector<1x32xf32>
    %cst_250 = arith.constant dense<0.000000e+00> : vector<8xf32>
    %458 = vector.multi_reduction <add>, %455, %cst_250 [1] : vector<8x32xf32> to vector<8xf32>
    %459 = vector.shape_cast %458 : vector<8xf32> to vector<8x1xf32>
    %cst_251 = arith.constant 3.200000e+01 : f32
    %460 = vector.broadcast %cst_251 : f32 to vector<8x1xf32>
    %461 = arith.divf %459, %460 : vector<8x1xf32>
    %462 = vector.broadcast %461 : vector<8x1xf32> to vector<8x32xf32>
    %463 = arith.subf %455, %462 : vector<8x32xf32>
    %464 = arith.mulf %463, %463 : vector<8x32xf32>
    %cst_252 = arith.constant dense<0.000000e+00> : vector<8xf32>
    %465 = vector.multi_reduction <add>, %464, %cst_252 [1] : vector<8x32xf32> to vector<8xf32>
    %466 = vector.shape_cast %465 : vector<8xf32> to vector<8x1xf32>
    %cst_253 = arith.constant 3.200000e+01 : f32
    %467 = vector.broadcast %cst_253 : f32 to vector<8x1xf32>
    %468 = arith.divf %466, %467 : vector<8x1xf32>
    %cst_254 = arith.constant 9.99999974E-6 : f32
    %469 = vector.broadcast %cst_254 : f32 to vector<8x1xf32>
    %470 = arith.addf %468, %469 : vector<8x1xf32>
    %471 = math.rsqrt %470 : vector<8x1xf32>
    %472 = vector.broadcast %471 : vector<8x1xf32> to vector<8x32xf32>
    %473 = arith.mulf %463, %472 : vector<8x32xf32>
    %474 = vector.broadcast %456 : vector<1x32xf32> to vector<8x32xf32>
    %475 = arith.mulf %473, %474 : vector<8x32xf32>
    %476 = vector.broadcast %457 : vector<1x32xf32> to vector<8x32xf32>
    %477 = arith.addf %475, %476 : vector<8x32xf32>
    %478 = vector.shape_cast %29 : vector<1x1x32x64xf32> to vector<32x64xf32>
    %479 = vector.shape_cast %28 : vector<1x1x1x64xf32> to vector<1x64xf32>
    %cst_255 = arith.constant dense<0.000000e+00> : vector<8x64xf32>
    %480 = tpu.matmul %477, %478, %cst_255 {dimension_numbers = #tpu.dot_dimension_numbers<[1], [0], [0], [1], [0, 0, 1, 1], [], []>} : vector<8x32xf32>, vector<32x64xf32>, vector<8x64xf32> -> vector<8x64xf32>
    %481 = vector.broadcast %479 : vector<1x64xf32> to vector<8x64xf32>
    %482 = arith.addf %480, %481 : vector<8x64xf32>
    %cst_256 = arith.constant 0.000000e+00 : f32
    %483 = vector.broadcast %cst_256 : f32 to vector<8x64xf32>
    %484 = arith.maximumf %482, %483 : vector<8x64xf32>
    %485 = vector.shape_cast %31 : vector<1x1x64x32xf32> to vector<64x32xf32>
    %486 = vector.shape_cast %30 : vector<1x1x1x32xf32> to vector<1x32xf32>
    %cst_257 = arith.constant dense<0.000000e+00> : vector<8x32xf32>
    %487 = tpu.matmul %484, %485, %cst_257 {dimension_numbers = #tpu.dot_dimension_numbers<[1], [0], [0], [1], [0, 0, 1, 1], [], []>} : vector<8x64xf32>, vector<64x32xf32>, vector<8x32xf32> -> vector<8x32xf32>
    %488 = vector.broadcast %486 : vector<1x32xf32> to vector<8x32xf32>
    %489 = arith.addf %487, %488 : vector<8x32xf32>
    %490 = arith.addf %477, %489 : vector<8x32xf32>
    %491 = vector.shape_cast %37 : vector<1x1x1x32xf32> to vector<1x32xf32>
    %492 = vector.shape_cast %36 : vector<1x1x1x32xf32> to vector<1x32xf32>
    %cst_258 = arith.constant dense<0.000000e+00> : vector<8xf32>
    %493 = vector.multi_reduction <add>, %490, %cst_258 [1] : vector<8x32xf32> to vector<8xf32>
    %494 = vector.shape_cast %493 : vector<8xf32> to vector<8x1xf32>
    %cst_259 = arith.constant 3.200000e+01 : f32
    %495 = vector.broadcast %cst_259 : f32 to vector<8x1xf32>
    %496 = arith.divf %494, %495 : vector<8x1xf32>
    %497 = vector.broadcast %496 : vector<8x1xf32> to vector<8x32xf32>
    %498 = arith.subf %490, %497 : vector<8x32xf32>
    %499 = arith.mulf %498, %498 : vector<8x32xf32>
    %cst_260 = arith.constant dense<0.000000e+00> : vector<8xf32>
    %500 = vector.multi_reduction <add>, %499, %cst_260 [1] : vector<8x32xf32> to vector<8xf32>
    %501 = vector.shape_cast %500 : vector<8xf32> to vector<8x1xf32>
    %cst_261 = arith.constant 3.200000e+01 : f32
    %502 = vector.broadcast %cst_261 : f32 to vector<8x1xf32>
    %503 = arith.divf %501, %502 : vector<8x1xf32>
    %cst_262 = arith.constant 9.99999974E-6 : f32
    %504 = vector.broadcast %cst_262 : f32 to vector<8x1xf32>
    %505 = arith.addf %503, %504 : vector<8x1xf32>
    %506 = math.rsqrt %505 : vector<8x1xf32>
    %507 = vector.broadcast %506 : vector<8x1xf32> to vector<8x32xf32>
    %508 = arith.mulf %498, %507 : vector<8x32xf32>
    %509 = vector.broadcast %491 : vector<1x32xf32> to vector<8x32xf32>
    %510 = arith.mulf %508, %509 : vector<8x32xf32>
    %511 = vector.broadcast %492 : vector<1x32xf32> to vector<8x32xf32>
    %512 = arith.addf %510, %511 : vector<8x32xf32>
    %cst_263 = arith.constant dense<0.000000e+00> : vector<8x5xf32>
    %513 = tpu.matmul %512, %42, %cst_263 {dimension_numbers = #tpu.dot_dimension_numbers<[1], [0], [0], [1], [0, 0, 1, 1], [], []>} : vector<8x32xf32>, vector<32x5xf32>, vector<8x5xf32> -> vector<8x5xf32>
    %514 = vector.broadcast %43 : vector<1x5xf32> to vector<8x5xf32>
    %515 = arith.addf %513, %514 : vector<8x5xf32>
    %516 = vector.shape_cast %515 : vector<8x5xf32> to vector<2x4x5xf32>
    %517 = vector.extract_strided_slice %516 {offsets = [0, 0, 0], sizes = [2, 4, 4], strides = [1, 1, 1]} : vector<2x4x5xf32> to vector<2x4x4xf32>
    %cst_264 = arith.constant 3.000000e+00 : f32
    %518 = vector.broadcast %cst_264 : f32 to vector<2x4x4xf32>
    %519 = arith.addf %517, %518 : vector<2x4x4xf32>
    %cst_265 = arith.constant 6.000000e+00 : f32
    %520 = vector.broadcast %cst_265 : f32 to vector<2x4x4xf32>
    %521 = arith.divf %519, %520 : vector<2x4x4xf32>
    %cst_266 = arith.constant 0.000000e+00 : f32
    %cst_267 = arith.constant 1.000000e+00 : f32
    %522 = vector.broadcast %cst_266 : f32 to vector<2x4x4xf32>
    %523 = arith.maximumf %522, %521 : vector<2x4x4xf32>
    %524 = vector.broadcast %cst_267 : f32 to vector<2x4x4xf32>
    %525 = arith.minimumf %524, %523 : vector<2x4x4xf32>
    %526 = vector.extract_strided_slice %516 {offsets = [0, 0, 4], sizes = [2, 4, 1], strides = [1, 1, 1]} : vector<2x4x5xf32> to vector<2x4x1xf32>
    %527 = vector.shape_cast %526 : vector<2x4x1xf32> to vector<2x4xf32>
    %cst_268 = arith.constant 0.000000e+00 : f32
    %528 = vector.broadcast %cst_268 : f32 to vector<2x4xf32>
    %529 = arith.maximumf %527, %528 : vector<2x4xf32>
    %530 = vector.broadcast %cst_268 : f32 to vector<2x4xf32>
    %531 = arith.subf %527, %530 : vector<2x4xf32>
    %532 = arith.cmpf one, %531, %531 : vector<2x4xf32>
    %533 = vector.broadcast %cst_268 : f32 to vector<2x4xf32>
    %534 = arith.addf %527, %533 : vector<2x4xf32>
    %535 = math.absf %531 : vector<2x4xf32>
    %cst_269 = arith.constant 0.000000e+00 : f32
    %536 = vector.broadcast %cst_269 : f32 to vector<2x4xf32>
    %537 = arith.subf %536, %535 : vector<2x4xf32>
    %538 = math.exp %537 : vector<2x4xf32>
    %539 = math.log1p %538 : vector<2x4xf32>
    %540 = arith.addf %529, %539 : vector<2x4xf32>
    %541 = arith.select %532, %534, %540 : vector<2x4xi1>, vector<2x4xf32>
    %542 = vector.extract_strided_slice %525 {offsets = [0, 0, 0], sizes = [2, 1, 4], strides = [1, 1, 1]} : vector<2x4x4xf32> to vector<2x1x4xf32>
    %543 = vector.shape_cast %542 : vector<2x1x4xf32> to vector<2x4xf32>
    %544 = vector.extract_strided_slice %525 {offsets = [0, 0, 0], sizes = [2, 1, 4], strides = [1, 1, 1]} : vector<2x4x4xf32> to vector<2x1x4xf32>
    %545 = vector.shape_cast %544 : vector<2x1x4xf32> to vector<2x4xf32>
    %cst_270 = arith.constant dense<0.000000e+00> : vector<2x4xf32>
    %546 = tpu.matmul %543, %44, %cst_270 {dimension_numbers = #tpu.dot_dimension_numbers<[1], [0], [0], [1], [0, 0, 1, 1], [], []>} : vector<2x4xf32>, vector<4x4xf32>, vector<2x4xf32> -> vector<2x4xf32>
    %547 = arith.addf %546, %545 : vector<2x4xf32>
    %548 = vector.broadcast %45 : vector<1x4xf32> to vector<2x4xf32>
    %549 = arith.mulf %547, %548 : vector<2x4xf32>
    %cst_271 = arith.constant dense<0.000000e+00> : vector<2xf32>
    %550 = vector.multi_reduction <add>, %549, %cst_271 [1] : vector<2x4xf32> to vector<2xf32>
    %551 = vector.shape_cast %550 : vector<2xf32> to vector<2x1xf32>
    %552 = vector.extract_strided_slice %525 {offsets = [0, 1, 0], sizes = [2, 1, 4], strides = [1, 1, 1]} : vector<2x4x4xf32> to vector<2x1x4xf32>
    %553 = vector.shape_cast %552 : vector<2x1x4xf32> to vector<2x4xf32>
    %cst_272 = arith.constant dense<0.000000e+00> : vector<2x4xf32>
    %554 = tpu.matmul %547, %44, %cst_272 {dimension_numbers = #tpu.dot_dimension_numbers<[1], [0], [0], [1], [0, 0, 1, 1], [], []>} : vector<2x4xf32>, vector<4x4xf32>, vector<2x4xf32> -> vector<2x4xf32>
    %555 = arith.addf %554, %553 : vector<2x4xf32>
    %556 = vector.broadcast %45 : vector<1x4xf32> to vector<2x4xf32>
    %557 = arith.mulf %555, %556 : vector<2x4xf32>
    %cst_273 = arith.constant dense<0.000000e+00> : vector<2xf32>
    %558 = vector.multi_reduction <add>, %557, %cst_273 [1] : vector<2x4xf32> to vector<2xf32>
    %559 = vector.shape_cast %558 : vector<2xf32> to vector<2x1xf32>
    %560 = vector.extract_strided_slice %525 {offsets = [0, 2, 0], sizes = [2, 1, 4], strides = [1, 1, 1]} : vector<2x4x4xf32> to vector<2x1x4xf32>
    %561 = vector.shape_cast %560 : vector<2x1x4xf32> to vector<2x4xf32>
    %cst_274 = arith.constant dense<0.000000e+00> : vector<2x4xf32>
    %562 = tpu.matmul %555, %44, %cst_274 {dimension_numbers = #tpu.dot_dimension_numbers<[1], [0], [0], [1], [0, 0, 1, 1], [], []>} : vector<2x4xf32>, vector<4x4xf32>, vector<2x4xf32> -> vector<2x4xf32>
    %563 = arith.addf %562, %561 : vector<2x4xf32>
    %564 = vector.broadcast %45 : vector<1x4xf32> to vector<2x4xf32>
    %565 = arith.mulf %563, %564 : vector<2x4xf32>
    %cst_275 = arith.constant dense<0.000000e+00> : vector<2xf32>
    %566 = vector.multi_reduction <add>, %565, %cst_275 [1] : vector<2x4xf32> to vector<2xf32>
    %567 = vector.shape_cast %566 : vector<2xf32> to vector<2x1xf32>
    %568 = vector.extract_strided_slice %525 {offsets = [0, 3, 0], sizes = [2, 1, 4], strides = [1, 1, 1]} : vector<2x4x4xf32> to vector<2x1x4xf32>
    %569 = vector.shape_cast %568 : vector<2x1x4xf32> to vector<2x4xf32>
    %cst_276 = arith.constant dense<0.000000e+00> : vector<2x4xf32>
    %570 = tpu.matmul %563, %44, %cst_276 {dimension_numbers = #tpu.dot_dimension_numbers<[1], [0], [0], [1], [0, 0, 1, 1], [], []>} : vector<2x4xf32>, vector<4x4xf32>, vector<2x4xf32> -> vector<2x4xf32>
    %571 = arith.addf %570, %569 : vector<2x4xf32>
    %572 = vector.broadcast %45 : vector<1x4xf32> to vector<2x4xf32>
    %573 = arith.mulf %571, %572 : vector<2x4xf32>
    %cst_277 = arith.constant dense<0.000000e+00> : vector<2xf32>
    %574 = vector.multi_reduction <add>, %573, %cst_277 [1] : vector<2x4xf32> to vector<2xf32>
    %575 = vector.shape_cast %574 : vector<2xf32> to vector<2x1xf32>
    %576 = tpu.concatenate %551, %559, %567, %575 in 1 : vector<2x1xf32>, vector<2x1xf32>, vector<2x1xf32>, vector<2x1xf32> -> vector<2x4xf32>
    %577 = arith.addf %576, %541 : vector<2x4xf32>
    %c0_278 = arith.constant 0 : index
    %c0_279 = arith.constant 0 : index
    %c0_280 = arith.constant 0 : index
    %578 = vector.load %arg47[%c0_278, %c0_279, %c0_280] : memref<1x2x4xf32, #tpu.memory_space<vmem>>, vector<1x2x4xf32>
    %579 = vector.shape_cast %578 : vector<1x2x4xf32> to vector<2x4xf32>
    %580 = vector.shape_cast %577 : vector<2x4xf32> to vector<1x2x4xf32>
    tpu.vector_store %arg47[%c0_278, %c0_279, %c0_280], %580 {strides = array<i32>} : memref<1x2x4xf32, #tpu.memory_space<vmem>>, vector<1x2x4xf32>,
    return
  }
  func.func @transform_0(%arg0: i32) -> (i32, i32, i32, i32) {
    %c0_i32 = arith.constant 0 : i32
    %c0_i32_0 = arith.constant 0 : i32
    %c0_i32_1 = arith.constant 0 : i32
    %c0_i32_2 = arith.constant 0 : i32
    return %arg0, %c0_i32, %c0_i32_0, %c0_i32_1 : i32, i32, i32, i32
  }
  func.func @transform_1(%arg0: i32) -> (i32, i32, i32, i32) {
    %c0_i32 = arith.constant 0 : i32
    %c0_i32_0 = arith.constant 0 : i32
    %c0_i32_1 = arith.constant 0 : i32
    %c0_i32_2 = arith.constant 0 : i32
    return %arg0, %c0_i32, %c0_i32_0, %c0_i32_1 : i32, i32, i32, i32
  }
  func.func @transform_2(%arg0: i32) -> (i32, i32) {
    %c0_i32 = arith.constant 0 : i32
    %c0_i32_0 = arith.constant 0 : i32
    %c0_i32_1 = arith.constant 0 : i32
    return %c0_i32, %c0_i32_0 : i32, i32
  }
  func.func @transform_3(%arg0: i32) -> (i32, i32) {
    %c0_i32 = arith.constant 0 : i32
    %c0_i32_0 = arith.constant 0 : i32
    %c0_i32_1 = arith.constant 0 : i32
    return %c0_i32, %c0_i32_0 : i32, i32
  }
  func.func @transform_4(%arg0: i32) -> (i32, i32) {
    %c0_i32 = arith.constant 0 : i32
    %c0_i32_0 = arith.constant 0 : i32
    %c0_i32_1 = arith.constant 0 : i32
    return %c0_i32, %c0_i32_0 : i32, i32
  }
  func.func @transform_5(%arg0: i32) -> (i32, i32) {
    %c0_i32 = arith.constant 0 : i32
    %c0_i32_0 = arith.constant 0 : i32
    %c0_i32_1 = arith.constant 0 : i32
    return %c0_i32, %c0_i32_0 : i32, i32
  }
  func.func @transform_6(%arg0: i32) -> (i32, i32) {
    %c0_i32 = arith.constant 0 : i32
    %c0_i32_0 = arith.constant 0 : i32
    %c0_i32_1 = arith.constant 0 : i32
    return %c0_i32, %c0_i32_0 : i32, i32
  }
  func.func @transform_7(%arg0: i32) -> (i32, i32) {
    %c0_i32 = arith.constant 0 : i32
    %c0_i32_0 = arith.constant 0 : i32
    %c0_i32_1 = arith.constant 0 : i32
    return %c0_i32, %c0_i32_0 : i32, i32
  }
  func.func @transform_8(%arg0: i32) -> (i32, i32, i32, i32) {
    %c0_i32 = arith.constant 0 : i32
    %c0_i32_0 = arith.constant 0 : i32
    %c0_i32_1 = arith.constant 0 : i32
    %c0_i32_2 = arith.constant 0 : i32
    return %arg0, %c0_i32, %c0_i32_0, %c0_i32_1 : i32, i32, i32, i32
  }
  func.func @transform_9(%arg0: i32) -> (i32, i32, i32, i32) {
    %c0_i32 = arith.constant 0 : i32
    %c0_i32_0 = arith.constant 0 : i32
    %c0_i32_1 = arith.constant 0 : i32
    %c0_i32_2 = arith.constant 0 : i32
    return %arg0, %c0_i32, %c0_i32_0, %c0_i32_1 : i32, i32, i32, i32
  }
  func.func @transform_10(%arg0: i32) -> (i32, i32, i32, i32) {
    %c0_i32 = arith.constant 0 : i32
    %c0_i32_0 = arith.constant 0 : i32
    %c0_i32_1 = arith.constant 0 : i32
    %c0_i32_2 = arith.constant 0 : i32
    return %arg0, %c0_i32, %c0_i32_0, %c0_i32_1 : i32, i32, i32, i32
  }
  func.func @transform_11(%arg0: i32) -> (i32, i32, i32, i32) {
    %c0_i32 = arith.constant 0 : i32
    %c0_i32_0 = arith.constant 0 : i32
    %c0_i32_1 = arith.constant 0 : i32
    %c0_i32_2 = arith.constant 0 : i32
    return %arg0, %c0_i32, %c0_i32_0, %c0_i32_1 : i32, i32, i32, i32
  }
  func.func @transform_12(%arg0: i32) -> (i32, i32, i32, i32) {
    %c0_i32 = arith.constant 0 : i32
    %c0_i32_0 = arith.constant 0 : i32
    %c0_i32_1 = arith.constant 0 : i32
    %c0_i32_2 = arith.constant 0 : i32
    return %arg0, %c0_i32, %c0_i32_0, %c0_i32_1 : i32, i32, i32, i32
  }
  func.func @transform_13(%arg0: i32) -> (i32, i32, i32, i32) {
    %c0_i32 = arith.constant 0 : i32
    %c0_i32_0 = arith.constant 0 : i32
    %c0_i32_1 = arith.constant 0 : i32
    %c0_i32_2 = arith.constant 0 : i32
    return %arg0, %c0_i32, %c0_i32_0, %c0_i32_1 : i32, i32, i32, i32
  }
  func.func @transform_14(%arg0: i32) -> (i32, i32, i32, i32) {
    %c0_i32 = arith.constant 0 : i32
    %c0_i32_0 = arith.constant 0 : i32
    %c0_i32_1 = arith.constant 0 : i32
    %c0_i32_2 = arith.constant 0 : i32
    return %arg0, %c0_i32, %c0_i32_0, %c0_i32_1 : i32, i32, i32, i32
  }
  func.func @transform_15(%arg0: i32) -> (i32, i32, i32, i32) {
    %c0_i32 = arith.constant 0 : i32
    %c0_i32_0 = arith.constant 0 : i32
    %c0_i32_1 = arith.constant 0 : i32
    %c0_i32_2 = arith.constant 0 : i32
    return %arg0, %c0_i32, %c0_i32_0, %c0_i32_1 : i32, i32, i32, i32
  }
  func.func @transform_16(%arg0: i32) -> (i32, i32, i32, i32) {
    %c0_i32 = arith.constant 0 : i32
    %c0_i32_0 = arith.constant 0 : i32
    %c0_i32_1 = arith.constant 0 : i32
    %c0_i32_2 = arith.constant 0 : i32
    return %arg0, %c0_i32, %c0_i32_0, %c0_i32_1 : i32, i32, i32, i32
  }
  func.func @transform_17(%arg0: i32) -> (i32, i32, i32, i32) {
    %c0_i32 = arith.constant 0 : i32
    %c0_i32_0 = arith.constant 0 : i32
    %c0_i32_1 = arith.constant 0 : i32
    %c0_i32_2 = arith.constant 0 : i32
    return %arg0, %c0_i32, %c0_i32_0, %c0_i32_1 : i32, i32, i32, i32
  }
  func.func @transform_18(%arg0: i32) -> (i32, i32, i32, i32) {
    %c0_i32 = arith.constant 0 : i32
    %c0_i32_0 = arith.constant 0 : i32
    %c0_i32_1 = arith.constant 0 : i32
    %c0_i32_2 = arith.constant 0 : i32
    return %arg0, %c0_i32, %c0_i32_0, %c0_i32_1 : i32, i32, i32, i32
  }
  func.func @transform_19(%arg0: i32) -> (i32, i32, i32, i32) {
    %c0_i32 = arith.constant 0 : i32
    %c0_i32_0 = arith.constant 0 : i32
    %c0_i32_1 = arith.constant 0 : i32
    %c0_i32_2 = arith.constant 0 : i32
    return %arg0, %c0_i32, %c0_i32_0, %c0_i32_1 : i32, i32, i32, i32
  }
  func.func @transform_20(%arg0: i32) -> (i32, i32, i32) {
    %c0_i32 = arith.constant 0 : i32
    %c0_i32_0 = arith.constant 0 : i32
    %c0_i32_1 = arith.constant 0 : i32
    return %arg0, %c0_i32, %c0_i32_0 : i32, i32, i32
  }
  func.func @transform_21(%arg0: i32) -> (i32, i32, i32) {
    %c0_i32 = arith.constant 0 : i32
    %c0_i32_0 = arith.constant 0 : i32
    %c0_i32_1 = arith.constant 0 : i32
    return %arg0, %c0_i32, %c0_i32_0 : i32, i32, i32
  }
  func.func @transform_22(%arg0: i32) -> (i32, i32, i32, i32) {
    %c0_i32 = arith.constant 0 : i32
    %c0_i32_0 = arith.constant 0 : i32
    %c0_i32_1 = arith.constant 0 : i32
    %c0_i32_2 = arith.constant 0 : i32
    return %arg0, %c0_i32, %c0_i32_0, %c0_i32_1 : i32, i32, i32, i32
  }
  func.func @transform_23(%arg0: i32) -> (i32, i32, i32, i32) {
    %c0_i32 = arith.constant 0 : i32
    %c0_i32_0 = arith.constant 0 : i32
    %c0_i32_1 = arith.constant 0 : i32
    %c0_i32_2 = arith.constant 0 : i32
    return %arg0, %c0_i32, %c0_i32_0, %c0_i32_1 : i32, i32, i32, i32
  }
  func.func @transform_24(%arg0: i32) -> (i32, i32, i32, i32) {
    %c0_i32 = arith.constant 0 : i32
    %c0_i32_0 = arith.constant 0 : i32
    %c0_i32_1 = arith.constant 0 : i32
    %c0_i32_2 = arith.constant 0 : i32
    return %arg0, %c0_i32, %c0_i32_0, %c0_i32_1 : i32, i32, i32, i32
  }
  func.func @transform_25(%arg0: i32) -> (i32, i32, i32, i32) {
    %c0_i32 = arith.constant 0 : i32
    %c0_i32_0 = arith.constant 0 : i32
    %c0_i32_1 = arith.constant 0 : i32
    %c0_i32_2 = arith.constant 0 : i32
    return %arg0, %c0_i32, %c0_i32_0, %c0_i32_1 : i32, i32, i32, i32
  }
  func.func @transform_26(%arg0: i32) -> (i32, i32, i32, i32) {
    %c0_i32 = arith.constant 0 : i32
    %c0_i32_0 = arith.constant 0 : i32
    %c0_i32_1 = arith.constant 0 : i32
    %c0_i32_2 = arith.constant 0 : i32
    return %arg0, %c0_i32, %c0_i32_0, %c0_i32_1 : i32, i32, i32, i32
  }
  func.func @transform_27(%arg0: i32) -> (i32, i32, i32, i32) {
    %c0_i32 = arith.constant 0 : i32
    %c0_i32_0 = arith.constant 0 : i32
    %c0_i32_1 = arith.constant 0 : i32
    %c0_i32_2 = arith.constant 0 : i32
    return %arg0, %c0_i32, %c0_i32_0, %c0_i32_1 : i32, i32, i32, i32
  }
  func.func @transform_28(%arg0: i32) -> (i32, i32, i32, i32) {
    %c0_i32 = arith.constant 0 : i32
    %c0_i32_0 = arith.constant 0 : i32
    %c0_i32_1 = arith.constant 0 : i32
    %c0_i32_2 = arith.constant 0 : i32
    return %arg0, %c0_i32, %c0_i32_0, %c0_i32_1 : i32, i32, i32, i32
  }
  func.func @transform_29(%arg0: i32) -> (i32, i32, i32, i32) {
    %c0_i32 = arith.constant 0 : i32
    %c0_i32_0 = arith.constant 0 : i32
    %c0_i32_1 = arith.constant 0 : i32
    %c0_i32_2 = arith.constant 0 : i32
    return %arg0, %c0_i32, %c0_i32_0, %c0_i32_1 : i32, i32, i32, i32
  }
  func.func @transform_30(%arg0: i32) -> (i32, i32, i32, i32) {
    %c0_i32 = arith.constant 0 : i32
    %c0_i32_0 = arith.constant 0 : i32
    %c0_i32_1 = arith.constant 0 : i32
    %c0_i32_2 = arith.constant 0 : i32
    return %arg0, %c0_i32, %c0_i32_0, %c0_i32_1 : i32, i32, i32, i32
  }
  func.func @transform_31(%arg0: i32) -> (i32, i32, i32, i32) {
    %c0_i32 = arith.constant 0 : i32
    %c0_i32_0 = arith.constant 0 : i32
    %c0_i32_1 = arith.constant 0 : i32
    %c0_i32_2 = arith.constant 0 : i32
    return %arg0, %c0_i32, %c0_i32_0, %c0_i32_1 : i32, i32, i32, i32
  }
  func.func @transform_32(%arg0: i32) -> (i32, i32, i32, i32) {
    %c0_i32 = arith.constant 0 : i32
    %c0_i32_0 = arith.constant 0 : i32
    %c0_i32_1 = arith.constant 0 : i32
    %c0_i32_2 = arith.constant 0 : i32
    return %arg0, %c0_i32, %c0_i32_0, %c0_i32_1 : i32, i32, i32, i32
  }
  func.func @transform_33(%arg0: i32) -> (i32, i32, i32, i32) {
    %c0_i32 = arith.constant 0 : i32
    %c0_i32_0 = arith.constant 0 : i32
    %c0_i32_1 = arith.constant 0 : i32
    %c0_i32_2 = arith.constant 0 : i32
    return %arg0, %c0_i32, %c0_i32_0, %c0_i32_1 : i32, i32, i32, i32
  }
  func.func @transform_34(%arg0: i32) -> (i32, i32, i32, i32) {
    %c0_i32 = arith.constant 0 : i32
    %c0_i32_0 = arith.constant 0 : i32
    %c0_i32_1 = arith.constant 0 : i32
    %c0_i32_2 = arith.constant 0 : i32
    return %arg0, %c0_i32, %c0_i32_0, %c0_i32_1 : i32, i32, i32, i32
  }
  func.func @transform_35(%arg0: i32) -> (i32, i32, i32, i32) {
    %c0_i32 = arith.constant 0 : i32
    %c0_i32_0 = arith.constant 0 : i32
    %c0_i32_1 = arith.constant 0 : i32
    %c0_i32_2 = arith.constant 0 : i32
    return %arg0, %c0_i32, %c0_i32_0, %c0_i32_1 : i32, i32, i32, i32
  }
  func.func @transform_36(%arg0: i32) -> (i32, i32, i32, i32) {
    %c0_i32 = arith.constant 0 : i32
    %c0_i32_0 = arith.constant 0 : i32
    %c0_i32_1 = arith.constant 0 : i32
    %c0_i32_2 = arith.constant 0 : i32
    return %arg0, %c0_i32, %c0_i32_0, %c0_i32_1 : i32, i32, i32, i32
  }
  func.func @transform_37(%arg0: i32) -> (i32, i32, i32, i32) {
    %c0_i32 = arith.constant 0 : i32
    %c0_i32_0 = arith.constant 0 : i32
    %c0_i32_1 = arith.constant 0 : i32
    %c0_i32_2 = arith.constant 0 : i32
    return %arg0, %c0_i32, %c0_i32_0, %c0_i32_1 : i32, i32, i32, i32
  }
  func.func @transform_38(%arg0: i32) -> (i32, i32, i32, i32) {
    %c0_i32 = arith.constant 0 : i32
    %c0_i32_0 = arith.constant 0 : i32
    %c0_i32_1 = arith.constant 0 : i32
    %c0_i32_2 = arith.constant 0 : i32
    return %arg0, %c0_i32, %c0_i32_0, %c0_i32_1 : i32, i32, i32, i32
  }
  func.func @transform_39(%arg0: i32) -> (i32, i32, i32, i32) {
    %c0_i32 = arith.constant 0 : i32
    %c0_i32_0 = arith.constant 0 : i32
    %c0_i32_1 = arith.constant 0 : i32
    %c0_i32_2 = arith.constant 0 : i32
    return %arg0, %c0_i32, %c0_i32_0, %c0_i32_1 : i32, i32, i32, i32
  }
  func.func @transform_40(%arg0: i32) -> (i32, i32, i32, i32) {
    %c0_i32 = arith.constant 0 : i32
    %c0_i32_0 = arith.constant 0 : i32
    %c0_i32_1 = arith.constant 0 : i32
    %c0_i32_2 = arith.constant 0 : i32
    return %arg0, %c0_i32, %c0_i32_0, %c0_i32_1 : i32, i32, i32, i32
  }
  func.func @transform_41(%arg0: i32) -> (i32, i32, i32, i32) {
    %c0_i32 = arith.constant 0 : i32
    %c0_i32_0 = arith.constant 0 : i32
    %c0_i32_1 = arith.constant 0 : i32
    %c0_i32_2 = arith.constant 0 : i32
    return %arg0, %c0_i32, %c0_i32_0, %c0_i32_1 : i32, i32, i32, i32
  }
  func.func @transform_42(%arg0: i32) -> (i32, i32) {
    %c0_i32 = arith.constant 0 : i32
    %c0_i32_0 = arith.constant 0 : i32
    %c0_i32_1 = arith.constant 0 : i32
    return %c0_i32, %c0_i32_0 : i32, i32
  }
  func.func @transform_43(%arg0: i32) -> (i32, i32) {
    %c0_i32 = arith.constant 0 : i32
    %c0_i32_0 = arith.constant 0 : i32
    %c0_i32_1 = arith.constant 0 : i32
    return %c0_i32, %c0_i32_0 : i32, i32
  }
  func.func @transform_44(%arg0: i32) -> (i32, i32) {
    %c0_i32 = arith.constant 0 : i32
    %c0_i32_0 = arith.constant 0 : i32
    %c0_i32_1 = arith.constant 0 : i32
    return %c0_i32, %c0_i32_0 : i32, i32
  }
  func.func @transform_45(%arg0: i32) -> (i32, i32) {
    %c0_i32 = arith.constant 0 : i32
    %c0_i32_0 = arith.constant 0 : i32
    %c0_i32_1 = arith.constant 0 : i32
    return %c0_i32, %c0_i32_0 : i32, i32
  }
  func.func @transform_46(%arg0: i32) -> (i32, i32, i32) {
    %c0_i32 = arith.constant 0 : i32
    %c0_i32_0 = arith.constant 0 : i32
    %c0_i32_1 = arith.constant 0 : i32
    return %arg0, %c0_i32, %c0_i32_0 : i32, i32, i32
  }
}

</mosaic_0001>

<llo_original>
// kernel: _lambda_.1
$region0: #{_lambda_.1}
  #allocation0 [shape = 'u32[]', space=smem, size = 0x4, offset = 0x4, fixed_abs, tag = 'smem constant byte address 0x4 - core index']
  #allocation1 [shape = 'u32[144,128]{1,0:T(1,128)}', space=vmem, size = 0x12000, scoped, tag = 'internal scratch']
  %s0 = inlined_call_operand.smem [shape: u32[47], index: -1, kind: input, shape index: {}]
  %s1 = sld [smem:[%s0]]
  %s2 = scalar_lea.smem %s0, 1
  %s3 = sld [smem:[%s2]]
  %s4 = scalar_lea.smem %s0, 2
  %s5 = sld [smem:[%s4]]
  %s6 = scalar_lea.smem %s0, 3
  %s7 = sld [smem:[%s6]]
  %s8 = scalar_lea.smem %s0, 4
  %s9 = sld [smem:[%s8]]
  %s10 = scalar_lea.smem %s0, 5
  %s11 = sld [smem:[%s10]]
  %s12 = scalar_lea.smem %s0, 6
  %s13 = sld [smem:[%s12]]
  %s14 = scalar_lea.smem %s0, 7
  %s15 = sld [smem:[%s14]]
  %s16 = scalar_lea.smem %s0, 8
  %s17 = sld [smem:[%s16]]
  %s18 = scalar_lea.smem %s0, 9
  %s19 = sld [smem:[%s18]]
  %s20 = scalar_lea.smem %s0, 10
  %s21 = sld [smem:[%s20]]
  %s22 = scalar_lea.smem %s0, 11
  %s23 = sld [smem:[%s22]]
  %s24 = scalar_lea.smem %s0, 12
  %s25 = sld [smem:[%s24]]
  %s26 = scalar_lea.smem %s0, 13
  %s27 = sld [smem:[%s26]]
  %s28 = scalar_lea.smem %s0, 14
  %s29 = sld [smem:[%s28]]
  %s30 = scalar_lea.smem %s0, 15
  %s31 = sld [smem:[%s30]]
  %s32 = scalar_lea.smem %s0, 16
  %s33 = sld [smem:[%s32]]
  %s34 = scalar_lea.smem %s0, 17
  %s35 = sld [smem:[%s34]]
  %s36 = scalar_lea.smem %s0, 18
  %s37 = sld [smem:[%s36]]
  %s38 = scalar_lea.smem %s0, 19
  %s39 = sld [smem:[%s38]]
  %s40 = scalar_lea.smem %s0, 20
  %s41 = sld [smem:[%s40]]
  %s42 = scalar_lea.smem %s0, 21
  %s43 = sld [smem:[%s42]]
  %s44 = scalar_lea.smem %s0, 22
  %s45 = sld [smem:[%s44]]
  %s46 = scalar_lea.smem %s0, 23
  %s47 = sld [smem:[%s46]]
  %s48 = scalar_lea.smem %s0, 24
  %s49 = sld [smem:[%s48]]
  %s50 = scalar_lea.smem %s0, 25
  %s51 = sld [smem:[%s50]]
  %s52 = scalar_lea.smem %s0, 26
  %s53 = sld [smem:[%s52]]
  %s54 = scalar_lea.smem %s0, 27
  %s55 = sld [smem:[%s54]]
  %s56 = scalar_lea.smem %s0, 28
  %s57 = sld [smem:[%s56]]
  %s58 = scalar_lea.smem %s0, 29
  %s59 = sld [smem:[%s58]]
  %s60 = scalar_lea.smem %s0, 30
  %s61 = sld [smem:[%s60]]
  %s62 = scalar_lea.smem %s0, 31
  %s63 = sld [smem:[%s62]]
  %s64 = scalar_lea.smem %s0, 32
  %s65 = sld [smem:[%s64]]
  %s66 = scalar_lea.smem %s0, 33
  %s67 = sld [smem:[%s66]]
  %s68 = scalar_lea.smem %s0, 34
  %s69 = sld [smem:[%s68]]
  %s70 = scalar_lea.smem %s0, 35
  %s71 = sld [smem:[%s70]]
  %s72 = scalar_lea.smem %s0, 36
  %s73 = sld [smem:[%s72]]
  %s74 = scalar_lea.smem %s0, 37
  %s75 = sld [smem:[%s74]]
  %s76 = scalar_lea.smem %s0, 38
  %s77 = sld [smem:[%s76]]
  %s78 = scalar_lea.smem %s0, 39
  %s79 = sld [smem:[%s78]]
  %s80 = scalar_lea.smem %s0, 40
  %s81 = sld [smem:[%s80]]
  %s82 = scalar_lea.smem %s0, 41
  %s83 = sld [smem:[%s82]]
  %s84 = scalar_lea.smem %s0, 42
  %s85 = sld [smem:[%s84]]
  %s86 = scalar_lea.smem %s0, 43
  %s87 = sld [smem:[%s86]]
  %s88 = scalar_lea.smem %s0, 44
  %s89 = sld [smem:[%s88]]
  %s90 = scalar_lea.smem %s0, 45
  %s91 = sld [smem:[%s90]]
  %s92 = scalar_lea.smem %s0, 46
  %s93 = sld [smem:[%s92]]
  %s94 = sld [smem:[#allocation0]]
  $region225: #{_lambda_.1} parent=0
    _
  %s96 = ssub.s32 1, %s94
  %s97 = scalar_select 0, %s96, %s94
  $region1: #{_lambda_.1} parent=0
    #allocation2 [shape = 'u8[512]{0}', space=vmem, size = 0x400, scoped, tag = 'input window, operand 7, single buffered']
    #allocation3 [shape = 's32[2]{0}', space=sflag, size = 0x8, scoped, tag = 'scoped memory for _lambda_.1']
    #allocation4 [shape = 'u8[512]{0}', space=vmem, size = 0x400, scoped, tag = 'input window, operand 43, single buffered']
    #allocation5 [shape = 's32[1]{0}', space=sflag, size = 0x4, scoped, tag = 'scoped memory for _lambda_.1']
    %98 = vsyncpa [#allocation3], 0
    %99 = vsyncpa [#allocation5], 0
    loop: start=0, step=1, limit=4
    $region2: #{_lambda_.1} parent=1 // loop_pre_header
      _
    $region3: #{_lambda_.1} parent=1 // loop_header
      %s101 = sphi 0, %s105
      %p102 = scmp.ge.s32.totalorder %s101, 4
      %s111 = sphi 0, %s113
      %s114 = sphi 0, %s111
      %s115 = sphi 0, %s114
      %s131 = sphi 0, %s115
      %s137 = sphi 0, %s139
      %s140 = sphi 0, %s137
      %s141 = sphi 0, %s140
      %s157 = sphi 0, %s141
      %s161 = sphi 0, %s161
      %s163 = sphi 0, %s161
      %s164 = sphi 0, %s163
      %s178 = sphi 0, %s164
      %s182 = sphi 0, %s182
      %s184 = sphi 0, %s182
      %s185 = sphi 0, %s184
      %s199 = sphi 0, %s185
      %s203 = sphi 0, %s203
      %s205 = sphi 0, %s203
      %s206 = sphi 0, %s205
      %s220 = sphi 0, %s206
      %s224 = sphi 0, %s224
      %s226 = sphi 0, %s224
      %s227 = sphi 0, %s226
      %s241 = sphi 0, %s227
      %s245 = sphi 0, %s245
      %s247 = sphi 0, %s245
      %s248 = sphi 0, %s247
      %s262 = sphi 0, %s248
      %s266 = sphi 0, %s266
      %s268 = sphi 0, %s266
      %s269 = sphi 0, %s268
      %s283 = sphi 0, %s269
      %s289 = sphi 0, %s291
      %s292 = sphi 0, %s289
      %s293 = sphi 0, %s292
      %s309 = sphi 0, %s293
      %s315 = sphi 0, %s317
      %s318 = sphi 0, %s315
      %s319 = sphi 0, %s318
      %s335 = sphi 0, %s319
      %s341 = sphi 0, %s343
      %s344 = sphi 0, %s341
      %s345 = sphi 0, %s344
      %s361 = sphi 0, %s345
      %s367 = sphi 0, %s369
      %s370 = sphi 0, %s367
      %s371 = sphi 0, %s370
      %s387 = sphi 0, %s371
      %s393 = sphi 0, %s395
      %s396 = sphi 0, %s393
      %s397 = sphi 0, %s396
      %s413 = sphi 0, %s397
      %s419 = sphi 0, %s421
      %s422 = sphi 0, %s419
      %s423 = sphi 0, %s422
      %s439 = sphi 0, %s423
      %s445 = sphi 0, %s447
      %s448 = sphi 0, %s445
      %s449 = sphi 0, %s448
      %s465 = sphi 0, %s449
      %s471 = sphi 0, %s473
      %s474 = sphi 0, %s471
      %s475 = sphi 0, %s474
      %s491 = sphi 0, %s475
      %s497 = sphi 0, %s499
      %s500 = sphi 0, %s497
      %s501 = sphi 0, %s500
      %s517 = sphi 0, %s501
      %s523 = sphi 0, %s525
      %s526 = sphi 0, %s523
      %s527 = sphi 0, %s526
      %s543 = sphi 0, %s527
      %s549 = sphi 0, %s551
      %s552 = sphi 0, %s549
      %s553 = sphi 0, %s552
      %s569 = sphi 0, %s553
      %s575 = sphi 0, %s577
      %s578 = sphi 0, %s575
      %s579 = sphi 0, %s578
      %s595 = sphi 0, %s579
      %s601 = sphi 0, %s603
      %s604 = sphi 0, %s601
      %s605 = sphi 0, %s604
      %s621 = sphi 0, %s605
      %s627 = sphi 0, %s629
      %s630 = sphi 0, %s627
      %s631 = sphi 0, %s630
      %s647 = sphi 0, %s631
      %s653 = sphi 0, %s655
      %s656 = sphi 0, %s653
      %s657 = sphi 0, %s656
      %s673 = sphi 0, %s657
      %s679 = sphi 0, %s681
      %s682 = sphi 0, %s679
      %s683 = sphi 0, %s682
      %s699 = sphi 0, %s683
      %s705 = sphi 0, %s707
      %s708 = sphi 0, %s705
      %s709 = sphi 0, %s708
      %s725 = sphi 0, %s709
      %s731 = sphi 0, %s733
      %s734 = sphi 0, %s731
      %s735 = sphi 0, %s734
      %s751 = sphi 0, %s735
      %s757 = sphi 0, %s759
      %s760 = sphi 0, %s757
      %s761 = sphi 0, %s760
      %s777 = sphi 0, %s761
      %s783 = sphi 0, %s785
      %s786 = sphi 0, %s783
      %s787 = sphi 0, %s786
      %s803 = sphi 0, %s787
      %s809 = sphi 0, %s811
      %s812 = sphi 0, %s809
      %s813 = sphi 0, %s812
      %s829 = sphi 0, %s813
      %s835 = sphi 0, %s837
      %s838 = sphi 0, %s835
      %s839 = sphi 0, %s838
      %s855 = sphi 0, %s839
      %s861 = sphi 0, %s863
      %s864 = sphi 0, %s861
      %s865 = sphi 0, %s864
      %s881 = sphi 0, %s865
      %s887 = sphi 0, %s889
      %s890 = sphi 0, %s887
      %s891 = sphi 0, %s890
      %s907 = sphi 0, %s891
      %s913 = sphi 0, %s915
      %s916 = sphi 0, %s913
      %s917 = sphi 0, %s916
      %s933 = sphi 0, %s917
      %s939 = sphi 0, %s941
      %s942 = sphi 0, %s939
      %s943 = sphi 0, %s942
      %s959 = sphi 0, %s943
      %s965 = sphi 0, %s967
      %s968 = sphi 0, %s965
      %s969 = sphi 0, %s968
      %s985 = sphi 0, %s969
      %s991 = sphi 0, %s993
      %s994 = sphi 0, %s991
      %s995 = sphi 0, %s994
      %s1011 = sphi 0, %s995
      %s1017 = sphi 0, %s1019
      %s1020 = sphi 0, %s1017
      %s1021 = sphi 0, %s1020
      %s1037 = sphi 0, %s1021
      %s1043 = sphi 0, %s1045
      %s1046 = sphi 0, %s1043
      %s1047 = sphi 0, %s1046
      %s1063 = sphi 0, %s1047
      %s1069 = sphi 0, %s1071
      %s1072 = sphi 0, %s1069
      %s1073 = sphi 0, %s1072
      %s1089 = sphi 0, %s1073
      %s1095 = sphi 0, %s1097
      %s1098 = sphi 0, %s1095
      %s1099 = sphi 0, %s1098
      %s1115 = sphi 0, %s1099
      %s1121 = sphi 0, %s1123
      %s1124 = sphi 0, %s1121
      %s1125 = sphi 0, %s1124
      %s1141 = sphi 0, %s1125
      %s1147 = sphi 0, %s1149
      %s1150 = sphi 0, %s1147
      %s1151 = sphi 0, %s1150
      %s1167 = sphi 0, %s1151
      %s1171 = sphi 0, %s1171
      %s1173 = sphi 0, %s1171
      %s1174 = sphi 0, %s1173
      %s1188 = sphi 0, %s1174
      %s1192 = sphi 0, %s1192
      %s1194 = sphi 0, %s1192
      %s1195 = sphi 0, %s1194
      %s1209 = sphi 0, %s1195
      %s1213 = sphi 0, %s1213
      %s1215 = sphi 0, %s1213
      %s1216 = sphi 0, %s1215
      %s1230 = sphi 0, %s1216
      %s1234 = sphi 0, %s1234
      %s1236 = sphi 0, %s1234
      %s1237 = sphi 0, %s1236
      %s1251 = sphi 0, %s1237
      %s1257 = sphi 0, %s1259
      %s1260 = sphi 0, %s1257
      %s1261 = sphi 0, %s1260
      %s1277 = sphi 0, %s1261
    $region4: #{_lambda_.1} parent=1 // loop_header_branch
      %104 = sbr.rel (%p102) target = $region8
    $region5: #{_lambda_.1} parent=1 // loop_body
      %s106 = ssub.s32 %s101, 1
      %s107 = ssub.s32 %s101, 2
      %s108 = sadd.s32 %s101, 1
      %s109 = ssub.s32 %s101, %s108
      %p110 = scmp.eq.s32.totalorder %s109, 0
      %s112 = sadd.s32 %s111, 1
      %s113 = scalar_select %p110, %s111, %s112
      %p116 = pneg %p110
      %p117 = scmp.eq.s32.totalorder %s101, 1
      %p118 = por %p116, %p117
      %p119 = scmp.ne.s32.totalorder %s111, %s114
      %p120 = scmp.eq.s32.totalorder %s101, 0
      %p121 = por %p119, %p120
      %p122 = scmp.ne.s32.totalorder %s111, %s114
      %p123 = scmp.eq.s32.totalorder %s106, 1
      %p124 = por %p122, %p123
      %p125 = scmp.ne.s32.totalorder %s114, %s115
      %p126 = scmp.eq.s32.totalorder %s106, 0
      %p127 = por %p125, %p126
      %p128 = scmp.ne.s32.totalorder %s114, %s115
      %p129 = scmp.eq.s32.totalorder %s107, 1
      %p130 = por %p128, %p129
      %p132 = scmp.ne.s32.totalorder %s115, %s131
      %p133 = scmp.eq.s32.totalorder %s107, 0
      %p134 = por %p132, %p133
      %s135 = ssub.s32 %s101, %s108
      %p136 = scmp.eq.s32.totalorder %s135, 0
      %s138 = sadd.s32 %s137, 1
      %s139 = scalar_select %p136, %s137, %s138
      %p142 = pneg %p136
      %p143 = scmp.eq.s32.totalorder %s101, 1
      %p144 = por %p142, %p143
      %p145 = scmp.ne.s32.totalorder %s137, %s140
      %p146 = scmp.eq.s32.totalorder %s101, 0
      %p147 = por %p145, %p146
      %p148 = scmp.ne.s32.totalorder %s137, %s140
      %p149 = scmp.eq.s32.totalorder %s106, 1
      %p150 = por %p148, %p149
      %p151 = scmp.ne.s32.totalorder %s140, %s141
      %p152 = scmp.eq.s32.totalorder %s106, 0
      %p153 = por %p151, %p152
      %p154 = scmp.ne.s32.totalorder %s140, %s141
      %p155 = scmp.eq.s32.totalorder %s107, 1
      %p156 = por %p154, %p155
      %p158 = scmp.ne.s32.totalorder %s141, %s157
      %p159 = scmp.eq.s32.totalorder %s107, 0
      %p160 = por %p158, %p159
      %s162 = sadd.s32 %s161, 1
      %p165 = scmp.eq.s32.totalorder %s101, 1
      %p166 = scmp.ne.s32.totalorder %s161, %s163
      %p167 = scmp.eq.s32.totalorder %s101, 0
      %p168 = por %p166, %p167
      %p169 = scmp.ne.s32.totalorder %s161, %s163
      %p170 = scmp.eq.s32.totalorder %s106, 1
      %p171 = por %p169, %p170
      %p172 = scmp.ne.s32.totalorder %s163, %s164
      %p173 = scmp.eq.s32.totalorder %s106, 0
      %p174 = por %p172, %p173
      %p175 = scmp.ne.s32.totalorder %s163, %s164
      %p176 = scmp.eq.s32.totalorder %s107, 1
      %p177 = por %p175, %p176
      %p179 = scmp.ne.s32.totalorder %s164, %s178
      %p180 = scmp.eq.s32.totalorder %s107, 0
      %p181 = por %p179, %p180
      %s183 = sadd.s32 %s182, 1
      %p186 = scmp.eq.s32.totalorder %s101, 1
      %p187 = scmp.ne.s32.totalorder %s182, %s184
      %p188 = scmp.eq.s32.totalorder %s101, 0
      %p189 = por %p187, %p188
      %p190 = scmp.ne.s32.totalorder %s182, %s184
      %p191 = scmp.eq.s32.totalorder %s106, 1
      %p192 = por %p190, %p191
      %p193 = scmp.ne.s32.totalorder %s184, %s185
      %p194 = scmp.eq.s32.totalorder %s106, 0
      %p195 = por %p193, %p194
      %p196 = scmp.ne.s32.totalorder %s184, %s185
      %p197 = scmp.eq.s32.totalorder %s107, 1
      %p198 = por %p196, %p197
      %p200 = scmp.ne.s32.totalorder %s185, %s199
      %p201 = scmp.eq.s32.totalorder %s107, 0
      %p202 = por %p200, %p201
      %s204 = sadd.s32 %s203, 1
      %p207 = scmp.eq.s32.totalorder %s101, 1
      %p208 = scmp.ne.s32.totalorder %s203, %s205
      %p209 = scmp.eq.s32.totalorder %s101, 0
      %p210 = por %p208, %p209
      %p211 = scmp.ne.s32.totalorder %s203, %s205
      %p212 = scmp.eq.s32.totalorder %s106, 1
      %p213 = por %p211, %p212
      %p214 = scmp.ne.s32.totalorder %s205, %s206
      %p215 = scmp.eq.s32.totalorder %s106, 0
      %p216 = por %p214, %p215
      %p217 = scmp.ne.s32.totalorder %s205, %s206
      %p218 = scmp.eq.s32.totalorder %s107, 1
      %p219 = por %p217, %p218
      %p221 = scmp.ne.s32.totalorder %s206, %s220
      %p222 = scmp.eq.s32.totalorder %s107, 0
      %p223 = por %p221, %p222
      %s225 = sadd.s32 %s224, 1
      %p228 = scmp.eq.s32.totalorder %s101, 1
      %p229 = scmp.ne.s32.totalorder %s224, %s226
      %p230 = scmp.eq.s32.totalorder %s101, 0
      %p231 = por %p229, %p230
      %p232 = scmp.ne.s32.totalorder %s224, %s226
      %p233 = scmp.eq.s32.totalorder %s106, 1
      %p234 = por %p232, %p233
      %p235 = scmp.ne.s32.totalorder %s226, %s227
      %p236 = scmp.eq.s32.totalorder %s106, 0
      %p237 = por %p235, %p236
      %p238 = scmp.ne.s32.totalorder %s226, %s227
      %p239 = scmp.eq.s32.totalorder %s107, 1
      %p240 = por %p238, %p239
      %p242 = scmp.ne.s32.totalorder %s227, %s241
      %p243 = scmp.eq.s32.totalorder %s107, 0
      %p244 = por %p242, %p243
      %s246 = sadd.s32 %s245, 1
      %p249 = scmp.eq.s32.totalorder %s101, 1
      %p250 = scmp.ne.s32.totalorder %s245, %s247
      %p251 = scmp.eq.s32.totalorder %s101, 0
      %p252 = por %p250, %p251
      %p253 = scmp.ne.s32.totalorder %s245, %s247
      %p254 = scmp.eq.s32.totalorder %s106, 1
      %p255 = por %p253, %p254
      %p256 = scmp.ne.s32.totalorder %s247, %s248
      %p257 = scmp.eq.s32.totalorder %s106, 0
      %p258 = por %p256, %p257
      %p259 = scmp.ne.s32.totalorder %s247, %s248
      %p260 = scmp.eq.s32.totalorder %s107, 1
      %p261 = por %p259, %p260
      %p263 = scmp.ne.s32.totalorder %s248, %s262
      %p264 = scmp.eq.s32.totalorder %s107, 0
      %p265 = por %p263, %p264
      %s267 = sadd.s32 %s266, 1
      %p270 = scmp.eq.s32.totalorder %s101, 1
      %p271 = scmp.ne.s32.totalorder %s266, %s268
      %p272 = scmp.eq.s32.totalorder %s101, 0
      %p273 = por %p271, %p272
      %p274 = scmp.ne.s32.totalorder %s266, %s268
      %p275 = scmp.eq.s32.totalorder %s106, 1
      %p276 = por %p274, %p275
      %p277 = scmp.ne.s32.totalorder %s268, %s269
      %p278 = scmp.eq.s32.totalorder %s106, 0
      %p279 = por %p277, %p278
      %p280 = scmp.ne.s32.totalorder %s268, %s269
      %p281 = scmp.eq.s32.totalorder %s107, 1
      %p282 = por %p280, %p281
      %p284 = scmp.ne.s32.totalorder %s269, %s283
      %p285 = scmp.eq.s32.totalorder %s107, 0
      %p286 = por %p284, %p285
      %s287 = ssub.s32 %s101, %s108
      %p288 = scmp.eq.s32.totalorder %s287, 0
      %s290 = sadd.s32 %s289, 1
      %s291 = scalar_select %p288, %s289, %s290
      %p294 = pneg %p288
      %p295 = scmp.eq.s32.totalorder %s101, 1
      %p296 = por %p294, %p295
      %p297 = scmp.ne.s32.totalorder %s289, %s292
      %p298 = scmp.eq.s32.totalorder %s101, 0
      %p299 = por %p297, %p298
      %p300 = scmp.ne.s32.totalorder %s289, %s292
      %p301 = scmp.eq.s32.totalorder %s106, 1
      %p302 = por %p300, %p301
      %p303 = scmp.ne.s32.totalorder %s292, %s293
      %p304 = scmp.eq.s32.totalorder %s106, 0
      %p305 = por %p303, %p304
      %p306 = scmp.ne.s32.totalorder %s292, %s293
      %p307 = scmp.eq.s32.totalorder %s107, 1
      %p308 = por %p306, %p307
      %p310 = scmp.ne.s32.totalorder %s293, %s309
      %p311 = scmp.eq.s32.totalorder %s107, 0
      %p312 = por %p310, %p311
      %s313 = ssub.s32 %s101, %s108
      %p314 = scmp.eq.s32.totalorder %s313, 0
      %s316 = sadd.s32 %s315, 1
      %s317 = scalar_select %p314, %s315, %s316
      %p320 = pneg %p314
      %p321 = scmp.eq.s32.totalorder %s101, 1
      %p322 = por %p320, %p321
      %p323 = scmp.ne.s32.totalorder %s315, %s318
      %p324 = scmp.eq.s32.totalorder %s101, 0
      %p325 = por %p323, %p324
      %p326 = scmp.ne.s32.totalorder %s315, %s318
      %p327 = scmp.eq.s32.totalorder %s106, 1
      %p328 = por %p326, %p327
      %p329 = scmp.ne.s32.totalorder %s318, %s319
      %p330 = scmp.eq.s32.totalorder %s106, 0
      %p331 = por %p329, %p330
      %p332 = scmp.ne.s32.totalorder %s318, %s319
      %p333 = scmp.eq.s32.totalorder %s107, 1
      %p334 = por %p332, %p333
      %p336 = scmp.ne.s32.totalorder %s319, %s335
      %p337 = scmp.eq.s32.totalorder %s107, 0
      %p338 = por %p336, %p337
      %s339 = ssub.s32 %s101, %s108
      %p340 = scmp.eq.s32.totalorder %s339, 0
      %s342 = sadd.s32 %s341, 1
      %s343 = scalar_select %p340, %s341, %s342
      %p346 = pneg %p340
      %p347 = scmp.eq.s32.totalorder %s101, 1
      %p348 = por %p346, %p347
      %p349 = scmp.ne.s32.totalorder %s341, %s344
      %p350 = scmp.eq.s32.totalorder %s101, 0
      %p351 = por %p349, %p350
      %p352 = scmp.ne.s32.totalorder %s341, %s344
      %p353 = scmp.eq.s32.totalorder %s106, 1
      %p354 = por %p352, %p353
      %p355 = scmp.ne.s32.totalorder %s344, %s345
      %p356 = scmp.eq.s32.totalorder %s106, 0
      %p357 = por %p355, %p356
      %p358 = scmp.ne.s32.totalorder %s344, %s345
      %p359 = scmp.eq.s32.totalorder %s107, 1
      %p360 = por %p358, %p359
      %p362 = scmp.ne.s32.totalorder %s345, %s361
      %p363 = scmp.eq.s32.totalorder %s107, 0
      %p364 = por %p362, %p363
      %s365 = ssub.s32 %s101, %s108
      %p366 = scmp.eq.s32.totalorder %s365, 0
      %s368 = sadd.s32 %s367, 1
      %s369 = scalar_select %p366, %s367, %s368
      %p372 = pneg %p366
      %p373 = scmp.eq.s32.totalorder %s101, 1
      %p374 = por %p372, %p373
      %p375 = scmp.ne.s32.totalorder %s367, %s370
      %p376 = scmp.eq.s32.totalorder %s101, 0
      %p377 = por %p375, %p376
      %p378 = scmp.ne.s32.totalorder %s367, %s370
      %p379 = scmp.eq.s32.totalorder %s106, 1
      %p380 = por %p378, %p379
      %p381 = scmp.ne.s32.totalorder %s370, %s371
      %p382 = scmp.eq.s32.totalorder %s106, 0
      %p383 = por %p381, %p382
      %p384 = scmp.ne.s32.totalorder %s370, %s371
      %p385 = scmp.eq.s32.totalorder %s107, 1
      %p386 = por %p384, %p385
      %p388 = scmp.ne.s32.totalorder %s371, %s387
      %p389 = scmp.eq.s32.totalorder %s107, 0
      %p390 = por %p388, %p389
      %s391 = ssub.s32 %s101, %s108
      %p392 = scmp.eq.s32.totalorder %s391, 0
      %s394 = sadd.s32 %s393, 1
      %s395 = scalar_select %p392, %s393, %s394
      %p398 = pneg %p392
      %p399 = scmp.eq.s32.totalorder %s101, 1
      %p400 = por %p398, %p399
      %p401 = scmp.ne.s32.totalorder %s393, %s396
      %p402 = scmp.eq.s32.totalorder %s101, 0
      %p403 = por %p401, %p402
      %p404 = scmp.ne.s32.totalorder %s393, %s396
      %p405 = scmp.eq.s32.totalorder %s106, 1
      %p406 = por %p404, %p405
      %p407 = scmp.ne.s32.totalorder %s396, %s397
      %p408 = scmp.eq.s32.totalorder %s106, 0
      %p409 = por %p407, %p408
      %p410 = scmp.ne.s32.totalorder %s396, %s397
      %p411 = scmp.eq.s32.totalorder %s107, 1
      %p412 = por %p410, %p411
      %p414 = scmp.ne.s32.totalorder %s397, %s413
      %p415 = scmp.eq.s32.totalorder %s107, 0
      %p416 = por %p414, %p415
      %s417 = ssub.s32 %s101, %s108
      %p418 = scmp.eq.s32.totalorder %s417, 0
      %s420 = sadd.s32 %s419, 1
      %s421 = scalar_select %p418, %s419, %s420
      %p424 = pneg %p418
      %p425 = scmp.eq.s32.totalorder %s101, 1
      %p426 = por %p424, %p425
      %p427 = scmp.ne.s32.totalorder %s419, %s422
      %p428 = scmp.eq.s32.totalorder %s101, 0
      %p429 = por %p427, %p428
      %p430 = scmp.ne.s32.totalorder %s419, %s422
      %p431 = scmp.eq.s32.totalorder %s106, 1
      %p432 = por %p430, %p431
      %p433 = scmp.ne.s32.totalorder %s422, %s423
      %p434 = scmp.eq.s32.totalorder %s106, 0
      %p435 = por %p433, %p434
      %p436 = scmp.ne.s32.totalorder %s422, %s423
      %p437 = scmp.eq.s32.totalorder %s107, 1
      %p438 = por %p436, %p437
      %p440 = scmp.ne.s32.totalorder %s423, %s439
      %p441 = scmp.eq.s32.totalorder %s107, 0
      %p442 = por %p440, %p441
      %s443 = ssub.s32 %s101, %s108
      %p444 = scmp.eq.s32.totalorder %s443, 0
      %s446 = sadd.s32 %s445, 1
      %s447 = scalar_select %p444, %s445, %s446
      %p450 = pneg %p444
      %p451 = scmp.eq.s32.totalorder %s101, 1
      %p452 = por %p450, %p451
      %p453 = scmp.ne.s32.totalorder %s445, %s448
      %p454 = scmp.eq.s32.totalorder %s101, 0
      %p455 = por %p453, %p454
      %p456 = scmp.ne.s32.totalorder %s445, %s448
      %p457 = scmp.eq.s32.totalorder %s106, 1
      %p458 = por %p456, %p457
      %p459 = scmp.ne.s32.totalorder %s448, %s449
      %p460 = scmp.eq.s32.totalorder %s106, 0
      %p461 = por %p459, %p460
      %p462 = scmp.ne.s32.totalorder %s448, %s449
      %p463 = scmp.eq.s32.totalorder %s107, 1
      %p464 = por %p462, %p463
      %p466 = scmp.ne.s32.totalorder %s449, %s465
      %p467 = scmp.eq.s32.totalorder %s107, 0
      %p468 = por %p466, %p467
      %s469 = ssub.s32 %s101, %s108
      %p470 = scmp.eq.s32.totalorder %s469, 0
      %s472 = sadd.s32 %s471, 1
      %s473 = scalar_select %p470, %s471, %s472
      %p476 = pneg %p470
      %p477 = scmp.eq.s32.totalorder %s101, 1
      %p478 = por %p476, %p477
      %p479 = scmp.ne.s32.totalorder %s471, %s474
      %p480 = scmp.eq.s32.totalorder %s101, 0
      %p481 = por %p479, %p480
      %p482 = scmp.ne.s32.totalorder %s471, %s474
      %p483 = scmp.eq.s32.totalorder %s106, 1
      %p484 = por %p482, %p483
      %p485 = scmp.ne.s32.totalorder %s474, %s475
      %p486 = scmp.eq.s32.totalorder %s106, 0
      %p487 = por %p485, %p486
      %p488 = scmp.ne.s32.totalorder %s474, %s475
      %p489 = scmp.eq.s32.totalorder %s107, 1
      %p490 = por %p488, %p489
      %p492 = scmp.ne.s32.totalorder %s475, %s491
      %p493 = scmp.eq.s32.totalorder %s107, 0
      %p494 = por %p492, %p493
      %s495 = ssub.s32 %s101, %s108
      %p496 = scmp.eq.s32.totalorder %s495, 0
      %s498 = sadd.s32 %s497, 1
      %s499 = scalar_select %p496, %s497, %s498
      %p502 = pneg %p496
      %p503 = scmp.eq.s32.totalorder %s101, 1
      %p504 = por %p502, %p503
      %p505 = scmp.ne.s32.totalorder %s497, %s500
      %p506 = scmp.eq.s32.totalorder %s101, 0
      %p507 = por %p505, %p506
      %p508 = scmp.ne.s32.totalorder %s497, %s500
      %p509 = scmp.eq.s32.totalorder %s106, 1
      %p510 = por %p508, %p509
      %p511 = scmp.ne.s32.totalorder %s500, %s501
      %p512 = scmp.eq.s32.totalorder %s106, 0
      %p513 = por %p511, %p512
      %p514 = scmp.ne.s32.totalorder %s500, %s501
      %p515 = scmp.eq.s32.totalorder %s107, 1
      %p516 = por %p514, %p515
      %p518 = scmp.ne.s32.totalorder %s501, %s517
      %p519 = scmp.eq.s32.totalorder %s107, 0
      %p520 = por %p518, %p519
      %s521 = ssub.s32 %s101, %s108
      %p522 = scmp.eq.s32.totalorder %s521, 0
      %s524 = sadd.s32 %s523, 1
      %s525 = scalar_select %p522, %s523, %s524
      %p528 = pneg %p522
      %p529 = scmp.eq.s32.totalorder %s101, 1
      %p530 = por %p528, %p529
      %p531 = scmp.ne.s32.totalorder %s523, %s526
      %p532 = scmp.eq.s32.totalorder %s101, 0
      %p533 = por %p531, %p532
      %p534 = scmp.ne.s32.totalorder %s523, %s526
      %p535 = scmp.eq.s32.totalorder %s106, 1
      %p536 = por %p534, %p535
      %p537 = scmp.ne.s32.totalorder %s526, %s527
      %p538 = scmp.eq.s32.totalorder %s106, 0
      %p539 = por %p537, %p538
      %p540 = scmp.ne.s32.totalorder %s526, %s527
      %p541 = scmp.eq.s32.totalorder %s107, 1
      %p542 = por %p540, %p541
      %p544 = scmp.ne.s32.totalorder %s527, %s543
      %p545 = scmp.eq.s32.totalorder %s107, 0
      %p546 = por %p544, %p545
      %s547 = ssub.s32 %s101, %s108
      %p548 = scmp.eq.s32.totalorder %s547, 0
      %s550 = sadd.s32 %s549, 1
      %s551 = scalar_select %p548, %s549, %s550
      %p554 = pneg %p548
      %p555 = scmp.eq.s32.totalorder %s101, 1
      %p556 = por %p554, %p555
      %p557 = scmp.ne.s32.totalorder %s549, %s552
      %p558 = scmp.eq.s32.totalorder %s101, 0
      %p559 = por %p557, %p558
      %p560 = scmp.ne.s32.totalorder %s549, %s552
      %p561 = scmp.eq.s32.totalorder %s106, 1
      %p562 = por %p560, %p561
      %p563 = scmp.ne.s32.totalorder %s552, %s553
      %p564 = scmp.eq.s32.totalorder %s106, 0
      %p565 = por %p563, %p564
      %p566 = scmp.ne.s32.totalorder %s552, %s553
      %p567 = scmp.eq.s32.totalorder %s107, 1
      %p568 = por %p566, %p567
      %p570 = scmp.ne.s32.totalorder %s553, %s569
      %p571 = scmp.eq.s32.totalorder %s107, 0
      %p572 = por %p570, %p571
      %s573 = ssub.s32 %s101, %s108
      %p574 = scmp.eq.s32.totalorder %s573, 0
      %s576 = sadd.s32 %s575, 1
      %s577 = scalar_select %p574, %s575, %s576
      %p580 = pneg %p574
      %p581 = scmp.eq.s32.totalorder %s101, 1
      %p582 = por %p580, %p581
      %p583 = scmp.ne.s32.totalorder %s575, %s578
      %p584 = scmp.eq.s32.totalorder %s101, 0
      %p585 = por %p583, %p584
      %p586 = scmp.ne.s32.totalorder %s575, %s578
      %p587 = scmp.eq.s32.totalorder %s106, 1
      %p588 = por %p586, %p587
      %p589 = scmp.ne.s32.totalorder %s578, %s579
      %p590 = scmp.eq.s32.totalorder %s106, 0
      %p591 = por %p589, %p590
      %p592 = scmp.ne.s32.totalorder %s578, %s579
      %p593 = scmp.eq.s32.totalorder %s107, 1
      %p594 = por %p592, %p593
      %p596 = scmp.ne.s32.totalorder %s579, %s595
      %p597 = scmp.eq.s32.totalorder %s107, 0
      %p598 = por %p596, %p597
      %s599 = ssub.s32 %s101, %s108
      %p600 = scmp.eq.s32.totalorder %s599, 0
      %s602 = sadd.s32 %s601, 1
      %s603 = scalar_select %p600, %s601, %s602
      %p606 = pneg %p600
      %p607 = scmp.eq.s32.totalorder %s101, 1
      %p608 = por %p606, %p607
      %p609 = scmp.ne.s32.totalorder %s601, %s604
      %p610 = scmp.eq.s32.totalorder %s101, 0
      %p611 = por %p609, %p610
      %p612 = scmp.ne.s32.totalorder %s601, %s604
      %p613 = scmp.eq.s32.totalorder %s106, 1
      %p614 = por %p612, %p613
      %p615 = scmp.ne.s32.totalorder %s604, %s605
      %p616 = scmp.eq.s32.totalorder %s106, 0
      %p617 = por %p615, %p616
      %p618 = scmp.ne.s32.totalorder %s604, %s605
      %p619 = scmp.eq.s32.totalorder %s107, 1
      %p620 = por %p618, %p619
      %p622 = scmp.ne.s32.totalorder %s605, %s621
      %p623 = scmp.eq.s32.totalorder %s107, 0
      %p624 = por %p622, %p623
      %s625 = ssub.s32 %s101, %s108
      %p626 = scmp.eq.s32.totalorder %s625, 0
      %s628 = sadd.s32 %s627, 1
      %s629 = scalar_select %p626, %s627, %s628
      %p632 = pneg %p626
      %p633 = scmp.eq.s32.totalorder %s101, 1
      %p634 = por %p632, %p633
      %p635 = scmp.ne.s32.totalorder %s627, %s630
      %p636 = scmp.eq.s32.totalorder %s101, 0
      %p637 = por %p635, %p636
      %p638 = scmp.ne.s32.totalorder %s627, %s630
      %p639 = scmp.eq.s32.totalorder %s106, 1
      %p640 = por %p638, %p639
      %p641 = scmp.ne.s32.totalorder %s630, %s631
      %p642 = scmp.eq.s32.totalorder %s106, 0
      %p643 = por %p641, %p642
      %p644 = scmp.ne.s32.totalorder %s630, %s631
      %p645 = scmp.eq.s32.totalorder %s107, 1
      %p646 = por %p644, %p645
      %p648 = scmp.ne.s32.totalorder %s631, %s647
      %p649 = scmp.eq.s32.totalorder %s107, 0
      %p650 = por %p648, %p649
      %s651 = ssub.s32 %s101, %s108
      %p652 = scmp.eq.s32.totalorder %s651, 0
      %s654 = sadd.s32 %s653, 1
      %s655 = scalar_select %p652, %s653, %s654
      %p658 = pneg %p652
      %p659 = scmp.eq.s32.totalorder %s101, 1
      %p660 = por %p658, %p659
      %p661 = scmp.ne.s32.totalorder %s653, %s656
      %p662 = scmp.eq.s32.totalorder %s101, 0
      %p663 = por %p661, %p662
      %p664 = scmp.ne.s32.totalorder %s653, %s656
      %p665 = scmp.eq.s32.totalorder %s106, 1
      %p666 = por %p664, %p665
      %p667 = scmp.ne.s32.totalorder %s656, %s657
      %p668 = scmp.eq.s32.totalorder %s106, 0
      %p669 = por %p667, %p668
      %p670 = scmp.ne.s32.totalorder %s656, %s657
      %p671 = scmp.eq.s32.totalorder %s107, 1
      %p672 = por %p670, %p671
      %p674 = scmp.ne.s32.totalorder %s657, %s673
      %p675 = scmp.eq.s32.totalorder %s107, 0
      %p676 = por %p674, %p675
      %s677 = ssub.s32 %s101, %s108
      %p678 = scmp.eq.s32.totalorder %s677, 0
      %s680 = sadd.s32 %s679, 1
      %s681 = scalar_select %p678, %s679, %s680
      %p684 = pneg %p678
      %p685 = scmp.eq.s32.totalorder %s101, 1
      %p686 = por %p684, %p685
      %p687 = scmp.ne.s32.totalorder %s679, %s682
      %p688 = scmp.eq.s32.totalorder %s101, 0
      %p689 = por %p687, %p688
      %p690 = scmp.ne.s32.totalorder %s679, %s682
      %p691 = scmp.eq.s32.totalorder %s106, 1
      %p692 = por %p690, %p691
      %p693 = scmp.ne.s32.totalorder %s682, %s683
      %p694 = scmp.eq.s32.totalorder %s106, 0
      %p695 = por %p693, %p694
      %p696 = scmp.ne.s32.totalorder %s682, %s683
      %p697 = scmp.eq.s32.totalorder %s107, 1
      %p698 = por %p696, %p697
      %p700 = scmp.ne.s32.totalorder %s683, %s699
      %p701 = scmp.eq.s32.totalorder %s107, 0
      %p702 = por %p700, %p701
      %s703 = ssub.s32 %s101, %s108
      %p704 = scmp.eq.s32.totalorder %s703, 0
      %s706 = sadd.s32 %s705, 1
      %s707 = scalar_select %p704, %s705, %s706
      %p710 = pneg %p704
      %p711 = scmp.eq.s32.totalorder %s101, 1
      %p712 = por %p710, %p711
      %p713 = scmp.ne.s32.totalorder %s705, %s708
      %p714 = scmp.eq.s32.totalorder %s101, 0
      %p715 = por %p713, %p714
      %p716 = scmp.ne.s32.totalorder %s705, %s708
      %p717 = scmp.eq.s32.totalorder %s106, 1
      %p718 = por %p716, %p717
      %p719 = scmp.ne.s32.totalorder %s708, %s709
      %p720 = scmp.eq.s32.totalorder %s106, 0
      %p721 = por %p719, %p720
      %p722 = scmp.ne.s32.totalorder %s708, %s709
      %p723 = scmp.eq.s32.totalorder %s107, 1
      %p724 = por %p722, %p723
      %p726 = scmp.ne.s32.totalorder %s709, %s725
      %p727 = scmp.eq.s32.totalorder %s107, 0
      %p728 = por %p726, %p727
      %s729 = ssub.s32 %s101, %s108
      %p730 = scmp.eq.s32.totalorder %s729, 0
      %s732 = sadd.s32 %s731, 1
      %s733 = scalar_select %p730, %s731, %s732
      %p736 = pneg %p730
      %p737 = scmp.eq.s32.totalorder %s101, 1
      %p738 = por %p736, %p737
      %p739 = scmp.ne.s32.totalorder %s731, %s734
      %p740 = scmp.eq.s32.totalorder %s101, 0
      %p741 = por %p739, %p740
      %p742 = scmp.ne.s32.totalorder %s731, %s734
      %p743 = scmp.eq.s32.totalorder %s106, 1
      %p744 = por %p742, %p743
      %p745 = scmp.ne.s32.totalorder %s734, %s735
      %p746 = scmp.eq.s32.totalorder %s106, 0
      %p747 = por %p745, %p746
      %p748 = scmp.ne.s32.totalorder %s734, %s735
      %p749 = scmp.eq.s32.totalorder %s107, 1
      %p750 = por %p748, %p749
      %p752 = scmp.ne.s32.totalorder %s735, %s751
      %p753 = scmp.eq.s32.totalorder %s107, 0
      %p754 = por %p752, %p753
      %s755 = ssub.s32 %s101, %s108
      %p756 = scmp.eq.s32.totalorder %s755, 0
      %s758 = sadd.s32 %s757, 1
      %s759 = scalar_select %p756, %s757, %s758
      %p762 = pneg %p756
      %p763 = scmp.eq.s32.totalorder %s101, 1
      %p764 = por %p762, %p763
      %p765 = scmp.ne.s32.totalorder %s757, %s760
      %p766 = scmp.eq.s32.totalorder %s101, 0
      %p767 = por %p765, %p766
      %p768 = scmp.ne.s32.totalorder %s757, %s760
      %p769 = scmp.eq.s32.totalorder %s106, 1
      %p770 = por %p768, %p769
      %p771 = scmp.ne.s32.totalorder %s760, %s761
      %p772 = scmp.eq.s32.totalorder %s106, 0
      %p773 = por %p771, %p772
      %p774 = scmp.ne.s32.totalorder %s760, %s761
      %p775 = scmp.eq.s32.totalorder %s107, 1
      %p776 = por %p774, %p775
      %p778 = scmp.ne.s32.totalorder %s761, %s777
      %p779 = scmp.eq.s32.totalorder %s107, 0
      %p780 = por %p778, %p779
      %s781 = ssub.s32 %s101, %s108
      %p782 = scmp.eq.s32.totalorder %s781, 0
      %s784 = sadd.s32 %s783, 1
      %s785 = scalar_select %p782, %s783, %s784
      %p788 = pneg %p782
      %p789 = scmp.eq.s32.totalorder %s101, 1
      %p790 = por %p788, %p789
      %p791 = scmp.ne.s32.totalorder %s783, %s786
      %p792 = scmp.eq.s32.totalorder %s101, 0
      %p793 = por %p791, %p792
      %p794 = scmp.ne.s32.totalorder %s783, %s786
      %p795 = scmp.eq.s32.totalorder %s106, 1
      %p796 = por %p794, %p795
      %p797 = scmp.ne.s32.totalorder %s786, %s787
      %p798 = scmp.eq.s32.totalorder %s106, 0
      %p799 = por %p797, %p798
      %p800 = scmp.ne.s32.totalorder %s786, %s787
      %p801 = scmp.eq.s32.totalorder %s107, 1
      %p802 = por %p800, %p801
      %p804 = scmp.ne.s32.totalorder %s787, %s803
      %p805 = scmp.eq.s32.totalorder %s107, 0
      %p806 = por %p804, %p805
      %s807 = ssub.s32 %s101, %s108
      %p808 = scmp.eq.s32.totalorder %s807, 0
      %s810 = sadd.s32 %s809, 1
      %s811 = scalar_select %p808, %s809, %s810
      %p814 = pneg %p808
      %p815 = scmp.eq.s32.totalorder %s101, 1
      %p816 = por %p814, %p815
      %p817 = scmp.ne.s32.totalorder %s809, %s812
      %p818 = scmp.eq.s32.totalorder %s101, 0
      %p819 = por %p817, %p818
      %p820 = scmp.ne.s32.totalorder %s809, %s812
      %p821 = scmp.eq.s32.totalorder %s106, 1
      %p822 = por %p820, %p821
      %p823 = scmp.ne.s32.totalorder %s812, %s813
      %p824 = scmp.eq.s32.totalorder %s106, 0
      %p825 = por %p823, %p824
      %p826 = scmp.ne.s32.totalorder %s812, %s813
      %p827 = scmp.eq.s32.totalorder %s107, 1
      %p828 = por %p826, %p827
      %p830 = scmp.ne.s32.totalorder %s813, %s829
      %p831 = scmp.eq.s32.totalorder %s107, 0
      %p832 = por %p830, %p831
      %s833 = ssub.s32 %s101, %s108
      %p834 = scmp.eq.s32.totalorder %s833, 0
      %s836 = sadd.s32 %s835, 1
      %s837 = scalar_select %p834, %s835, %s836
      %p840 = pneg %p834
      %p841 = scmp.eq.s32.totalorder %s101, 1
      %p842 = por %p840, %p841
      %p843 = scmp.ne.s32.totalorder %s835, %s838
      %p844 = scmp.eq.s32.totalorder %s101, 0
      %p845 = por %p843, %p844
      %p846 = scmp.ne.s32.totalorder %s835, %s838
      %p847 = scmp.eq.s32.totalorder %s106, 1
      %p848 = por %p846, %p847
      %p849 = scmp.ne.s32.totalorder %s838, %s839
      %p850 = scmp.eq.s32.totalorder %s106, 0
      %p851 = por %p849, %p850
      %p852 = scmp.ne.s32.totalorder %s838, %s839
      %p853 = scmp.eq.s32.totalorder %s107, 1
      %p854 = por %p852, %p853
      %p856 = scmp.ne.s32.totalorder %s839, %s855
      %p857 = scmp.eq.s32.totalorder %s107, 0
      %p858 = por %p856, %p857
      %s859 = ssub.s32 %s101, %s108
      %p860 = scmp.eq.s32.totalorder %s859, 0
      %s862 = sadd.s32 %s861, 1
      %s863 = scalar_select %p860, %s861, %s862
      %p866 = pneg %p860
      %p867 = scmp.eq.s32.totalorder %s101, 1
      %p868 = por %p866, %p867
      %p869 = scmp.ne.s32.totalorder %s861, %s864
      %p870 = scmp.eq.s32.totalorder %s101, 0
      %p871 = por %p869, %p870
      %p872 = scmp.ne.s32.totalorder %s861, %s864
      %p873 = scmp.eq.s32.totalorder %s106, 1
      %p874 = por %p872, %p873
      %p875 = scmp.ne.s32.totalorder %s864, %s865
      %p876 = scmp.eq.s32.totalorder %s106, 0
      %p877 = por %p875, %p876
      %p878 = scmp.ne.s32.totalorder %s864, %s865
      %p879 = scmp.eq.s32.totalorder %s107, 1
      %p880 = por %p878, %p879
      %p882 = scmp.ne.s32.totalorder %s865, %s881
      %p883 = scmp.eq.s32.totalorder %s107, 0
      %p884 = por %p882, %p883
      %s885 = ssub.s32 %s101, %s108
      %p886 = scmp.eq.s32.totalorder %s885, 0
      %s888 = sadd.s32 %s887, 1
      %s889 = scalar_select %p886, %s887, %s888
      %p892 = pneg %p886
      %p893 = scmp.eq.s32.totalorder %s101, 1
      %p894 = por %p892, %p893
      %p895 = scmp.ne.s32.totalorder %s887, %s890
      %p896 = scmp.eq.s32.totalorder %s101, 0
      %p897 = por %p895, %p896
      %p898 = scmp.ne.s32.totalorder %s887, %s890
      %p899 = scmp.eq.s32.totalorder %s106, 1
      %p900 = por %p898, %p899
      %p901 = scmp.ne.s32.totalorder %s890, %s891
      %p902 = scmp.eq.s32.totalorder %s106, 0
      %p903 = por %p901, %p902
      %p904 = scmp.ne.s32.totalorder %s890, %s891
      %p905 = scmp.eq.s32.totalorder %s107, 1
      %p906 = por %p904, %p905
      %p908 = scmp.ne.s32.totalorder %s891, %s907
      %p909 = scmp.eq.s32.totalorder %s107, 0
      %p910 = por %p908, %p909
      %s911 = ssub.s32 %s101, %s108
      %p912 = scmp.eq.s32.totalorder %s911, 0
      %s914 = sadd.s32 %s913, 1
      %s915 = scalar_select %p912, %s913, %s914
      %p918 = pneg %p912
      %p919 = scmp.eq.s32.totalorder %s101, 1
      %p920 = por %p918, %p919
      %p921 = scmp.ne.s32.totalorder %s913, %s916
      %p922 = scmp.eq.s32.totalorder %s101, 0
      %p923 = por %p921, %p922
      %p924 = scmp.ne.s32.totalorder %s913, %s916
      %p925 = scmp.eq.s32.totalorder %s106, 1
      %p926 = por %p924, %p925
      %p927 = scmp.ne.s32.totalorder %s916, %s917
      %p928 = scmp.eq.s32.totalorder %s106, 0
      %p929 = por %p927, %p928
      %p930 = scmp.ne.s32.totalorder %s916, %s917
      %p931 = scmp.eq.s32.totalorder %s107, 1
      %p932 = por %p930, %p931
      %p934 = scmp.ne.s32.totalorder %s917, %s933
      %p935 = scmp.eq.s32.totalorder %s107, 0
      %p936 = por %p934, %p935
      %s937 = ssub.s32 %s101, %s108
      %p938 = scmp.eq.s32.totalorder %s937, 0
      %s940 = sadd.s32 %s939, 1
      %s941 = scalar_select %p938, %s939, %s940
      %p944 = pneg %p938
      %p945 = scmp.eq.s32.totalorder %s101, 1
      %p946 = por %p944, %p945
      %p947 = scmp.ne.s32.totalorder %s939, %s942
      %p948 = scmp.eq.s32.totalorder %s101, 0
      %p949 = por %p947, %p948
      %p950 = scmp.ne.s32.totalorder %s939, %s942
      %p951 = scmp.eq.s32.totalorder %s106, 1
      %p952 = por %p950, %p951
      %p953 = scmp.ne.s32.totalorder %s942, %s943
      %p954 = scmp.eq.s32.totalorder %s106, 0
      %p955 = por %p953, %p954
      %p956 = scmp.ne.s32.totalorder %s942, %s943
      %p957 = scmp.eq.s32.totalorder %s107, 1
      %p958 = por %p956, %p957
      %p960 = scmp.ne.s32.totalorder %s943, %s959
      %p961 = scmp.eq.s32.totalorder %s107, 0
      %p962 = por %p960, %p961
      %s963 = ssub.s32 %s101, %s108
      %p964 = scmp.eq.s32.totalorder %s963, 0
      %s966 = sadd.s32 %s965, 1
      %s967 = scalar_select %p964, %s965, %s966
      %p970 = pneg %p964
      %p971 = scmp.eq.s32.totalorder %s101, 1
      %p972 = por %p970, %p971
      %p973 = scmp.ne.s32.totalorder %s965, %s968
      %p974 = scmp.eq.s32.totalorder %s101, 0
      %p975 = por %p973, %p974
      %p976 = scmp.ne.s32.totalorder %s965, %s968
      %p977 = scmp.eq.s32.totalorder %s106, 1
      %p978 = por %p976, %p977
      %p979 = scmp.ne.s32.totalorder %s968, %s969
      %p980 = scmp.eq.s32.totalorder %s106, 0
      %p981 = por %p979, %p980
      %p982 = scmp.ne.s32.totalorder %s968, %s969
      %p983 = scmp.eq.s32.totalorder %s107, 1
      %p984 = por %p982, %p983
      %p986 = scmp.ne.s32.totalorder %s969, %s985
      %p987 = scmp.eq.s32.totalorder %s107, 0
      %p988 = por %p986, %p987
      %s989 = ssub.s32 %s101, %s108
      %p990 = scmp.eq.s32.totalorder %s989, 0
      %s992 = sadd.s32 %s991, 1
      %s993 = scalar_select %p990, %s991, %s992
      %p996 = pneg %p990
      %p997 = scmp.eq.s32.totalorder %s101, 1
      %p998 = por %p996, %p997
      %p999 = scmp.ne.s32.totalorder %s991, %s994
      %p1000 = scmp.eq.s32.totalorder %s101, 0
      %p1001 = por %p999, %p1000
      %p1002 = scmp.ne.s32.totalorder %s991, %s994
      %p1003 = scmp.eq.s32.totalorder %s106, 1
      %p1004 = por %p1002, %p1003
      %p1005 = scmp.ne.s32.totalorder %s994, %s995
      %p1006 = scmp.eq.s32.totalorder %s106, 0
      %p1007 = por %p1005, %p1006
      %p1008 = scmp.ne.s32.totalorder %s994, %s995
      %p1009 = scmp.eq.s32.totalorder %s107, 1
      %p1010 = por %p1008, %p1009
      %p1012 = scmp.ne.s32.totalorder %s995, %s1011
      %p1013 = scmp.eq.s32.totalorder %s107, 0
      %p1014 = por %p1012, %p1013
      %s1015 = ssub.s32 %s101, %s108
      %p1016 = scmp.eq.s32.totalorder %s1015, 0
      %s1018 = sadd.s32 %s1017, 1
      %s1019 = scalar_select %p1016, %s1017, %s1018
      %p1022 = pneg %p1016
      %p1023 = scmp.eq.s32.totalorder %s101, 1
      %p1024 = por %p1022, %p1023
      %p1025 = scmp.ne.s32.totalorder %s1017, %s1020
      %p1026 = scmp.eq.s32.totalorder %s101, 0
      %p1027 = por %p1025, %p1026
      %p1028 = scmp.ne.s32.totalorder %s1017, %s1020
      %p1029 = scmp.eq.s32.totalorder %s106, 1
      %p1030 = por %p1028, %p1029
      %p1031 = scmp.ne.s32.totalorder %s1020, %s1021
      %p1032 = scmp.eq.s32.totalorder %s106, 0
      %p1033 = por %p1031, %p1032
      %p1034 = scmp.ne.s32.totalorder %s1020, %s1021
      %p1035 = scmp.eq.s32.totalorder %s107, 1
      %p1036 = por %p1034, %p1035
      %p1038 = scmp.ne.s32.totalorder %s1021, %s1037
      %p1039 = scmp.eq.s32.totalorder %s107, 0
      %p1040 = por %p1038, %p1039
      %s1041 = ssub.s32 %s101, %s108
      %p1042 = scmp.eq.s32.totalorder %s1041, 0
      %s1044 = sadd.s32 %s1043, 1
      %s1045 = scalar_select %p1042, %s1043, %s1044
      %p1048 = pneg %p1042
      %p1049 = scmp.eq.s32.totalorder %s101, 1
      %p1050 = por %p1048, %p1049
      %p1051 = scmp.ne.s32.totalorder %s1043, %s1046
      %p1052 = scmp.eq.s32.totalorder %s101, 0
      %p1053 = por %p1051, %p1052
      %p1054 = scmp.ne.s32.totalorder %s1043, %s1046
      %p1055 = scmp.eq.s32.totalorder %s106, 1
      %p1056 = por %p1054, %p1055
      %p1057 = scmp.ne.s32.totalorder %s1046, %s1047
      %p1058 = scmp.eq.s32.totalorder %s106, 0
      %p1059 = por %p1057, %p1058
      %p1060 = scmp.ne.s32.totalorder %s1046, %s1047
      %p1061 = scmp.eq.s32.totalorder %s107, 1
      %p1062 = por %p1060, %p1061
      %p1064 = scmp.ne.s32.totalorder %s1047, %s1063
      %p1065 = scmp.eq.s32.totalorder %s107, 0
      %p1066 = por %p1064, %p1065
      %s1067 = ssub.s32 %s101, %s108
      %p1068 = scmp.eq.s32.totalorder %s1067, 0
      %s1070 = sadd.s32 %s1069, 1
      %s1071 = scalar_select %p1068, %s1069, %s1070
      %p1074 = pneg %p1068
      %p1075 = scmp.eq.s32.totalorder %s101, 1
      %p1076 = por %p1074, %p1075
      %p1077 = scmp.ne.s32.totalorder %s1069, %s1072
      %p1078 = scmp.eq.s32.totalorder %s101, 0
      %p1079 = por %p1077, %p1078
      %p1080 = scmp.ne.s32.totalorder %s1069, %s1072
      %p1081 = scmp.eq.s32.totalorder %s106, 1
      %p1082 = por %p1080, %p1081
      %p1083 = scmp.ne.s32.totalorder %s1072, %s1073
      %p1084 = scmp.eq.s32.totalorder %s106, 0
      %p1085 = por %p1083, %p1084
      %p1086 = scmp.ne.s32.totalorder %s1072, %s1073
      %p1087 = scmp.eq.s32.totalorder %s107, 1
      %p1088 = por %p1086, %p1087
      %p1090 = scmp.ne.s32.totalorder %s1073, %s1089
      %p1091 = scmp.eq.s32.totalorder %s107, 0
      %p1092 = por %p1090, %p1091
      %s1093 = ssub.s32 %s101, %s108
      %p1094 = scmp.eq.s32.totalorder %s1093, 0
      %s1096 = sadd.s32 %s1095, 1
      %s1097 = scalar_select %p1094, %s1095, %s1096
      %p1100 = pneg %p1094
      %p1101 = scmp.eq.s32.totalorder %s101, 1
      %p1102 = por %p1100, %p1101
      %p1103 = scmp.ne.s32.totalorder %s1095, %s1098
      %p1104 = scmp.eq.s32.totalorder %s101, 0
      %p1105 = por %p1103, %p1104
      %p1106 = scmp.ne.s32.totalorder %s1095, %s1098
      %p1107 = scmp.eq.s32.totalorder %s106, 1
      %p1108 = por %p1106, %p1107
      %p1109 = scmp.ne.s32.totalorder %s1098, %s1099
      %p1110 = scmp.eq.s32.totalorder %s106, 0
      %p1111 = por %p1109, %p1110
      %p1112 = scmp.ne.s32.totalorder %s1098, %s1099
      %p1113 = scmp.eq.s32.totalorder %s107, 1
      %p1114 = por %p1112, %p1113
      %p1116 = scmp.ne.s32.totalorder %s1099, %s1115
      %p1117 = scmp.eq.s32.totalorder %s107, 0
      %p1118 = por %p1116, %p1117
      %s1119 = ssub.s32 %s101, %s108
      %p1120 = scmp.eq.s32.totalorder %s1119, 0
      %s1122 = sadd.s32 %s1121, 1
      %s1123 = scalar_select %p1120, %s1121, %s1122
      %p1126 = pneg %p1120
      %p1127 = scmp.eq.s32.totalorder %s101, 1
      %p1128 = por %p1126, %p1127
      %p1129 = scmp.ne.s32.totalorder %s1121, %s1124
      %p1130 = scmp.eq.s32.totalorder %s101, 0
      %p1131 = por %p1129, %p1130
      %p1132 = scmp.ne.s32.totalorder %s1121, %s1124
      %p1133 = scmp.eq.s32.totalorder %s106, 1
      %p1134 = por %p1132, %p1133
      %p1135 = scmp.ne.s32.totalorder %s1124, %s1125
      %p1136 = scmp.eq.s32.totalorder %s106, 0
      %p1137 = por %p1135, %p1136
      %p1138 = scmp.ne.s32.totalorder %s1124, %s1125
      %p1139 = scmp.eq.s32.totalorder %s107, 1
      %p1140 = por %p1138, %p1139
      %p1142 = scmp.ne.s32.totalorder %s1125, %s1141
      %p1143 = scmp.eq.s32.totalorder %s107, 0
      %p1144 = por %p1142, %p1143
      %s1145 = ssub.s32 %s101, %s108
      %p1146 = scmp.eq.s32.totalorder %s1145, 0
      %s1148 = sadd.s32 %s1147, 1
      %s1149 = scalar_select %p1146, %s1147, %s1148
      %p1152 = pneg %p1146
      %p1153 = scmp.eq.s32.totalorder %s101, 1
      %p1154 = por %p1152, %p1153
      %p1155 = scmp.ne.s32.totalorder %s1147, %s1150
      %p1156 = scmp.eq.s32.totalorder %s101, 0
      %p1157 = por %p1155, %p1156
      %p1158 = scmp.ne.s32.totalorder %s1147, %s1150
      %p1159 = scmp.eq.s32.totalorder %s106, 1
      %p1160 = por %p1158, %p1159
      %p1161 = scmp.ne.s32.totalorder %s1150, %s1151
      %p1162 = scmp.eq.s32.totalorder %s106, 0
      %p1163 = por %p1161, %p1162
      %p1164 = scmp.ne.s32.totalorder %s1150, %s1151
      %p1165 = scmp.eq.s32.totalorder %s107, 1
      %p1166 = por %p1164, %p1165
      %p1168 = scmp.ne.s32.totalorder %s1151, %s1167
      %p1169 = scmp.eq.s32.totalorder %s107, 0
      %p1170 = por %p1168, %p1169
      %s1172 = sadd.s32 %s1171, 1
      %p1175 = scmp.eq.s32.totalorder %s101, 1
      %p1176 = scmp.ne.s32.totalorder %s1171, %s1173
      %p1177 = scmp.eq.s32.totalorder %s101, 0
      %p1178 = por %p1176, %p1177
      %p1179 = scmp.ne.s32.totalorder %s1171, %s1173
      %p1180 = scmp.eq.s32.totalorder %s106, 1
      %p1181 = por %p1179, %p1180
      %p1182 = scmp.ne.s32.totalorder %s1173, %s1174
      %p1183 = scmp.eq.s32.totalorder %s106, 0
      %p1184 = por %p1182, %p1183
      %p1185 = scmp.ne.s32.totalorder %s1173, %s1174
      %p1186 = scmp.eq.s32.totalorder %s107, 1
      %p1187 = por %p1185, %p1186
      %p1189 = scmp.ne.s32.totalorder %s1174, %s1188
      %p1190 = scmp.eq.s32.totalorder %s107, 0
      %p1191 = por %p1189, %p1190
      %s1193 = sadd.s32 %s1192, 1
      %p1196 = scmp.eq.s32.totalorder %s101, 1
      %p1197 = scmp.ne.s32.totalorder %s1192, %s1194
      %p1198 = scmp.eq.s32.totalorder %s101, 0
      %p1199 = por %p1197, %p1198
      %p1200 = scmp.ne.s32.totalorder %s1192, %s1194
      %p1201 = scmp.eq.s32.totalorder %s106, 1
      %p1202 = por %p1200, %p1201
      %p1203 = scmp.ne.s32.totalorder %s1194, %s1195
      %p1204 = scmp.eq.s32.totalorder %s106, 0
      %p1205 = por %p1203, %p1204
      %p1206 = scmp.ne.s32.totalorder %s1194, %s1195
      %p1207 = scmp.eq.s32.totalorder %s107, 1
      %p1208 = por %p1206, %p1207
      %p1210 = scmp.ne.s32.totalorder %s1195, %s1209
      %p1211 = scmp.eq.s32.totalorder %s107, 0
      %p1212 = por %p1210, %p1211
      %s1214 = sadd.s32 %s1213, 1
      %p1217 = scmp.eq.s32.totalorder %s101, 1
      %p1218 = scmp.ne.s32.totalorder %s1213, %s1215
      %p1219 = scmp.eq.s32.totalorder %s101, 0
      %p1220 = por %p1218, %p1219
      %p1221 = scmp.ne.s32.totalorder %s1213, %s1215
      %p1222 = scmp.eq.s32.totalorder %s106, 1
      %p1223 = por %p1221, %p1222
      %p1224 = scmp.ne.s32.totalorder %s1215, %s1216
      %p1225 = scmp.eq.s32.totalorder %s106, 0
      %p1226 = por %p1224, %p1225
      %p1227 = scmp.ne.s32.totalorder %s1215, %s1216
      %p1228 = scmp.eq.s32.totalorder %s107, 1
      %p1229 = por %p1227, %p1228
      %p1231 = scmp.ne.s32.totalorder %s1216, %s1230
      %p1232 = scmp.eq.s32.totalorder %s107, 0
      %p1233 = por %p1231, %p1232
      %s1235 = sadd.s32 %s1234, 1
      %p1238 = scmp.eq.s32.totalorder %s101, 1
      %p1239 = scmp.ne.s32.totalorder %s1234, %s1236
      %p1240 = scmp.eq.s32.totalorder %s101, 0
      %p1241 = por %p1239, %p1240
      %p1242 = scmp.ne.s32.totalorder %s1234, %s1236
      %p1243 = scmp.eq.s32.totalorder %s106, 1
      %p1244 = por %p1242, %p1243
      %p1245 = scmp.ne.s32.totalorder %s1236, %s1237
      %p1246 = scmp.eq.s32.totalorder %s106, 0
      %p1247 = por %p1245, %p1246
      %p1248 = scmp.ne.s32.totalorder %s1236, %s1237
      %p1249 = scmp.eq.s32.totalorder %s107, 1
      %p1250 = por %p1248, %p1249
      %p1252 = scmp.ne.s32.totalorder %s1237, %s1251
      %p1253 = scmp.eq.s32.totalorder %s107, 0
      %p1254 = por %p1252, %p1253
      %s1255 = ssub.s32 %s101, %s108
      %p1256 = scmp.eq.s32.totalorder %s1255, 0
      %s1258 = sadd.s32 %s1257, 1
      %s1259 = scalar_select %p1256, %s1257, %s1258
      %p1262 = pneg %p1256
      %p1263 = scmp.eq.s32.totalorder %s101, 1
      %p1264 = por %p1262, %p1263
      %p1265 = scmp.ne.s32.totalorder %s1257, %s1260
      %p1266 = scmp.eq.s32.totalorder %s101, 0
      %p1267 = por %p1265, %p1266
      %p1268 = scmp.ne.s32.totalorder %s1257, %s1260
      %p1269 = scmp.eq.s32.totalorder %s106, 1
      %p1270 = por %p1268, %p1269
      %p1271 = scmp.ne.s32.totalorder %s1260, %s1261
      %p1272 = scmp.eq.s32.totalorder %s106, 0
      %p1273 = por %p1271, %p1272
      %p1274 = scmp.ne.s32.totalorder %s1260, %s1261
      %p1275 = scmp.eq.s32.totalorder %s107, 1
      %p1276 = por %p1274, %p1275
      %p1278 = scmp.ne.s32.totalorder %s1261, %s1277
      %p1279 = scmp.eq.s32.totalorder %s107, 0
      %p1280 = por %p1278, %p1279
      %p1281 = scmp.le.s32.totalorder 1, %s101
      %p1282 = scmp.lt.s32.totalorder %s101, 3
      %p1283 = pnand %p1281, %p1282
      %p1284 = pneg %p1283
      // Predicated region
      $region9: #{_lambda_.1} parent=5 // pred_check
        _
      $region10: #{_lambda_.1} parent=5 // pred_check_branch
        %1286 = sbr.rel (%p1283) target = $region12
      $region11: #{_lambda_.1} parent=5 // pred_region
        %s1287 = ssub.s32 %s101, 1
        // Predicated region
        $region13: #{_lambda_.1} parent=11 // pred_check
          %p1288 = pneg %p174
        $region14: #{_lambda_.1} parent=11 // pred_check_branch
          %1290 = sbr.rel (%p1288) target = $region16
        $region15: #{_lambda_.1} parent=11 // pred_region
          _
        $region16: #{_lambda_.1} parent=11 // pred_fallthru
          _
        // Predicated region
        $region17: #{_lambda_.1} parent=11 // pred_check
          %p1291 = pneg %p195
        $region18: #{_lambda_.1} parent=11 // pred_check_branch
          %1293 = sbr.rel (%p1291) target = $region20
        $region19: #{_lambda_.1} parent=11 // pred_region
          _
        $region20: #{_lambda_.1} parent=11 // pred_fallthru
          _
        // Predicated region
        $region21: #{_lambda_.1} parent=11 // pred_check
          %p1294 = pneg %p216
        $region22: #{_lambda_.1} parent=11 // pred_check_branch
          %1296 = sbr.rel (%p1294) target = $region24
        $region23: #{_lambda_.1} parent=11 // pred_region
          _
        $region24: #{_lambda_.1} parent=11 // pred_fallthru
          _
        // Predicated region
        $region25: #{_lambda_.1} parent=11 // pred_check
          %p1297 = pneg %p237
        $region26: #{_lambda_.1} parent=11 // pred_check_branch
          %1299 = sbr.rel (%p1297) target = $region28
        $region27: #{_lambda_.1} parent=11 // pred_region
          _
        $region28: #{_lambda_.1} parent=11 // pred_fallthru
          _
        // Predicated region
        $region29: #{_lambda_.1} parent=11 // pred_check
          %p1300 = pneg %p258
        $region30: #{_lambda_.1} parent=11 // pred_check_branch
          %1302 = sbr.rel (%p1300) target = $region32
        $region31: #{_lambda_.1} parent=11 // pred_region
          _
        $region32: #{_lambda_.1} parent=11 // pred_fallthru
          _
        // Predicated region
        $region33: #{_lambda_.1} parent=11 // pred_check
          %p1303 = pneg %p279
        $region34: #{_lambda_.1} parent=11 // pred_check_branch
          %1305 = sbr.rel (%p1303) target = $region36
        $region35: #{_lambda_.1} parent=11 // pred_region
          %s1307 = ssub.s32 16, 16
          %1308 = vsyncadd [#allocation3], %s1307
          %s1310 = sshll.u32 [#allocation2], 4
          %s1311 = int_to_ptr.vmem [resolvable:$true] %s1310
          %1313 = dma.hbm_to_vmem [thread:$0]  %s15, 16, %s1311, [#allocation3]
        $region36: #{_lambda_.1} parent=11 // pred_fallthru
          _
        // Predicated region
        $region37: #{_lambda_.1} parent=11 // pred_check
          %p1314 = pneg %p1184
        $region38: #{_lambda_.1} parent=11 // pred_check_branch
          %1316 = sbr.rel (%p1314) target = $region40
        $region39: #{_lambda_.1} parent=11 // pred_region
          _
        $region40: #{_lambda_.1} parent=11 // pred_fallthru
          _
        // Predicated region
        $region41: #{_lambda_.1} parent=11 // pred_check
          %p1317 = pneg %p1205
        $region42: #{_lambda_.1} parent=11 // pred_check_branch
          %1319 = sbr.rel (%p1317) target = $region44
        $region43: #{_lambda_.1} parent=11 // pred_region
          %s1321 = ssub.s32 16, 16
          %1322 = vsyncadd [#allocation5], %s1321
          %s1324 = sshll.u32 [#allocation4], 4
          %s1325 = int_to_ptr.vmem [resolvable:$true] %s1324
          %1327 = dma.hbm_to_vmem [thread:$0]  %s87, 16, %s1325, [#allocation5]
        $region44: #{_lambda_.1} parent=11 // pred_fallthru
          _
        // Predicated region
        $region45: #{_lambda_.1} parent=11 // pred_check
          %p1328 = pneg %p1226
        $region46: #{_lambda_.1} parent=11 // pred_check_branch
          %1330 = sbr.rel (%p1328) target = $region48
        $region47: #{_lambda_.1} parent=11 // pred_region
          _
        $region48: #{_lambda_.1} parent=11 // pred_fallthru
          _
        // Predicated region
        $region49: #{_lambda_.1} parent=11 // pred_check
          %p1331 = pneg %p1247
        $region50: #{_lambda_.1} parent=11 // pred_check_branch
          %1333 = sbr.rel (%p1331) target = $region52
        $region51: #{_lambda_.1} parent=11 // pred_region
          _
        $region52: #{_lambda_.1} parent=11 // pred_fallthru
          _
      $region12: #{_lambda_.1} parent=5 // pred_fallthru
        _
      %p1334 = scmp.lt.s32.totalorder %s101, 2
      // Predicated region
      $region53: #{_lambda_.1} parent=5 // pred_check
        %p1335 = pneg %p1334
      $region54: #{_lambda_.1} parent=5 // pred_check_branch
        %1337 = sbr.rel (%p1335) target = $region56
      $region55: #{_lambda_.1} parent=5 // pred_region
        // Predicated region
        $region57: #{_lambda_.1} parent=55 // pred_check
          %p1338 = pneg %p121
        $region58: #{_lambda_.1} parent=55 // pred_check_branch
          %1340 = sbr.rel (%p1338) target = $region60
        $region59: #{_lambda_.1} parent=55 // pred_region
          %p1341 = scmp.lt.s32.totalorder %s101, 1
          %s1342 = scalar_select %p1341, %s101, 1
          %s1343 = smul.addr %s1342, 2
          %s1344 = smul.addr %s1343, 8
          %s1345 = scalar_lea.vmem %s1, %s1344
        $region60: #{_lambda_.1} parent=55 // pred_fallthru
          _
        // Predicated region
        $region61: #{_lambda_.1} parent=55 // pred_check
          %p1346 = pneg %p147
        $region62: #{_lambda_.1} parent=55 // pred_check_branch
          %1348 = sbr.rel (%p1346) target = $region64
        $region63: #{_lambda_.1} parent=55 // pred_region
          %p1349 = scmp.lt.s32.totalorder %s101, 1
          %s1350 = scalar_select %p1349, %s101, 1
          %s1351 = smul.addr %s1350, 2
          %s1352 = smul.addr %s1351, 4
          %s1353 = scalar_lea.vmem %s3, %s1352
        $region64: #{_lambda_.1} parent=55 // pred_fallthru
          _
        // Predicated region
        $region65: #{_lambda_.1} parent=55 // pred_check
          %p1354 = pneg %p299
        $region66: #{_lambda_.1} parent=55 // pred_check_branch
          %1356 = sbr.rel (%p1354) target = $region68
        $region67: #{_lambda_.1} parent=55 // pred_region
          %p1357 = scmp.lt.s32.totalorder %s101, 1
          %s1358 = scalar_select %p1357, %s101, 1
          %s1359 = scalar_lea.vmem %s17, %s1358
        $region68: #{_lambda_.1} parent=55 // pred_fallthru
          _
        // Predicated region
        $region69: #{_lambda_.1} parent=55 // pred_check
          %p1360 = pneg %p325
        $region70: #{_lambda_.1} parent=55 // pred_check_branch
          %1362 = sbr.rel (%p1360) target = $region72
        $region71: #{_lambda_.1} parent=55 // pred_region
          %p1363 = scmp.lt.s32.totalorder %s101, 1
          %s1364 = scalar_select %p1363, %s101, 1
          %s1365 = smul.addr %s1364, 4
          %s1366 = smul.addr %s1365, 8
          %s1367 = scalar_lea.vmem %s19, %s1366
        $region72: #{_lambda_.1} parent=55 // pred_fallthru
          _
        // Predicated region
        $region73: #{_lambda_.1} parent=55 // pred_check
          %p1368 = pneg %p351
        $region74: #{_lambda_.1} parent=55 // pred_check_branch
          %1370 = sbr.rel (%p1368) target = $region76
        $region75: #{_lambda_.1} parent=55 // pred_region
          %p1371 = scmp.lt.s32.totalorder %s101, 1
          %s1372 = scalar_select %p1371, %s101, 1
          %s1373 = scalar_lea.vmem %s21, %s1372
        $region76: #{_lambda_.1} parent=55 // pred_fallthru
          _
        // Predicated region
        $region77: #{_lambda_.1} parent=55 // pred_check
          %p1374 = pneg %p377
        $region78: #{_lambda_.1} parent=55 // pred_check_branch
          %1376 = sbr.rel (%p1374) target = $region80
        $region79: #{_lambda_.1} parent=55 // pred_region
          %p1377 = scmp.lt.s32.totalorder %s101, 1
          %s1378 = scalar_select %p1377, %s101, 1
          %s1379 = smul.addr %s1378, 8
          %s1380 = smul.addr %s1379, 8
          %s1381 = scalar_lea.vmem %s23, %s1380
        $region80: #{_lambda_.1} parent=55 // pred_fallthru
          _
        // Predicated region
        $region81: #{_lambda_.1} parent=55 // pred_check
          %p1382 = pneg %p403
        $region82: #{_lambda_.1} parent=55 // pred_check_branch
          %1384 = sbr.rel (%p1382) target = $region84
        $region83: #{_lambda_.1} parent=55 // pred_region
          %p1385 = scmp.lt.s32.totalorder %s101, 1
          %s1386 = scalar_select %p1385, %s101, 1
          %s1387 = scalar_lea.vmem %s25, %s1386
        $region84: #{_lambda_.1} parent=55 // pred_fallthru
          _
        // Predicated region
        $region85: #{_lambda_.1} parent=55 // pred_check
          %p1388 = pneg %p429
        $region86: #{_lambda_.1} parent=55 // pred_check_branch
          %1390 = sbr.rel (%p1388) target = $region88
        $region87: #{_lambda_.1} parent=55 // pred_region
          %p1391 = scmp.lt.s32.totalorder %s101, 1
          %s1392 = scalar_select %p1391, %s101, 1
          %s1393 = scalar_lea.vmem %s27, %s1392
        $region88: #{_lambda_.1} parent=55 // pred_fallthru
          _
        // Predicated region
        $region89: #{_lambda_.1} parent=55 // pred_check
          %p1394 = pneg %p455
        $region90: #{_lambda_.1} parent=55 // pred_check_branch
          %1396 = sbr.rel (%p1394) target = $region92
        $region91: #{_lambda_.1} parent=55 // pred_region
          %p1397 = scmp.lt.s32.totalorder %s101, 1
          %s1398 = scalar_select %p1397, %s101, 1
          %s1399 = scalar_lea.vmem %s29, %s1398
        $region92: #{_lambda_.1} parent=55 // pred_fallthru
          _
        // Predicated region
        $region93: #{_lambda_.1} parent=55 // pred_check
          %p1400 = pneg %p481
        $region94: #{_lambda_.1} parent=55 // pred_check_branch
          %1402 = sbr.rel (%p1400) target = $region96
        $region95: #{_lambda_.1} parent=55 // pred_region
          %p1403 = scmp.lt.s32.totalorder %s101, 1
          %s1404 = scalar_select %p1403, %s101, 1
          %s1405 = scalar_lea.vmem %s31, %s1404
        $region96: #{_lambda_.1} parent=55 // pred_fallthru
          _
        // Predicated region
        $region97: #{_lambda_.1} parent=55 // pred_check
          %p1406 = pneg %p507
        $region98: #{_lambda_.1} parent=55 // pred_check_branch
          %1408 = sbr.rel (%p1406) target = $region100
        $region99: #{_lambda_.1} parent=55 // pred_region
          %p1409 = scmp.lt.s32.totalorder %s101, 1
          %s1410 = scalar_select %p1409, %s101, 1
          %s1411 = scalar_lea.vmem %s33, %s1410
        $region100: #{_lambda_.1} parent=55 // pred_fallthru
          _
        // Predicated region
        $region101: #{_lambda_.1} parent=55 // pred_check
          %p1412 = pneg %p533
        $region102: #{_lambda_.1} parent=55 // pred_check_branch
          %1414 = sbr.rel (%p1412) target = $region104
        $region103: #{_lambda_.1} parent=55 // pred_region
          %p1415 = scmp.lt.s32.totalorder %s101, 1
          %s1416 = scalar_select %p1415, %s101, 1
          %s1417 = smul.addr %s1416, 4
          %s1418 = smul.addr %s1417, 8
          %s1419 = scalar_lea.vmem %s35, %s1418
        $region104: #{_lambda_.1} parent=55 // pred_fallthru
          _
        // Predicated region
        $region105: #{_lambda_.1} parent=55 // pred_check
          %p1420 = pneg %p559
        $region106: #{_lambda_.1} parent=55 // pred_check_branch
          %1422 = sbr.rel (%p1420) target = $region108
        $region107: #{_lambda_.1} parent=55 // pred_region
          %p1423 = scmp.lt.s32.totalorder %s101, 1
          %s1424 = scalar_select %p1423, %s101, 1
          %s1425 = scalar_lea.vmem %s37, %s1424
        $region108: #{_lambda_.1} parent=55 // pred_fallthru
          _
        // Predicated region
        $region109: #{_lambda_.1} parent=55 // pred_check
          %p1426 = pneg %p585
        $region110: #{_lambda_.1} parent=55 // pred_check_branch
          %1428 = sbr.rel (%p1426) target = $region112
        $region111: #{_lambda_.1} parent=55 // pred_region
          %p1429 = scmp.lt.s32.totalorder %s101, 1
          %s1430 = scalar_select %p1429, %s101, 1
          %s1431 = smul.addr %s1430, 4
          %s1432 = smul.addr %s1431, 8
          %s1433 = scalar_lea.vmem %s39, %s1432
        $region112: #{_lambda_.1} parent=55 // pred_fallthru
          _
        // Predicated region
        $region113: #{_lambda_.1} parent=55 // pred_check
          %p1434 = pneg %p611
        $region114: #{_lambda_.1} parent=55 // pred_check_branch
          %1436 = sbr.rel (%p1434) target = $region116
        $region115: #{_lambda_.1} parent=55 // pred_region
          %p1437 = scmp.lt.s32.totalorder %s101, 1
          %s1438 = scalar_select %p1437, %s101, 1
          %s1439 = smul.addr %s1438, 4
          %s1440 = scalar_lea.vmem %s41, %s1439
        $region116: #{_lambda_.1} parent=55 // pred_fallthru
          _
        // Predicated region
        $region117: #{_lambda_.1} parent=55 // pred_check
          %p1441 = pneg %p637
        $region118: #{_lambda_.1} parent=55 // pred_check_branch
          %1443 = sbr.rel (%p1441) target = $region120
        $region119: #{_lambda_.1} parent=55 // pred_region
          %p1444 = scmp.lt.s32.totalorder %s101, 1
          %s1445 = scalar_select %p1444, %s101, 1
          %s1446 = smul.addr %s1445, 4
          %s1447 = scalar_lea.vmem %s43, %s1446
        $region120: #{_lambda_.1} parent=55 // pred_fallthru
          _
        // Predicated region
        $region121: #{_lambda_.1} parent=55 // pred_check
          %p1448 = pneg %p663
        $region122: #{_lambda_.1} parent=55 // pred_check_branch
          %1450 = sbr.rel (%p1448) target = $region124
        $region123: #{_lambda_.1} parent=55 // pred_region
          %p1451 = scmp.lt.s32.totalorder %s101, 1
          %s1452 = scalar_select %p1451, %s101, 1
          %s1453 = scalar_lea.vmem %s45, %s1452
        $region124: #{_lambda_.1} parent=55 // pred_fallthru
          _
        // Predicated region
        $region125: #{_lambda_.1} parent=55 // pred_check
          %p1454 = pneg %p689
        $region126: #{_lambda_.1} parent=55 // pred_check_branch
          %1456 = sbr.rel (%p1454) target = $region128
        $region127: #{_lambda_.1} parent=55 // pred_region
          %p1457 = scmp.lt.s32.totalorder %s101, 1
          %s1458 = scalar_select %p1457, %s101, 1
          %s1459 = smul.addr %s1458, 4
          %s1460 = smul.addr %s1459, 8
          %s1461 = scalar_lea.vmem %s47, %s1460
        $region128: #{_lambda_.1} parent=55 // pred_fallthru
          _
        // Predicated region
        $region129: #{_lambda_.1} parent=55 // pred_check
          %p1462 = pneg %p715
        $region130: #{_lambda_.1} parent=55 // pred_check_branch
          %1464 = sbr.rel (%p1462) target = $region132
        $region131: #{_lambda_.1} parent=55 // pred_region
          %p1465 = scmp.lt.s32.totalorder %s101, 1
          %s1466 = scalar_select %p1465, %s101, 1
          %s1467 = scalar_lea.vmem %s49, %s1466
        $region132: #{_lambda_.1} parent=55 // pred_fallthru
          _
        // Predicated region
        $region133: #{_lambda_.1} parent=55 // pred_check
          %p1468 = pneg %p741
        $region134: #{_lambda_.1} parent=55 // pred_check_branch
          %1470 = sbr.rel (%p1468) target = $region136
        $region135: #{_lambda_.1} parent=55 // pred_region
          %p1471 = scmp.lt.s32.totalorder %s101, 1
          %s1472 = scalar_select %p1471, %s101, 1
          %s1473 = smul.addr %s1472, 4
          %s1474 = smul.addr %s1473, 8
          %s1475 = scalar_lea.vmem %s51, %s1474
        $region136: #{_lambda_.1} parent=55 // pred_fallthru
          _
        // Predicated region
        $region137: #{_lambda_.1} parent=55 // pred_check
          %p1476 = pneg %p767
        $region138: #{_lambda_.1} parent=55 // pred_check_branch
          %1478 = sbr.rel (%p1476) target = $region140
        $region139: #{_lambda_.1} parent=55 // pred_region
          %p1479 = scmp.lt.s32.totalorder %s101, 1
          %s1480 = scalar_select %p1479, %s101, 1
          %s1481 = scalar_lea.vmem %s53, %s1480
        $region140: #{_lambda_.1} parent=55 // pred_fallthru
          _
        // Predicated region
        $region141: #{_lambda_.1} parent=55 // pred_check
          %p1482 = pneg %p793
        $region142: #{_lambda_.1} parent=55 // pred_check_branch
          %1484 = sbr.rel (%p1482) target = $region144
        $region143: #{_lambda_.1} parent=55 // pred_region
          %p1485 = scmp.lt.s32.totalorder %s101, 1
          %s1486 = scalar_select %p1485, %s101, 1
          %s1487 = smul.addr %s1486, 4
          %s1488 = smul.addr %s1487, 8
          %s1489 = scalar_lea.vmem %s55, %s1488
        $region144: #{_lambda_.1} parent=55 // pred_fallthru
          _
        // Predicated region
        $region145: #{_lambda_.1} parent=55 // pred_check
          %p1490 = pneg %p819
        $region146: #{_lambda_.1} parent=55 // pred_check_branch
          %1492 = sbr.rel (%p1490) target = $region148
        $region147: #{_lambda_.1} parent=55 // pred_region
          %p1493 = scmp.lt.s32.totalorder %s101, 1
          %s1494 = scalar_select %p1493, %s101, 1
          %s1495 = scalar_lea.vmem %s57, %s1494
        $region148: #{_lambda_.1} parent=55 // pred_fallthru
          _
        // Predicated region
        $region149: #{_lambda_.1} parent=55 // pred_check
          %p1496 = pneg %p845
        $region150: #{_lambda_.1} parent=55 // pred_check_branch
          %1498 = sbr.rel (%p1496) target = $region152
        $region151: #{_lambda_.1} parent=55 // pred_region
          %p1499 = scmp.lt.s32.totalorder %s101, 1
          %s1500 = scalar_select %p1499, %s101, 1
          %s1501 = smul.addr %s1500, 4
          %s1502 = smul.addr %s1501, 8
          %s1503 = scalar_lea.vmem %s59, %s1502
        $region152: #{_lambda_.1} parent=55 // pred_fallthru
          _
        // Predicated region
        $region153: #{_lambda_.1} parent=55 // pred_check
          %p1504 = pneg %p871
        $region154: #{_lambda_.1} parent=55 // pred_check_branch
          %1506 = sbr.rel (%p1504) target = $region156
        $region155: #{_lambda_.1} parent=55 // pred_region
          %p1507 = scmp.lt.s32.totalorder %s101, 1
          %s1508 = scalar_select %p1507, %s101, 1
          %s1509 = scalar_lea.vmem %s61, %s1508
        $region156: #{_lambda_.1} parent=55 // pred_fallthru
          _
        // Predicated region
        $region157: #{_lambda_.1} parent=55 // pred_check
          %p1510 = pneg %p897
        $region158: #{_lambda_.1} parent=55 // pred_check_branch
          %1512 = sbr.rel (%p1510) target = $region160
        $region159: #{_lambda_.1} parent=55 // pred_region
          %p1513 = scmp.lt.s32.totalorder %s101, 1
          %s1514 = scalar_select %p1513, %s101, 1
          %s1515 = smul.addr %s1514, 8
          %s1516 = smul.addr %s1515, 8
          %s1517 = scalar_lea.vmem %s63, %s1516
        $region160: #{_lambda_.1} parent=55 // pred_fallthru
          _
        // Predicated region
        $region161: #{_lambda_.1} parent=55 // pred_check
          %p1518 = pneg %p923
        $region162: #{_lambda_.1} parent=55 // pred_check_branch
          %1520 = sbr.rel (%p1518) target = $region164
        $region163: #{_lambda_.1} parent=55 // pred_region
          %p1521 = scmp.lt.s32.totalorder %s101, 1
          %s1522 = scalar_select %p1521, %s101, 1
          %s1523 = scalar_lea.vmem %s65, %s1522
        $region164: #{_lambda_.1} parent=55 // pred_fallthru
          _
        // Predicated region
        $region165: #{_lambda_.1} parent=55 // pred_check
          %p1524 = pneg %p949
        $region166: #{_lambda_.1} parent=55 // pred_check_branch
          %1526 = sbr.rel (%p1524) target = $region168
        $region167: #{_lambda_.1} parent=55 // pred_region
          %p1527 = scmp.lt.s32.totalorder %s101, 1
          %s1528 = scalar_select %p1527, %s101, 1
          %s1529 = scalar_lea.vmem %s67, %s1528
        $region168: #{_lambda_.1} parent=55 // pred_fallthru
          _
        // Predicated region
        $region169: #{_lambda_.1} parent=55 // pred_check
          %p1530 = pneg %p975
        $region170: #{_lambda_.1} parent=55 // pred_check_branch
          %1532 = sbr.rel (%p1530) target = $region172
        $region171: #{_lambda_.1} parent=55 // pred_region
          %p1533 = scmp.lt.s32.totalorder %s101, 1
          %s1534 = scalar_select %p1533, %s101, 1
          %s1535 = scalar_lea.vmem %s69, %s1534
        $region172: #{_lambda_.1} parent=55 // pred_fallthru
          _
        // Predicated region
        $region173: #{_lambda_.1} parent=55 // pred_check
          %p1536 = pneg %p1001
        $region174: #{_lambda_.1} parent=55 // pred_check_branch
          %1538 = sbr.rel (%p1536) target = $region176
        $region175: #{_lambda_.1} parent=55 // pred_region
          %p1539 = scmp.lt.s32.totalorder %s101, 1
          %s1540 = scalar_select %p1539, %s101, 1
          %s1541 = scalar_lea.vmem %s71, %s1540
        $region176: #{_lambda_.1} parent=55 // pred_fallthru
          _
        // Predicated region
        $region177: #{_lambda_.1} parent=55 // pred_check
          %p1542 = pneg %p1027
        $region178: #{_lambda_.1} parent=55 // pred_check_branch
          %1544 = sbr.rel (%p1542) target = $region180
        $region179: #{_lambda_.1} parent=55 // pred_region
          %p1545 = scmp.lt.s32.totalorder %s101, 1
          %s1546 = scalar_select %p1545, %s101, 1
          %s1547 = scalar_lea.vmem %s73, %s1546
        $region180: #{_lambda_.1} parent=55 // pred_fallthru
          _
        // Predicated region
        $region181: #{_lambda_.1} parent=55 // pred_check
          %p1548 = pneg %p1053
        $region182: #{_lambda_.1} parent=55 // pred_check_branch
          %1550 = sbr.rel (%p1548) target = $region184
        $region183: #{_lambda_.1} parent=55 // pred_region
          %p1551 = scmp.lt.s32.totalorder %s101, 1
          %s1552 = scalar_select %p1551, %s101, 1
          %s1553 = scalar_lea.vmem %s75, %s1552
        $region184: #{_lambda_.1} parent=55 // pred_fallthru
          _
        // Predicated region
        $region185: #{_lambda_.1} parent=55 // pred_check
          %p1554 = pneg %p1079
        $region186: #{_lambda_.1} parent=55 // pred_check_branch
          %1556 = sbr.rel (%p1554) target = $region188
        $region187: #{_lambda_.1} parent=55 // pred_region
          %p1557 = scmp.lt.s32.totalorder %s101, 1
          %s1558 = scalar_select %p1557, %s101, 1
          %s1559 = scalar_lea.vmem %s77, %s1558
        $region188: #{_lambda_.1} parent=55 // pred_fallthru
          _
        // Predicated region
        $region189: #{_lambda_.1} parent=55 // pred_check
          %p1560 = pneg %p1105
        $region190: #{_lambda_.1} parent=55 // pred_check_branch
          %1562 = sbr.rel (%p1560) target = $region192
        $region191: #{_lambda_.1} parent=55 // pred_region
          %p1563 = scmp.lt.s32.totalorder %s101, 1
          %s1564 = scalar_select %p1563, %s101, 1
          %s1565 = smul.addr %s1564, 4
          %s1566 = smul.addr %s1565, 8
          %s1567 = scalar_lea.vmem %s79, %s1566
        $region192: #{_lambda_.1} parent=55 // pred_fallthru
          _
        // Predicated region
        $region193: #{_lambda_.1} parent=55 // pred_check
          %p1568 = pneg %p1131
        $region194: #{_lambda_.1} parent=55 // pred_check_branch
          %1570 = sbr.rel (%p1568) target = $region196
        $region195: #{_lambda_.1} parent=55 // pred_region
          %p1571 = scmp.lt.s32.totalorder %s101, 1
          %s1572 = scalar_select %p1571, %s101, 1
          %s1573 = scalar_lea.vmem %s81, %s1572
        $region196: #{_lambda_.1} parent=55 // pred_fallthru
          _
        // Predicated region
        $region197: #{_lambda_.1} parent=55 // pred_check
          %p1574 = pneg %p1157
        $region198: #{_lambda_.1} parent=55 // pred_check_branch
          %1576 = sbr.rel (%p1574) target = $region200
        $region199: #{_lambda_.1} parent=55 // pred_region
          %p1577 = scmp.lt.s32.totalorder %s101, 1
          %s1578 = scalar_select %p1577, %s101, 1
          %s1579 = smul.addr %s1578, 4
          %s1580 = smul.addr %s1579, 8
          %s1581 = scalar_lea.vmem %s83, %s1580
        $region200: #{_lambda_.1} parent=55 // pred_fallthru
          _
      $region56: #{_lambda_.1} parent=5 // pred_fallthru
        _
      %p1582 = scmp.le.s32.totalorder 1, %s101
      %p1583 = scmp.lt.s32.totalorder %s101, 3
      %p1584 = pnand %p1582, %p1583
      %p1585 = pneg %p1584
      // Predicated region
      $region201: #{_lambda_.1} parent=5 // pred_check
        _
      $region202: #{_lambda_.1} parent=5 // pred_check_branch
        %1587 = sbr.rel (%p1584) target = $region204
      $region203: #{_lambda_.1} parent=5 // pred_region
        %s1588 = ssub.s32 %s101, 1
        // Predicated region
        $region205: #{_lambda_.1} parent=203 // pred_check
          %p1589 = pneg %p279
        $region206: #{_lambda_.1} parent=203 // pred_check_branch
          %1591 = sbr.rel (%p1589) target = $region208
        $region207: #{_lambda_.1} parent=203 // pred_region
          %1592 = dma.done [#allocation3], 16
        $region208: #{_lambda_.1} parent=203 // pred_fallthru
          _
        // Predicated region
        $region209: #{_lambda_.1} parent=203 // pred_check
          %p1593 = pneg %p1205
        $region210: #{_lambda_.1} parent=203 // pred_check_branch
          %1595 = sbr.rel (%p1593) target = $region212
        $region211: #{_lambda_.1} parent=203 // pred_region
          %1596 = dma.done [#allocation5], 16
        $region212: #{_lambda_.1} parent=203 // pred_fallthru
          _
        %p1597 = scmp.lt.s32.totalorder %s106, 1
        %s1598 = scalar_select %p1597, %s106, 1
        %s1599 = smul.addr %s1598, 2
        %s1600 = smul.addr %s1599, 8
        %s1601 = scalar_lea.vmem %s1, %s1600
        %p1602 = pneg %p127
        %p1603 = pneg %p124
        %p1604 = scmp.lt.s32.totalorder %s106, 1
        %s1605 = scalar_select %p1604, %s106, 1
        %s1606 = smul.addr %s1605, 2
        %s1607 = smul.addr %s1606, 4
        %s1608 = scalar_lea.vmem %s3, %s1607
        %p1609 = pneg %p153
        %p1610 = pneg %p150
        %p1611 = pneg %p174
        %p1612 = pneg %p171
        %p1613 = pneg %p195
        %p1614 = pneg %p192
        %p1615 = pneg %p216
        %p1616 = pneg %p213
        %p1617 = pneg %p237
        %p1618 = pneg %p234
        %p1619 = pneg %p258
        %p1620 = pneg %p255
        %p1621 = pneg %p279
        %p1622 = pneg %p276
        %p1623 = scmp.lt.s32.totalorder %s106, 1
        %s1624 = scalar_select %p1623, %s106, 1
        %s1625 = scalar_lea.vmem %s17, %s1624
        %p1626 = pneg %p305
        %p1627 = pneg %p302
        %p1628 = scmp.lt.s32.totalorder %s106, 1
        %s1629 = scalar_select %p1628, %s106, 1
        %s1630 = smul.addr %s1629, 4
        %s1631 = smul.addr %s1630, 8
        %s1632 = scalar_lea.vmem %s19, %s1631
        %p1633 = pneg %p331
        %p1634 = pneg %p328
        %p1635 = scmp.lt.s32.totalorder %s106, 1
        %s1636 = scalar_select %p1635, %s106, 1
        %s1637 = scalar_lea.vmem %s21, %s1636
        %p1638 = pneg %p357
        %p1639 = pneg %p354
        %p1640 = scmp.lt.s32.totalorder %s106, 1
        %s1641 = scalar_select %p1640, %s106, 1
        %s1642 = smul.addr %s1641, 8
        %s1643 = smul.addr %s1642, 8
        %s1644 = scalar_lea.vmem %s23, %s1643
        %p1645 = pneg %p383
        %p1646 = pneg %p380
        %p1647 = scmp.lt.s32.totalorder %s106, 1
        %s1648 = scalar_select %p1647, %s106, 1
        %s1649 = scalar_lea.vmem %s25, %s1648
        %p1650 = pneg %p409
        %p1651 = pneg %p406
        %p1652 = scmp.lt.s32.totalorder %s106, 1
        %s1653 = scalar_select %p1652, %s106, 1
        %s1654 = scalar_lea.vmem %s27, %s1653
        %p1655 = pneg %p435
        %p1656 = pneg %p432
        %p1657 = scmp.lt.s32.totalorder %s106, 1
        %s1658 = scalar_select %p1657, %s106, 1
        %s1659 = scalar_lea.vmem %s29, %s1658
        %p1660 = pneg %p461
        %p1661 = pneg %p458
        %p1662 = scmp.lt.s32.totalorder %s106, 1
        %s1663 = scalar_select %p1662, %s106, 1
        %s1664 = scalar_lea.vmem %s31, %s1663
        %p1665 = pneg %p487
        %p1666 = pneg %p484
        %p1667 = scmp.lt.s32.totalorder %s106, 1
        %s1668 = scalar_select %p1667, %s106, 1
        %s1669 = scalar_lea.vmem %s33, %s1668
        %p1670 = pneg %p513
        %p1671 = pneg %p510
        %p1672 = scmp.lt.s32.totalorder %s106, 1
        %s1673 = scalar_select %p1672, %s106, 1
        %s1674 = smul.addr %s1673, 4
        %s1675 = smul.addr %s1674, 8
        %s1676 = scalar_lea.vmem %s35, %s1675
        %p1677 = pneg %p539
        %p1678 = pneg %p536
        %p1679 = scmp.lt.s32.totalorder %s106, 1
        %s1680 = scalar_select %p1679, %s106, 1
        %s1681 = scalar_lea.vmem %s37, %s1680
        %p1682 = pneg %p565
        %p1683 = pneg %p562
        %p1684 = scmp.lt.s32.totalorder %s106, 1
        %s1685 = scalar_select %p1684, %s106, 1
        %s1686 = smul.addr %s1685, 4
        %s1687 = smul.addr %s1686, 8
        %s1688 = scalar_lea.vmem %s39, %s1687
        %p1689 = pneg %p591
        %p1690 = pneg %p588
        %p1691 = scmp.lt.s32.totalorder %s106, 1
        %s1692 = scalar_select %p1691, %s106, 1
        %s1693 = smul.addr %s1692, 4
        %s1694 = scalar_lea.vmem %s41, %s1693
        %p1695 = pneg %p617
        %p1696 = pneg %p614
        %p1697 = scmp.lt.s32.totalorder %s106, 1
        %s1698 = scalar_select %p1697, %s106, 1
        %s1699 = smul.addr %s1698, 4
        %s1700 = scalar_lea.vmem %s43, %s1699
        %p1701 = pneg %p643
        %p1702 = pneg %p640
        %p1703 = scmp.lt.s32.totalorder %s106, 1
        %s1704 = scalar_select %p1703, %s106, 1
        %s1705 = scalar_lea.vmem %s45, %s1704
        %p1706 = pneg %p669
        %p1707 = pneg %p666
        %p1708 = scmp.lt.s32.totalorder %s106, 1
        %s1709 = scalar_select %p1708, %s106, 1
        %s1710 = smul.addr %s1709, 4
        %s1711 = smul.addr %s1710, 8
        %s1712 = scalar_lea.vmem %s47, %s1711
        %p1713 = pneg %p695
        %p1714 = pneg %p692
        %p1715 = scmp.lt.s32.totalorder %s106, 1
        %s1716 = scalar_select %p1715, %s106, 1
        %s1717 = scalar_lea.vmem %s49, %s1716
        %p1718 = pneg %p721
        %p1719 = pneg %p718
        %p1720 = scmp.lt.s32.totalorder %s106, 1
        %s1721 = scalar_select %p1720, %s106, 1
        %s1722 = smul.addr %s1721, 4
        %s1723 = smul.addr %s1722, 8
        %s1724 = scalar_lea.vmem %s51, %s1723
        %p1725 = pneg %p747
        %p1726 = pneg %p744
        %p1727 = scmp.lt.s32.totalorder %s106, 1
        %s1728 = scalar_select %p1727, %s106, 1
        %s1729 = scalar_lea.vmem %s53, %s1728
        %p1730 = pneg %p773
        %p1731 = pneg %p770
        %p1732 = scmp.lt.s32.totalorder %s106, 1
        %s1733 = scalar_select %p1732, %s106, 1
        %s1734 = smul.addr %s1733, 4
        %s1735 = smul.addr %s1734, 8
        %s1736 = scalar_lea.vmem %s55, %s1735
        %p1737 = pneg %p799
        %p1738 = pneg %p796
        %p1739 = scmp.lt.s32.totalorder %s106, 1
        %s1740 = scalar_select %p1739, %s106, 1
        %s1741 = scalar_lea.vmem %s57, %s1740
        %p1742 = pneg %p825
        %p1743 = pneg %p822
        %p1744 = scmp.lt.s32.totalorder %s106, 1
        %s1745 = scalar_select %p1744, %s106, 1
        %s1746 = smul.addr %s1745, 4
        %s1747 = smul.addr %s1746, 8
        %s1748 = scalar_lea.vmem %s59, %s1747
        %p1749 = pneg %p851
        %p1750 = pneg %p848
        %p1751 = scmp.lt.s32.totalorder %s106, 1
        %s1752 = scalar_select %p1751, %s106, 1
        %s1753 = scalar_lea.vmem %s61, %s1752
        %p1754 = pneg %p877
        %p1755 = pneg %p874
        %p1756 = scmp.lt.s32.totalorder %s106, 1
        %s1757 = scalar_select %p1756, %s106, 1
        %s1758 = smul.addr %s1757, 8
        %s1759 = smul.addr %s1758, 8
        %s1760 = scalar_lea.vmem %s63, %s1759
        %p1761 = pneg %p903
        %p1762 = pneg %p900
        %p1763 = scmp.lt.s32.totalorder %s106, 1
        %s1764 = scalar_select %p1763, %s106, 1
        %s1765 = scalar_lea.vmem %s65, %s1764
        %p1766 = pneg %p929
        %p1767 = pneg %p926
        %p1768 = scmp.lt.s32.totalorder %s106, 1
        %s1769 = scalar_select %p1768, %s106, 1
        %s1770 = scalar_lea.vmem %s67, %s1769
        %p1771 = pneg %p955
        %p1772 = pneg %p952
        %p1773 = scmp.lt.s32.totalorder %s106, 1
        %s1774 = scalar_select %p1773, %s106, 1
        %s1775 = scalar_lea.vmem %s69, %s1774
        %p1776 = pneg %p981
        %p1777 = pneg %p978
        %p1778 = scmp.lt.s32.totalorder %s106, 1
        %s1779 = scalar_select %p1778, %s106, 1
        %s1780 = scalar_lea.vmem %s71, %s1779
        %p1781 = pneg %p1007
        %p1782 = pneg %p1004
        %p1783 = scmp.lt.s32.totalorder %s106, 1
        %s1784 = scalar_select %p1783, %s106, 1
        %s1785 = scalar_lea.vmem %s73, %s1784
        %p1786 = pneg %p1033
        %p1787 = pneg %p1030
        %p1788 = scmp.lt.s32.totalorder %s106, 1
        %s1789 = scalar_select %p1788, %s106, 1
        %s1790 = scalar_lea.vmem %s75, %s1789
        %p1791 = pneg %p1059
        %p1792 = pneg %p1056
        %p1793 = scmp.lt.s32.totalorder %s106, 1
        %s1794 = scalar_select %p1793, %s106, 1
        %s1795 = scalar_lea.vmem %s77, %s1794
        %p1796 = pneg %p1085
        %p1797 = pneg %p1082
        %p1798 = scmp.lt.s32.totalorder %s106, 1
        %s1799 = scalar_select %p1798, %s106, 1
        %s1800 = smul.addr %s1799, 4
        %s1801 = smul.addr %s1800, 8
        %s1802 = scalar_lea.vmem %s79, %s1801
        %p1803 = pneg %p1111
        %p1804 = pneg %p1108
        %p1805 = scmp.lt.s32.totalorder %s106, 1
        %s1806 = scalar_select %p1805, %s106, 1
        %s1807 = scalar_lea.vmem %s81, %s1806
        %p1808 = pneg %p1137
        %p1809 = pneg %p1134
        %p1810 = scmp.lt.s32.totalorder %s106, 1
        %s1811 = scalar_select %p1810, %s106, 1
        %s1812 = smul.addr %s1811, 4
        %s1813 = smul.addr %s1812, 8
        %s1814 = scalar_lea.vmem %s83, %s1813
        %p1815 = pneg %p1163
        %p1816 = pneg %p1160
        %p1817 = pneg %p1184
        %p1818 = pneg %p1181
        %p1819 = pneg %p1205
        %p1820 = pneg %p1202
        %p1821 = pneg %p1226
        %p1822 = pneg %p1223
        %p1823 = pneg %p1247
        %p1824 = pneg %p1244
        %p1825 = pneg %p1273
        %p1826 = pneg %p1270
        %p1827 = scmp.lt.s32.totalorder %s106, 1
        %s1828 = scalar_select %p1827, %s106, 1
        %s1829 = smul.addr %s1828, 2
        %s1830 = scalar_lea.vmem %s93, %s1829
        %p1831 = scmp.lt.s32.totalorder %s106, 1
        %s1832 = scalar_select %p1831, %s106, 1
        %s1833 = smul.addr %s1832, 2
        %s1834 = smul.addr %s1833, 8
        %s1835 = scalar_lea.vmem %s1, %s1834
        %p1836 = scmp.lt.s32.totalorder %s106, 1
        %s1837 = scalar_select %p1836, %s106, 1
        %s1838 = smul.addr %s1837, 2
        %s1839 = smul.addr %s1838, 4
        %s1840 = scalar_lea.vmem %s3, %s1839
        %p1841 = scmp.lt.s32.totalorder %s106, 1
        %s1842 = scalar_select %p1841, %s106, 1
        %s1843 = scalar_lea.vmem %s17, %s1842
        %p1844 = scmp.lt.s32.totalorder %s106, 1
        %s1845 = scalar_select %p1844, %s106, 1
        %s1846 = smul.addr %s1845, 4
        %s1847 = smul.addr %s1846, 8
        %s1848 = scalar_lea.vmem %s19, %s1847
        %p1849 = scmp.lt.s32.totalorder %s106, 1
        %s1850 = scalar_select %p1849, %s106, 1
        %s1851 = scalar_lea.vmem %s21, %s1850
        %p1852 = scmp.lt.s32.totalorder %s106, 1
        %s1853 = scalar_select %p1852, %s106, 1
        %s1854 = smul.addr %s1853, 8
        %s1855 = smul.addr %s1854, 8
        %s1856 = scalar_lea.vmem %s23, %s1855
        %p1857 = scmp.lt.s32.totalorder %s106, 1
        %s1858 = scalar_select %p1857, %s106, 1
        %s1859 = scalar_lea.vmem %s25, %s1858
        %p1860 = scmp.lt.s32.totalorder %s106, 1
        %s1861 = scalar_select %p1860, %s106, 1
        %s1862 = scalar_lea.vmem %s27, %s1861
        %p1863 = scmp.lt.s32.totalorder %s106, 1
        %s1864 = scalar_select %p1863, %s106, 1
        %s1865 = scalar_lea.vmem %s29, %s1864
        %p1866 = scmp.lt.s32.totalorder %s106, 1
        %s1867 = scalar_select %p1866, %s106, 1
        %s1868 = scalar_lea.vmem %s31, %s1867
        %p1869 = scmp.lt.s32.totalorder %s106, 1
        %s1870 = scalar_select %p1869, %s106, 1
        %s1871 = scalar_lea.vmem %s33, %s1870
        %p1872 = scmp.lt.s32.totalorder %s106, 1
        %s1873 = scalar_select %p1872, %s106, 1
        %s1874 = smul.addr %s1873, 4
        %s1875 = smul.addr %s1874, 8
        %s1876 = scalar_lea.vmem %s35, %s1875
        %p1877 = scmp.lt.s32.totalorder %s106, 1
        %s1878 = scalar_select %p1877, %s106, 1
        %s1879 = scalar_lea.vmem %s37, %s1878
        %p1880 = scmp.lt.s32.totalorder %s106, 1
        %s1881 = scalar_select %p1880, %s106, 1
        %s1882 = smul.addr %s1881, 4
        %s1883 = smul.addr %s1882, 8
        %s1884 = scalar_lea.vmem %s39, %s1883
        %p1885 = scmp.lt.s32.totalorder %s106, 1
        %s1886 = scalar_select %p1885, %s106, 1
        %s1887 = smul.addr %s1886, 4
        %s1888 = scalar_lea.vmem %s41, %s1887
        %p1889 = scmp.lt.s32.totalorder %s106, 1
        %s1890 = scalar_select %p1889, %s106, 1
        %s1891 = smul.addr %s1890, 4
        %s1892 = scalar_lea.vmem %s43, %s1891
        %p1893 = scmp.lt.s32.totalorder %s106, 1
        %s1894 = scalar_select %p1893, %s106, 1
        %s1895 = scalar_lea.vmem %s45, %s1894
        %p1896 = scmp.lt.s32.totalorder %s106, 1
        %s1897 = scalar_select %p1896, %s106, 1
        %s1898 = smul.addr %s1897, 4
        %s1899 = smul.addr %s1898, 8
        %s1900 = scalar_lea.vmem %s47, %s1899
        %p1901 = scmp.lt.s32.totalorder %s106, 1
        %s1902 = scalar_select %p1901, %s106, 1
        %s1903 = scalar_lea.vmem %s49, %s1902
        %p1904 = scmp.lt.s32.totalorder %s106, 1
        %s1905 = scalar_select %p1904, %s106, 1
        %s1906 = smul.addr %s1905, 4
        %s1907 = smul.addr %s1906, 8
        %s1908 = scalar_lea.vmem %s51, %s1907
        %p1909 = scmp.lt.s32.totalorder %s106, 1
        %s1910 = scalar_select %p1909, %s106, 1
        %s1911 = scalar_lea.vmem %s53, %s1910
        %p1912 = scmp.lt.s32.totalorder %s106, 1
        %s1913 = scalar_select %p1912, %s106, 1
        %s1914 = smul.addr %s1913, 4
        %s1915 = smul.addr %s1914, 8
        %s1916 = scalar_lea.vmem %s55, %s1915
        %p1917 = scmp.lt.s32.totalorder %s106, 1
        %s1918 = scalar_select %p1917, %s106, 1
        %s1919 = scalar_lea.vmem %s57, %s1918
        %p1920 = scmp.lt.s32.totalorder %s106, 1
        %s1921 = scalar_select %p1920, %s106, 1
        %s1922 = smul.addr %s1921, 4
        %s1923 = smul.addr %s1922, 8
        %s1924 = scalar_lea.vmem %s59, %s1923
        %p1925 = scmp.lt.s32.totalorder %s106, 1
        %s1926 = scalar_select %p1925, %s106, 1
        %s1927 = scalar_lea.vmem %s61, %s1926
        %p1928 = scmp.lt.s32.totalorder %s106, 1
        %s1929 = scalar_select %p1928, %s106, 1
        %s1930 = smul.addr %s1929, 8
        %s1931 = smul.addr %s1930, 8
        %s1932 = scalar_lea.vmem %s63, %s1931
        %p1933 = scmp.lt.s32.totalorder %s106, 1
        %s1934 = scalar_select %p1933, %s106, 1
        %s1935 = scalar_lea.vmem %s65, %s1934
        %p1936 = scmp.lt.s32.totalorder %s106, 1
        %s1937 = scalar_select %p1936, %s106, 1
        %s1938 = scalar_lea.vmem %s67, %s1937
        %p1939 = scmp.lt.s32.totalorder %s106, 1
        %s1940 = scalar_select %p1939, %s106, 1
        %s1941 = scalar_lea.vmem %s69, %s1940
        %p1942 = scmp.lt.s32.totalorder %s106, 1
        %s1943 = scalar_select %p1942, %s106, 1
        %s1944 = scalar_lea.vmem %s71, %s1943
        %p1945 = scmp.lt.s32.totalorder %s106, 1
        %s1946 = scalar_select %p1945, %s106, 1
        %s1947 = scalar_lea.vmem %s73, %s1946
        %p1948 = scmp.lt.s32.totalorder %s106, 1
        %s1949 = scalar_select %p1948, %s106, 1
        %s1950 = scalar_lea.vmem %s75, %s1949
        %p1951 = scmp.lt.s32.totalorder %s106, 1
        %s1952 = scalar_select %p1951, %s106, 1
        %s1953 = scalar_lea.vmem %s77, %s1952
        %p1954 = scmp.lt.s32.totalorder %s106, 1
        %s1955 = scalar_select %p1954, %s106, 1
        %s1956 = smul.addr %s1955, 4
        %s1957 = smul.addr %s1956, 8
        %s1958 = scalar_lea.vmem %s79, %s1957
        %p1959 = scmp.lt.s32.totalorder %s106, 1
        %s1960 = scalar_select %p1959, %s106, 1
        %s1961 = scalar_lea.vmem %s81, %s1960
        %p1962 = scmp.lt.s32.totalorder %s106, 1
        %s1963 = scalar_select %p1962, %s106, 1
        %s1964 = smul.addr %s1963, 4
        %s1965 = smul.addr %s1964, 8
        %s1966 = scalar_lea.vmem %s83, %s1965
        %p1967 = scmp.lt.s32.totalorder %s106, 1
        %s1968 = scalar_select %p1967, %s106, 1
        %s1969 = smul.addr %s1968, 2
        %s1970 = scalar_lea.vmem %s93, %s1969
        %v1971 = vld [vmem:[%s1835] sm:$0xff]
        %v1972 = vld [vmem:[%s1835 + $0x8] sm:$0xff]
        %v1973 = vld [vmem:[%s1840] sm:$0xf]
        %v1974 = vld [vmem:[%s1840 + $0x4] sm:$0xf]
        %v1975 = vld [vmem:[%s5] sm:$0xff]
        %v1976 = vld [vmem:[%s7] sm:$0xf]
        %v1977 = vld [vmem:[%s9] sm:$0x1f]
        %v1978 = vld [vmem:[%s11] sm:$0x1]
        %v1979 = vld [vmem:[%s13] sm:$0xf]
        %v1980 = vld [vmem:[#allocation2] sm:$0x1]
        %v1981 = vld [vmem:[%s1843] sm:$0x1]
        %v1982 = vld [vmem:[%s1848] sm:$0xff]
        %v1983 = vld [vmem:[%s1848 + $0x8] sm:$0xff]
        %v1984 = vld [vmem:[%s1848 + $0x10] sm:$0xff]
        %v1985 = vld [vmem:[%s1848 + $0x18] sm:$0xff]
        %v1986 = vld [vmem:[%s1851] sm:$0x1]
        %v1987 = vld [vmem:[%s1856] sm:$0xff]
        %v1988 = vld [vmem:[%s1856 + $0x8] sm:$0xff]
        %v1989 = vld [vmem:[%s1856 + $0x10] sm:$0xff]
        %v1990 = vld [vmem:[%s1856 + $0x18] sm:$0xff]
        %v1991 = vld [vmem:[%s1856 + $0x20] sm:$0xff]
        %v1992 = vld [vmem:[%s1856 + $0x28] sm:$0xff]
        %v1993 = vld [vmem:[%s1856 + $0x30] sm:$0xff]
        %v1994 = vld [vmem:[%s1856 + $0x38] sm:$0xff]
        %v1995 = vld [vmem:[%s1859] sm:$0x1]
        %v1996 = vld [vmem:[%s1862] sm:$0x1]
        %v1997 = vld [vmem:[%s1865] sm:$0x1]
        %v1998 = vld [vmem:[%s1868] sm:$0x1]
        %v1999 = vld [vmem:[%s1871] sm:$0x1]
        %v2000 = vld [vmem:[%s1876] sm:$0xff]
        %v2001 = vld [vmem:[%s1876 + $0x8] sm:$0xff]
        %v2002 = vld [vmem:[%s1876 + $0x10] sm:$0xff]
        %v2003 = vld [vmem:[%s1876 + $0x18] sm:$0xff]
        %v2004 = vld [vmem:[%s1879] sm:$0x1]
        %v2005 = vld [vmem:[%s1884] sm:$0xff]
        %v2006 = vld [vmem:[%s1884 + $0x8] sm:$0xff]
        %v2007 = vld [vmem:[%s1884 + $0x10] sm:$0xff]
        %v2008 = vld [vmem:[%s1884 + $0x18] sm:$0xff]
        %v2009 = vld [vmem:[%s1888] sm:$0xf]
        %v2010 = vld [vmem:[%s1892] sm:$0xf]
        %v2011 = vld [vmem:[%s1895] sm:$0x1]
        %v2012 = vld [vmem:[%s1900] sm:$0xff]
        %v2013 = vld [vmem:[%s1900 + $0x8] sm:$0xff]
        %v2014 = vld [vmem:[%s1900 + $0x10] sm:$0xff]
        %v2015 = vld [vmem:[%s1900 + $0x18] sm:$0xff]
        %v2016 = vld [vmem:[%s1903] sm:$0x1]
        %v2017 = vld [vmem:[%s1908] sm:$0xff]
        %v2018 = vld [vmem:[%s1908 + $0x8] sm:$0xff]
        %v2019 = vld [vmem:[%s1908 + $0x10] sm:$0xff]
        %v2020 = vld [vmem:[%s1908 + $0x18] sm:$0xff]
        %v2021 = vld [vmem:[%s1911] sm:$0x1]
        %v2022 = vld [vmem:[%s1916] sm:$0xff]
        %v2023 = vld [vmem:[%s1916 + $0x8] sm:$0xff]
        %v2024 = vld [vmem:[%s1916 + $0x10] sm:$0xff]
        %v2025 = vld [vmem:[%s1916 + $0x18] sm:$0xff]
        %v2026 = vld [vmem:[%s1919] sm:$0x1]
        %v2027 = vld [vmem:[%s1924] sm:$0xff]
        %v2028 = vld [vmem:[%s1924 + $0x8] sm:$0xff]
        %v2029 = vld [vmem:[%s1924 + $0x10] sm:$0xff]
        %v2030 = vld [vmem:[%s1924 + $0x18] sm:$0xff]
        %v2031 = vld [vmem:[%s1927] sm:$0x1]
        %v2032 = vld [vmem:[%s1932] sm:$0xff]
        %v2033 = vld [vmem:[%s1932 + $0x8] sm:$0xff]
        %v2034 = vld [vmem:[%s1932 + $0x10] sm:$0xff]
        %v2035 = vld [vmem:[%s1932 + $0x18] sm:$0xff]
        %v2036 = vld [vmem:[%s1932 + $0x20] sm:$0xff]
        %v2037 = vld [vmem:[%s1932 + $0x28] sm:$0xff]
        %v2038 = vld [vmem:[%s1932 + $0x30] sm:$0xff]
        %v2039 = vld [vmem:[%s1932 + $0x38] sm:$0xff]
        %v2040 = vld [vmem:[%s1935] sm:$0x1]
        %v2041 = vld [vmem:[%s1938] sm:$0x1]
        %v2042 = vld [vmem:[%s1941] sm:$0x1]
        %v2043 = vld [vmem:[%s1944] sm:$0x1]
        %v2044 = vld [vmem:[%s1947] sm:$0x1]
        %v2045 = vld [vmem:[%s1950] sm:$0x1]
        %v2046 = vld [vmem:[%s1953] sm:$0x1]
        %v2047 = vld [vmem:[%s1958] sm:$0xff]
        %v2048 = vld [vmem:[%s1958 + $0x8] sm:$0xff]
        %v2049 = vld [vmem:[%s1958 + $0x10] sm:$0xff]
        %v2050 = vld [vmem:[%s1958 + $0x18] sm:$0xff]
        %v2051 = vld [vmem:[%s1961] sm:$0x1]
        %v2052 = vld [vmem:[%s1966] sm:$0xff]
        %v2053 = vld [vmem:[%s1966 + $0x8] sm:$0xff]
        %v2054 = vld [vmem:[%s1966 + $0x10] sm:$0xff]
        %v2055 = vld [vmem:[%s1966 + $0x18] sm:$0xff]
        %v2056 = vld [vmem:[%s85] sm:$0xff]
        %v2057 = vld [vmem:[%s85 + $0x8] sm:$0xff]
        %v2058 = vld [vmem:[%s85 + $0x10] sm:$0xff]
        %v2059 = vld [vmem:[%s85 + $0x18] sm:$0xff]
        %v2060 = vld [vmem:[#allocation4] sm:$0x1]
        %v2061 = vld [vmem:[%s89] sm:$0xf]
        %v2062 = vld [vmem:[%s91] sm:$0x1]
        %v2064 = vlaneseq
        %v2065 = vshrl.u32 %v2064, 7
        %v2066 = vsub.s32 0, %v2065
        %v2067 = vrot.slane %v1978, %v2066
        %vm2069 = vcmask 39936
        %v2071 = vsel %vm2069, %v1971, 0
        %v2074 = vsel %vm2069, %v1972, 0
        %vm2076 = vcmask 1044480
        %v2078 = vsel %vm2076, %v1977, 0
        %2080 = vmatprep.subr.mxu0 0.0
        %2081 = vmatpush1.msra.mxu0 %v2078
        %2082 = vmatprep.subr.mxu0 0.0
        %2083 = vmatpush1.msra.mxu0 0.0
        %2084 = vmatprep.subr.mxu0 0.0
        %2085 = vmatpush1.msra.mxu0 0.0
        %2086 = vmatprep.subr.mxu0 0.0
        %2087 = vmatpush1.msra.mxu0 0.0
        %2088 = vmatprep.subr.mxu0 0.0
        %2089 = vmatpush1.msra.mxu0 0.0
        %2090 = vmatprep.subr.mxu0 0.0
        %2091 = vmatpush1.msra.mxu0 0.0
        %2092 = vmatprep.subr.mxu0 0.0
        %2093 = vmatpush1.msra.mxu0 0.0
        %2094 = vmatprep.subr.mxu0 0.0
        %2095 = vmatpush1.msra.mxu0 0.0
        %2096 = vmatprep.subr.mxu0 0.0
        %2097 = vmatpush1.msra.mxu0 0.0
        %2098 = vmatprep.subr.mxu0 0.0
        %2099 = vmatpush1.msra.mxu0 0.0
        %2100 = vmatprep.subr.mxu0 0.0
        %2101 = vmatpush1.msra.mxu0 0.0
        %2102 = vmatprep.subr.mxu0 0.0
        %2103 = vmatpush1.msra.mxu0 0.0
        %2104 = vmatprep.subr.mxu0 0.0
        %2105 = vmatpush1.msra.mxu0 0.0
        %2106 = vmatprep.subr.mxu0 0.0
        %2107 = vmatpush1.msra.mxu0 0.0
        %2108 = vmatprep.subr.mxu0 0.0
        %2109 = vmatpush1.msra.mxu0 0.0
        %2110 = vmatprep.subr.mxu0 0.0
        %2111 = vmatpush1.msra.mxu0 0.0
        %2112 = vmatprep.subr.mxu0 0.0
        %2113 = vmatpush1.msra.mxu0 0.0
        %2114 = vmatprep.subr.mxu0 0.0
        %2115 = vmatpush1.msra.mxu0 0.0
        %2116 = vmatprep.subr.mxu0 0.0
        %2117 = vmatpush1.msra.mxu0 0.0
        %2118 = vmatprep.subr.mxu0 0.0
        %2119 = vmatpush1.msra.mxu0 0.0
        %2120 = vmatprep.subr.mxu0 0.0
        %2121 = vmatpush1.msra.mxu0 0.0
        %2122 = vmatprep.subr.mxu0 0.0
        %2123 = vmatpush1.msra.mxu0 0.0
        %2124 = vmatprep.subr.mxu0 0.0
        %2125 = vmatpush1.msra.mxu0 0.0
        %2126 = vmatprep.subr.mxu0 0.0
        %2127 = vmatpush1.msra.mxu0 0.0
        %2128 = vmatprep.subr.mxu0 0.0
        %2129 = vmatpush1.msra.mxu0 0.0
        %2130 = vmatprep.subr.mxu0 0.0
        %2131 = vmatpush1.msra.mxu0 0.0
        %2132 = vmatprep.subr.mxu0 0.0
        %2133 = vmatpush1.msra.mxu0 0.0
        %2134 = vmatprep.subr.mxu0 0.0
        %2135 = vmatpush1.msra.mxu0 0.0
        %2136 = vmatprep.subr.mxu0 0.0
        %2137 = vmatpush1.msra.mxu0 0.0
        %2138 = vmatprep.subr.mxu0 0.0
        %2139 = vmatpush1.msra.mxu0 0.0
        %2140 = vmatprep.subr.mxu0 0.0
        %2141 = vmatpush1.msra.mxu0 0.0
        %2142 = vmatprep.subr.mxu0 0.0
        %2143 = vmatpush1.msra.mxu0 0.0
        %2144 = vmatprep.mubr.f32.mxu0 0.0
        %2145 = vmatmul.mubr.f32.gmra.mrb[0].mxu0 %v2071
        %v2146 = vpop.f32.mrb[0].mxu0
        %v2147 = vadd.f32 %v2067, %v2146
        %v2148 = vpop.f32.mrb[0].mxu0
        %2149 = vmatprep.mubr.f32.mxu0 0.0
        %2150 = vmatmul.mubr.f32.gmra.mrb[0].mxu0 %v2074
        %v2151 = vpop.f32.mrb[0].mxu0
        %v2152 = vadd.f32 %v2067, %v2151
        %v2153 = vpop.f32.mrb[0].mxu0
        %2154 = vdwg.mxu0
        %v2155 = vadd.f32 %v2147, %v1975
        %v2156 = vadd.f32 %v2152, %v1975
        %v2158 = vlaneseq
        %v2159 = vshrl.u32 %v2158, 7
        %v2160 = vsub.s32 0, %v2159
        %v2161 = vrot.slane %v1980, %v2160
        %v2165 = vcombine.low %v1973, %v1974
        %vm2166 = vcmask 31744
        %v2167 = vsel %vm2166, %v2165, 0
        %vm2169 = vcmask 1043456
        %v2171 = vsel %vm2169, %v1979, 0
        %2173 = vmatprep.subr.mxu0 0.0
        %2174 = vmatpush1.msra.mxu0 %v2171
        %2175 = vmatprep.subr.mxu0 0.0
        %2176 = vmatpush1.msra.mxu0 0.0
        %2177 = vmatprep.subr.mxu0 0.0
        %2178 = vmatpush1.msra.mxu0 0.0
        %2179 = vmatprep.subr.mxu0 0.0
        %2180 = vmatpush1.msra.mxu0 0.0
        %2181 = vmatprep.subr.mxu0 0.0
        %2182 = vmatpush1.msra.mxu0 0.0
        %2183 = vmatprep.subr.mxu0 0.0
        %2184 = vmatpush1.msra.mxu0 0.0
        %2185 = vmatprep.subr.mxu0 0.0
        %2186 = vmatpush1.msra.mxu0 0.0
        %2187 = vmatprep.subr.mxu0 0.0
        %2188 = vmatpush1.msra.mxu0 0.0
        %2189 = vmatprep.subr.mxu0 0.0
        %2190 = vmatpush1.msra.mxu0 0.0
        %2191 = vmatprep.subr.mxu0 0.0
        %2192 = vmatpush1.msra.mxu0 0.0
        %2193 = vmatprep.subr.mxu0 0.0
        %2194 = vmatpush1.msra.mxu0 0.0
        %2195 = vmatprep.subr.mxu0 0.0
        %2196 = vmatpush1.msra.mxu0 0.0
        %2197 = vmatprep.subr.mxu0 0.0
        %2198 = vmatpush1.msra.mxu0 0.0
        %2199 = vmatprep.subr.mxu0 0.0
        %2200 = vmatpush1.msra.mxu0 0.0
        %2201 = vmatprep.subr.mxu0 0.0
        %2202 = vmatpush1.msra.mxu0 0.0
        %2203 = vmatprep.subr.mxu0 0.0
        %2204 = vmatpush1.msra.mxu0 0.0
        %2205 = vmatprep.subr.mxu0 0.0
        %2206 = vmatpush1.msra.mxu0 0.0
        %2207 = vmatprep.subr.mxu0 0.0
        %2208 = vmatpush1.msra.mxu0 0.0
        %2209 = vmatprep.subr.mxu0 0.0
        %2210 = vmatpush1.msra.mxu0 0.0
        %2211 = vmatprep.subr.mxu0 0.0
        %2212 = vmatpush1.msra.mxu0 0.0
        %2213 = vmatprep.subr.mxu0 0.0
        %2214 = vmatpush1.msra.mxu0 0.0
        %2215 = vmatprep.subr.mxu0 0.0
        %2216 = vmatpush1.msra.mxu0 0.0
        %2217 = vmatprep.subr.mxu0 0.0
        %2218 = vmatpush1.msra.mxu0 0.0
        %2219 = vmatprep.subr.mxu0 0.0
        %2220 = vmatpush1.msra.mxu0 0.0
        %2221 = vmatprep.subr.mxu0 0.0
        %2222 = vmatpush1.msra.mxu0 0.0
        %2223 = vmatprep.subr.mxu0 0.0
        %2224 = vmatpush1.msra.mxu0 0.0
        %2225 = vmatprep.subr.mxu0 0.0
        %2226 = vmatpush1.msra.mxu0 0.0
        %2227 = vmatprep.subr.mxu0 0.0
        %2228 = vmatpush1.msra.mxu0 0.0
        %2229 = vmatprep.subr.mxu0 0.0
        %2230 = vmatpush1.msra.mxu0 0.0
        %2231 = vmatprep.subr.mxu0 0.0
        %2232 = vmatpush1.msra.mxu0 0.0
        %2233 = vmatprep.subr.mxu0 0.0
        %2234 = vmatpush1.msra.mxu0 0.0
        %2235 = vmatprep.subr.mxu0 0.0
        %2236 = vmatpush1.msra.mxu0 0.0
        %2237 = vmatprep.mubr.f32.mxu0 0.0
        %2238 = vmatmul.mubr.f32.gmra.mrb[0].mxu0 %v2167
        %v2239 = vpop.f32.mrb[0].mxu0
        %v2240 = vadd.f32 %v2161, %v2239
        %v2241 = vpop.f32.mrb[0].mxu0
        %2242 = vdwg.mxu0
        %v2244 = vrot.slane %v1976, 4
        %v2246 = vsel %vm2169, %v1976, %v2244
        %v2247 = vadd.f32 %v2240, %v2246
        %v2249 = vlaneseq
        %v2250 = vshrl.u32 %v2249, 7
        %v2251 = vsub.s32 0, %v2250
        %v2252 = vrot.slane %v2004, %v2251
        %vm2254 = vcmask 261120
        %v2256 = vsel %vm2254, %v2155, 0
        %v2259 = vsel %vm2254, %v2156, 0
        %2261 = vmatprep.subr.mxu0 0.0
        %2262 = vmatpush1.msra.mxu0 %v2005
        %2263 = vmatprep.subr.mxu0 0.0
        %2264 = vmatpush1.msra.mxu0 %v2006
        %2265 = vmatprep.subr.mxu0 0.0
        %2266 = vmatpush1.msra.mxu0 %v2007
        %2267 = vmatprep.subr.mxu0 0.0
        %2268 = vmatpush1.msra.mxu0 %v2008
        %2269 = vmatprep.subr.mxu0 0.0
        %2270 = vmatpush1.msra.mxu0 0.0
        %2271 = vmatprep.subr.mxu0 0.0
        %2272 = vmatpush1.msra.mxu0 0.0
        %2273 = vmatprep.subr.mxu0 0.0
        %2274 = vmatpush1.msra.mxu0 0.0
        %2275 = vmatprep.subr.mxu0 0.0
        %2276 = vmatpush1.msra.mxu0 0.0
        %2277 = vmatprep.subr.mxu0 0.0
        %2278 = vmatpush1.msra.mxu0 0.0
        %2279 = vmatprep.subr.mxu0 0.0
        %2280 = vmatpush1.msra.mxu0 0.0
        %2281 = vmatprep.subr.mxu0 0.0
        %2282 = vmatpush1.msra.mxu0 0.0
        %2283 = vmatprep.subr.mxu0 0.0
        %2284 = vmatpush1.msra.mxu0 0.0
        %2285 = vmatprep.subr.mxu0 0.0
        %2286 = vmatpush1.msra.mxu0 0.0
        %2287 = vmatprep.subr.mxu0 0.0
        %2288 = vmatpush1.msra.mxu0 0.0
        %2289 = vmatprep.subr.mxu0 0.0
        %2290 = vmatpush1.msra.mxu0 0.0
        %2291 = vmatprep.subr.mxu0 0.0
        %2292 = vmatpush1.msra.mxu0 0.0
        %2293 = vmatprep.subr.mxu0 0.0
        %2294 = vmatpush1.msra.mxu0 0.0
        %2295 = vmatprep.subr.mxu0 0.0
        %2296 = vmatpush1.msra.mxu0 0.0
        %2297 = vmatprep.subr.mxu0 0.0
        %2298 = vmatpush1.msra.mxu0 0.0
        %2299 = vmatprep.subr.mxu0 0.0
        %2300 = vmatpush1.msra.mxu0 0.0
        %2301 = vmatprep.subr.mxu0 0.0
        %2302 = vmatpush1.msra.mxu0 0.0
        %2303 = vmatprep.subr.mxu0 0.0
        %2304 = vmatpush1.msra.mxu0 0.0
        %2305 = vmatprep.subr.mxu0 0.0
        %2306 = vmatpush1.msra.mxu0 0.0
        %2307 = vmatprep.subr.mxu0 0.0
        %2308 = vmatpush1.msra.mxu0 0.0
        %2309 = vmatprep.subr.mxu0 0.0
        %2310 = vmatpush1.msra.mxu0 0.0
        %2311 = vmatprep.subr.mxu0 0.0
        %2312 = vmatpush1.msra.mxu0 0.0
        %2313 = vmatprep.subr.mxu0 0.0
        %2314 = vmatpush1.msra.mxu0 0.0
        %2315 = vmatprep.subr.mxu0 0.0
        %2316 = vmatpush1.msra.mxu0 0.0
        %2317 = vmatprep.subr.mxu0 0.0
        %2318 = vmatpush1.msra.mxu0 0.0
        %2319 = vmatprep.subr.mxu0 0.0
        %2320 = vmatpush1.msra.mxu0 0.0
        %2321 = vmatprep.subr.mxu0 0.0
        %2322 = vmatpush1.msra.mxu0 0.0
        %2323 = vmatprep.subr.mxu0 0.0
        %2324 = vmatpush1.msra.mxu0 0.0
        %2325 = vmatprep.mubr.f32.mxu0 0.0
        %2326 = vmatmul.mubr.f32.gmra.mrb[0].mxu0 %v2256
        %v2327 = vpop.f32.mrb[0].mxu0
        %v2328 = vadd.f32 %v2252, %v2327
        %v2329 = vpop.f32.mrb[0].mxu0
        %2330 = vmatprep.mubr.f32.mxu0 0.0
        %2331 = vmatmul.mubr.f32.gmra.mrb[0].mxu0 %v2259
        %v2332 = vpop.f32.mrb[0].mxu0
        %v2333 = vadd.f32 %v2252, %v2332
        %v2334 = vpop.f32.mrb[0].mxu0
        %2335 = vdwg.mxu0
        %2337 = vrot.lane.b32.xlu0 %v2328, 96
        %v2338 = vpop.permute.xlu0 %2337
        %vm2339 = vcmask 64512
        %v2340 = vsel %vm2339, %v2328, 0
        %v2342 = vsel %vm2339, %v2338, 0
        %2344 = vmatprep.subr.mxu0 0.0
        %2345 = vmatpush1.xpose.msra.mxu0 %v2342
        %2346 = vmatprep.subr.mxu0 0.0
        %2347 = vmatpush1.xpose.msra.mxu0 0.0
        %2348 = vmatprep.subr.mxu0 0.0
        %2349 = vmatpush1.xpose.msra.mxu0 0.0
        %2350 = vmatprep.subr.mxu0 0.0
        %2351 = vmatpush1.xpose.msra.mxu0 0.0
        %2352 = vmatprep.subr.mxu0 0.0
        %2353 = vmatpush1.xpose.msra.mxu0 0.0
        %2354 = vmatprep.subr.mxu0 0.0
        %2355 = vmatpush1.xpose.msra.mxu0 0.0
        %2356 = vmatprep.subr.mxu0 0.0
        %2357 = vmatpush1.xpose.msra.mxu0 0.0
        %2358 = vmatprep.subr.mxu0 0.0
        %2359 = vmatpush1.xpose.msra.mxu0 0.0
        %2360 = vmatprep.subr.mxu0 0.0
        %2361 = vmatpush1.xpose.msra.mxu0 0.0
        %2362 = vmatprep.subr.mxu0 0.0
        %2363 = vmatpush1.xpose.msra.mxu0 0.0
        %2364 = vmatprep.subr.mxu0 0.0
        %2365 = vmatpush1.xpose.msra.mxu0 0.0
        %2366 = vmatprep.subr.mxu0 0.0
        %2367 = vmatpush1.xpose.msra.mxu0 0.0
        %2368 = vmatprep.subr.mxu0 0.0
        %2369 = vmatpush1.xpose.msra.mxu0 0.0
        %2370 = vmatprep.subr.mxu0 0.0
        %2371 = vmatpush1.xpose.msra.mxu0 0.0
        %2372 = vmatprep.subr.mxu0 0.0
        %2373 = vmatpush1.xpose.msra.mxu0 0.0
        %2374 = vmatprep.subr.mxu0 0.0
        %2375 = vmatpush1.xpose.msra.mxu0 0.0
        %2376 = vmatprep.subr.mxu0 0.0
        %2377 = vmatpush1.xpose.msra.mxu0 0.0
        %2378 = vmatprep.subr.mxu0 0.0
        %2379 = vmatpush1.xpose.msra.mxu0 0.0
        %2380 = vmatprep.subr.mxu0 0.0
        %2381 = vmatpush1.xpose.msra.mxu0 0.0
        %2382 = vmatprep.subr.mxu0 0.0
        %2383 = vmatpush1.xpose.msra.mxu0 0.0
        %2384 = vmatprep.subr.mxu0 0.0
        %2385 = vmatpush1.xpose.msra.mxu0 0.0
        %2386 = vmatprep.subr.mxu0 0.0
        %2387 = vmatpush1.xpose.msra.mxu0 0.0
        %2388 = vmatprep.subr.mxu0 0.0
        %2389 = vmatpush1.xpose.msra.mxu0 0.0
        %2390 = vmatprep.subr.mxu0 0.0
        %2391 = vmatpush1.xpose.msra.mxu0 0.0
        %2392 = vmatprep.subr.mxu0 0.0
        %2393 = vmatpush1.xpose.msra.mxu0 0.0
        %2394 = vmatprep.subr.mxu0 0.0
        %2395 = vmatpush1.xpose.msra.mxu0 0.0
        %2396 = vmatprep.subr.mxu0 0.0
        %2397 = vmatpush1.xpose.msra.mxu0 0.0
        %2398 = vmatprep.subr.mxu0 0.0
        %2399 = vmatpush1.xpose.msra.mxu0 0.0
        %2400 = vmatprep.subr.mxu0 0.0
        %2401 = vmatpush1.xpose.msra.mxu0 0.0
        %2402 = vmatprep.subr.mxu0 0.0
        %2403 = vmatpush1.xpose.msra.mxu0 0.0
        %2404 = vmatprep.subr.mxu0 0.0
        %2405 = vmatpush1.xpose.msra.mxu0 0.0
        %2406 = vmatprep.subr.mxu0 0.0
        %2407 = vmatpush1.xpose.msra.mxu0 0.0
        %2408 = vmatprep.mubr.f32.mxu0 0.0
        %2409 = vmatmul.mubr.f32.gmra.mrb[0].mxu0 %v2340
        %v2410 = vpop.f32.mrb[0].mxu0
        %v2411 = vadd.f32 0.0, %v2410
        %v2412 = vpop.f32.mrb[0].mxu0
        %2413 = vdwg.mxu0
        %2415 = vrot.lane.b32.xlu0 %v2333, 96
        %v2416 = vpop.permute.xlu0 %2415
        %v2417 = vsel %vm2339, %v2333, 0
        %v2419 = vsel %vm2339, %v2416, 0
        %2421 = vmatprep.subr.mxu0 0.0
        %2422 = vmatpush1.xpose.msra.mxu0 %v2419
        %2423 = vmatprep.subr.mxu0 0.0
        %2424 = vmatpush1.xpose.msra.mxu0 0.0
        %2425 = vmatprep.subr.mxu0 0.0
        %2426 = vmatpush1.xpose.msra.mxu0 0.0
        %2427 = vmatprep.subr.mxu0 0.0
        %2428 = vmatpush1.xpose.msra.mxu0 0.0
        %2429 = vmatprep.subr.mxu0 0.0
        %2430 = vmatpush1.xpose.msra.mxu0 0.0
        %2431 = vmatprep.subr.mxu0 0.0
        %2432 = vmatpush1.xpose.msra.mxu0 0.0
        %2433 = vmatprep.subr.mxu0 0.0
        %2434 = vmatpush1.xpose.msra.mxu0 0.0
        %2435 = vmatprep.subr.mxu0 0.0
        %2436 = vmatpush1.xpose.msra.mxu0 0.0
        %2437 = vmatprep.subr.mxu0 0.0
        %2438 = vmatpush1.xpose.msra.mxu0 0.0
        %2439 = vmatprep.subr.mxu0 0.0
        %2440 = vmatpush1.xpose.msra.mxu0 0.0
        %2441 = vmatprep.subr.mxu0 0.0
        %2442 = vmatpush1.xpose.msra.mxu0 0.0
        %2443 = vmatprep.subr.mxu0 0.0
        %2444 = vmatpush1.xpose.msra.mxu0 0.0
        %2445 = vmatprep.subr.mxu0 0.0
        %2446 = vmatpush1.xpose.msra.mxu0 0.0
        %2447 = vmatprep.subr.mxu0 0.0
        %2448 = vmatpush1.xpose.msra.mxu0 0.0
        %2449 = vmatprep.subr.mxu0 0.0
        %2450 = vmatpush1.xpose.msra.mxu0 0.0
        %2451 = vmatprep.subr.mxu0 0.0
        %2452 = vmatpush1.xpose.msra.mxu0 0.0
        %2453 = vmatprep.subr.mxu0 0.0
        %2454 = vmatpush1.xpose.msra.mxu0 0.0
        %2455 = vmatprep.subr.mxu0 0.0
        %2456 = vmatpush1.xpose.msra.mxu0 0.0
        %2457 = vmatprep.subr.mxu0 0.0
        %2458 = vmatpush1.xpose.msra.mxu0 0.0
        %2459 = vmatprep.subr.mxu0 0.0
        %2460 = vmatpush1.xpose.msra.mxu0 0.0
        %2461 = vmatprep.subr.mxu0 0.0
        %2462 = vmatpush1.xpose.msra.mxu0 0.0
        %2463 = vmatprep.subr.mxu0 0.0
        %2464 = vmatpush1.xpose.msra.mxu0 0.0
        %2465 = vmatprep.subr.mxu0 0.0
        %2466 = vmatpush1.xpose.msra.mxu0 0.0
        %2467 = vmatprep.subr.mxu0 0.0
        %2468 = vmatpush1.xpose.msra.mxu0 0.0
        %2469 = vmatprep.subr.mxu0 0.0
        %2470 = vmatpush1.xpose.msra.mxu0 0.0
        %2471 = vmatprep.subr.mxu0 0.0
        %2472 = vmatpush1.xpose.msra.mxu0 0.0
        %2473 = vmatprep.subr.mxu0 0.0
        %2474 = vmatpush1.xpose.msra.mxu0 0.0
        %2475 = vmatprep.subr.mxu0 0.0
        %2476 = vmatpush1.xpose.msra.mxu0 0.0
        %2477 = vmatprep.subr.mxu0 0.0
        %2478 = vmatpush1.xpose.msra.mxu0 0.0
        %2479 = vmatprep.subr.mxu0 0.0
        %2480 = vmatpush1.xpose.msra.mxu0 0.0
        %2481 = vmatprep.subr.mxu0 0.0
        %2482 = vmatpush1.xpose.msra.mxu0 0.0
        %2483 = vmatprep.subr.mxu0 0.0
        %2484 = vmatpush1.xpose.msra.mxu0 0.0
        %2485 = vmatprep.mubr.f32.mxu0 0.0
        %2486 = vmatmul.mubr.f32.gmra.mrb[0].mxu0 %v2417
        %v2487 = vpop.f32.mrb[0].mxu0
        %v2488 = vadd.f32 0.0, %v2487
        %v2489 = vpop.f32.mrb[0].mxu0
        %2490 = vdwg.mxu0
        %v2491 = vmul.f32 %v2411, 0.35355338
        %v2492 = vmul.f32 %v2488, 0.35355338
        %v2493 = vsel %vm2339, %v2491, -inf
        %2494 = vmax.xlane.f32.xlu0 %v2493
        %v2495 = vpop.xlane.xlu0 %2494
        %v2496 = vsel %vm2339, %v2492, -inf
        %2497 = vmax.xlane.f32.xlu0 %v2496
        %v2498 = vpop.xlane.xlu0 %2497
        %v2499 = vsub.f32 %v2491, %v2495
        %v2500 = vsub.f32 %v2492, %v2498
        %v2501 = vmul.f32 %v2499, 1.442695
        %v2502 = vpow.pop %v2501
        %v2503 = vmul.f32 %v2500, 1.442695
        %v2504 = vpow.pop %v2503
        %v2505 = vsel %vm2339, %v2502, 0.0
        %2506 = vadd.xlane.f32.xlu0 %v2505
        %v2507 = vpop.xlane.xlu0 %2506
        %v2508 = vsel %vm2339, %v2504, 0.0
        %2509 = vadd.xlane.f32.xlu0 %v2508
        %v2510 = vpop.xlane.xlu0 %2509
        %v2511 = vrcp.pop %v2507
        %v2512 = vmul.f32 %v2502, %v2511
        %v2513 = vrcp.pop %v2510
        %v2514 = vmul.f32 %v2504, %v2513
        %2515 = vrot.lane.b32.xlu0 %v2328, 64
        %v2516 = vpop.permute.xlu0 %2515
        %v2519 = vsel %vm2339, %v2512, 0
        %2521 = vmatprep.subr.mxu0 0.0
        %2522 = vmatpush1.msra.mxu0 %v2516
        %2523 = vmatprep.subr.mxu0 0.0
        %2524 = vmatpush1.msra.mxu0 0.0
        %2525 = vmatprep.subr.mxu0 0.0
        %2526 = vmatpush1.msra.mxu0 0.0
        %2527 = vmatprep.subr.mxu0 0.0
        %2528 = vmatpush1.msra.mxu0 0.0
        %2529 = vmatprep.subr.mxu0 0.0
        %2530 = vmatpush1.msra.mxu0 0.0
        %2531 = vmatprep.subr.mxu0 0.0
        %2532 = vmatpush1.msra.mxu0 0.0
        %2533 = vmatprep.subr.mxu0 0.0
        %2534 = vmatpush1.msra.mxu0 0.0
        %2535 = vmatprep.subr.mxu0 0.0
        %2536 = vmatpush1.msra.mxu0 0.0
        %2537 = vmatprep.subr.mxu0 0.0
        %2538 = vmatpush1.msra.mxu0 0.0
        %2539 = vmatprep.subr.mxu0 0.0
        %2540 = vmatpush1.msra.mxu0 0.0
        %2541 = vmatprep.subr.mxu0 0.0
        %2542 = vmatpush1.msra.mxu0 0.0
        %2543 = vmatprep.subr.mxu0 0.0
        %2544 = vmatpush1.msra.mxu0 0.0
        %2545 = vmatprep.subr.mxu0 0.0
        %2546 = vmatpush1.msra.mxu0 0.0
        %2547 = vmatprep.subr.mxu0 0.0
        %2548 = vmatpush1.msra.mxu0 0.0
        %2549 = vmatprep.subr.mxu0 0.0
        %2550 = vmatpush1.msra.mxu0 0.0
        %2551 = vmatprep.subr.mxu0 0.0
        %2552 = vmatpush1.msra.mxu0 0.0
        %2553 = vmatprep.subr.mxu0 0.0
        %2554 = vmatpush1.msra.mxu0 0.0
        %2555 = vmatprep.subr.mxu0 0.0
        %2556 = vmatpush1.msra.mxu0 0.0
        %2557 = vmatprep.subr.mxu0 0.0
        %2558 = vmatpush1.msra.mxu0 0.0
        %2559 = vmatprep.subr.mxu0 0.0
        %2560 = vmatpush1.msra.mxu0 0.0
        %2561 = vmatprep.subr.mxu0 0.0
        %2562 = vmatpush1.msra.mxu0 0.0
        %2563 = vmatprep.subr.mxu0 0.0
        %2564 = vmatpush1.msra.mxu0 0.0
        %2565 = vmatprep.subr.mxu0 0.0
        %2566 = vmatpush1.msra.mxu0 0.0
        %2567 = vmatprep.subr.mxu0 0.0
        %2568 = vmatpush1.msra.mxu0 0.0
        %2569 = vmatprep.subr.mxu0 0.0
        %2570 = vmatpush1.msra.mxu0 0.0
        %2571 = vmatprep.subr.mxu0 0.0
        %2572 = vmatpush1.msra.mxu0 0.0
        %2573 = vmatprep.subr.mxu0 0.0
        %2574 = vmatpush1.msra.mxu0 0.0
        %2575 = vmatprep.subr.mxu0 0.0
        %2576 = vmatpush1.msra.mxu0 0.0
        %2577 = vmatprep.subr.mxu0 0.0
        %2578 = vmatpush1.msra.mxu0 0.0
        %2579 = vmatprep.subr.mxu0 0.0
        %2580 = vmatpush1.msra.mxu0 0.0
        %2581 = vmatprep.subr.mxu0 0.0
        %2582 = vmatpush1.msra.mxu0 0.0
        %2583 = vmatprep.subr.mxu0 0.0
        %2584 = vmatpush1.msra.mxu0 0.0
        %2585 = vmatprep.mubr.f32.mxu0 0.0
        %2586 = vmatmul.mubr.f32.gmra.mrb[0].mxu0 %v2519
        %v2587 = vpop.f32.mrb[0].mxu0
        %v2588 = vadd.f32 0.0, %v2587
        %v2589 = vpop.f32.mrb[0].mxu0
        %2590 = vdwg.mxu0
        %2591 = vrot.lane.b32.xlu0 %v2333, 64
        %v2592 = vpop.permute.xlu0 %2591
        %v2595 = vsel %vm2339, %v2514, 0
        %2597 = vmatprep.subr.mxu0 0.0
        %2598 = vmatpush1.msra.mxu0 %v2592
        %2599 = vmatprep.subr.mxu0 0.0
        %2600 = vmatpush1.msra.mxu0 0.0
        %2601 = vmatprep.subr.mxu0 0.0
        %2602 = vmatpush1.msra.mxu0 0.0
        %2603 = vmatprep.subr.mxu0 0.0
        %2604 = vmatpush1.msra.mxu0 0.0
        %2605 = vmatprep.subr.mxu0 0.0
        %2606 = vmatpush1.msra.mxu0 0.0
        %2607 = vmatprep.subr.mxu0 0.0
        %2608 = vmatpush1.msra.mxu0 0.0
        %2609 = vmatprep.subr.mxu0 0.0
        %2610 = vmatpush1.msra.mxu0 0.0
        %2611 = vmatprep.subr.mxu0 0.0
        %2612 = vmatpush1.msra.mxu0 0.0
        %2613 = vmatprep.subr.mxu0 0.0
        %2614 = vmatpush1.msra.mxu0 0.0
        %2615 = vmatprep.subr.mxu0 0.0
        %2616 = vmatpush1.msra.mxu0 0.0
        %2617 = vmatprep.subr.mxu0 0.0
        %2618 = vmatpush1.msra.mxu0 0.0
        %2619 = vmatprep.subr.mxu0 0.0
        %2620 = vmatpush1.msra.mxu0 0.0
        %2621 = vmatprep.subr.mxu0 0.0
        %2622 = vmatpush1.msra.mxu0 0.0
        %2623 = vmatprep.subr.mxu0 0.0
        %2624 = vmatpush1.msra.mxu0 0.0
        %2625 = vmatprep.subr.mxu0 0.0
        %2626 = vmatpush1.msra.mxu0 0.0
        %2627 = vmatprep.subr.mxu0 0.0
        %2628 = vmatpush1.msra.mxu0 0.0
        %2629 = vmatprep.subr.mxu0 0.0
        %2630 = vmatpush1.msra.mxu0 0.0
        %2631 = vmatprep.subr.mxu0 0.0
        %2632 = vmatpush1.msra.mxu0 0.0
        %2633 = vmatprep.subr.mxu0 0.0
        %2634 = vmatpush1.msra.mxu0 0.0
        %2635 = vmatprep.subr.mxu0 0.0
        %2636 = vmatpush1.msra.mxu0 0.0
        %2637 = vmatprep.subr.mxu0 0.0
        %2638 = vmatpush1.msra.mxu0 0.0
        %2639 = vmatprep.subr.mxu0 0.0
        %2640 = vmatpush1.msra.mxu0 0.0
        %2641 = vmatprep.subr.mxu0 0.0
        %2642 = vmatpush1.msra.mxu0 0.0
        %2643 = vmatprep.subr.mxu0 0.0
        %2644 = vmatpush1.msra.mxu0 0.0
        %2645 = vmatprep.subr.mxu0 0.0
        %2646 = vmatpush1.msra.mxu0 0.0
        %2647 = vmatprep.subr.mxu0 0.0
        %2648 = vmatpush1.msra.mxu0 0.0
        %2649 = vmatprep.subr.mxu0 0.0
        %2650 = vmatpush1.msra.mxu0 0.0
        %2651 = vmatprep.subr.mxu0 0.0
        %2652 = vmatpush1.msra.mxu0 0.0
        %2653 = vmatprep.subr.mxu0 0.0
        %2654 = vmatpush1.msra.mxu0 0.0
        %2655 = vmatprep.subr.mxu0 0.0
        %2656 = vmatpush1.msra.mxu0 0.0
        %2657 = vmatprep.subr.mxu0 0.0
        %2658 = vmatpush1.msra.mxu0 0.0
        %2659 = vmatprep.subr.mxu0 0.0
        %2660 = vmatpush1.msra.mxu0 0.0
        %2661 = vmatprep.mubr.f32.mxu0 0.0
        %2662 = vmatmul.mubr.f32.gmra.mrb[0].mxu0 %v2595
        %v2663 = vpop.f32.mrb[0].mxu0
        %v2664 = vadd.f32 0.0, %v2663
        %v2665 = vpop.f32.mrb[0].mxu0
        %2666 = vdwg.mxu0
        %2667 = vrot.lane.b32.xlu0 %v2328, 120
        %v2668 = vpop.permute.xlu0 %2667
        %2669 = vrot.lane.b32.xlu0 %v2328, 88
        %v2670 = vpop.permute.xlu0 %2669
        %v2671 = vsel %vm2339, %v2668, 0
        %v2673 = vsel %vm2339, %v2670, 0
        %2675 = vmatprep.subr.mxu0 0.0
        %2676 = vmatpush1.xpose.msra.mxu0 %v2673
        %2677 = vmatprep.subr.mxu0 0.0
        %2678 = vmatpush1.xpose.msra.mxu0 0.0
        %2679 = vmatprep.subr.mxu0 0.0
        %2680 = vmatpush1.xpose.msra.mxu0 0.0
        %2681 = vmatprep.subr.mxu0 0.0
        %2682 = vmatpush1.xpose.msra.mxu0 0.0
        %2683 = vmatprep.subr.mxu0 0.0
        %2684 = vmatpush1.xpose.msra.mxu0 0.0
        %2685 = vmatprep.subr.mxu0 0.0
        %2686 = vmatpush1.xpose.msra.mxu0 0.0
        %2687 = vmatprep.subr.mxu0 0.0
        %2688 = vmatpush1.xpose.msra.mxu0 0.0
        %2689 = vmatprep.subr.mxu0 0.0
        %2690 = vmatpush1.xpose.msra.mxu0 0.0
        %2691 = vmatprep.subr.mxu0 0.0
        %2692 = vmatpush1.xpose.msra.mxu0 0.0
        %2693 = vmatprep.subr.mxu0 0.0
        %2694 = vmatpush1.xpose.msra.mxu0 0.0
        %2695 = vmatprep.subr.mxu0 0.0
        %2696 = vmatpush1.xpose.msra.mxu0 0.0
        %2697 = vmatprep.subr.mxu0 0.0
        %2698 = vmatpush1.xpose.msra.mxu0 0.0
        %2699 = vmatprep.subr.mxu0 0.0
        %2700 = vmatpush1.xpose.msra.mxu0 0.0
        %2701 = vmatprep.subr.mxu0 0.0
        %2702 = vmatpush1.xpose.msra.mxu0 0.0
        %2703 = vmatprep.subr.mxu0 0.0
        %2704 = vmatpush1.xpose.msra.mxu0 0.0
        %2705 = vmatprep.subr.mxu0 0.0
        %2706 = vmatpush1.xpose.msra.mxu0 0.0
        %2707 = vmatprep.subr.mxu0 0.0
        %2708 = vmatpush1.xpose.msra.mxu0 0.0
        %2709 = vmatprep.subr.mxu0 0.0
        %2710 = vmatpush1.xpose.msra.mxu0 0.0
        %2711 = vmatprep.subr.mxu0 0.0
        %2712 = vmatpush1.xpose.msra.mxu0 0.0
        %2713 = vmatprep.subr.mxu0 0.0
        %2714 = vmatpush1.xpose.msra.mxu0 0.0
        %2715 = vmatprep.subr.mxu0 0.0
        %2716 = vmatpush1.xpose.msra.mxu0 0.0
        %2717 = vmatprep.subr.mxu0 0.0
        %2718 = vmatpush1.xpose.msra.mxu0 0.0
        %2719 = vmatprep.subr.mxu0 0.0
        %2720 = vmatpush1.xpose.msra.mxu0 0.0
        %2721 = vmatprep.subr.mxu0 0.0
        %2722 = vmatpush1.xpose.msra.mxu0 0.0
        %2723 = vmatprep.subr.mxu0 0.0
        %2724 = vmatpush1.xpose.msra.mxu0 0.0
        %2725 = vmatprep.subr.mxu0 0.0
        %2726 = vmatpush1.xpose.msra.mxu0 0.0
        %2727 = vmatprep.subr.mxu0 0.0
        %2728 = vmatpush1.xpose.msra.mxu0 0.0
        %2729 = vmatprep.subr.mxu0 0.0
        %2730 = vmatpush1.xpose.msra.mxu0 0.0
        %2731 = vmatprep.subr.mxu0 0.0
        %2732 = vmatpush1.xpose.msra.mxu0 0.0
        %2733 = vmatprep.subr.mxu0 0.0
        %2734 = vmatpush1.xpose.msra.mxu0 0.0
        %2735 = vmatprep.subr.mxu0 0.0
        %2736 = vmatpush1.xpose.msra.mxu0 0.0
        %2737 = vmatprep.subr.mxu0 0.0
        %2738 = vmatpush1.xpose.msra.mxu0 0.0
        %2739 = vmatprep.mubr.f32.mxu0 0.0
        %2740 = vmatmul.mubr.f32.gmra.mrb[0].mxu0 %v2671
        %v2741 = vpop.f32.mrb[0].mxu0
        %v2742 = vadd.f32 0.0, %v2741
        %v2743 = vpop.f32.mrb[0].mxu0
        %2744 = vdwg.mxu0
        %2745 = vrot.lane.b32.xlu0 %v2333, 120
        %v2746 = vpop.permute.xlu0 %2745
        %2747 = vrot.lane.b32.xlu0 %v2333, 88
        %v2748 = vpop.permute.xlu0 %2747
        %v2749 = vsel %vm2339, %v2746, 0
        %v2751 = vsel %vm2339, %v2748, 0
        %2753 = vmatprep.subr.mxu0 0.0
        %2754 = vmatpush1.xpose.msra.mxu0 %v2751
        %2755 = vmatprep.subr.mxu0 0.0
        %2756 = vmatpush1.xpose.msra.mxu0 0.0
        %2757 = vmatprep.subr.mxu0 0.0
        %2758 = vmatpush1.xpose.msra.mxu0 0.0
        %2759 = vmatprep.subr.mxu0 0.0
        %2760 = vmatpush1.xpose.msra.mxu0 0.0
        %2761 = vmatprep.subr.mxu0 0.0
        %2762 = vmatpush1.xpose.msra.mxu0 0.0
        %2763 = vmatprep.subr.mxu0 0.0
        %2764 = vmatpush1.xpose.msra.mxu0 0.0
        %2765 = vmatprep.subr.mxu0 0.0
        %2766 = vmatpush1.xpose.msra.mxu0 0.0
        %2767 = vmatprep.subr.mxu0 0.0
        %2768 = vmatpush1.xpose.msra.mxu0 0.0
        %2769 = vmatprep.subr.mxu0 0.0
        %2770 = vmatpush1.xpose.msra.mxu0 0.0
        %2771 = vmatprep.subr.mxu0 0.0
        %2772 = vmatpush1.xpose.msra.mxu0 0.0
        %2773 = vmatprep.subr.mxu0 0.0
        %2774 = vmatpush1.xpose.msra.mxu0 0.0
        %2775 = vmatprep.subr.mxu0 0.0
        %2776 = vmatpush1.xpose.msra.mxu0 0.0
        %2777 = vmatprep.subr.mxu0 0.0
        %2778 = vmatpush1.xpose.msra.mxu0 0.0
        %2779 = vmatprep.subr.mxu0 0.0
        %2780 = vmatpush1.xpose.msra.mxu0 0.0
        %2781 = vmatprep.subr.mxu0 0.0
        %2782 = vmatpush1.xpose.msra.mxu0 0.0
        %2783 = vmatprep.subr.mxu0 0.0
        %2784 = vmatpush1.xpose.msra.mxu0 0.0
        %2785 = vmatprep.subr.mxu0 0.0
        %2786 = vmatpush1.xpose.msra.mxu0 0.0
        %2787 = vmatprep.subr.mxu0 0.0
        %2788 = vmatpush1.xpose.msra.mxu0 0.0
        %2789 = vmatprep.subr.mxu0 0.0
        %2790 = vmatpush1.xpose.msra.mxu0 0.0
        %2791 = vmatprep.subr.mxu0 0.0
        %2792 = vmatpush1.xpose.msra.mxu0 0.0
        %2793 = vmatprep.subr.mxu0 0.0
        %2794 = vmatpush1.xpose.msra.mxu0 0.0
        %2795 = vmatprep.subr.mxu0 0.0
        %2796 = vmatpush1.xpose.msra.mxu0 0.0
        %2797 = vmatprep.subr.mxu0 0.0
        %2798 = vmatpush1.xpose.msra.mxu0 0.0
        %2799 = vmatprep.subr.mxu0 0.0
        %2800 = vmatpush1.xpose.msra.mxu0 0.0
        %2801 = vmatprep.subr.mxu0 0.0
        %2802 = vmatpush1.xpose.msra.mxu0 0.0
        %2803 = vmatprep.subr.mxu0 0.0
        %2804 = vmatpush1.xpose.msra.mxu0 0.0
        %2805 = vmatprep.subr.mxu0 0.0
        %2806 = vmatpush1.xpose.msra.mxu0 0.0
        %2807 = vmatprep.subr.mxu0 0.0
        %2808 = vmatpush1.xpose.msra.mxu0 0.0
        %2809 = vmatprep.subr.mxu0 0.0
        %2810 = vmatpush1.xpose.msra.mxu0 0.0
        %2811 = vmatprep.subr.mxu0 0.0
        %2812 = vmatpush1.xpose.msra.mxu0 0.0
        %2813 = vmatprep.subr.mxu0 0.0
        %2814 = vmatpush1.xpose.msra.mxu0 0.0
        %2815 = vmatprep.subr.mxu0 0.0
        %2816 = vmatpush1.xpose.msra.mxu0 0.0
        %2817 = vmatprep.mubr.f32.mxu0 0.0
        %2818 = vmatmul.mubr.f32.gmra.mrb[0].mxu0 %v2749
        %v2819 = vpop.f32.mrb[0].mxu0
        %v2820 = vadd.f32 0.0, %v2819
        %v2821 = vpop.f32.mrb[0].mxu0
        %2822 = vdwg.mxu0
        %v2823 = vmul.f32 %v2742, 0.35355338
        %v2824 = vmul.f32 %v2820, 0.35355338
        %v2825 = vsel %vm2339, %v2823, -inf
        %2826 = vmax.xlane.f32.xlu0 %v2825
        %v2827 = vpop.xlane.xlu0 %2826
        %v2828 = vsel %vm2339, %v2824, -inf
        %2829 = vmax.xlane.f32.xlu0 %v2828
        %v2830 = vpop.xlane.xlu0 %2829
        %v2831 = vsub.f32 %v2823, %v2827
        %v2832 = vsub.f32 %v2824, %v2830
        %v2833 = vmul.f32 %v2831, 1.442695
        %v2834 = vpow.pop %v2833
        %v2835 = vmul.f32 %v2832, 1.442695
        %v2836 = vpow.pop %v2835
        %v2837 = vsel %vm2339, %v2834, 0.0
        %2838 = vadd.xlane.f32.xlu0 %v2837
        %v2839 = vpop.xlane.xlu0 %2838
        %v2840 = vsel %vm2339, %v2836, 0.0
        %2841 = vadd.xlane.f32.xlu0 %v2840
        %v2842 = vpop.xlane.xlu0 %2841
        %v2843 = vrcp.pop %v2839
        %v2844 = vmul.f32 %v2834, %v2843
        %v2845 = vrcp.pop %v2842
        %v2846 = vmul.f32 %v2836, %v2845
        %2847 = vrot.lane.b32.xlu0 %v2328, 56
        %v2848 = vpop.permute.xlu0 %2847
        %v2851 = vsel %vm2339, %v2844, 0
        %2853 = vmatprep.subr.mxu0 0.0
        %2854 = vmatpush1.msra.mxu0 %v2848
        %2855 = vmatprep.subr.mxu0 0.0
        %2856 = vmatpush1.msra.mxu0 0.0
        %2857 = vmatprep.subr.mxu0 0.0
        %2858 = vmatpush1.msra.mxu0 0.0
        %2859 = vmatprep.subr.mxu0 0.0
        %2860 = vmatpush1.msra.mxu0 0.0
        %2861 = vmatprep.subr.mxu0 0.0
        %2862 = vmatpush1.msra.mxu0 0.0
        %2863 = vmatprep.subr.mxu0 0.0
        %2864 = vmatpush1.msra.mxu0 0.0
        %2865 = vmatprep.subr.mxu0 0.0
        %2866 = vmatpush1.msra.mxu0 0.0
        %2867 = vmatprep.subr.mxu0 0.0
        %2868 = vmatpush1.msra.mxu0 0.0
        %2869 = vmatprep.subr.mxu0 0.0
        %2870 = vmatpush1.msra.mxu0 0.0
        %2871 = vmatprep.subr.mxu0 0.0
        %2872 = vmatpush1.msra.mxu0 0.0
        %2873 = vmatprep.subr.mxu0 0.0
        %2874 = vmatpush1.msra.mxu0 0.0
        %2875 = vmatprep.subr.mxu0 0.0
        %2876 = vmatpush1.msra.mxu0 0.0
        %2877 = vmatprep.subr.mxu0 0.0
        %2878 = vmatpush1.msra.mxu0 0.0
        %2879 = vmatprep.subr.mxu0 0.0
        %2880 = vmatpush1.msra.mxu0 0.0
        %2881 = vmatprep.subr.mxu0 0.0
        %2882 = vmatpush1.msra.mxu0 0.0
        %2883 = vmatprep.subr.mxu0 0.0
        %2884 = vmatpush1.msra.mxu0 0.0
        %2885 = vmatprep.subr.mxu0 0.0
        %2886 = vmatpush1.msra.mxu0 0.0
        %2887 = vmatprep.subr.mxu0 0.0
        %2888 = vmatpush1.msra.mxu0 0.0
        %2889 = vmatprep.subr.mxu0 0.0
        %2890 = vmatpush1.msra.mxu0 0.0
        %2891 = vmatprep.subr.mxu0 0.0
        %2892 = vmatpush1.msra.mxu0 0.0
        %2893 = vmatprep.subr.mxu0 0.0
        %2894 = vmatpush1.msra.mxu0 0.0
        %2895 = vmatprep.subr.mxu0 0.0
        %2896 = vmatpush1.msra.mxu0 0.0
        %2897 = vmatprep.subr.mxu0 0.0
        %2898 = vmatpush1.msra.mxu0 0.0
        %2899 = vmatprep.subr.mxu0 0.0
        %2900 = vmatpush1.msra.mxu0 0.0
        %2901 = vmatprep.subr.mxu0 0.0
        %2902 = vmatpush1.msra.mxu0 0.0
        %2903 = vmatprep.subr.mxu0 0.0
        %2904 = vmatpush1.msra.mxu0 0.0
        %2905 = vmatprep.subr.mxu0 0.0
        %2906 = vmatpush1.msra.mxu0 0.0
        %2907 = vmatprep.subr.mxu0 0.0
        %2908 = vmatpush1.msra.mxu0 0.0
        %2909 = vmatprep.subr.mxu0 0.0
        %2910 = vmatpush1.msra.mxu0 0.0
        %2911 = vmatprep.subr.mxu0 0.0
        %2912 = vmatpush1.msra.mxu0 0.0
        %2913 = vmatprep.subr.mxu0 0.0
        %2914 = vmatpush1.msra.mxu0 0.0
        %2915 = vmatprep.subr.mxu0 0.0
        %2916 = vmatpush1.msra.mxu0 0.0
        %2917 = vmatprep.mubr.f32.mxu0 0.0
        %2918 = vmatmul.mubr.f32.gmra.mrb[0].mxu0 %v2851
        %v2919 = vpop.f32.mrb[0].mxu0
        %v2920 = vadd.f32 0.0, %v2919
        %v2921 = vpop.f32.mrb[0].mxu0
        %2922 = vdwg.mxu0
        %2923 = vrot.lane.b32.xlu0 %v2333, 56
        %v2924 = vpop.permute.xlu0 %2923
        %v2927 = vsel %vm2339, %v2846, 0
        %2929 = vmatprep.subr.mxu0 0.0
        %2930 = vmatpush1.msra.mxu0 %v2924
        %2931 = vmatprep.subr.mxu0 0.0
        %2932 = vmatpush1.msra.mxu0 0.0
        %2933 = vmatprep.subr.mxu0 0.0
        %2934 = vmatpush1.msra.mxu0 0.0
        %2935 = vmatprep.subr.mxu0 0.0
        %2936 = vmatpush1.msra.mxu0 0.0
        %2937 = vmatprep.subr.mxu0 0.0
        %2938 = vmatpush1.msra.mxu0 0.0
        %2939 = vmatprep.subr.mxu0 0.0
        %2940 = vmatpush1.msra.mxu0 0.0
        %2941 = vmatprep.subr.mxu0 0.0
        %2942 = vmatpush1.msra.mxu0 0.0
        %2943 = vmatprep.subr.mxu0 0.0
        %2944 = vmatpush1.msra.mxu0 0.0
        %2945 = vmatprep.subr.mxu0 0.0
        %2946 = vmatpush1.msra.mxu0 0.0
        %2947 = vmatprep.subr.mxu0 0.0
        %2948 = vmatpush1.msra.mxu0 0.0
        %2949 = vmatprep.subr.mxu0 0.0
        %2950 = vmatpush1.msra.mxu0 0.0
        %2951 = vmatprep.subr.mxu0 0.0
        %2952 = vmatpush1.msra.mxu0 0.0
        %2953 = vmatprep.subr.mxu0 0.0
        %2954 = vmatpush1.msra.mxu0 0.0
        %2955 = vmatprep.subr.mxu0 0.0
        %2956 = vmatpush1.msra.mxu0 0.0
        %2957 = vmatprep.subr.mxu0 0.0
        %2958 = vmatpush1.msra.mxu0 0.0
        %2959 = vmatprep.subr.mxu0 0.0
        %2960 = vmatpush1.msra.mxu0 0.0
        %2961 = vmatprep.subr.mxu0 0.0
        %2962 = vmatpush1.msra.mxu0 0.0
        %2963 = vmatprep.subr.mxu0 0.0
        %2964 = vmatpush1.msra.mxu0 0.0
        %2965 = vmatprep.subr.mxu0 0.0
        %2966 = vmatpush1.msra.mxu0 0.0
        %2967 = vmatprep.subr.mxu0 0.0
        %2968 = vmatpush1.msra.mxu0 0.0
        %2969 = vmatprep.subr.mxu0 0.0
        %2970 = vmatpush1.msra.mxu0 0.0
        %2971 = vmatprep.subr.mxu0 0.0
        %2972 = vmatpush1.msra.mxu0 0.0
        %2973 = vmatprep.subr.mxu0 0.0
        %2974 = vmatpush1.msra.mxu0 0.0
        %2975 = vmatprep.subr.mxu0 0.0
        %2976 = vmatpush1.msra.mxu0 0.0
        %2977 = vmatprep.subr.mxu0 0.0
        %2978 = vmatpush1.msra.mxu0 0.0
        %2979 = vmatprep.subr.mxu0 0.0
        %2980 = vmatpush1.msra.mxu0 0.0
        %2981 = vmatprep.subr.mxu0 0.0
        %2982 = vmatpush1.msra.mxu0 0.0
        %2983 = vmatprep.subr.mxu0 0.0
        %2984 = vmatpush1.msra.mxu0 0.0
        %2985 = vmatprep.subr.mxu0 0.0
        %2986 = vmatpush1.msra.mxu0 0.0
        %2987 = vmatprep.subr.mxu0 0.0
        %2988 = vmatpush1.msra.mxu0 0.0
        %2989 = vmatprep.subr.mxu0 0.0
        %2990 = vmatpush1.msra.mxu0 0.0
        %2991 = vmatprep.subr.mxu0 0.0
        %2992 = vmatpush1.msra.mxu0 0.0
        %2993 = vmatprep.mubr.f32.mxu0 0.0
        %2994 = vmatmul.mubr.f32.gmra.mrb[0].mxu0 %v2927
        %v2995 = vpop.f32.mrb[0].mxu0
        %v2996 = vadd.f32 0.0, %v2995
        %v2997 = vpop.f32.mrb[0].mxu0
        %2998 = vdwg.mxu0
        %2999 = vrot.lane.b32.xlu0 %v2328, 112
        %v3000 = vpop.permute.xlu0 %2999
        %3001 = vrot.lane.b32.xlu0 %v2328, 80
        %v3002 = vpop.permute.xlu0 %3001
        %v3003 = vsel %vm2339, %v3000, 0
        %v3005 = vsel %vm2339, %v3002, 0
        %3007 = vmatprep.subr.mxu0 0.0
        %3008 = vmatpush1.xpose.msra.mxu0 %v3005
        %3009 = vmatprep.subr.mxu0 0.0
        %3010 = vmatpush1.xpose.msra.mxu0 0.0
        %3011 = vmatprep.subr.mxu0 0.0
        %3012 = vmatpush1.xpose.msra.mxu0 0.0
        %3013 = vmatprep.subr.mxu0 0.0
        %3014 = vmatpush1.xpose.msra.mxu0 0.0
        %3015 = vmatprep.subr.mxu0 0.0
        %3016 = vmatpush1.xpose.msra.mxu0 0.0
        %3017 = vmatprep.subr.mxu0 0.0
        %3018 = vmatpush1.xpose.msra.mxu0 0.0
        %3019 = vmatprep.subr.mxu0 0.0
        %3020 = vmatpush1.xpose.msra.mxu0 0.0
        %3021 = vmatprep.subr.mxu0 0.0
        %3022 = vmatpush1.xpose.msra.mxu0 0.0
        %3023 = vmatprep.subr.mxu0 0.0
        %3024 = vmatpush1.xpose.msra.mxu0 0.0
        %3025 = vmatprep.subr.mxu0 0.0
        %3026 = vmatpush1.xpose.msra.mxu0 0.0
        %3027 = vmatprep.subr.mxu0 0.0
        %3028 = vmatpush1.xpose.msra.mxu0 0.0
        %3029 = vmatprep.subr.mxu0 0.0
        %3030 = vmatpush1.xpose.msra.mxu0 0.0
        %3031 = vmatprep.subr.mxu0 0.0
        %3032 = vmatpush1.xpose.msra.mxu0 0.0
        %3033 = vmatprep.subr.mxu0 0.0
        %3034 = vmatpush1.xpose.msra.mxu0 0.0
        %3035 = vmatprep.subr.mxu0 0.0
        %3036 = vmatpush1.xpose.msra.mxu0 0.0
        %3037 = vmatprep.subr.mxu0 0.0
        %3038 = vmatpush1.xpose.msra.mxu0 0.0
        %3039 = vmatprep.subr.mxu0 0.0
        %3040 = vmatpush1.xpose.msra.mxu0 0.0
        %3041 = vmatprep.subr.mxu0 0.0
        %3042 = vmatpush1.xpose.msra.mxu0 0.0
        %3043 = vmatprep.subr.mxu0 0.0
        %3044 = vmatpush1.xpose.msra.mxu0 0.0
        %3045 = vmatprep.subr.mxu0 0.0
        %3046 = vmatpush1.xpose.msra.mxu0 0.0
        %3047 = vmatprep.subr.mxu0 0.0
        %3048 = vmatpush1.xpose.msra.mxu0 0.0
        %3049 = vmatprep.subr.mxu0 0.0
        %3050 = vmatpush1.xpose.msra.mxu0 0.0
        %3051 = vmatprep.subr.mxu0 0.0
        %3052 = vmatpush1.xpose.msra.mxu0 0.0
        %3053 = vmatprep.subr.mxu0 0.0
        %3054 = vmatpush1.xpose.msra.mxu0 0.0
        %3055 = vmatprep.subr.mxu0 0.0
        %3056 = vmatpush1.xpose.msra.mxu0 0.0
        %3057 = vmatprep.subr.mxu0 0.0
        %3058 = vmatpush1.xpose.msra.mxu0 0.0
        %3059 = vmatprep.subr.mxu0 0.0
        %3060 = vmatpush1.xpose.msra.mxu0 0.0
        %3061 = vmatprep.subr.mxu0 0.0
        %3062 = vmatpush1.xpose.msra.mxu0 0.0
        %3063 = vmatprep.subr.mxu0 0.0
        %3064 = vmatpush1.xpose.msra.mxu0 0.0
        %3065 = vmatprep.subr.mxu0 0.0
        %3066 = vmatpush1.xpose.msra.mxu0 0.0
        %3067 = vmatprep.subr.mxu0 0.0
        %3068 = vmatpush1.xpose.msra.mxu0 0.0
        %3069 = vmatprep.subr.mxu0 0.0
        %3070 = vmatpush1.xpose.msra.mxu0 0.0
        %3071 = vmatprep.mubr.f32.mxu0 0.0
        %3072 = vmatmul.mubr.f32.gmra.mrb[0].mxu0 %v3003
        %v3073 = vpop.f32.mrb[0].mxu0
        %v3074 = vadd.f32 0.0, %v3073
        %v3075 = vpop.f32.mrb[0].mxu0
        %3076 = vdwg.mxu0
        %3077 = vrot.lane.b32.xlu0 %v2333, 112
        %v3078 = vpop.permute.xlu0 %3077
        %3079 = vrot.lane.b32.xlu0 %v2333, 80
        %v3080 = vpop.permute.xlu0 %3079
        %v3081 = vsel %vm2339, %v3078, 0
        %v3083 = vsel %vm2339, %v3080, 0
        %3085 = vmatprep.subr.mxu0 0.0
        %3086 = vmatpush1.xpose.msra.mxu0 %v3083
        %3087 = vmatprep.subr.mxu0 0.0
        %3088 = vmatpush1.xpose.msra.mxu0 0.0
        %3089 = vmatprep.subr.mxu0 0.0
        %3090 = vmatpush1.xpose.msra.mxu0 0.0
        %3091 = vmatprep.subr.mxu0 0.0
        %3092 = vmatpush1.xpose.msra.mxu0 0.0
        %3093 = vmatprep.subr.mxu0 0.0
        %3094 = vmatpush1.xpose.msra.mxu0 0.0
        %3095 = vmatprep.subr.mxu0 0.0
        %3096 = vmatpush1.xpose.msra.mxu0 0.0
        %3097 = vmatprep.subr.mxu0 0.0
        %3098 = vmatpush1.xpose.msra.mxu0 0.0
        %3099 = vmatprep.subr.mxu0 0.0
        %3100 = vmatpush1.xpose.msra.mxu0 0.0
        %3101 = vmatprep.subr.mxu0 0.0
        %3102 = vmatpush1.xpose.msra.mxu0 0.0
        %3103 = vmatprep.subr.mxu0 0.0
        %3104 = vmatpush1.xpose.msra.mxu0 0.0
        %3105 = vmatprep.subr.mxu0 0.0
        %3106 = vmatpush1.xpose.msra.mxu0 0.0
        %3107 = vmatprep.subr.mxu0 0.0
        %3108 = vmatpush1.xpose.msra.mxu0 0.0
        %3109 = vmatprep.subr.mxu0 0.0
        %3110 = vmatpush1.xpose.msra.mxu0 0.0
        %3111 = vmatprep.subr.mxu0 0.0
        %3112 = vmatpush1.xpose.msra.mxu0 0.0
        %3113 = vmatprep.subr.mxu0 0.0
        %3114 = vmatpush1.xpose.msra.mxu0 0.0
        %3115 = vmatprep.subr.mxu0 0.0
        %3116 = vmatpush1.xpose.msra.mxu0 0.0
        %3117 = vmatprep.subr.mxu0 0.0
        %3118 = vmatpush1.xpose.msra.mxu0 0.0
        %3119 = vmatprep.subr.mxu0 0.0
        %3120 = vmatpush1.xpose.msra.mxu0 0.0
        %3121 = vmatprep.subr.mxu0 0.0
        %3122 = vmatpush1.xpose.msra.mxu0 0.0
        %3123 = vmatprep.subr.mxu0 0.0
        %3124 = vmatpush1.xpose.msra.mxu0 0.0
        %3125 = vmatprep.subr.mxu0 0.0
        %3126 = vmatpush1.xpose.msra.mxu0 0.0
        %3127 = vmatprep.subr.mxu0 0.0
        %3128 = vmatpush1.xpose.msra.mxu0 0.0
        %3129 = vmatprep.subr.mxu0 0.0
        %3130 = vmatpush1.xpose.msra.mxu0 0.0
        %3131 = vmatprep.subr.mxu0 0.0
        %3132 = vmatpush1.xpose.msra.mxu0 0.0
        %3133 = vmatprep.subr.mxu0 0.0
        %3134 = vmatpush1.xpose.msra.mxu0 0.0
        %3135 = vmatprep.subr.mxu0 0.0
        %3136 = vmatpush1.xpose.msra.mxu0 0.0
        %3137 = vmatprep.subr.mxu0 0.0
        %3138 = vmatpush1.xpose.msra.mxu0 0.0
        %3139 = vmatprep.subr.mxu0 0.0
        %3140 = vmatpush1.xpose.msra.mxu0 0.0
        %3141 = vmatprep.subr.mxu0 0.0
        %3142 = vmatpush1.xpose.msra.mxu0 0.0
        %3143 = vmatprep.subr.mxu0 0.0
        %3144 = vmatpush1.xpose.msra.mxu0 0.0
        %3145 = vmatprep.subr.mxu0 0.0
        %3146 = vmatpush1.xpose.msra.mxu0 0.0
        %3147 = vmatprep.subr.mxu0 0.0
        %3148 = vmatpush1.xpose.msra.mxu0 0.0
        %3149 = vmatprep.mubr.f32.mxu0 0.0
        %3150 = vmatmul.mubr.f32.gmra.mrb[0].mxu0 %v3081
        %v3151 = vpop.f32.mrb[0].mxu0
        %v3152 = vadd.f32 0.0, %v3151
        %v3153 = vpop.f32.mrb[0].mxu0
        %3154 = vdwg.mxu0
        %v3155 = vmul.f32 %v3074, 0.35355338
        %v3156 = vmul.f32 %v3152, 0.35355338
        %v3157 = vsel %vm2339, %v3155, -inf
        %3158 = vmax.xlane.f32.xlu0 %v3157
        %v3159 = vpop.xlane.xlu0 %3158
        %v3160 = vsel %vm2339, %v3156, -inf
        %3161 = vmax.xlane.f32.xlu0 %v3160
        %v3162 = vpop.xlane.xlu0 %3161
        %v3163 = vsub.f32 %v3155, %v3159
        %v3164 = vsub.f32 %v3156, %v3162
        %v3165 = vmul.f32 %v3163, 1.442695
        %v3166 = vpow.pop %v3165
        %v3167 = vmul.f32 %v3164, 1.442695
        %v3168 = vpow.pop %v3167
        %v3169 = vsel %vm2339, %v3166, 0.0
        %3170 = vadd.xlane.f32.xlu0 %v3169
        %v3171 = vpop.xlane.xlu0 %3170
        %v3172 = vsel %vm2339, %v3168, 0.0
        %3173 = vadd.xlane.f32.xlu0 %v3172
        %v3174 = vpop.xlane.xlu0 %3173
        %v3175 = vrcp.pop %v3171
        %v3176 = vmul.f32 %v3166, %v3175
        %v3177 = vrcp.pop %v3174
        %v3178 = vmul.f32 %v3168, %v3177
        %3179 = vrot.lane.b32.xlu0 %v2328, 48
        %v3180 = vpop.permute.xlu0 %3179
        %v3183 = vsel %vm2339, %v3176, 0
        %3185 = vmatprep.subr.mxu0 0.0
        %3186 = vmatpush1.msra.mxu0 %v3180
        %3187 = vmatprep.subr.mxu0 0.0
        %3188 = vmatpush1.msra.mxu0 0.0
        %3189 = vmatprep.subr.mxu0 0.0
        %3190 = vmatpush1.msra.mxu0 0.0
        %3191 = vmatprep.subr.mxu0 0.0
        %3192 = vmatpush1.msra.mxu0 0.0
        %3193 = vmatprep.subr.mxu0 0.0
        %3194 = vmatpush1.msra.mxu0 0.0
        %3195 = vmatprep.subr.mxu0 0.0
        %3196 = vmatpush1.msra.mxu0 0.0
        %3197 = vmatprep.subr.mxu0 0.0
        %3198 = vmatpush1.msra.mxu0 0.0
        %3199 = vmatprep.subr.mxu0 0.0
        %3200 = vmatpush1.msra.mxu0 0.0
        %3201 = vmatprep.subr.mxu0 0.0
        %3202 = vmatpush1.msra.mxu0 0.0
        %3203 = vmatprep.subr.mxu0 0.0
        %3204 = vmatpush1.msra.mxu0 0.0
        %3205 = vmatprep.subr.mxu0 0.0
        %3206 = vmatpush1.msra.mxu0 0.0
        %3207 = vmatprep.subr.mxu0 0.0
        %3208 = vmatpush1.msra.mxu0 0.0
        %3209 = vmatprep.subr.mxu0 0.0
        %3210 = vmatpush1.msra.mxu0 0.0
        %3211 = vmatprep.subr.mxu0 0.0
        %3212 = vmatpush1.msra.mxu0 0.0
        %3213 = vmatprep.subr.mxu0 0.0
        %3214 = vmatpush1.msra.mxu0 0.0
        %3215 = vmatprep.subr.mxu0 0.0
        %3216 = vmatpush1.msra.mxu0 0.0
        %3217 = vmatprep.subr.mxu0 0.0
        %3218 = vmatpush1.msra.mxu0 0.0
        %3219 = vmatprep.subr.mxu0 0.0
        %3220 = vmatpush1.msra.mxu0 0.0
        %3221 = vmatprep.subr.mxu0 0.0
        %3222 = vmatpush1.msra.mxu0 0.0
        %3223 = vmatprep.subr.mxu0 0.0
        %3224 = vmatpush1.msra.mxu0 0.0
        %3225 = vmatprep.subr.mxu0 0.0
        %3226 = vmatpush1.msra.mxu0 0.0
        %3227 = vmatprep.subr.mxu0 0.0
        %3228 = vmatpush1.msra.mxu0 0.0
        %3229 = vmatprep.subr.mxu0 0.0
        %3230 = vmatpush1.msra.mxu0 0.0
        %3231 = vmatprep.subr.mxu0 0.0
        %3232 = vmatpush1.msra.mxu0 0.0
        %3233 = vmatprep.subr.mxu0 0.0
        %3234 = vmatpush1.msra.mxu0 0.0
        %3235 = vmatprep.subr.mxu0 0.0
        %3236 = vmatpush1.msra.mxu0 0.0
        %3237 = vmatprep.subr.mxu0 0.0
        %3238 = vmatpush1.msra.mxu0 0.0
        %3239 = vmatprep.subr.mxu0 0.0
        %3240 = vmatpush1.msra.mxu0 0.0
        %3241 = vmatprep.subr.mxu0 0.0
        %3242 = vmatpush1.msra.mxu0 0.0
        %3243 = vmatprep.subr.mxu0 0.0
        %3244 = vmatpush1.msra.mxu0 0.0
        %3245 = vmatprep.subr.mxu0 0.0
        %3246 = vmatpush1.msra.mxu0 0.0
        %3247 = vmatprep.subr.mxu0 0.0
        %3248 = vmatpush1.msra.mxu0 0.0
        %3249 = vmatprep.mubr.f32.mxu0 0.0
        %3250 = vmatmul.mubr.f32.gmra.mrb[0].mxu0 %v3183
        %v3251 = vpop.f32.mrb[0].mxu0
        %v3252 = vadd.f32 0.0, %v3251
        %v3253 = vpop.f32.mrb[0].mxu0
        %3254 = vdwg.mxu0
        %3255 = vrot.lane.b32.xlu0 %v2333, 48
        %v3256 = vpop.permute.xlu0 %3255
        %v3259 = vsel %vm2339, %v3178, 0
        %3261 = vmatprep.subr.mxu0 0.0
        %3262 = vmatpush1.msra.mxu0 %v3256
        %3263 = vmatprep.subr.mxu0 0.0
        %3264 = vmatpush1.msra.mxu0 0.0
        %3265 = vmatprep.subr.mxu0 0.0
        %3266 = vmatpush1.msra.mxu0 0.0
        %3267 = vmatprep.subr.mxu0 0.0
        %3268 = vmatpush1.msra.mxu0 0.0
        %3269 = vmatprep.subr.mxu0 0.0
        %3270 = vmatpush1.msra.mxu0 0.0
        %3271 = vmatprep.subr.mxu0 0.0
        %3272 = vmatpush1.msra.mxu0 0.0
        %3273 = vmatprep.subr.mxu0 0.0
        %3274 = vmatpush1.msra.mxu0 0.0
        %3275 = vmatprep.subr.mxu0 0.0
        %3276 = vmatpush1.msra.mxu0 0.0
        %3277 = vmatprep.subr.mxu0 0.0
        %3278 = vmatpush1.msra.mxu0 0.0
        %3279 = vmatprep.subr.mxu0 0.0
        %3280 = vmatpush1.msra.mxu0 0.0
        %3281 = vmatprep.subr.mxu0 0.0
        %3282 = vmatpush1.msra.mxu0 0.0
        %3283 = vmatprep.subr.mxu0 0.0
        %3284 = vmatpush1.msra.mxu0 0.0
        %3285 = vmatprep.subr.mxu0 0.0
        %3286 = vmatpush1.msra.mxu0 0.0
        %3287 = vmatprep.subr.mxu0 0.0
        %3288 = vmatpush1.msra.mxu0 0.0
        %3289 = vmatprep.subr.mxu0 0.0
        %3290 = vmatpush1.msra.mxu0 0.0
        %3291 = vmatprep.subr.mxu0 0.0
        %3292 = vmatpush1.msra.mxu0 0.0
        %3293 = vmatprep.subr.mxu0 0.0
        %3294 = vmatpush1.msra.mxu0 0.0
        %3295 = vmatprep.subr.mxu0 0.0
        %3296 = vmatpush1.msra.mxu0 0.0
        %3297 = vmatprep.subr.mxu0 0.0
        %3298 = vmatpush1.msra.mxu0 0.0
        %3299 = vmatprep.subr.mxu0 0.0
        %3300 = vmatpush1.msra.mxu0 0.0
        %3301 = vmatprep.subr.mxu0 0.0
        %3302 = vmatpush1.msra.mxu0 0.0
        %3303 = vmatprep.subr.mxu0 0.0
        %3304 = vmatpush1.msra.mxu0 0.0
        %3305 = vmatprep.subr.mxu0 0.0
        %3306 = vmatpush1.msra.mxu0 0.0
        %3307 = vmatprep.subr.mxu0 0.0
        %3308 = vmatpush1.msra.mxu0 0.0
        %3309 = vmatprep.subr.mxu0 0.0
        %3310 = vmatpush1.msra.mxu0 0.0
        %3311 = vmatprep.subr.mxu0 0.0
        %3312 = vmatpush1.msra.mxu0 0.0
        %3313 = vmatprep.subr.mxu0 0.0
        %3314 = vmatpush1.msra.mxu0 0.0
        %3315 = vmatprep.subr.mxu0 0.0
        %3316 = vmatpush1.msra.mxu0 0.0
        %3317 = vmatprep.subr.mxu0 0.0
        %3318 = vmatpush1.msra.mxu0 0.0
        %3319 = vmatprep.subr.mxu0 0.0
        %3320 = vmatpush1.msra.mxu0 0.0
        %3321 = vmatprep.subr.mxu0 0.0
        %3322 = vmatpush1.msra.mxu0 0.0
        %3323 = vmatprep.subr.mxu0 0.0
        %3324 = vmatpush1.msra.mxu0 0.0
        %3325 = vmatprep.mubr.f32.mxu0 0.0
        %3326 = vmatmul.mubr.f32.gmra.mrb[0].mxu0 %v3259
        %v3327 = vpop.f32.mrb[0].mxu0
        %v3328 = vadd.f32 0.0, %v3327
        %v3329 = vpop.f32.mrb[0].mxu0
        %3330 = vdwg.mxu0
        %3331 = vrot.lane.b32.xlu0 %v2328, 104
        %v3332 = vpop.permute.xlu0 %3331
        %3333 = vrot.lane.b32.xlu0 %v2328, 72
        %v3334 = vpop.permute.xlu0 %3333
        %v3335 = vsel %vm2339, %v3332, 0
        %v3337 = vsel %vm2339, %v3334, 0
        %3339 = vmatprep.subr.mxu0 0.0
        %3340 = vmatpush1.xpose.msra.mxu0 %v3337
        %3341 = vmatprep.subr.mxu0 0.0
        %3342 = vmatpush1.xpose.msra.mxu0 0.0
        %3343 = vmatprep.subr.mxu0 0.0
        %3344 = vmatpush1.xpose.msra.mxu0 0.0
        %3345 = vmatprep.subr.mxu0 0.0
        %3346 = vmatpush1.xpose.msra.mxu0 0.0
        %3347 = vmatprep.subr.mxu0 0.0
        %3348 = vmatpush1.xpose.msra.mxu0 0.0
        %3349 = vmatprep.subr.mxu0 0.0
        %3350 = vmatpush1.xpose.msra.mxu0 0.0
        %3351 = vmatprep.subr.mxu0 0.0
        %3352 = vmatpush1.xpose.msra.mxu0 0.0
        %3353 = vmatprep.subr.mxu0 0.0
        %3354 = vmatpush1.xpose.msra.mxu0 0.0
        %3355 = vmatprep.subr.mxu0 0.0
        %3356 = vmatpush1.xpose.msra.mxu0 0.0
        %3357 = vmatprep.subr.mxu0 0.0
        %3358 = vmatpush1.xpose.msra.mxu0 0.0
        %3359 = vmatprep.subr.mxu0 0.0
        %3360 = vmatpush1.xpose.msra.mxu0 0.0
        %3361 = vmatprep.subr.mxu0 0.0
        %3362 = vmatpush1.xpose.msra.mxu0 0.0
        %3363 = vmatprep.subr.mxu0 0.0
        %3364 = vmatpush1.xpose.msra.mxu0 0.0
        %3365 = vmatprep.subr.mxu0 0.0
        %3366 = vmatpush1.xpose.msra.mxu0 0.0
        %3367 = vmatprep.subr.mxu0 0.0
        %3368 = vmatpush1.xpose.msra.mxu0 0.0
        %3369 = vmatprep.subr.mxu0 0.0
        %3370 = vmatpush1.xpose.msra.mxu0 0.0
        %3371 = vmatprep.subr.mxu0 0.0
        %3372 = vmatpush1.xpose.msra.mxu0 0.0
        %3373 = vmatprep.subr.mxu0 0.0
        %3374 = vmatpush1.xpose.msra.mxu0 0.0
        %3375 = vmatprep.subr.mxu0 0.0
        %3376 = vmatpush1.xpose.msra.mxu0 0.0
        %3377 = vmatprep.subr.mxu0 0.0
        %3378 = vmatpush1.xpose.msra.mxu0 0.0
        %3379 = vmatprep.subr.mxu0 0.0
        %3380 = vmatpush1.xpose.msra.mxu0 0.0
        %3381 = vmatprep.subr.mxu0 0.0
        %3382 = vmatpush1.xpose.msra.mxu0 0.0
        %3383 = vmatprep.subr.mxu0 0.0
        %3384 = vmatpush1.xpose.msra.mxu0 0.0
        %3385 = vmatprep.subr.mxu0 0.0
        %3386 = vmatpush1.xpose.msra.mxu0 0.0
        %3387 = vmatprep.subr.mxu0 0.0
        %3388 = vmatpush1.xpose.msra.mxu0 0.0
        %3389 = vmatprep.subr.mxu0 0.0
        %3390 = vmatpush1.xpose.msra.mxu0 0.0
        %3391 = vmatprep.subr.mxu0 0.0
        %3392 = vmatpush1.xpose.msra.mxu0 0.0
        %3393 = vmatprep.subr.mxu0 0.0
        %3394 = vmatpush1.xpose.msra.mxu0 0.0
        %3395 = vmatprep.subr.mxu0 0.0
        %3396 = vmatpush1.xpose.msra.mxu0 0.0
        %3397 = vmatprep.subr.mxu0 0.0
        %3398 = vmatpush1.xpose.msra.mxu0 0.0
        %3399 = vmatprep.subr.mxu0 0.0
        %3400 = vmatpush1.xpose.msra.mxu0 0.0
        %3401 = vmatprep.subr.mxu0 0.0
        %3402 = vmatpush1.xpose.msra.mxu0 0.0
        %3403 = vmatprep.mubr.f32.mxu0 0.0
        %3404 = vmatmul.mubr.f32.gmra.mrb[0].mxu0 %v3335
        %v3405 = vpop.f32.mrb[0].mxu0
        %v3406 = vadd.f32 0.0, %v3405
        %v3407 = vpop.f32.mrb[0].mxu0
        %3408 = vdwg.mxu0
        %3409 = vrot.lane.b32.xlu0 %v2333, 104
        %v3410 = vpop.permute.xlu0 %3409
        %3411 = vrot.lane.b32.xlu0 %v2333, 72
        %v3412 = vpop.permute.xlu0 %3411
        %v3413 = vsel %vm2339, %v3410, 0
        %v3415 = vsel %vm2339, %v3412, 0
        %3417 = vmatprep.subr.mxu0 0.0
        %3418 = vmatpush1.xpose.msra.mxu0 %v3415
        %3419 = vmatprep.subr.mxu0 0.0
        %3420 = vmatpush1.xpose.msra.mxu0 0.0
        %3421 = vmatprep.subr.mxu0 0.0
        %3422 = vmatpush1.xpose.msra.mxu0 0.0
        %3423 = vmatprep.subr.mxu0 0.0
        %3424 = vmatpush1.xpose.msra.mxu0 0.0
        %3425 = vmatprep.subr.mxu0 0.0
        %3426 = vmatpush1.xpose.msra.mxu0 0.0
        %3427 = vmatprep.subr.mxu0 0.0
        %3428 = vmatpush1.xpose.msra.mxu0 0.0
        %3429 = vmatprep.subr.mxu0 0.0
        %3430 = vmatpush1.xpose.msra.mxu0 0.0
        %3431 = vmatprep.subr.mxu0 0.0
        %3432 = vmatpush1.xpose.msra.mxu0 0.0
        %3433 = vmatprep.subr.mxu0 0.0
        %3434 = vmatpush1.xpose.msra.mxu0 0.0
        %3435 = vmatprep.subr.mxu0 0.0
        %3436 = vmatpush1.xpose.msra.mxu0 0.0
        %3437 = vmatprep.subr.mxu0 0.0
        %3438 = vmatpush1.xpose.msra.mxu0 0.0
        %3439 = vmatprep.subr.mxu0 0.0
        %3440 = vmatpush1.xpose.msra.mxu0 0.0
        %3441 = vmatprep.subr.mxu0 0.0
        %3442 = vmatpush1.xpose.msra.mxu0 0.0
        %3443 = vmatprep.subr.mxu0 0.0
        %3444 = vmatpush1.xpose.msra.mxu0 0.0
        %3445 = vmatprep.subr.mxu0 0.0
        %3446 = vmatpush1.xpose.msra.mxu0 0.0
        %3447 = vmatprep.subr.mxu0 0.0
        %3448 = vmatpush1.xpose.msra.mxu0 0.0
        %3449 = vmatprep.subr.mxu0 0.0
        %3450 = vmatpush1.xpose.msra.mxu0 0.0
        %3451 = vmatprep.subr.mxu0 0.0
        %3452 = vmatpush1.xpose.msra.mxu0 0.0
        %3453 = vmatprep.subr.mxu0 0.0
        %3454 = vmatpush1.xpose.msra.mxu0 0.0
        %3455 = vmatprep.subr.mxu0 0.0
        %3456 = vmatpush1.xpose.msra.mxu0 0.0
        %3457 = vmatprep.subr.mxu0 0.0
        %3458 = vmatpush1.xpose.msra.mxu0 0.0
        %3459 = vmatprep.subr.mxu0 0.0
        %3460 = vmatpush1.xpose.msra.mxu0 0.0
        %3461 = vmatprep.subr.mxu0 0.0
        %3462 = vmatpush1.xpose.msra.mxu0 0.0
        %3463 = vmatprep.subr.mxu0 0.0
        %3464 = vmatpush1.xpose.msra.mxu0 0.0
        %3465 = vmatprep.subr.mxu0 0.0
        %3466 = vmatpush1.xpose.msra.mxu0 0.0
        %3467 = vmatprep.subr.mxu0 0.0
        %3468 = vmatpush1.xpose.msra.mxu0 0.0
        %3469 = vmatprep.subr.mxu0 0.0
        %3470 = vmatpush1.xpose.msra.mxu0 0.0
        %3471 = vmatprep.subr.mxu0 0.0
        %3472 = vmatpush1.xpose.msra.mxu0 0.0
        %3473 = vmatprep.subr.mxu0 0.0
        %3474 = vmatpush1.xpose.msra.mxu0 0.0
        %3475 = vmatprep.subr.mxu0 0.0
        %3476 = vmatpush1.xpose.msra.mxu0 0.0
        %3477 = vmatprep.subr.mxu0 0.0
        %3478 = vmatpush1.xpose.msra.mxu0 0.0
        %3479 = vmatprep.subr.mxu0 0.0
        %3480 = vmatpush1.xpose.msra.mxu0 0.0
        %3481 = vmatprep.mubr.f32.mxu0 0.0
        %3482 = vmatmul.mubr.f32.gmra.mrb[0].mxu0 %v3413
        %v3483 = vpop.f32.mrb[0].mxu0
        %v3484 = vadd.f32 0.0, %v3483
        %v3485 = vpop.f32.mrb[0].mxu0
        %3486 = vdwg.mxu0
        %v3487 = vmul.f32 %v3406, 0.35355338
        %v3488 = vmul.f32 %v3484, 0.35355338
        %v3489 = vsel %vm2339, %v3487, -inf
        %3490 = vmax.xlane.f32.xlu0 %v3489
        %v3491 = vpop.xlane.xlu0 %3490
        %v3492 = vsel %vm2339, %v3488, -inf
        %3493 = vmax.xlane.f32.xlu0 %v3492
        %v3494 = vpop.xlane.xlu0 %3493
        %v3495 = vsub.f32 %v3487, %v3491
        %v3496 = vsub.f32 %v3488, %v3494
        %v3497 = vmul.f32 %v3495, 1.442695
        %v3498 = vpow.pop %v3497
        %v3499 = vmul.f32 %v3496, 1.442695
        %v3500 = vpow.pop %v3499
        %v3501 = vsel %vm2339, %v3498, 0.0
        %3502 = vadd.xlane.f32.xlu0 %v3501
        %v3503 = vpop.xlane.xlu0 %3502
        %v3504 = vsel %vm2339, %v3500, 0.0
        %3505 = vadd.xlane.f32.xlu0 %v3504
        %v3506 = vpop.xlane.xlu0 %3505
        %v3507 = vrcp.pop %v3503
        %v3508 = vmul.f32 %v3498, %v3507
        %v3509 = vrcp.pop %v3506
        %v3510 = vmul.f32 %v3500, %v3509
        %3511 = vrot.lane.b32.xlu0 %v2328, 40
        %v3512 = vpop.permute.xlu0 %3511
        %v3515 = vsel %vm2339, %v3508, 0
        %3517 = vmatprep.subr.mxu0 0.0
        %3518 = vmatpush1.msra.mxu0 %v3512
        %3519 = vmatprep.subr.mxu0 0.0
        %3520 = vmatpush1.msra.mxu0 0.0
        %3521 = vmatprep.subr.mxu0 0.0
        %3522 = vmatpush1.msra.mxu0 0.0
        %3523 = vmatprep.subr.mxu0 0.0
        %3524 = vmatpush1.msra.mxu0 0.0
        %3525 = vmatprep.subr.mxu0 0.0
        %3526 = vmatpush1.msra.mxu0 0.0
        %3527 = vmatprep.subr.mxu0 0.0
        %3528 = vmatpush1.msra.mxu0 0.0
        %3529 = vmatprep.subr.mxu0 0.0
        %3530 = vmatpush1.msra.mxu0 0.0
        %3531 = vmatprep.subr.mxu0 0.0
        %3532 = vmatpush1.msra.mxu0 0.0
        %3533 = vmatprep.subr.mxu0 0.0
        %3534 = vmatpush1.msra.mxu0 0.0
        %3535 = vmatprep.subr.mxu0 0.0
        %3536 = vmatpush1.msra.mxu0 0.0
        %3537 = vmatprep.subr.mxu0 0.0
        %3538 = vmatpush1.msra.mxu0 0.0
        %3539 = vmatprep.subr.mxu0 0.0
        %3540 = vmatpush1.msra.mxu0 0.0
        %3541 = vmatprep.subr.mxu0 0.0
        %3542 = vmatpush1.msra.mxu0 0.0
        %3543 = vmatprep.subr.mxu0 0.0
        %3544 = vmatpush1.msra.mxu0 0.0
        %3545 = vmatprep.subr.mxu0 0.0
        %3546 = vmatpush1.msra.mxu0 0.0
        %3547 = vmatprep.subr.mxu0 0.0
        %3548 = vmatpush1.msra.mxu0 0.0
        %3549 = vmatprep.subr.mxu0 0.0
        %3550 = vmatpush1.msra.mxu0 0.0
        %3551 = vmatprep.subr.mxu0 0.0
        %3552 = vmatpush1.msra.mxu0 0.0
        %3553 = vmatprep.subr.mxu0 0.0
        %3554 = vmatpush1.msra.mxu0 0.0
        %3555 = vmatprep.subr.mxu0 0.0
        %3556 = vmatpush1.msra.mxu0 0.0
        %3557 = vmatprep.subr.mxu0 0.0
        %3558 = vmatpush1.msra.mxu0 0.0
        %3559 = vmatprep.subr.mxu0 0.0
        %3560 = vmatpush1.msra.mxu0 0.0
        %3561 = vmatprep.subr.mxu0 0.0
        %3562 = vmatpush1.msra.mxu0 0.0
        %3563 = vmatprep.subr.mxu0 0.0
        %3564 = vmatpush1.msra.mxu0 0.0
        %3565 = vmatprep.subr.mxu0 0.0
        %3566 = vmatpush1.msra.mxu0 0.0
        %3567 = vmatprep.subr.mxu0 0.0
        %3568 = vmatpush1.msra.mxu0 0.0
        %3569 = vmatprep.subr.mxu0 0.0
        %3570 = vmatpush1.msra.mxu0 0.0
        %3571 = vmatprep.subr.mxu0 0.0
        %3572 = vmatpush1.msra.mxu0 0.0
        %3573 = vmatprep.subr.mxu0 0.0
        %3574 = vmatpush1.msra.mxu0 0.0
        %3575 = vmatprep.subr.mxu0 0.0
        %3576 = vmatpush1.msra.mxu0 0.0
        %3577 = vmatprep.subr.mxu0 0.0
        %3578 = vmatpush1.msra.mxu0 0.0
        %3579 = vmatprep.subr.mxu0 0.0
        %3580 = vmatpush1.msra.mxu0 0.0
        %3581 = vmatprep.mubr.f32.mxu0 0.0
        %3582 = vmatmul.mubr.f32.gmra.mrb[0].mxu0 %v3515
        %v3583 = vpop.f32.mrb[0].mxu0
        %v3584 = vadd.f32 0.0, %v3583
        %v3585 = vpop.f32.mrb[0].mxu0
        %3586 = vdwg.mxu0
        %3587 = vrot.lane.b32.xlu0 %v2333, 40
        %v3588 = vpop.permute.xlu0 %3587
        %v3591 = vsel %vm2339, %v3510, 0
        %3593 = vmatprep.subr.mxu0 0.0
        %3594 = vmatpush1.msra.mxu0 %v3588
        %3595 = vmatprep.subr.mxu0 0.0
        %3596 = vmatpush1.msra.mxu0 0.0
        %3597 = vmatprep.subr.mxu0 0.0
        %3598 = vmatpush1.msra.mxu0 0.0
        %3599 = vmatprep.subr.mxu0 0.0
        %3600 = vmatpush1.msra.mxu0 0.0
        %3601 = vmatprep.subr.mxu0 0.0
        %3602 = vmatpush1.msra.mxu0 0.0
        %3603 = vmatprep.subr.mxu0 0.0
        %3604 = vmatpush1.msra.mxu0 0.0
        %3605 = vmatprep.subr.mxu0 0.0
        %3606 = vmatpush1.msra.mxu0 0.0
        %3607 = vmatprep.subr.mxu0 0.0
        %3608 = vmatpush1.msra.mxu0 0.0
        %3609 = vmatprep.subr.mxu0 0.0
        %3610 = vmatpush1.msra.mxu0 0.0
        %3611 = vmatprep.subr.mxu0 0.0
        %3612 = vmatpush1.msra.mxu0 0.0
        %3613 = vmatprep.subr.mxu0 0.0
        %3614 = vmatpush1.msra.mxu0 0.0
        %3615 = vmatprep.subr.mxu0 0.0
        %3616 = vmatpush1.msra.mxu0 0.0
        %3617 = vmatprep.subr.mxu0 0.0
        %3618 = vmatpush1.msra.mxu0 0.0
        %3619 = vmatprep.subr.mxu0 0.0
        %3620 = vmatpush1.msra.mxu0 0.0
        %3621 = vmatprep.subr.mxu0 0.0
        %3622 = vmatpush1.msra.mxu0 0.0
        %3623 = vmatprep.subr.mxu0 0.0
        %3624 = vmatpush1.msra.mxu0 0.0
        %3625 = vmatprep.subr.mxu0 0.0
        %3626 = vmatpush1.msra.mxu0 0.0
        %3627 = vmatprep.subr.mxu0 0.0
        %3628 = vmatpush1.msra.mxu0 0.0
        %3629 = vmatprep.subr.mxu0 0.0
        %3630 = vmatpush1.msra.mxu0 0.0
        %3631 = vmatprep.subr.mxu0 0.0
        %3632 = vmatpush1.msra.mxu0 0.0
        %3633 = vmatprep.subr.mxu0 0.0
        %3634 = vmatpush1.msra.mxu0 0.0
        %3635 = vmatprep.subr.mxu0 0.0
        %3636 = vmatpush1.msra.mxu0 0.0
        %3637 = vmatprep.subr.mxu0 0.0
        %3638 = vmatpush1.msra.mxu0 0.0
        %3639 = vmatprep.subr.mxu0 0.0
        %3640 = vmatpush1.msra.mxu0 0.0
        %3641 = vmatprep.subr.mxu0 0.0
        %3642 = vmatpush1.msra.mxu0 0.0
        %3643 = vmatprep.subr.mxu0 0.0
        %3644 = vmatpush1.msra.mxu0 0.0
        %3645 = vmatprep.subr.mxu0 0.0
        %3646 = vmatpush1.msra.mxu0 0.0
        %3647 = vmatprep.subr.mxu0 0.0
        %3648 = vmatpush1.msra.mxu0 0.0
        %3649 = vmatprep.subr.mxu0 0.0
        %3650 = vmatpush1.msra.mxu0 0.0
        %3651 = vmatprep.subr.mxu0 0.0
        %3652 = vmatpush1.msra.mxu0 0.0
        %3653 = vmatprep.subr.mxu0 0.0
        %3654 = vmatpush1.msra.mxu0 0.0
        %3655 = vmatprep.subr.mxu0 0.0
        %3656 = vmatpush1.msra.mxu0 0.0
        %3657 = vmatprep.mubr.f32.mxu0 0.0
        %3658 = vmatmul.mubr.f32.gmra.mrb[0].mxu0 %v3591
        %v3659 = vpop.f32.mrb[0].mxu0
        %v3660 = vadd.f32 0.0, %v3659
        %v3661 = vpop.f32.mrb[0].mxu0
        %3662 = vdwg.mxu0
        %3665 = vrot.lane.b32.xlu0 %v2920, 8
        %v3666 = vpop.permute.xlu0 %3665
        %3667 = vrot.lane.b32.xlu0 %v2996, 8
        %v3668 = vpop.permute.xlu0 %3667
        %3673 = vrot.lane.b32.xlu0 %v3252, 16
        %v3674 = vpop.permute.xlu0 %3673
        %3675 = vrot.lane.b32.xlu0 %v3328, 16
        %v3676 = vpop.permute.xlu0 %3675
        %3681 = vrot.lane.b32.xlu0 %v3584, 24
        %v3682 = vpop.permute.xlu0 %3681
        %3683 = vrot.lane.b32.xlu0 %v3660, 24
        %v3684 = vpop.permute.xlu0 %3683
        %v3687 = vsel %vm2339, %v2588, %v3666
        %v3688 = vsel %vm2339, %v2664, %v3668
        %vm3689 = vcmask 130048
        %v3690 = vsel %vm3689, %v3687, %v3674
        %v3691 = vsel %vm3689, %v3688, %v3676
        %vm3692 = vcmask 195584
        %v3693 = vsel %vm3692, %v3690, %v3682
        %v3694 = vsel %vm3692, %v3691, %v3684
        %v3696 = vlaneseq
        %v3697 = vshrl.u32 %v3696, 7
        %v3698 = vsub.s32 0, %v3697
        %v3699 = vrot.slane %v1999, %v3698
        %v3702 = vsel %vm2254, %v3693, 0
        %v3705 = vsel %vm2254, %v3694, 0
        %3707 = vmatprep.subr.mxu0 0.0
        %3708 = vmatpush1.msra.mxu0 %v2000
        %3709 = vmatprep.subr.mxu0 0.0
        %3710 = vmatpush1.msra.mxu0 %v2001
        %3711 = vmatprep.subr.mxu0 0.0
        %3712 = vmatpush1.msra.mxu0 %v2002
        %3713 = vmatprep.subr.mxu0 0.0
        %3714 = vmatpush1.msra.mxu0 %v2003
        %3715 = vmatprep.subr.mxu0 0.0
        %3716 = vmatpush1.msra.mxu0 0.0
        %3717 = vmatprep.subr.mxu0 0.0
        %3718 = vmatpush1.msra.mxu0 0.0
        %3719 = vmatprep.subr.mxu0 0.0
        %3720 = vmatpush1.msra.mxu0 0.0
        %3721 = vmatprep.subr.mxu0 0.0
        %3722 = vmatpush1.msra.mxu0 0.0
        %3723 = vmatprep.subr.mxu0 0.0
        %3724 = vmatpush1.msra.mxu0 0.0
        %3725 = vmatprep.subr.mxu0 0.0
        %3726 = vmatpush1.msra.mxu0 0.0
        %3727 = vmatprep.subr.mxu0 0.0
        %3728 = vmatpush1.msra.mxu0 0.0
        %3729 = vmatprep.subr.mxu0 0.0
        %3730 = vmatpush1.msra.mxu0 0.0
        %3731 = vmatprep.subr.mxu0 0.0
        %3732 = vmatpush1.msra.mxu0 0.0
        %3733 = vmatprep.subr.mxu0 0.0
        %3734 = vmatpush1.msra.mxu0 0.0
        %3735 = vmatprep.subr.mxu0 0.0
        %3736 = vmatpush1.msra.mxu0 0.0
        %3737 = vmatprep.subr.mxu0 0.0
        %3738 = vmatpush1.msra.mxu0 0.0
        %3739 = vmatprep.subr.mxu0 0.0
        %3740 = vmatpush1.msra.mxu0 0.0
        %3741 = vmatprep.subr.mxu0 0.0
        %3742 = vmatpush1.msra.mxu0 0.0
        %3743 = vmatprep.subr.mxu0 0.0
        %3744 = vmatpush1.msra.mxu0 0.0
        %3745 = vmatprep.subr.mxu0 0.0
        %3746 = vmatpush1.msra.mxu0 0.0
        %3747 = vmatprep.subr.mxu0 0.0
        %3748 = vmatpush1.msra.mxu0 0.0
        %3749 = vmatprep.subr.mxu0 0.0
        %3750 = vmatpush1.msra.mxu0 0.0
        %3751 = vmatprep.subr.mxu0 0.0
        %3752 = vmatpush1.msra.mxu0 0.0
        %3753 = vmatprep.subr.mxu0 0.0
        %3754 = vmatpush1.msra.mxu0 0.0
        %3755 = vmatprep.subr.mxu0 0.0
        %3756 = vmatpush1.msra.mxu0 0.0
        %3757 = vmatprep.subr.mxu0 0.0
        %3758 = vmatpush1.msra.mxu0 0.0
        %3759 = vmatprep.subr.mxu0 0.0
        %3760 = vmatpush1.msra.mxu0 0.0
        %3761 = vmatprep.subr.mxu0 0.0
        %3762 = vmatpush1.msra.mxu0 0.0
        %3763 = vmatprep.subr.mxu0 0.0
        %3764 = vmatpush1.msra.mxu0 0.0
        %3765 = vmatprep.subr.mxu0 0.0
        %3766 = vmatpush1.msra.mxu0 0.0
        %3767 = vmatprep.subr.mxu0 0.0
        %3768 = vmatpush1.msra.mxu0 0.0
        %3769 = vmatprep.subr.mxu0 0.0
        %3770 = vmatpush1.msra.mxu0 0.0
        %3771 = vmatprep.mubr.f32.mxu0 0.0
        %3772 = vmatmul.mubr.f32.gmra.mrb[0].mxu0 %v3702
        %v3773 = vpop.f32.mrb[0].mxu0
        %v3774 = vadd.f32 %v3699, %v3773
        %v3775 = vpop.f32.mrb[0].mxu0
        %3776 = vmatprep.mubr.f32.mxu0 0.0
        %3777 = vmatmul.mubr.f32.gmra.mrb[0].mxu0 %v3705
        %v3778 = vpop.f32.mrb[0].mxu0
        %v3779 = vadd.f32 %v3699, %v3778
        %v3780 = vpop.f32.mrb[0].mxu0
        %3781 = vdwg.mxu0
        %v3782 = vadd.f32 %v2155, %v3774
        %v3783 = vadd.f32 %v2156, %v3779
        %v3784 = vsel %vm2254, %v3782, 0.0
        %3785 = vadd.xlane.f32.xlu0 %v3784
        %v3786 = vpop.xlane.xlu0 %3785
        %v3787 = vsel %vm2254, %v3783, 0.0
        %3788 = vadd.xlane.f32.xlu0 %v3787
        %v3789 = vpop.xlane.xlu0 %3788
        %v3790 = vrcp.pop 32.0
        %v3791 = vmul.f32 %v3786, %v3790
        %v3792 = vmul.f32 %v3789, %v3790
        %v3793 = vsub.f32 %v3782, %v3791
        %v3794 = vsub.f32 %v3783, %v3792
        %v3795 = vmul.f32 %v3793, %v3793
        %v3796 = vmul.f32 %v3794, %v3794
        %v3797 = vsel %vm2254, %v3795, 0.0
        %3798 = vadd.xlane.f32.xlu0 %v3797
        %v3799 = vpop.xlane.xlu0 %3798
        %v3800 = vsel %vm2254, %v3796, 0.0
        %3801 = vadd.xlane.f32.xlu0 %v3800
        %v3802 = vpop.xlane.xlu0 %3801
        %v3803 = vmul.f32 %v3799, %v3790
        %v3804 = vmul.f32 %v3802, %v3790
        %v3805 = vadd.f32 %v3803, 1e-05
        %v3806 = vadd.f32 %v3804, 1e-05
        %v3807 = vrsqrt.pop %v3805
        %v3808 = vrsqrt.pop %v3806
        %v3809 = vmul.f32 %v3793, %v3807
        %v3810 = vmul.f32 %v3794, %v3808
        %v3812 = vlaneseq
        %v3813 = vshrl.u32 %v3812, 7
        %v3814 = vsub.s32 0, %v3813
        %v3815 = vrot.slane %v1996, %v3814
        %v3817 = vmul.f32 %v3809, %v3815
        %v3818 = vmul.f32 %v3810, %v3815
        %v3820 = vlaneseq
        %v3821 = vshrl.u32 %v3820, 7
        %v3822 = vsub.s32 0, %v3821
        %v3823 = vrot.slane %v1995, %v3822
        %v3825 = vadd.f32 %v3817, %v3823
        %v3826 = vadd.f32 %v3818, %v3823
        %v3828 = vlaneseq
        %v3829 = vshrl.u32 %v3828, 7
        %v3830 = vsub.s32 0, %v3829
        %v3831 = vrot.slane %v1981, %v3830
        %v3834 = vsel %vm2254, %v3825, 0
        %v3837 = vsel %vm2254, %v3826, 0
        %3839 = vmatprep.subr.mxu0 0.0
        %3840 = vmatpush1.msra.mxu0 %v1982
        %3841 = vmatprep.subr.mxu0 0.0
        %3842 = vmatpush1.msra.mxu0 %v1983
        %3843 = vmatprep.subr.mxu0 0.0
        %3844 = vmatpush1.msra.mxu0 %v1984
        %3845 = vmatprep.subr.mxu0 0.0
        %3846 = vmatpush1.msra.mxu0 %v1985
        %3847 = vmatprep.subr.mxu0 0.0
        %3848 = vmatpush1.msra.mxu0 0.0
        %3849 = vmatprep.subr.mxu0 0.0
        %3850 = vmatpush1.msra.mxu0 0.0
        %3851 = vmatprep.subr.mxu0 0.0
        %3852 = vmatpush1.msra.mxu0 0.0
        %3853 = vmatprep.subr.mxu0 0.0
        %3854 = vmatpush1.msra.mxu0 0.0
        %3855 = vmatprep.subr.mxu0 0.0
        %3856 = vmatpush1.msra.mxu0 0.0
        %3857 = vmatprep.subr.mxu0 0.0
        %3858 = vmatpush1.msra.mxu0 0.0
        %3859 = vmatprep.subr.mxu0 0.0
        %3860 = vmatpush1.msra.mxu0 0.0
        %3861 = vmatprep.subr.mxu0 0.0
        %3862 = vmatpush1.msra.mxu0 0.0
        %3863 = vmatprep.subr.mxu0 0.0
        %3864 = vmatpush1.msra.mxu0 0.0
        %3865 = vmatprep.subr.mxu0 0.0
        %3866 = vmatpush1.msra.mxu0 0.0
        %3867 = vmatprep.subr.mxu0 0.0
        %3868 = vmatpush1.msra.mxu0 0.0
        %3869 = vmatprep.subr.mxu0 0.0
        %3870 = vmatpush1.msra.mxu0 0.0
        %3871 = vmatprep.subr.mxu0 0.0
        %3872 = vmatpush1.msra.mxu0 0.0
        %3873 = vmatprep.subr.mxu0 0.0
        %3874 = vmatpush1.msra.mxu0 0.0
        %3875 = vmatprep.subr.mxu0 0.0
        %3876 = vmatpush1.msra.mxu0 0.0
        %3877 = vmatprep.subr.mxu0 0.0
        %3878 = vmatpush1.msra.mxu0 0.0
        %3879 = vmatprep.subr.mxu0 0.0
        %3880 = vmatpush1.msra.mxu0 0.0
        %3881 = vmatprep.subr.mxu0 0.0
        %3882 = vmatpush1.msra.mxu0 0.0
        %3883 = vmatprep.subr.mxu0 0.0
        %3884 = vmatpush1.msra.mxu0 0.0
        %3885 = vmatprep.subr.mxu0 0.0
        %3886 = vmatpush1.msra.mxu0 0.0
        %3887 = vmatprep.subr.mxu0 0.0
        %3888 = vmatpush1.msra.mxu0 0.0
        %3889 = vmatprep.subr.mxu0 0.0
        %3890 = vmatpush1.msra.mxu0 0.0
        %3891 = vmatprep.subr.mxu0 0.0
        %3892 = vmatpush1.msra.mxu0 0.0
        %3893 = vmatprep.subr.mxu0 0.0
        %3894 = vmatpush1.msra.mxu0 0.0
        %3895 = vmatprep.subr.mxu0 0.0
        %3896 = vmatpush1.msra.mxu0 0.0
        %3897 = vmatprep.subr.mxu0 0.0
        %3898 = vmatpush1.msra.mxu0 0.0
        %3899 = vmatprep.subr.mxu0 0.0
        %3900 = vmatpush1.msra.mxu0 0.0
        %3901 = vmatprep.subr.mxu0 0.0
        %3902 = vmatpush1.msra.mxu0 0.0
        %3903 = vmatprep.mubr.f32.mxu0 0.0
        %3904 = vmatmul.mubr.f32.gmra.mrb[0].mxu0 %v3834
        %v3905 = vpop.f32.mrb[0].mxu0
        %v3906 = vadd.f32 %v3831, %v3905
        %v3907 = vpop.f32.mrb[0].mxu0
        %3908 = vmatprep.mubr.f32.mxu0 0.0
        %3909 = vmatmul.mubr.f32.gmra.mrb[0].mxu0 %v3837
        %v3910 = vpop.f32.mrb[0].mxu0
        %v3911 = vadd.f32 %v3831, %v3910
        %v3912 = vpop.f32.mrb[0].mxu0
        %3913 = vdwg.mxu0
        %v3914 = vmax.f32 %v3906, 0.0
        %v3915 = vmax.f32 %v3911, 0.0
        %v3917 = vlaneseq
        %v3918 = vshrl.u32 %v3917, 7
        %v3919 = vsub.s32 0, %v3918
        %v3920 = vrot.slane %v1986, %v3919
        %vm3922 = vcmask 523264
        %v3924 = vsel %vm3922, %v3914, 0
        %v3927 = vsel %vm3922, %v3915, 0
        %3929 = vmatprep.subr.mxu0 0.0
        %3930 = vmatpush1.msra.mxu0 %v1987
        %3931 = vmatprep.subr.mxu0 0.0
        %3932 = vmatpush1.msra.mxu0 %v1988
        %3933 = vmatprep.subr.mxu0 0.0
        %3934 = vmatpush1.msra.mxu0 %v1989
        %3935 = vmatprep.subr.mxu0 0.0
        %3936 = vmatpush1.msra.mxu0 %v1990
        %3937 = vmatprep.subr.mxu0 0.0
        %3938 = vmatpush1.msra.mxu0 %v1991
        %3939 = vmatprep.subr.mxu0 0.0
        %3940 = vmatpush1.msra.mxu0 %v1992
        %3941 = vmatprep.subr.mxu0 0.0
        %3942 = vmatpush1.msra.mxu0 %v1993
        %3943 = vmatprep.subr.mxu0 0.0
        %3944 = vmatpush1.msra.mxu0 %v1994
        %3945 = vmatprep.subr.mxu0 0.0
        %3946 = vmatpush1.msra.mxu0 0.0
        %3947 = vmatprep.subr.mxu0 0.0
        %3948 = vmatpush1.msra.mxu0 0.0
        %3949 = vmatprep.subr.mxu0 0.0
        %3950 = vmatpush1.msra.mxu0 0.0
        %3951 = vmatprep.subr.mxu0 0.0
        %3952 = vmatpush1.msra.mxu0 0.0
        %3953 = vmatprep.subr.mxu0 0.0
        %3954 = vmatpush1.msra.mxu0 0.0
        %3955 = vmatprep.subr.mxu0 0.0
        %3956 = vmatpush1.msra.mxu0 0.0
        %3957 = vmatprep.subr.mxu0 0.0
        %3958 = vmatpush1.msra.mxu0 0.0
        %3959 = vmatprep.subr.mxu0 0.0
        %3960 = vmatpush1.msra.mxu0 0.0
        %3961 = vmatprep.subr.mxu0 0.0
        %3962 = vmatpush1.msra.mxu0 0.0
        %3963 = vmatprep.subr.mxu0 0.0
        %3964 = vmatpush1.msra.mxu0 0.0
        %3965 = vmatprep.subr.mxu0 0.0
        %3966 = vmatpush1.msra.mxu0 0.0
        %3967 = vmatprep.subr.mxu0 0.0
        %3968 = vmatpush1.msra.mxu0 0.0
        %3969 = vmatprep.subr.mxu0 0.0
        %3970 = vmatpush1.msra.mxu0 0.0
        %3971 = vmatprep.subr.mxu0 0.0
        %3972 = vmatpush1.msra.mxu0 0.0
        %3973 = vmatprep.subr.mxu0 0.0
        %3974 = vmatpush1.msra.mxu0 0.0
        %3975 = vmatprep.subr.mxu0 0.0
        %3976 = vmatpush1.msra.mxu0 0.0
        %3977 = vmatprep.subr.mxu0 0.0
        %3978 = vmatpush1.msra.mxu0 0.0
        %3979 = vmatprep.subr.mxu0 0.0
        %3980 = vmatpush1.msra.mxu0 0.0
        %3981 = vmatprep.subr.mxu0 0.0
        %3982 = vmatpush1.msra.mxu0 0.0
        %3983 = vmatprep.subr.mxu0 0.0
        %3984 = vmatpush1.msra.mxu0 0.0
        %3985 = vmatprep.subr.mxu0 0.0
        %3986 = vmatpush1.msra.mxu0 0.0
        %3987 = vmatprep.subr.mxu0 0.0
        %3988 = vmatpush1.msra.mxu0 0.0
        %3989 = vmatprep.subr.mxu0 0.0
        %3990 = vmatpush1.msra.mxu0 0.0
        %3991 = vmatprep.subr.mxu0 0.0
        %3992 = vmatpush1.msra.mxu0 0.0
        %3993 = vmatprep.mubr.f32.mxu0 0.0
        %3994 = vmatmul.mubr.f32.gmra.mrb[0].mxu0 %v3924
        %v3995 = vpop.f32.mrb[0].mxu0
        %v3996 = vadd.f32 %v3920, %v3995
        %v3997 = vpop.f32.mrb[0].mxu0
        %3998 = vmatprep.mubr.f32.mxu0 0.0
        %3999 = vmatmul.mubr.f32.gmra.mrb[0].mxu0 %v3927
        %v4000 = vpop.f32.mrb[0].mxu0
        %v4001 = vadd.f32 %v3920, %v4000
        %v4002 = vpop.f32.mrb[0].mxu0
        %4003 = vdwg.mxu0
        %v4004 = vadd.f32 %v3825, %v3996
        %v4005 = vadd.f32 %v3826, %v4001
        %v4006 = vsel %vm2254, %v4004, 0.0
        %4007 = vadd.xlane.f32.xlu0 %v4006
        %v4008 = vpop.xlane.xlu0 %4007
        %v4009 = vsel %vm2254, %v4005, 0.0
        %4010 = vadd.xlane.f32.xlu0 %v4009
        %v4011 = vpop.xlane.xlu0 %4010
        %v4012 = vmul.f32 %v4008, %v3790
        %v4013 = vmul.f32 %v4011, %v3790
        %v4014 = vsub.f32 %v4004, %v4012
        %v4015 = vsub.f32 %v4005, %v4013
        %v4016 = vmul.f32 %v4014, %v4014
        %v4017 = vmul.f32 %v4015, %v4015
        %v4018 = vsel %vm2254, %v4016, 0.0
        %4019 = vadd.xlane.f32.xlu0 %v4018
        %v4020 = vpop.xlane.xlu0 %4019
        %v4021 = vsel %vm2254, %v4017, 0.0
        %4022 = vadd.xlane.f32.xlu0 %v4021
        %v4023 = vpop.xlane.xlu0 %4022
        %v4024 = vmul.f32 %v4020, %v3790
        %v4025 = vmul.f32 %v4023, %v3790
        %v4026 = vadd.f32 %v4024, 1e-05
        %v4027 = vadd.f32 %v4025, 1e-05
        %v4028 = vrsqrt.pop %v4026
        %v4029 = vrsqrt.pop %v4027
        %v4030 = vmul.f32 %v4014, %v4028
        %v4031 = vmul.f32 %v4015, %v4029
        %v4033 = vlaneseq
        %v4034 = vshrl.u32 %v4033, 7
        %v4035 = vsub.s32 0, %v4034
        %v4036 = vrot.slane %v1998, %v4035
        %v4038 = vmul.f32 %v4030, %v4036
        %v4039 = vmul.f32 %v4031, %v4036
        %v4041 = vlaneseq
        %v4042 = vshrl.u32 %v4041, 7
        %v4043 = vsub.s32 0, %v4042
        %v4044 = vrot.slane %v1997, %v4043
        %v4046 = vadd.f32 %v4038, %v4044
        %v4047 = vadd.f32 %v4039, %v4044
        %4049 = vset.pattern.permute.xlu0 0
        %4050 = vperm.xlu0 %4049, %v2010
        %v4051 = vpop.permute.xlu0 %4050
        %v4054 = vsel %vm2339, %v2009, 0
        %4056 = vmatprep.subr.mxu0 0.0
        %4057 = vmatpush1.msra.mxu0 %v4046
        %4058 = vmatprep.subr.mxu0 0.0
        %4059 = vmatpush1.msra.mxu0 0.0
        %4060 = vmatprep.subr.mxu0 0.0
        %4061 = vmatpush1.msra.mxu0 0.0
        %4062 = vmatprep.subr.mxu0 0.0
        %4063 = vmatpush1.msra.mxu0 0.0
        %4064 = vmatprep.subr.mxu0 0.0
        %4065 = vmatpush1.msra.mxu0 0.0
        %4066 = vmatprep.subr.mxu0 0.0
        %4067 = vmatpush1.msra.mxu0 0.0
        %4068 = vmatprep.subr.mxu0 0.0
        %4069 = vmatpush1.msra.mxu0 0.0
        %4070 = vmatprep.subr.mxu0 0.0
        %4071 = vmatpush1.msra.mxu0 0.0
        %4072 = vmatprep.subr.mxu0 0.0
        %4073 = vmatpush1.msra.mxu0 0.0
        %4074 = vmatprep.subr.mxu0 0.0
        %4075 = vmatpush1.msra.mxu0 0.0
        %4076 = vmatprep.subr.mxu0 0.0
        %4077 = vmatpush1.msra.mxu0 0.0
        %4078 = vmatprep.subr.mxu0 0.0
        %4079 = vmatpush1.msra.mxu0 0.0
        %4080 = vmatprep.subr.mxu0 0.0
        %4081 = vmatpush1.msra.mxu0 0.0
        %4082 = vmatprep.subr.mxu0 0.0
        %4083 = vmatpush1.msra.mxu0 0.0
        %4084 = vmatprep.subr.mxu0 0.0
        %4085 = vmatpush1.msra.mxu0 0.0
        %4086 = vmatprep.subr.mxu0 0.0
        %4087 = vmatpush1.msra.mxu0 0.0
        %4088 = vmatprep.subr.mxu0 0.0
        %4089 = vmatpush1.msra.mxu0 0.0
        %4090 = vmatprep.subr.mxu0 0.0
        %4091 = vmatpush1.msra.mxu0 0.0
        %4092 = vmatprep.subr.mxu0 0.0
        %4093 = vmatpush1.msra.mxu0 0.0
        %4094 = vmatprep.subr.mxu0 0.0
        %4095 = vmatpush1.msra.mxu0 0.0
        %4096 = vmatprep.subr.mxu0 0.0
        %4097 = vmatpush1.msra.mxu0 0.0
        %4098 = vmatprep.subr.mxu0 0.0
        %4099 = vmatpush1.msra.mxu0 0.0
        %4100 = vmatprep.subr.mxu0 0.0
        %4101 = vmatpush1.msra.mxu0 0.0
        %4102 = vmatprep.subr.mxu0 0.0
        %4103 = vmatpush1.msra.mxu0 0.0
        %4104 = vmatprep.subr.mxu0 0.0
        %4105 = vmatpush1.msra.mxu0 0.0
        %4106 = vmatprep.subr.mxu0 0.0
        %4107 = vmatpush1.msra.mxu0 0.0
        %4108 = vmatprep.subr.mxu0 0.0
        %4109 = vmatpush1.msra.mxu0 0.0
        %4110 = vmatprep.subr.mxu0 0.0
        %4111 = vmatpush1.msra.mxu0 0.0
        %4112 = vmatprep.subr.mxu0 0.0
        %4113 = vmatpush1.msra.mxu0 0.0
        %4114 = vmatprep.subr.mxu0 0.0
        %4115 = vmatpush1.msra.mxu0 0.0
        %4116 = vmatprep.subr.mxu0 0.0
        %4117 = vmatpush1.msra.mxu0 0.0
        %4118 = vmatprep.subr.mxu0 0.0
        %4119 = vmatpush1.msra.mxu0 0.0
        %4120 = vmatprep.mubr.f32.mxu0 0.0
        %4121 = vmatmul.mubr.f32.gmra.mrb[0].mxu0 %v4054
        %v4122 = vpop.f32.mrb[0].mxu0
        %v4123 = vadd.f32 %v4051, %v4122
        %v4124 = vpop.f32.mrb[0].mxu0
        %4125 = vdwg.mxu0
        %4126 = vmatprep.subr.mxu0 0.0
        %4127 = vmatpush1.msra.mxu0 %v4047
        %4128 = vmatprep.subr.mxu0 0.0
        %4129 = vmatpush1.msra.mxu0 0.0
        %4130 = vmatprep.subr.mxu0 0.0
        %4131 = vmatpush1.msra.mxu0 0.0
        %4132 = vmatprep.subr.mxu0 0.0
        %4133 = vmatpush1.msra.mxu0 0.0
        %4134 = vmatprep.subr.mxu0 0.0
        %4135 = vmatpush1.msra.mxu0 0.0
        %4136 = vmatprep.subr.mxu0 0.0
        %4137 = vmatpush1.msra.mxu0 0.0
        %4138 = vmatprep.subr.mxu0 0.0
        %4139 = vmatpush1.msra.mxu0 0.0
        %4140 = vmatprep.subr.mxu0 0.0
        %4141 = vmatpush1.msra.mxu0 0.0
        %4142 = vmatprep.subr.mxu0 0.0
        %4143 = vmatpush1.msra.mxu0 0.0
        %4144 = vmatprep.subr.mxu0 0.0
        %4145 = vmatpush1.msra.mxu0 0.0
        %4146 = vmatprep.subr.mxu0 0.0
        %4147 = vmatpush1.msra.mxu0 0.0
        %4148 = vmatprep.subr.mxu0 0.0
        %4149 = vmatpush1.msra.mxu0 0.0
        %4150 = vmatprep.subr.mxu0 0.0
        %4151 = vmatpush1.msra.mxu0 0.0
        %4152 = vmatprep.subr.mxu0 0.0
        %4153 = vmatpush1.msra.mxu0 0.0
        %4154 = vmatprep.subr.mxu0 0.0
        %4155 = vmatpush1.msra.mxu0 0.0
        %4156 = vmatprep.subr.mxu0 0.0
        %4157 = vmatpush1.msra.mxu0 0.0
        %4158 = vmatprep.subr.mxu0 0.0
        %4159 = vmatpush1.msra.mxu0 0.0
        %4160 = vmatprep.subr.mxu0 0.0
        %4161 = vmatpush1.msra.mxu0 0.0
        %4162 = vmatprep.subr.mxu0 0.0
        %4163 = vmatpush1.msra.mxu0 0.0
        %4164 = vmatprep.subr.mxu0 0.0
        %4165 = vmatpush1.msra.mxu0 0.0
        %4166 = vmatprep.subr.mxu0 0.0
        %4167 = vmatpush1.msra.mxu0 0.0
        %4168 = vmatprep.subr.mxu0 0.0
        %4169 = vmatpush1.msra.mxu0 0.0
        %4170 = vmatprep.subr.mxu0 0.0
        %4171 = vmatpush1.msra.mxu0 0.0
        %4172 = vmatprep.subr.mxu0 0.0
        %4173 = vmatpush1.msra.mxu0 0.0
        %4174 = vmatprep.subr.mxu0 0.0
        %4175 = vmatpush1.msra.mxu0 0.0
        %4176 = vmatprep.subr.mxu0 0.0
        %4177 = vmatpush1.msra.mxu0 0.0
        %4178 = vmatprep.subr.mxu0 0.0
        %4179 = vmatpush1.msra.mxu0 0.0
        %4180 = vmatprep.subr.mxu0 0.0
        %4181 = vmatpush1.msra.mxu0 0.0
        %4182 = vmatprep.subr.mxu0 0.0
        %4183 = vmatpush1.msra.mxu0 0.0
        %4184 = vmatprep.subr.mxu0 0.0
        %4185 = vmatpush1.msra.mxu0 0.0
        %4186 = vmatprep.subr.mxu0 0.0
        %4187 = vmatpush1.msra.mxu0 0.0
        %4188 = vmatprep.subr.mxu0 0.0
        %4189 = vmatpush1.msra.mxu0 0.0
        %4190 = vmatprep.mubr.f32.mxu0 0.0
        %4191 = vmatmul.mubr.f32.gmra.mrb[0].mxu0 %v4054
        %v4192 = vpop.f32.mrb[0].mxu0
        %v4193 = vadd.f32 %v4051, %v4192
        %v4194 = vpop.f32.mrb[0].mxu0
        %4195 = vdwg.mxu0
        %v4197 = vrot.slane %v4193, 4
        %v4199 = vsel %vm2169, %v4123, %v4197
        %v4200 = vlaneseq
        %v4201 = vshrl.u32 %v4200, 7
        %v4202 = vlaneseq
        %v4203 = vand.u32 %v4202, 127
        %vm4204 = vcmp.gt.s32.totalorder %v4203, %v4201
        %v4205 = vsel %vm4204, 1, 0
        %v4206 = vcvt.s32.f32 %v4205
        %v4207 = vmul.f32 %v4206, -1e+30
        %v4209 = vlaneseq
        %v4210 = vshrl.u32 %v4209, 7
        %v4211 = vsub.s32 0, %v4210
        %v4212 = vrot.slane %v2051, %v4211
        %v4215 = vsel %vm2254, %v2247, 0
        %4217 = vmatprep.subr.mxu0 0.0
        %4218 = vmatpush1.msra.mxu0 %v2052
        %4219 = vmatprep.subr.mxu0 0.0
        %4220 = vmatpush1.msra.mxu0 %v2053
        %4221 = vmatprep.subr.mxu0 0.0
        %4222 = vmatpush1.msra.mxu0 %v2054
        %4223 = vmatprep.subr.mxu0 0.0
        %4224 = vmatpush1.msra.mxu0 %v2055
        %4225 = vmatprep.subr.mxu0 0.0
        %4226 = vmatpush1.msra.mxu0 0.0
        %4227 = vmatprep.subr.mxu0 0.0
        %4228 = vmatpush1.msra.mxu0 0.0
        %4229 = vmatprep.subr.mxu0 0.0
        %4230 = vmatpush1.msra.mxu0 0.0
        %4231 = vmatprep.subr.mxu0 0.0
        %4232 = vmatpush1.msra.mxu0 0.0
        %4233 = vmatprep.subr.mxu0 0.0
        %4234 = vmatpush1.msra.mxu0 0.0
        %4235 = vmatprep.subr.mxu0 0.0
        %4236 = vmatpush1.msra.mxu0 0.0
        %4237 = vmatprep.subr.mxu0 0.0
        %4238 = vmatpush1.msra.mxu0 0.0
        %4239 = vmatprep.subr.mxu0 0.0
        %4240 = vmatpush1.msra.mxu0 0.0
        %4241 = vmatprep.subr.mxu0 0.0
        %4242 = vmatpush1.msra.mxu0 0.0
        %4243 = vmatprep.subr.mxu0 0.0
        %4244 = vmatpush1.msra.mxu0 0.0
        %4245 = vmatprep.subr.mxu0 0.0
        %4246 = vmatpush1.msra.mxu0 0.0
        %4247 = vmatprep.subr.mxu0 0.0
        %4248 = vmatpush1.msra.mxu0 0.0
        %4249 = vmatprep.subr.mxu0 0.0
        %4250 = vmatpush1.msra.mxu0 0.0
        %4251 = vmatprep.subr.mxu0 0.0
        %4252 = vmatpush1.msra.mxu0 0.0
        %4253 = vmatprep.subr.mxu0 0.0
        %4254 = vmatpush1.msra.mxu0 0.0
        %4255 = vmatprep.subr.mxu0 0.0
        %4256 = vmatpush1.msra.mxu0 0.0
        %4257 = vmatprep.subr.mxu0 0.0
        %4258 = vmatpush1.msra.mxu0 0.0
        %4259 = vmatprep.subr.mxu0 0.0
        %4260 = vmatpush1.msra.mxu0 0.0
        %4261 = vmatprep.subr.mxu0 0.0
        %4262 = vmatpush1.msra.mxu0 0.0
        %4263 = vmatprep.subr.mxu0 0.0
        %4264 = vmatpush1.msra.mxu0 0.0
        %4265 = vmatprep.subr.mxu0 0.0
        %4266 = vmatpush1.msra.mxu0 0.0
        %4267 = vmatprep.subr.mxu0 0.0
        %4268 = vmatpush1.msra.mxu0 0.0
        %4269 = vmatprep.subr.mxu0 0.0
        %4270 = vmatpush1.msra.mxu0 0.0
        %4271 = vmatprep.subr.mxu0 0.0
        %4272 = vmatpush1.msra.mxu0 0.0
        %4273 = vmatprep.subr.mxu0 0.0
        %4274 = vmatpush1.msra.mxu0 0.0
        %4275 = vmatprep.subr.mxu0 0.0
        %4276 = vmatpush1.msra.mxu0 0.0
        %4277 = vmatprep.subr.mxu0 0.0
        %4278 = vmatpush1.msra.mxu0 0.0
        %4279 = vmatprep.subr.mxu0 0.0
        %4280 = vmatpush1.msra.mxu0 0.0
        %4281 = vmatprep.mubr.f32.mxu0 0.0
        %4282 = vmatmul.mubr.f32.gmra.mrb[0].mxu0 %v4215
        %v4283 = vpop.f32.mrb[0].mxu0
        %v4284 = vadd.f32 %v4212, %v4283
        %v4285 = vpop.f32.mrb[0].mxu0
        %4286 = vdwg.mxu0
        %v4288 = vcombine.high %v4284, %v4284
        %4289 = vrot.lane.b32.xlu0 %v4284, 96
        %v4290 = vpop.permute.xlu0 %4289
        %v4291 = vsel %vm2339, %v4284, 0
        %v4293 = vsel %vm2339, %v4290, 0
        %4295 = vmatprep.subr.mxu0 0.0
        %4296 = vmatpush1.xpose.msra.mxu0 %v4293
        %4297 = vmatprep.subr.mxu0 0.0
        %4298 = vmatpush1.xpose.msra.mxu0 0.0
        %4299 = vmatprep.subr.mxu0 0.0
        %4300 = vmatpush1.xpose.msra.mxu0 0.0
        %4301 = vmatprep.subr.mxu0 0.0
        %4302 = vmatpush1.xpose.msra.mxu0 0.0
        %4303 = vmatprep.subr.mxu0 0.0
        %4304 = vmatpush1.xpose.msra.mxu0 0.0
        %4305 = vmatprep.subr.mxu0 0.0
        %4306 = vmatpush1.xpose.msra.mxu0 0.0
        %4307 = vmatprep.subr.mxu0 0.0
        %4308 = vmatpush1.xpose.msra.mxu0 0.0
        %4309 = vmatprep.subr.mxu0 0.0
        %4310 = vmatpush1.xpose.msra.mxu0 0.0
        %4311 = vmatprep.subr.mxu0 0.0
        %4312 = vmatpush1.xpose.msra.mxu0 0.0
        %4313 = vmatprep.subr.mxu0 0.0
        %4314 = vmatpush1.xpose.msra.mxu0 0.0
        %4315 = vmatprep.subr.mxu0 0.0
        %4316 = vmatpush1.xpose.msra.mxu0 0.0
        %4317 = vmatprep.subr.mxu0 0.0
        %4318 = vmatpush1.xpose.msra.mxu0 0.0
        %4319 = vmatprep.subr.mxu0 0.0
        %4320 = vmatpush1.xpose.msra.mxu0 0.0
        %4321 = vmatprep.subr.mxu0 0.0
        %4322 = vmatpush1.xpose.msra.mxu0 0.0
        %4323 = vmatprep.subr.mxu0 0.0
        %4324 = vmatpush1.xpose.msra.mxu0 0.0
        %4325 = vmatprep.subr.mxu0 0.0
        %4326 = vmatpush1.xpose.msra.mxu0 0.0
        %4327 = vmatprep.subr.mxu0 0.0
        %4328 = vmatpush1.xpose.msra.mxu0 0.0
        %4329 = vmatprep.subr.mxu0 0.0
        %4330 = vmatpush1.xpose.msra.mxu0 0.0
        %4331 = vmatprep.subr.mxu0 0.0
        %4332 = vmatpush1.xpose.msra.mxu0 0.0
        %4333 = vmatprep.subr.mxu0 0.0
        %4334 = vmatpush1.xpose.msra.mxu0 0.0
        %4335 = vmatprep.subr.mxu0 0.0
        %4336 = vmatpush1.xpose.msra.mxu0 0.0
        %4337 = vmatprep.subr.mxu0 0.0
        %4338 = vmatpush1.xpose.msra.mxu0 0.0
        %4339 = vmatprep.subr.mxu0 0.0
        %4340 = vmatpush1.xpose.msra.mxu0 0.0
        %4341 = vmatprep.subr.mxu0 0.0
        %4342 = vmatpush1.xpose.msra.mxu0 0.0
        %4343 = vmatprep.subr.mxu0 0.0
        %4344 = vmatpush1.xpose.msra.mxu0 0.0
        %4345 = vmatprep.subr.mxu0 0.0
        %4346 = vmatpush1.xpose.msra.mxu0 0.0
        %4347 = vmatprep.subr.mxu0 0.0
        %4348 = vmatpush1.xpose.msra.mxu0 0.0
        %4349 = vmatprep.subr.mxu0 0.0
        %4350 = vmatpush1.xpose.msra.mxu0 0.0
        %4351 = vmatprep.subr.mxu0 0.0
        %4352 = vmatpush1.xpose.msra.mxu0 0.0
        %4353 = vmatprep.subr.mxu0 0.0
        %4354 = vmatpush1.xpose.msra.mxu0 0.0
        %4355 = vmatprep.subr.mxu0 0.0
        %4356 = vmatpush1.xpose.msra.mxu0 0.0
        %4357 = vmatprep.subr.mxu0 0.0
        %4358 = vmatpush1.xpose.msra.mxu0 0.0
        %4359 = vmatprep.mubr.f32.mxu0 0.0
        %4360 = vmatmul.mubr.f32.gmra.mrb[0].mxu0 %v4291
        %v4361 = vpop.f32.mrb[0].mxu0
        %v4362 = vadd.f32 0.0, %v4361
        %v4363 = vpop.f32.mrb[0].mxu0
        %4364 = vdwg.mxu0
        %4365 = vrot.lane.b32.xlu0 %v4288, 96
        %v4366 = vpop.permute.xlu0 %4365
        %v4367 = vsel %vm2339, %v4288, 0
        %v4369 = vsel %vm2339, %v4366, 0
        %4371 = vmatprep.subr.mxu0 0.0
        %4372 = vmatpush1.xpose.msra.mxu0 %v4369
        %4373 = vmatprep.subr.mxu0 0.0
        %4374 = vmatpush1.xpose.msra.mxu0 0.0
        %4375 = vmatprep.subr.mxu0 0.0
        %4376 = vmatpush1.xpose.msra.mxu0 0.0
        %4377 = vmatprep.subr.mxu0 0.0
        %4378 = vmatpush1.xpose.msra.mxu0 0.0
        %4379 = vmatprep.subr.mxu0 0.0
        %4380 = vmatpush1.xpose.msra.mxu0 0.0
        %4381 = vmatprep.subr.mxu0 0.0
        %4382 = vmatpush1.xpose.msra.mxu0 0.0
        %4383 = vmatprep.subr.mxu0 0.0
        %4384 = vmatpush1.xpose.msra.mxu0 0.0
        %4385 = vmatprep.subr.mxu0 0.0
        %4386 = vmatpush1.xpose.msra.mxu0 0.0
        %4387 = vmatprep.subr.mxu0 0.0
        %4388 = vmatpush1.xpose.msra.mxu0 0.0
        %4389 = vmatprep.subr.mxu0 0.0
        %4390 = vmatpush1.xpose.msra.mxu0 0.0
        %4391 = vmatprep.subr.mxu0 0.0
        %4392 = vmatpush1.xpose.msra.mxu0 0.0
        %4393 = vmatprep.subr.mxu0 0.0
        %4394 = vmatpush1.xpose.msra.mxu0 0.0
        %4395 = vmatprep.subr.mxu0 0.0
        %4396 = vmatpush1.xpose.msra.mxu0 0.0
        %4397 = vmatprep.subr.mxu0 0.0
        %4398 = vmatpush1.xpose.msra.mxu0 0.0
        %4399 = vmatprep.subr.mxu0 0.0
        %4400 = vmatpush1.xpose.msra.mxu0 0.0
        %4401 = vmatprep.subr.mxu0 0.0
        %4402 = vmatpush1.xpose.msra.mxu0 0.0
        %4403 = vmatprep.subr.mxu0 0.0
        %4404 = vmatpush1.xpose.msra.mxu0 0.0
        %4405 = vmatprep.subr.mxu0 0.0
        %4406 = vmatpush1.xpose.msra.mxu0 0.0
        %4407 = vmatprep.subr.mxu0 0.0
        %4408 = vmatpush1.xpose.msra.mxu0 0.0
        %4409 = vmatprep.subr.mxu0 0.0
        %4410 = vmatpush1.xpose.msra.mxu0 0.0
        %4411 = vmatprep.subr.mxu0 0.0
        %4412 = vmatpush1.xpose.msra.mxu0 0.0
        %4413 = vmatprep.subr.mxu0 0.0
        %4414 = vmatpush1.xpose.msra.mxu0 0.0
        %4415 = vmatprep.subr.mxu0 0.0
        %4416 = vmatpush1.xpose.msra.mxu0 0.0
        %4417 = vmatprep.subr.mxu0 0.0
        %4418 = vmatpush1.xpose.msra.mxu0 0.0
        %4419 = vmatprep.subr.mxu0 0.0
        %4420 = vmatpush1.xpose.msra.mxu0 0.0
        %4421 = vmatprep.subr.mxu0 0.0
        %4422 = vmatpush1.xpose.msra.mxu0 0.0
        %4423 = vmatprep.subr.mxu0 0.0
        %4424 = vmatpush1.xpose.msra.mxu0 0.0
        %4425 = vmatprep.subr.mxu0 0.0
        %4426 = vmatpush1.xpose.msra.mxu0 0.0
        %4427 = vmatprep.subr.mxu0 0.0
        %4428 = vmatpush1.xpose.msra.mxu0 0.0
        %4429 = vmatprep.subr.mxu0 0.0
        %4430 = vmatpush1.xpose.msra.mxu0 0.0
        %4431 = vmatprep.subr.mxu0 0.0
        %4432 = vmatpush1.xpose.msra.mxu0 0.0
        %4433 = vmatprep.subr.mxu0 0.0
        %4434 = vmatpush1.xpose.msra.mxu0 0.0
        %4435 = vmatprep.mubr.f32.mxu0 0.0
        %4436 = vmatmul.mubr.f32.gmra.mrb[0].mxu0 %v4367
        %v4437 = vpop.f32.mrb[0].mxu0
        %v4438 = vadd.f32 0.0, %v4437
        %v4439 = vpop.f32.mrb[0].mxu0
        %4440 = vdwg.mxu0
        %v4441 = vmul.f32 %v4362, 0.35355338
        %v4442 = vmul.f32 %v4438, 0.35355338
        %v4443 = vadd.f32 %v4441, %v4207
        %v4444 = vadd.f32 %v4442, %v4207
        %vm4445 = vcmask 27648
        %v4446 = vsel %vm4445, %v4443, -inf
        %4447 = vmax.xlane.f32.xlu0 %v4446
        %v4448 = vpop.xlane.xlu0 %4447
        %v4449 = vsel %vm4445, %v4444, -inf
        %4450 = vmax.xlane.f32.xlu0 %v4449
        %v4451 = vpop.xlane.xlu0 %4450
        %v4452 = vsub.f32 %v4443, %v4448
        %v4453 = vsub.f32 %v4444, %v4451
        %v4454 = vmul.f32 %v4452, 1.442695
        %v4455 = vpow.pop %v4454
        %v4456 = vmul.f32 %v4453, 1.442695
        %v4457 = vpow.pop %v4456
        %v4458 = vsel %vm4445, %v4455, 0.0
        %4459 = vadd.xlane.f32.xlu0 %v4458
        %v4460 = vpop.xlane.xlu0 %4459
        %v4461 = vsel %vm4445, %v4457, 0.0
        %4462 = vadd.xlane.f32.xlu0 %v4461
        %v4463 = vpop.xlane.xlu0 %4462
        %v4464 = vrcp.pop %v4460
        %v4465 = vmul.f32 %v4455, %v4464
        %v4466 = vrcp.pop %v4463
        %v4467 = vmul.f32 %v4457, %v4466
        %4468 = vrot.lane.b32.xlu0 %v4284, 64
        %v4469 = vpop.permute.xlu0 %4468
        %v4471 = vsel %vm2166, %v4465, 0
        %v4473 = vsel %vm2169, %v4469, 0
        %4475 = vmatprep.subr.mxu0 0.0
        %4476 = vmatpush1.msra.mxu0 %v4473
        %4477 = vmatprep.subr.mxu0 0.0
        %4478 = vmatpush1.msra.mxu0 0.0
        %4479 = vmatprep.subr.mxu0 0.0
        %4480 = vmatpush1.msra.mxu0 0.0
        %4481 = vmatprep.subr.mxu0 0.0
        %4482 = vmatpush1.msra.mxu0 0.0
        %4483 = vmatprep.subr.mxu0 0.0
        %4484 = vmatpush1.msra.mxu0 0.0
        %4485 = vmatprep.subr.mxu0 0.0
        %4486 = vmatpush1.msra.mxu0 0.0
        %4487 = vmatprep.subr.mxu0 0.0
        %4488 = vmatpush1.msra.mxu0 0.0
        %4489 = vmatprep.subr.mxu0 0.0
        %4490 = vmatpush1.msra.mxu0 0.0
        %4491 = vmatprep.subr.mxu0 0.0
        %4492 = vmatpush1.msra.mxu0 0.0
        %4493 = vmatprep.subr.mxu0 0.0
        %4494 = vmatpush1.msra.mxu0 0.0
        %4495 = vmatprep.subr.mxu0 0.0
        %4496 = vmatpush1.msra.mxu0 0.0
        %4497 = vmatprep.subr.mxu0 0.0
        %4498 = vmatpush1.msra.mxu0 0.0
        %4499 = vmatprep.subr.mxu0 0.0
        %4500 = vmatpush1.msra.mxu0 0.0
        %4501 = vmatprep.subr.mxu0 0.0
        %4502 = vmatpush1.msra.mxu0 0.0
        %4503 = vmatprep.subr.mxu0 0.0
        %4504 = vmatpush1.msra.mxu0 0.0
        %4505 = vmatprep.subr.mxu0 0.0
        %4506 = vmatpush1.msra.mxu0 0.0
        %4507 = vmatprep.subr.mxu0 0.0
        %4508 = vmatpush1.msra.mxu0 0.0
        %4509 = vmatprep.subr.mxu0 0.0
        %4510 = vmatpush1.msra.mxu0 0.0
        %4511 = vmatprep.subr.mxu0 0.0
        %4512 = vmatpush1.msra.mxu0 0.0
        %4513 = vmatprep.subr.mxu0 0.0
        %4514 = vmatpush1.msra.mxu0 0.0
        %4515 = vmatprep.subr.mxu0 0.0
        %4516 = vmatpush1.msra.mxu0 0.0
        %4517 = vmatprep.subr.mxu0 0.0
        %4518 = vmatpush1.msra.mxu0 0.0
        %4519 = vmatprep.subr.mxu0 0.0
        %4520 = vmatpush1.msra.mxu0 0.0
        %4521 = vmatprep.subr.mxu0 0.0
        %4522 = vmatpush1.msra.mxu0 0.0
        %4523 = vmatprep.subr.mxu0 0.0
        %4524 = vmatpush1.msra.mxu0 0.0
        %4525 = vmatprep.subr.mxu0 0.0
        %4526 = vmatpush1.msra.mxu0 0.0
        %4527 = vmatprep.subr.mxu0 0.0
        %4528 = vmatpush1.msra.mxu0 0.0
        %4529 = vmatprep.subr.mxu0 0.0
        %4530 = vmatpush1.msra.mxu0 0.0
        %4531 = vmatprep.subr.mxu0 0.0
        %4532 = vmatpush1.msra.mxu0 0.0
        %4533 = vmatprep.subr.mxu0 0.0
        %4534 = vmatpush1.msra.mxu0 0.0
        %4535 = vmatprep.subr.mxu0 0.0
        %4536 = vmatpush1.msra.mxu0 0.0
        %4537 = vmatprep.subr.mxu0 0.0
        %4538 = vmatpush1.msra.mxu0 0.0
        %4539 = vmatprep.mubr.f32.mxu0 0.0
        %4540 = vmatmul.mubr.f32.gmra.mrb[0].mxu0 %v4471
        %v4541 = vpop.f32.mrb[0].mxu0
        %v4542 = vadd.f32 0.0, %v4541
        %v4543 = vpop.f32.mrb[0].mxu0
        %4544 = vdwg.mxu0
        %4545 = vrot.lane.b32.xlu0 %v4288, 64
        %v4546 = vpop.permute.xlu0 %4545
        %v4548 = vsel %vm2166, %v4467, 0
        %v4550 = vsel %vm2169, %v4546, 0
        %4552 = vmatprep.subr.mxu0 0.0
        %4553 = vmatpush1.msra.mxu0 %v4550
        %4554 = vmatprep.subr.mxu0 0.0
        %4555 = vmatpush1.msra.mxu0 0.0
        %4556 = vmatprep.subr.mxu0 0.0
        %4557 = vmatpush1.msra.mxu0 0.0
        %4558 = vmatprep.subr.mxu0 0.0
        %4559 = vmatpush1.msra.mxu0 0.0
        %4560 = vmatprep.subr.mxu0 0.0
        %4561 = vmatpush1.msra.mxu0 0.0
        %4562 = vmatprep.subr.mxu0 0.0
        %4563 = vmatpush1.msra.mxu0 0.0
        %4564 = vmatprep.subr.mxu0 0.0
        %4565 = vmatpush1.msra.mxu0 0.0
        %4566 = vmatprep.subr.mxu0 0.0
        %4567 = vmatpush1.msra.mxu0 0.0
        %4568 = vmatprep.subr.mxu0 0.0
        %4569 = vmatpush1.msra.mxu0 0.0
        %4570 = vmatprep.subr.mxu0 0.0
        %4571 = vmatpush1.msra.mxu0 0.0
        %4572 = vmatprep.subr.mxu0 0.0
        %4573 = vmatpush1.msra.mxu0 0.0
        %4574 = vmatprep.subr.mxu0 0.0
        %4575 = vmatpush1.msra.mxu0 0.0
        %4576 = vmatprep.subr.mxu0 0.0
        %4577 = vmatpush1.msra.mxu0 0.0
        %4578 = vmatprep.subr.mxu0 0.0
        %4579 = vmatpush1.msra.mxu0 0.0
        %4580 = vmatprep.subr.mxu0 0.0
        %4581 = vmatpush1.msra.mxu0 0.0
        %4582 = vmatprep.subr.mxu0 0.0
        %4583 = vmatpush1.msra.mxu0 0.0
        %4584 = vmatprep.subr.mxu0 0.0
        %4585 = vmatpush1.msra.mxu0 0.0
        %4586 = vmatprep.subr.mxu0 0.0
        %4587 = vmatpush1.msra.mxu0 0.0
        %4588 = vmatprep.subr.mxu0 0.0
        %4589 = vmatpush1.msra.mxu0 0.0
        %4590 = vmatprep.subr.mxu0 0.0
        %4591 = vmatpush1.msra.mxu0 0.0
        %4592 = vmatprep.subr.mxu0 0.0
        %4593 = vmatpush1.msra.mxu0 0.0
        %4594 = vmatprep.subr.mxu0 0.0
        %4595 = vmatpush1.msra.mxu0 0.0
        %4596 = vmatprep.subr.mxu0 0.0
        %4597 = vmatpush1.msra.mxu0 0.0
        %4598 = vmatprep.subr.mxu0 0.0
        %4599 = vmatpush1.msra.mxu0 0.0
        %4600 = vmatprep.subr.mxu0 0.0
        %4601 = vmatpush1.msra.mxu0 0.0
        %4602 = vmatprep.subr.mxu0 0.0
        %4603 = vmatpush1.msra.mxu0 0.0
        %4604 = vmatprep.subr.mxu0 0.0
        %4605 = vmatpush1.msra.mxu0 0.0
        %4606 = vmatprep.subr.mxu0 0.0
        %4607 = vmatpush1.msra.mxu0 0.0
        %4608 = vmatprep.subr.mxu0 0.0
        %4609 = vmatpush1.msra.mxu0 0.0
        %4610 = vmatprep.subr.mxu0 0.0
        %4611 = vmatpush1.msra.mxu0 0.0
        %4612 = vmatprep.subr.mxu0 0.0
        %4613 = vmatpush1.msra.mxu0 0.0
        %4614 = vmatprep.subr.mxu0 0.0
        %4615 = vmatpush1.msra.mxu0 0.0
        %4616 = vmatprep.mubr.f32.mxu0 0.0
        %4617 = vmatmul.mubr.f32.gmra.mrb[0].mxu0 %v4548
        %v4618 = vpop.f32.mrb[0].mxu0
        %v4619 = vadd.f32 0.0, %v4618
        %v4620 = vpop.f32.mrb[0].mxu0
        %4621 = vdwg.mxu0
        %4622 = vrot.lane.b32.xlu0 %v4284, 120
        %v4623 = vpop.permute.xlu0 %4622
        %4624 = vrot.lane.b32.xlu0 %v4284, 88
        %v4625 = vpop.permute.xlu0 %4624
        %v4626 = vsel %vm2339, %v4623, 0
        %v4628 = vsel %vm2339, %v4625, 0
        %4630 = vmatprep.subr.mxu0 0.0
        %4631 = vmatpush1.xpose.msra.mxu0 %v4628
        %4632 = vmatprep.subr.mxu0 0.0
        %4633 = vmatpush1.xpose.msra.mxu0 0.0
        %4634 = vmatprep.subr.mxu0 0.0
        %4635 = vmatpush1.xpose.msra.mxu0 0.0
        %4636 = vmatprep.subr.mxu0 0.0
        %4637 = vmatpush1.xpose.msra.mxu0 0.0
        %4638 = vmatprep.subr.mxu0 0.0
        %4639 = vmatpush1.xpose.msra.mxu0 0.0
        %4640 = vmatprep.subr.mxu0 0.0
        %4641 = vmatpush1.xpose.msra.mxu0 0.0
        %4642 = vmatprep.subr.mxu0 0.0
        %4643 = vmatpush1.xpose.msra.mxu0 0.0
        %4644 = vmatprep.subr.mxu0 0.0
        %4645 = vmatpush1.xpose.msra.mxu0 0.0
        %4646 = vmatprep.subr.mxu0 0.0
        %4647 = vmatpush1.xpose.msra.mxu0 0.0
        %4648 = vmatprep.subr.mxu0 0.0
        %4649 = vmatpush1.xpose.msra.mxu0 0.0
        %4650 = vmatprep.subr.mxu0 0.0
        %4651 = vmatpush1.xpose.msra.mxu0 0.0
        %4652 = vmatprep.subr.mxu0 0.0
        %4653 = vmatpush1.xpose.msra.mxu0 0.0
        %4654 = vmatprep.subr.mxu0 0.0
        %4655 = vmatpush1.xpose.msra.mxu0 0.0
        %4656 = vmatprep.subr.mxu0 0.0
        %4657 = vmatpush1.xpose.msra.mxu0 0.0
        %4658 = vmatprep.subr.mxu0 0.0
        %4659 = vmatpush1.xpose.msra.mxu0 0.0
        %4660 = vmatprep.subr.mxu0 0.0
        %4661 = vmatpush1.xpose.msra.mxu0 0.0
        %4662 = vmatprep.subr.mxu0 0.0
        %4663 = vmatpush1.xpose.msra.mxu0 0.0
        %4664 = vmatprep.subr.mxu0 0.0
        %4665 = vmatpush1.xpose.msra.mxu0 0.0
        %4666 = vmatprep.subr.mxu0 0.0
        %4667 = vmatpush1.xpose.msra.mxu0 0.0
        %4668 = vmatprep.subr.mxu0 0.0
        %4669 = vmatpush1.xpose.msra.mxu0 0.0
        %4670 = vmatprep.subr.mxu0 0.0
        %4671 = vmatpush1.xpose.msra.mxu0 0.0
        %4672 = vmatprep.subr.mxu0 0.0
        %4673 = vmatpush1.xpose.msra.mxu0 0.0
        %4674 = vmatprep.subr.mxu0 0.0
        %4675 = vmatpush1.xpose.msra.mxu0 0.0
        %4676 = vmatprep.subr.mxu0 0.0
        %4677 = vmatpush1.xpose.msra.mxu0 0.0
        %4678 = vmatprep.subr.mxu0 0.0
        %4679 = vmatpush1.xpose.msra.mxu0 0.0
        %4680 = vmatprep.subr.mxu0 0.0
        %4681 = vmatpush1.xpose.msra.mxu0 0.0
        %4682 = vmatprep.subr.mxu0 0.0
        %4683 = vmatpush1.xpose.msra.mxu0 0.0
        %4684 = vmatprep.subr.mxu0 0.0
        %4685 = vmatpush1.xpose.msra.mxu0 0.0
        %4686 = vmatprep.subr.mxu0 0.0
        %4687 = vmatpush1.xpose.msra.mxu0 0.0
        %4688 = vmatprep.subr.mxu0 0.0
        %4689 = vmatpush1.xpose.msra.mxu0 0.0
        %4690 = vmatprep.subr.mxu0 0.0
        %4691 = vmatpush1.xpose.msra.mxu0 0.0
        %4692 = vmatprep.subr.mxu0 0.0
        %4693 = vmatpush1.xpose.msra.mxu0 0.0
        %4694 = vmatprep.mubr.f32.mxu0 0.0
        %4695 = vmatmul.mubr.f32.gmra.mrb[0].mxu0 %v4626
        %v4696 = vpop.f32.mrb[0].mxu0
        %v4697 = vadd.f32 0.0, %v4696
        %v4698 = vpop.f32.mrb[0].mxu0
        %4699 = vdwg.mxu0
        %4700 = vrot.lane.b32.xlu0 %v4288, 120
        %v4701 = vpop.permute.xlu0 %4700
        %4702 = vrot.lane.b32.xlu0 %v4288, 88
        %v4703 = vpop.permute.xlu0 %4702
        %v4704 = vsel %vm2339, %v4701, 0
        %v4706 = vsel %vm2339, %v4703, 0
        %4708 = vmatprep.subr.mxu0 0.0
        %4709 = vmatpush1.xpose.msra.mxu0 %v4706
        %4710 = vmatprep.subr.mxu0 0.0
        %4711 = vmatpush1.xpose.msra.mxu0 0.0
        %4712 = vmatprep.subr.mxu0 0.0
        %4713 = vmatpush1.xpose.msra.mxu0 0.0
        %4714 = vmatprep.subr.mxu0 0.0
        %4715 = vmatpush1.xpose.msra.mxu0 0.0
        %4716 = vmatprep.subr.mxu0 0.0
        %4717 = vmatpush1.xpose.msra.mxu0 0.0
        %4718 = vmatprep.subr.mxu0 0.0
        %4719 = vmatpush1.xpose.msra.mxu0 0.0
        %4720 = vmatprep.subr.mxu0 0.0
        %4721 = vmatpush1.xpose.msra.mxu0 0.0
        %4722 = vmatprep.subr.mxu0 0.0
        %4723 = vmatpush1.xpose.msra.mxu0 0.0
        %4724 = vmatprep.subr.mxu0 0.0
        %4725 = vmatpush1.xpose.msra.mxu0 0.0
        %4726 = vmatprep.subr.mxu0 0.0
        %4727 = vmatpush1.xpose.msra.mxu0 0.0
        %4728 = vmatprep.subr.mxu0 0.0
        %4729 = vmatpush1.xpose.msra.mxu0 0.0
        %4730 = vmatprep.subr.mxu0 0.0
        %4731 = vmatpush1.xpose.msra.mxu0 0.0
        %4732 = vmatprep.subr.mxu0 0.0
        %4733 = vmatpush1.xpose.msra.mxu0 0.0
        %4734 = vmatprep.subr.mxu0 0.0
        %4735 = vmatpush1.xpose.msra.mxu0 0.0
        %4736 = vmatprep.subr.mxu0 0.0
        %4737 = vmatpush1.xpose.msra.mxu0 0.0
        %4738 = vmatprep.subr.mxu0 0.0
        %4739 = vmatpush1.xpose.msra.mxu0 0.0
        %4740 = vmatprep.subr.mxu0 0.0
        %4741 = vmatpush1.xpose.msra.mxu0 0.0
        %4742 = vmatprep.subr.mxu0 0.0
        %4743 = vmatpush1.xpose.msra.mxu0 0.0
        %4744 = vmatprep.subr.mxu0 0.0
        %4745 = vmatpush1.xpose.msra.mxu0 0.0
        %4746 = vmatprep.subr.mxu0 0.0
        %4747 = vmatpush1.xpose.msra.mxu0 0.0
        %4748 = vmatprep.subr.mxu0 0.0
        %4749 = vmatpush1.xpose.msra.mxu0 0.0
        %4750 = vmatprep.subr.mxu0 0.0
        %4751 = vmatpush1.xpose.msra.mxu0 0.0
        %4752 = vmatprep.subr.mxu0 0.0
        %4753 = vmatpush1.xpose.msra.mxu0 0.0
        %4754 = vmatprep.subr.mxu0 0.0
        %4755 = vmatpush1.xpose.msra.mxu0 0.0
        %4756 = vmatprep.subr.mxu0 0.0
        %4757 = vmatpush1.xpose.msra.mxu0 0.0
        %4758 = vmatprep.subr.mxu0 0.0
        %4759 = vmatpush1.xpose.msra.mxu0 0.0
        %4760 = vmatprep.subr.mxu0 0.0
        %4761 = vmatpush1.xpose.msra.mxu0 0.0
        %4762 = vmatprep.subr.mxu0 0.0
        %4763 = vmatpush1.xpose.msra.mxu0 0.0
        %4764 = vmatprep.subr.mxu0 0.0
        %4765 = vmatpush1.xpose.msra.mxu0 0.0
        %4766 = vmatprep.subr.mxu0 0.0
        %4767 = vmatpush1.xpose.msra.mxu0 0.0
        %4768 = vmatprep.subr.mxu0 0.0
        %4769 = vmatpush1.xpose.msra.mxu0 0.0
        %4770 = vmatprep.subr.mxu0 0.0
        %4771 = vmatpush1.xpose.msra.mxu0 0.0
        %4772 = vmatprep.mubr.f32.mxu0 0.0
        %4773 = vmatmul.mubr.f32.gmra.mrb[0].mxu0 %v4704
        %v4774 = vpop.f32.mrb[0].mxu0
        %v4775 = vadd.f32 0.0, %v4774
        %v4776 = vpop.f32.mrb[0].mxu0
        %4777 = vdwg.mxu0
        %v4778 = vmul.f32 %v4697, 0.35355338
        %v4779 = vmul.f32 %v4775, 0.35355338
        %v4780 = vadd.f32 %v4778, %v4207
        %v4781 = vadd.f32 %v4779, %v4207
        %v4782 = vsel %vm4445, %v4780, -inf
        %4783 = vmax.xlane.f32.xlu0 %v4782
        %v4784 = vpop.xlane.xlu0 %4783
        %v4785 = vsel %vm4445, %v4781, -inf
        %4786 = vmax.xlane.f32.xlu0 %v4785
        %v4787 = vpop.xlane.xlu0 %4786
        %v4788 = vsub.f32 %v4780, %v4784
        %v4789 = vsub.f32 %v4781, %v4787
        %v4790 = vmul.f32 %v4788, 1.442695
        %v4791 = vpow.pop %v4790
        %v4792 = vmul.f32 %v4789, 1.442695
        %v4793 = vpow.pop %v4792
        %v4794 = vsel %vm4445, %v4791, 0.0
        %4795 = vadd.xlane.f32.xlu0 %v4794
        %v4796 = vpop.xlane.xlu0 %4795
        %v4797 = vsel %vm4445, %v4793, 0.0
        %4798 = vadd.xlane.f32.xlu0 %v4797
        %v4799 = vpop.xlane.xlu0 %4798
        %v4800 = vrcp.pop %v4796
        %v4801 = vmul.f32 %v4791, %v4800
        %v4802 = vrcp.pop %v4799
        %v4803 = vmul.f32 %v4793, %v4802
        %4804 = vrot.lane.b32.xlu0 %v4284, 56
        %v4805 = vpop.permute.xlu0 %4804
        %v4807 = vsel %vm2166, %v4801, 0
        %v4809 = vsel %vm2169, %v4805, 0
        %4811 = vmatprep.subr.mxu0 0.0
        %4812 = vmatpush1.msra.mxu0 %v4809
        %4813 = vmatprep.subr.mxu0 0.0
        %4814 = vmatpush1.msra.mxu0 0.0
        %4815 = vmatprep.subr.mxu0 0.0
        %4816 = vmatpush1.msra.mxu0 0.0
        %4817 = vmatprep.subr.mxu0 0.0
        %4818 = vmatpush1.msra.mxu0 0.0
        %4819 = vmatprep.subr.mxu0 0.0
        %4820 = vmatpush1.msra.mxu0 0.0
        %4821 = vmatprep.subr.mxu0 0.0
        %4822 = vmatpush1.msra.mxu0 0.0
        %4823 = vmatprep.subr.mxu0 0.0
        %4824 = vmatpush1.msra.mxu0 0.0
        %4825 = vmatprep.subr.mxu0 0.0
        %4826 = vmatpush1.msra.mxu0 0.0
        %4827 = vmatprep.subr.mxu0 0.0
        %4828 = vmatpush1.msra.mxu0 0.0
        %4829 = vmatprep.subr.mxu0 0.0
        %4830 = vmatpush1.msra.mxu0 0.0
        %4831 = vmatprep.subr.mxu0 0.0
        %4832 = vmatpush1.msra.mxu0 0.0
        %4833 = vmatprep.subr.mxu0 0.0
        %4834 = vmatpush1.msra.mxu0 0.0
        %4835 = vmatprep.subr.mxu0 0.0
        %4836 = vmatpush1.msra.mxu0 0.0
        %4837 = vmatprep.subr.mxu0 0.0
        %4838 = vmatpush1.msra.mxu0 0.0
        %4839 = vmatprep.subr.mxu0 0.0
        %4840 = vmatpush1.msra.mxu0 0.0
        %4841 = vmatprep.subr.mxu0 0.0
        %4842 = vmatpush1.msra.mxu0 0.0
        %4843 = vmatprep.subr.mxu0 0.0
        %4844 = vmatpush1.msra.mxu0 0.0
        %4845 = vmatprep.subr.mxu0 0.0
        %4846 = vmatpush1.msra.mxu0 0.0
        %4847 = vmatprep.subr.mxu0 0.0
        %4848 = vmatpush1.msra.mxu0 0.0
        %4849 = vmatprep.subr.mxu0 0.0
        %4850 = vmatpush1.msra.mxu0 0.0
        %4851 = vmatprep.subr.mxu0 0.0
        %4852 = vmatpush1.msra.mxu0 0.0
        %4853 = vmatprep.subr.mxu0 0.0
        %4854 = vmatpush1.msra.mxu0 0.0
        %4855 = vmatprep.subr.mxu0 0.0
        %4856 = vmatpush1.msra.mxu0 0.0
        %4857 = vmatprep.subr.mxu0 0.0
        %4858 = vmatpush1.msra.mxu0 0.0
        %4859 = vmatprep.subr.mxu0 0.0
        %4860 = vmatpush1.msra.mxu0 0.0
        %4861 = vmatprep.subr.mxu0 0.0
        %4862 = vmatpush1.msra.mxu0 0.0
        %4863 = vmatprep.subr.mxu0 0.0
        %4864 = vmatpush1.msra.mxu0 0.0
        %4865 = vmatprep.subr.mxu0 0.0
        %4866 = vmatpush1.msra.mxu0 0.0
        %4867 = vmatprep.subr.mxu0 0.0
        %4868 = vmatpush1.msra.mxu0 0.0
        %4869 = vmatprep.subr.mxu0 0.0
        %4870 = vmatpush1.msra.mxu0 0.0
        %4871 = vmatprep.subr.mxu0 0.0
        %4872 = vmatpush1.msra.mxu0 0.0
        %4873 = vmatprep.subr.mxu0 0.0
        %4874 = vmatpush1.msra.mxu0 0.0
        %4875 = vmatprep.mubr.f32.mxu0 0.0
        %4876 = vmatmul.mubr.f32.gmra.mrb[0].mxu0 %v4807
        %v4877 = vpop.f32.mrb[0].mxu0
        %v4878 = vadd.f32 0.0, %v4877
        %v4879 = vpop.f32.mrb[0].mxu0
        %4880 = vdwg.mxu0
        %4881 = vrot.lane.b32.xlu0 %v4288, 56
        %v4882 = vpop.permute.xlu0 %4881
        %v4884 = vsel %vm2166, %v4803, 0
        %v4886 = vsel %vm2169, %v4882, 0
        %4888 = vmatprep.subr.mxu0 0.0
        %4889 = vmatpush1.msra.mxu0 %v4886
        %4890 = vmatprep.subr.mxu0 0.0
        %4891 = vmatpush1.msra.mxu0 0.0
        %4892 = vmatprep.subr.mxu0 0.0
        %4893 = vmatpush1.msra.mxu0 0.0
        %4894 = vmatprep.subr.mxu0 0.0
        %4895 = vmatpush1.msra.mxu0 0.0
        %4896 = vmatprep.subr.mxu0 0.0
        %4897 = vmatpush1.msra.mxu0 0.0
        %4898 = vmatprep.subr.mxu0 0.0
        %4899 = vmatpush1.msra.mxu0 0.0
        %4900 = vmatprep.subr.mxu0 0.0
        %4901 = vmatpush1.msra.mxu0 0.0
        %4902 = vmatprep.subr.mxu0 0.0
        %4903 = vmatpush1.msra.mxu0 0.0
        %4904 = vmatprep.subr.mxu0 0.0
        %4905 = vmatpush1.msra.mxu0 0.0
        %4906 = vmatprep.subr.mxu0 0.0
        %4907 = vmatpush1.msra.mxu0 0.0
        %4908 = vmatprep.subr.mxu0 0.0
        %4909 = vmatpush1.msra.mxu0 0.0
        %4910 = vmatprep.subr.mxu0 0.0
        %4911 = vmatpush1.msra.mxu0 0.0
        %4912 = vmatprep.subr.mxu0 0.0
        %4913 = vmatpush1.msra.mxu0 0.0
        %4914 = vmatprep.subr.mxu0 0.0
        %4915 = vmatpush1.msra.mxu0 0.0
        %4916 = vmatprep.subr.mxu0 0.0
        %4917 = vmatpush1.msra.mxu0 0.0
        %4918 = vmatprep.subr.mxu0 0.0
        %4919 = vmatpush1.msra.mxu0 0.0
        %4920 = vmatprep.subr.mxu0 0.0
        %4921 = vmatpush1.msra.mxu0 0.0
        %4922 = vmatprep.subr.mxu0 0.0
        %4923 = vmatpush1.msra.mxu0 0.0
        %4924 = vmatprep.subr.mxu0 0.0
        %4925 = vmatpush1.msra.mxu0 0.0
        %4926 = vmatprep.subr.mxu0 0.0
        %4927 = vmatpush1.msra.mxu0 0.0
        %4928 = vmatprep.subr.mxu0 0.0
        %4929 = vmatpush1.msra.mxu0 0.0
        %4930 = vmatprep.subr.mxu0 0.0
        %4931 = vmatpush1.msra.mxu0 0.0
        %4932 = vmatprep.subr.mxu0 0.0
        %4933 = vmatpush1.msra.mxu0 0.0
        %4934 = vmatprep.subr.mxu0 0.0
        %4935 = vmatpush1.msra.mxu0 0.0
        %4936 = vmatprep.subr.mxu0 0.0
        %4937 = vmatpush1.msra.mxu0 0.0
        %4938 = vmatprep.subr.mxu0 0.0
        %4939 = vmatpush1.msra.mxu0 0.0
        %4940 = vmatprep.subr.mxu0 0.0
        %4941 = vmatpush1.msra.mxu0 0.0
        %4942 = vmatprep.subr.mxu0 0.0
        %4943 = vmatpush1.msra.mxu0 0.0
        %4944 = vmatprep.subr.mxu0 0.0
        %4945 = vmatpush1.msra.mxu0 0.0
        %4946 = vmatprep.subr.mxu0 0.0
        %4947 = vmatpush1.msra.mxu0 0.0
        %4948 = vmatprep.subr.mxu0 0.0
        %4949 = vmatpush1.msra.mxu0 0.0
        %4950 = vmatprep.subr.mxu0 0.0
        %4951 = vmatpush1.msra.mxu0 0.0
        %4952 = vmatprep.mubr.f32.mxu0 0.0
        %4953 = vmatmul.mubr.f32.gmra.mrb[0].mxu0 %v4884
        %v4954 = vpop.f32.mrb[0].mxu0
        %v4955 = vadd.f32 0.0, %v4954
        %v4956 = vpop.f32.mrb[0].mxu0
        %4957 = vdwg.mxu0
        %4958 = vrot.lane.b32.xlu0 %v4284, 112
        %v4959 = vpop.permute.xlu0 %4958
        %4960 = vrot.lane.b32.xlu0 %v4284, 80
        %v4961 = vpop.permute.xlu0 %4960
        %v4962 = vsel %vm2339, %v4959, 0
        %v4964 = vsel %vm2339, %v4961, 0
        %4966 = vmatprep.subr.mxu0 0.0
        %4967 = vmatpush1.xpose.msra.mxu0 %v4964
        %4968 = vmatprep.subr.mxu0 0.0
        %4969 = vmatpush1.xpose.msra.mxu0 0.0
        %4970 = vmatprep.subr.mxu0 0.0
        %4971 = vmatpush1.xpose.msra.mxu0 0.0
        %4972 = vmatprep.subr.mxu0 0.0
        %4973 = vmatpush1.xpose.msra.mxu0 0.0
        %4974 = vmatprep.subr.mxu0 0.0
        %4975 = vmatpush1.xpose.msra.mxu0 0.0
        %4976 = vmatprep.subr.mxu0 0.0
        %4977 = vmatpush1.xpose.msra.mxu0 0.0
        %4978 = vmatprep.subr.mxu0 0.0
        %4979 = vmatpush1.xpose.msra.mxu0 0.0
        %4980 = vmatprep.subr.mxu0 0.0
        %4981 = vmatpush1.xpose.msra.mxu0 0.0
        %4982 = vmatprep.subr.mxu0 0.0
        %4983 = vmatpush1.xpose.msra.mxu0 0.0
        %4984 = vmatprep.subr.mxu0 0.0
        %4985 = vmatpush1.xpose.msra.mxu0 0.0
        %4986 = vmatprep.subr.mxu0 0.0
        %4987 = vmatpush1.xpose.msra.mxu0 0.0
        %4988 = vmatprep.subr.mxu0 0.0
        %4989 = vmatpush1.xpose.msra.mxu0 0.0
        %4990 = vmatprep.subr.mxu0 0.0
        %4991 = vmatpush1.xpose.msra.mxu0 0.0
        %4992 = vmatprep.subr.mxu0 0.0
        %4993 = vmatpush1.xpose.msra.mxu0 0.0
        %4994 = vmatprep.subr.mxu0 0.0
        %4995 = vmatpush1.xpose.msra.mxu0 0.0
        %4996 = vmatprep.subr.mxu0 0.0
        %4997 = vmatpush1.xpose.msra.mxu0 0.0
        %4998 = vmatprep.subr.mxu0 0.0
        %4999 = vmatpush1.xpose.msra.mxu0 0.0
        %5000 = vmatprep.subr.mxu0 0.0
        %5001 = vmatpush1.xpose.msra.mxu0 0.0
        %5002 = vmatprep.subr.mxu0 0.0
        %5003 = vmatpush1.xpose.msra.mxu0 0.0
        %5004 = vmatprep.subr.mxu0 0.0
        %5005 = vmatpush1.xpose.msra.mxu0 0.0
        %5006 = vmatprep.subr.mxu0 0.0
        %5007 = vmatpush1.xpose.msra.mxu0 0.0
        %5008 = vmatprep.subr.mxu0 0.0
        %5009 = vmatpush1.xpose.msra.mxu0 0.0
        %5010 = vmatprep.subr.mxu0 0.0
        %5011 = vmatpush1.xpose.msra.mxu0 0.0
        %5012 = vmatprep.subr.mxu0 0.0
        %5013 = vmatpush1.xpose.msra.mxu0 0.0
        %5014 = vmatprep.subr.mxu0 0.0
        %5015 = vmatpush1.xpose.msra.mxu0 0.0
        %5016 = vmatprep.subr.mxu0 0.0
        %5017 = vmatpush1.xpose.msra.mxu0 0.0
        %5018 = vmatprep.subr.mxu0 0.0
        %5019 = vmatpush1.xpose.msra.mxu0 0.0
        %5020 = vmatprep.subr.mxu0 0.0
        %5021 = vmatpush1.xpose.msra.mxu0 0.0
        %5022 = vmatprep.subr.mxu0 0.0
        %5023 = vmatpush1.xpose.msra.mxu0 0.0
        %5024 = vmatprep.subr.mxu0 0.0
        %5025 = vmatpush1.xpose.msra.mxu0 0.0
        %5026 = vmatprep.subr.mxu0 0.0
        %5027 = vmatpush1.xpose.msra.mxu0 0.0
        %5028 = vmatprep.subr.mxu0 0.0
        %5029 = vmatpush1.xpose.msra.mxu0 0.0
        %5030 = vmatprep.mubr.f32.mxu0 0.0
        %5031 = vmatmul.mubr.f32.gmra.mrb[0].mxu0 %v4962
        %v5032 = vpop.f32.mrb[0].mxu0
        %v5033 = vadd.f32 0.0, %v5032
        %v5034 = vpop.f32.mrb[0].mxu0
        %5035 = vdwg.mxu0
        %5036 = vrot.lane.b32.xlu0 %v4288, 112
        %v5037 = vpop.permute.xlu0 %5036
        %5038 = vrot.lane.b32.xlu0 %v4288, 80
        %v5039 = vpop.permute.xlu0 %5038
        %v5040 = vsel %vm2339, %v5037, 0
        %v5042 = vsel %vm2339, %v5039, 0
        %5044 = vmatprep.subr.mxu0 0.0
        %5045 = vmatpush1.xpose.msra.mxu0 %v5042
        %5046 = vmatprep.subr.mxu0 0.0
        %5047 = vmatpush1.xpose.msra.mxu0 0.0
        %5048 = vmatprep.subr.mxu0 0.0
        %5049 = vmatpush1.xpose.msra.mxu0 0.0
        %5050 = vmatprep.subr.mxu0 0.0
        %5051 = vmatpush1.xpose.msra.mxu0 0.0
        %5052 = vmatprep.subr.mxu0 0.0
        %5053 = vmatpush1.xpose.msra.mxu0 0.0
        %5054 = vmatprep.subr.mxu0 0.0
        %5055 = vmatpush1.xpose.msra.mxu0 0.0
        %5056 = vmatprep.subr.mxu0 0.0
        %5057 = vmatpush1.xpose.msra.mxu0 0.0
        %5058 = vmatprep.subr.mxu0 0.0
        %5059 = vmatpush1.xpose.msra.mxu0 0.0
        %5060 = vmatprep.subr.mxu0 0.0
        %5061 = vmatpush1.xpose.msra.mxu0 0.0
        %5062 = vmatprep.subr.mxu0 0.0
        %5063 = vmatpush1.xpose.msra.mxu0 0.0
        %5064 = vmatprep.subr.mxu0 0.0
        %5065 = vmatpush1.xpose.msra.mxu0 0.0
        %5066 = vmatprep.subr.mxu0 0.0
        %5067 = vmatpush1.xpose.msra.mxu0 0.0
        %5068 = vmatprep.subr.mxu0 0.0
        %5069 = vmatpush1.xpose.msra.mxu0 0.0
        %5070 = vmatprep.subr.mxu0 0.0
        %5071 = vmatpush1.xpose.msra.mxu0 0.0
        %5072 = vmatprep.subr.mxu0 0.0
        %5073 = vmatpush1.xpose.msra.mxu0 0.0
        %5074 = vmatprep.subr.mxu0 0.0
        %5075 = vmatpush1.xpose.msra.mxu0 0.0
        %5076 = vmatprep.subr.mxu0 0.0
        %5077 = vmatpush1.xpose.msra.mxu0 0.0
        %5078 = vmatprep.subr.mxu0 0.0
        %5079 = vmatpush1.xpose.msra.mxu0 0.0
        %5080 = vmatprep.subr.mxu0 0.0
        %5081 = vmatpush1.xpose.msra.mxu0 0.0
        %5082 = vmatprep.subr.mxu0 0.0
        %5083 = vmatpush1.xpose.msra.mxu0 0.0
        %5084 = vmatprep.subr.mxu0 0.0
        %5085 = vmatpush1.xpose.msra.mxu0 0.0
        %5086 = vmatprep.subr.mxu0 0.0
        %5087 = vmatpush1.xpose.msra.mxu0 0.0
        %5088 = vmatprep.subr.mxu0 0.0
        %5089 = vmatpush1.xpose.msra.mxu0 0.0
        %5090 = vmatprep.subr.mxu0 0.0
        %5091 = vmatpush1.xpose.msra.mxu0 0.0
        %5092 = vmatprep.subr.mxu0 0.0
        %5093 = vmatpush1.xpose.msra.mxu0 0.0
        %5094 = vmatprep.subr.mxu0 0.0
        %5095 = vmatpush1.xpose.msra.mxu0 0.0
        %5096 = vmatprep.subr.mxu0 0.0
        %5097 = vmatpush1.xpose.msra.mxu0 0.0
        %5098 = vmatprep.subr.mxu0 0.0
        %5099 = vmatpush1.xpose.msra.mxu0 0.0
        %5100 = vmatprep.subr.mxu0 0.0
        %5101 = vmatpush1.xpose.msra.mxu0 0.0
        %5102 = vmatprep.subr.mxu0 0.0
        %5103 = vmatpush1.xpose.msra.mxu0 0.0
        %5104 = vmatprep.subr.mxu0 0.0
        %5105 = vmatpush1.xpose.msra.mxu0 0.0
        %5106 = vmatprep.subr.mxu0 0.0
        %5107 = vmatpush1.xpose.msra.mxu0 0.0
        %5108 = vmatprep.mubr.f32.mxu0 0.0
        %5109 = vmatmul.mubr.f32.gmra.mrb[0].mxu0 %v5040
        %v5110 = vpop.f32.mrb[0].mxu0
        %v5111 = vadd.f32 0.0, %v5110
        %v5112 = vpop.f32.mrb[0].mxu0
        %5113 = vdwg.mxu0
        %v5114 = vmul.f32 %v5033, 0.35355338
        %v5115 = vmul.f32 %v5111, 0.35355338
        %v5116 = vadd.f32 %v5114, %v4207
        %v5117 = vadd.f32 %v5115, %v4207
        %v5118 = vsel %vm4445, %v5116, -inf
        %5119 = vmax.xlane.f32.xlu0 %v5118
        %v5120 = vpop.xlane.xlu0 %5119
        %v5121 = vsel %vm4445, %v5117, -inf
        %5122 = vmax.xlane.f32.xlu0 %v5121
        %v5123 = vpop.xlane.xlu0 %5122
        %v5124 = vsub.f32 %v5116, %v5120
        %v5125 = vsub.f32 %v5117, %v5123
        %v5126 = vmul.f32 %v5124, 1.442695
        %v5127 = vpow.pop %v5126
        %v5128 = vmul.f32 %v5125, 1.442695
        %v5129 = vpow.pop %v5128
        %v5130 = vsel %vm4445, %v5127, 0.0
        %5131 = vadd.xlane.f32.xlu0 %v5130
        %v5132 = vpop.xlane.xlu0 %5131
        %v5133 = vsel %vm4445, %v5129, 0.0
        %5134 = vadd.xlane.f32.xlu0 %v5133
        %v5135 = vpop.xlane.xlu0 %5134
        %v5136 = vrcp.pop %v5132
        %v5137 = vmul.f32 %v5127, %v5136
        %v5138 = vrcp.pop %v5135
        %v5139 = vmul.f32 %v5129, %v5138
        %5140 = vrot.lane.b32.xlu0 %v4284, 48
        %v5141 = vpop.permute.xlu0 %5140
        %v5143 = vsel %vm2166, %v5137, 0
        %v5145 = vsel %vm2169, %v5141, 0
        %5147 = vmatprep.subr.mxu0 0.0
        %5148 = vmatpush1.msra.mxu0 %v5145
        %5149 = vmatprep.subr.mxu0 0.0
        %5150 = vmatpush1.msra.mxu0 0.0
        %5151 = vmatprep.subr.mxu0 0.0
        %5152 = vmatpush1.msra.mxu0 0.0
        %5153 = vmatprep.subr.mxu0 0.0
        %5154 = vmatpush1.msra.mxu0 0.0
        %5155 = vmatprep.subr.mxu0 0.0
        %5156 = vmatpush1.msra.mxu0 0.0
        %5157 = vmatprep.subr.mxu0 0.0
        %5158 = vmatpush1.msra.mxu0 0.0
        %5159 = vmatprep.subr.mxu0 0.0
        %5160 = vmatpush1.msra.mxu0 0.0
        %5161 = vmatprep.subr.mxu0 0.0
        %5162 = vmatpush1.msra.mxu0 0.0
        %5163 = vmatprep.subr.mxu0 0.0
        %5164 = vmatpush1.msra.mxu0 0.0
        %5165 = vmatprep.subr.mxu0 0.0
        %5166 = vmatpush1.msra.mxu0 0.0
        %5167 = vmatprep.subr.mxu0 0.0
        %5168 = vmatpush1.msra.mxu0 0.0
        %5169 = vmatprep.subr.mxu0 0.0
        %5170 = vmatpush1.msra.mxu0 0.0
        %5171 = vmatprep.subr.mxu0 0.0
        %5172 = vmatpush1.msra.mxu0 0.0
        %5173 = vmatprep.subr.mxu0 0.0
        %5174 = vmatpush1.msra.mxu0 0.0
        %5175 = vmatprep.subr.mxu0 0.0
        %5176 = vmatpush1.msra.mxu0 0.0
        %5177 = vmatprep.subr.mxu0 0.0
        %5178 = vmatpush1.msra.mxu0 0.0
        %5179 = vmatprep.subr.mxu0 0.0
        %5180 = vmatpush1.msra.mxu0 0.0
        %5181 = vmatprep.subr.mxu0 0.0
        %5182 = vmatpush1.msra.mxu0 0.0
        %5183 = vmatprep.subr.mxu0 0.0
        %5184 = vmatpush1.msra.mxu0 0.0
        %5185 = vmatprep.subr.mxu0 0.0
        %5186 = vmatpush1.msra.mxu0 0.0
        %5187 = vmatprep.subr.mxu0 0.0
        %5188 = vmatpush1.msra.mxu0 0.0
        %5189 = vmatprep.subr.mxu0 0.0
        %5190 = vmatpush1.msra.mxu0 0.0
        %5191 = vmatprep.subr.mxu0 0.0
        %5192 = vmatpush1.msra.mxu0 0.0
        %5193 = vmatprep.subr.mxu0 0.0
        %5194 = vmatpush1.msra.mxu0 0.0
        %5195 = vmatprep.subr.mxu0 0.0
        %5196 = vmatpush1.msra.mxu0 0.0
        %5197 = vmatprep.subr.mxu0 0.0
        %5198 = vmatpush1.msra.mxu0 0.0
        %5199 = vmatprep.subr.mxu0 0.0
        %5200 = vmatpush1.msra.mxu0 0.0
        %5201 = vmatprep.subr.mxu0 0.0
        %5202 = vmatpush1.msra.mxu0 0.0
        %5203 = vmatprep.subr.mxu0 0.0
        %5204 = vmatpush1.msra.mxu0 0.0
        %5205 = vmatprep.subr.mxu0 0.0
        %5206 = vmatpush1.msra.mxu0 0.0
        %5207 = vmatprep.subr.mxu0 0.0
        %5208 = vmatpush1.msra.mxu0 0.0
        %5209 = vmatprep.subr.mxu0 0.0
        %5210 = vmatpush1.msra.mxu0 0.0
        %5211 = vmatprep.mubr.f32.mxu0 0.0
        %5212 = vmatmul.mubr.f32.gmra.mrb[0].mxu0 %v5143
        %v5213 = vpop.f32.mrb[0].mxu0
        %v5214 = vadd.f32 0.0, %v5213
        %v5215 = vpop.f32.mrb[0].mxu0
        %5216 = vdwg.mxu0
        %5217 = vrot.lane.b32.xlu0 %v4288, 48
        %v5218 = vpop.permute.xlu0 %5217
        %v5220 = vsel %vm2166, %v5139, 0
        %v5222 = vsel %vm2169, %v5218, 0
        %5224 = vmatprep.subr.mxu0 0.0
        %5225 = vmatpush1.msra.mxu0 %v5222
        %5226 = vmatprep.subr.mxu0 0.0
        %5227 = vmatpush1.msra.mxu0 0.0
        %5228 = vmatprep.subr.mxu0 0.0
        %5229 = vmatpush1.msra.mxu0 0.0
        %5230 = vmatprep.subr.mxu0 0.0
        %5231 = vmatpush1.msra.mxu0 0.0
        %5232 = vmatprep.subr.mxu0 0.0
        %5233 = vmatpush1.msra.mxu0 0.0
        %5234 = vmatprep.subr.mxu0 0.0
        %5235 = vmatpush1.msra.mxu0 0.0
        %5236 = vmatprep.subr.mxu0 0.0
        %5237 = vmatpush1.msra.mxu0 0.0
        %5238 = vmatprep.subr.mxu0 0.0
        %5239 = vmatpush1.msra.mxu0 0.0
        %5240 = vmatprep.subr.mxu0 0.0
        %5241 = vmatpush1.msra.mxu0 0.0
        %5242 = vmatprep.subr.mxu0 0.0
        %5243 = vmatpush1.msra.mxu0 0.0
        %5244 = vmatprep.subr.mxu0 0.0
        %5245 = vmatpush1.msra.mxu0 0.0
        %5246 = vmatprep.subr.mxu0 0.0
        %5247 = vmatpush1.msra.mxu0 0.0
        %5248 = vmatprep.subr.mxu0 0.0
        %5249 = vmatpush1.msra.mxu0 0.0
        %5250 = vmatprep.subr.mxu0 0.0
        %5251 = vmatpush1.msra.mxu0 0.0
        %5252 = vmatprep.subr.mxu0 0.0
        %5253 = vmatpush1.msra.mxu0 0.0
        %5254 = vmatprep.subr.mxu0 0.0
        %5255 = vmatpush1.msra.mxu0 0.0
        %5256 = vmatprep.subr.mxu0 0.0
        %5257 = vmatpush1.msra.mxu0 0.0
        %5258 = vmatprep.subr.mxu0 0.0
        %5259 = vmatpush1.msra.mxu0 0.0
        %5260 = vmatprep.subr.mxu0 0.0
        %5261 = vmatpush1.msra.mxu0 0.0
        %5262 = vmatprep.subr.mxu0 0.0
        %5263 = vmatpush1.msra.mxu0 0.0
        %5264 = vmatprep.subr.mxu0 0.0
        %5265 = vmatpush1.msra.mxu0 0.0
        %5266 = vmatprep.subr.mxu0 0.0
        %5267 = vmatpush1.msra.mxu0 0.0
        %5268 = vmatprep.subr.mxu0 0.0
        %5269 = vmatpush1.msra.mxu0 0.0
        %5270 = vmatprep.subr.mxu0 0.0
        %5271 = vmatpush1.msra.mxu0 0.0
        %5272 = vmatprep.subr.mxu0 0.0
        %5273 = vmatpush1.msra.mxu0 0.0
        %5274 = vmatprep.subr.mxu0 0.0
        %5275 = vmatpush1.msra.mxu0 0.0
        %5276 = vmatprep.subr.mxu0 0.0
        %5277 = vmatpush1.msra.mxu0 0.0
        %5278 = vmatprep.subr.mxu0 0.0
        %5279 = vmatpush1.msra.mxu0 0.0
        %5280 = vmatprep.subr.mxu0 0.0
        %5281 = vmatpush1.msra.mxu0 0.0
        %5282 = vmatprep.subr.mxu0 0.0
        %5283 = vmatpush1.msra.mxu0 0.0
        %5284 = vmatprep.subr.mxu0 0.0
        %5285 = vmatpush1.msra.mxu0 0.0
        %5286 = vmatprep.subr.mxu0 0.0
        %5287 = vmatpush1.msra.mxu0 0.0
        %5288 = vmatprep.mubr.f32.mxu0 0.0
        %5289 = vmatmul.mubr.f32.gmra.mrb[0].mxu0 %v5220
        %v5290 = vpop.f32.mrb[0].mxu0
        %v5291 = vadd.f32 0.0, %v5290
        %v5292 = vpop.f32.mrb[0].mxu0
        %5293 = vdwg.mxu0
        %5294 = vrot.lane.b32.xlu0 %v4284, 104
        %v5295 = vpop.permute.xlu0 %5294
        %5296 = vrot.lane.b32.xlu0 %v4284, 72
        %v5297 = vpop.permute.xlu0 %5296
        %v5298 = vsel %vm2339, %v5295, 0
        %v5300 = vsel %vm2339, %v5297, 0
        %5302 = vmatprep.subr.mxu0 0.0
        %5303 = vmatpush1.xpose.msra.mxu0 %v5300
        %5304 = vmatprep.subr.mxu0 0.0
        %5305 = vmatpush1.xpose.msra.mxu0 0.0
        %5306 = vmatprep.subr.mxu0 0.0
        %5307 = vmatpush1.xpose.msra.mxu0 0.0
        %5308 = vmatprep.subr.mxu0 0.0
        %5309 = vmatpush1.xpose.msra.mxu0 0.0
        %5310 = vmatprep.subr.mxu0 0.0
        %5311 = vmatpush1.xpose.msra.mxu0 0.0
        %5312 = vmatprep.subr.mxu0 0.0
        %5313 = vmatpush1.xpose.msra.mxu0 0.0
        %5314 = vmatprep.subr.mxu0 0.0
        %5315 = vmatpush1.xpose.msra.mxu0 0.0
        %5316 = vmatprep.subr.mxu0 0.0
        %5317 = vmatpush1.xpose.msra.mxu0 0.0
        %5318 = vmatprep.subr.mxu0 0.0
        %5319 = vmatpush1.xpose.msra.mxu0 0.0
        %5320 = vmatprep.subr.mxu0 0.0
        %5321 = vmatpush1.xpose.msra.mxu0 0.0
        %5322 = vmatprep.subr.mxu0 0.0
        %5323 = vmatpush1.xpose.msra.mxu0 0.0
        %5324 = vmatprep.subr.mxu0 0.0
        %5325 = vmatpush1.xpose.msra.mxu0 0.0
        %5326 = vmatprep.subr.mxu0 0.0
        %5327 = vmatpush1.xpose.msra.mxu0 0.0
        %5328 = vmatprep.subr.mxu0 0.0
        %5329 = vmatpush1.xpose.msra.mxu0 0.0
        %5330 = vmatprep.subr.mxu0 0.0
        %5331 = vmatpush1.xpose.msra.mxu0 0.0
        %5332 = vmatprep.subr.mxu0 0.0
        %5333 = vmatpush1.xpose.msra.mxu0 0.0
        %5334 = vmatprep.subr.mxu0 0.0
        %5335 = vmatpush1.xpose.msra.mxu0 0.0
        %5336 = vmatprep.subr.mxu0 0.0
        %5337 = vmatpush1.xpose.msra.mxu0 0.0
        %5338 = vmatprep.subr.mxu0 0.0
        %5339 = vmatpush1.xpose.msra.mxu0 0.0
        %5340 = vmatprep.subr.mxu0 0.0
        %5341 = vmatpush1.xpose.msra.mxu0 0.0
        %5342 = vmatprep.subr.mxu0 0.0
        %5343 = vmatpush1.xpose.msra.mxu0 0.0
        %5344 = vmatprep.subr.mxu0 0.0
        %5345 = vmatpush1.xpose.msra.mxu0 0.0
        %5346 = vmatprep.subr.mxu0 0.0
        %5347 = vmatpush1.xpose.msra.mxu0 0.0
        %5348 = vmatprep.subr.mxu0 0.0
        %5349 = vmatpush1.xpose.msra.mxu0 0.0
        %5350 = vmatprep.subr.mxu0 0.0
        %5351 = vmatpush1.xpose.msra.mxu0 0.0
        %5352 = vmatprep.subr.mxu0 0.0
        %5353 = vmatpush1.xpose.msra.mxu0 0.0
        %5354 = vmatprep.subr.mxu0 0.0
        %5355 = vmatpush1.xpose.msra.mxu0 0.0
        %5356 = vmatprep.subr.mxu0 0.0
        %5357 = vmatpush1.xpose.msra.mxu0 0.0
        %5358 = vmatprep.subr.mxu0 0.0
        %5359 = vmatpush1.xpose.msra.mxu0 0.0
        %5360 = vmatprep.subr.mxu0 0.0
        %5361 = vmatpush1.xpose.msra.mxu0 0.0
        %5362 = vmatprep.subr.mxu0 0.0
        %5363 = vmatpush1.xpose.msra.mxu0 0.0
        %5364 = vmatprep.subr.mxu0 0.0
        %5365 = vmatpush1.xpose.msra.mxu0 0.0
        %5366 = vmatprep.mubr.f32.mxu0 0.0
        %5367 = vmatmul.mubr.f32.gmra.mrb[0].mxu0 %v5298
        %v5368 = vpop.f32.mrb[0].mxu0
        %v5369 = vadd.f32 0.0, %v5368
        %v5370 = vpop.f32.mrb[0].mxu0
        %5371 = vdwg.mxu0
        %5372 = vrot.lane.b32.xlu0 %v4288, 104
        %v5373 = vpop.permute.xlu0 %5372
        %5374 = vrot.lane.b32.xlu0 %v4288, 72
        %v5375 = vpop.permute.xlu0 %5374
        %v5376 = vsel %vm2339, %v5373, 0
        %v5378 = vsel %vm2339, %v5375, 0
        %5380 = vmatprep.subr.mxu0 0.0
        %5381 = vmatpush1.xpose.msra.mxu0 %v5378
        %5382 = vmatprep.subr.mxu0 0.0
        %5383 = vmatpush1.xpose.msra.mxu0 0.0
        %5384 = vmatprep.subr.mxu0 0.0
        %5385 = vmatpush1.xpose.msra.mxu0 0.0
        %5386 = vmatprep.subr.mxu0 0.0
        %5387 = vmatpush1.xpose.msra.mxu0 0.0
        %5388 = vmatprep.subr.mxu0 0.0
        %5389 = vmatpush1.xpose.msra.mxu0 0.0
        %5390 = vmatprep.subr.mxu0 0.0
        %5391 = vmatpush1.xpose.msra.mxu0 0.0
        %5392 = vmatprep.subr.mxu0 0.0
        %5393 = vmatpush1.xpose.msra.mxu0 0.0
        %5394 = vmatprep.subr.mxu0 0.0
        %5395 = vmatpush1.xpose.msra.mxu0 0.0
        %5396 = vmatprep.subr.mxu0 0.0
        %5397 = vmatpush1.xpose.msra.mxu0 0.0
        %5398 = vmatprep.subr.mxu0 0.0
        %5399 = vmatpush1.xpose.msra.mxu0 0.0
        %5400 = vmatprep.subr.mxu0 0.0
        %5401 = vmatpush1.xpose.msra.mxu0 0.0
        %5402 = vmatprep.subr.mxu0 0.0
        %5403 = vmatpush1.xpose.msra.mxu0 0.0
        %5404 = vmatprep.subr.mxu0 0.0
        %5405 = vmatpush1.xpose.msra.mxu0 0.0
        %5406 = vmatprep.subr.mxu0 0.0
        %5407 = vmatpush1.xpose.msra.mxu0 0.0
        %5408 = vmatprep.subr.mxu0 0.0
        %5409 = vmatpush1.xpose.msra.mxu0 0.0
        %5410 = vmatprep.subr.mxu0 0.0
        %5411 = vmatpush1.xpose.msra.mxu0 0.0
        %5412 = vmatprep.subr.mxu0 0.0
        %5413 = vmatpush1.xpose.msra.mxu0 0.0
        %5414 = vmatprep.subr.mxu0 0.0
        %5415 = vmatpush1.xpose.msra.mxu0 0.0
        %5416 = vmatprep.subr.mxu0 0.0
        %5417 = vmatpush1.xpose.msra.mxu0 0.0
        %5418 = vmatprep.subr.mxu0 0.0
        %5419 = vmatpush1.xpose.msra.mxu0 0.0
        %5420 = vmatprep.subr.mxu0 0.0
        %5421 = vmatpush1.xpose.msra.mxu0 0.0
        %5422 = vmatprep.subr.mxu0 0.0
        %5423 = vmatpush1.xpose.msra.mxu0 0.0
        %5424 = vmatprep.subr.mxu0 0.0
        %5425 = vmatpush1.xpose.msra.mxu0 0.0
        %5426 = vmatprep.subr.mxu0 0.0
        %5427 = vmatpush1.xpose.msra.mxu0 0.0
        %5428 = vmatprep.subr.mxu0 0.0
        %5429 = vmatpush1.xpose.msra.mxu0 0.0
        %5430 = vmatprep.subr.mxu0 0.0
        %5431 = vmatpush1.xpose.msra.mxu0 0.0
        %5432 = vmatprep.subr.mxu0 0.0
        %5433 = vmatpush1.xpose.msra.mxu0 0.0
        %5434 = vmatprep.subr.mxu0 0.0
        %5435 = vmatpush1.xpose.msra.mxu0 0.0
        %5436 = vmatprep.subr.mxu0 0.0
        %5437 = vmatpush1.xpose.msra.mxu0 0.0
        %5438 = vmatprep.subr.mxu0 0.0
        %5439 = vmatpush1.xpose.msra.mxu0 0.0
        %5440 = vmatprep.subr.mxu0 0.0
        %5441 = vmatpush1.xpose.msra.mxu0 0.0
        %5442 = vmatprep.subr.mxu0 0.0
        %5443 = vmatpush1.xpose.msra.mxu0 0.0
        %5444 = vmatprep.mubr.f32.mxu0 0.0
        %5445 = vmatmul.mubr.f32.gmra.mrb[0].mxu0 %v5376
        %v5446 = vpop.f32.mrb[0].mxu0
        %v5447 = vadd.f32 0.0, %v5446
        %v5448 = vpop.f32.mrb[0].mxu0
        %5449 = vdwg.mxu0
        %v5450 = vmul.f32 %v5369, 0.35355338
        %v5451 = vmul.f32 %v5447, 0.35355338
        %v5452 = vadd.f32 %v5450, %v4207
        %v5453 = vadd.f32 %v5451, %v4207
        %v5454 = vsel %vm4445, %v5452, -inf
        %5455 = vmax.xlane.f32.xlu0 %v5454
        %v5456 = vpop.xlane.xlu0 %5455
        %v5457 = vsel %vm4445, %v5453, -inf
        %5458 = vmax.xlane.f32.xlu0 %v5457
        %v5459 = vpop.xlane.xlu0 %5458
        %v5460 = vsub.f32 %v5452, %v5456
        %v5461 = vsub.f32 %v5453, %v5459
        %v5462 = vmul.f32 %v5460, 1.442695
        %v5463 = vpow.pop %v5462
        %v5464 = vmul.f32 %v5461, 1.442695
        %v5465 = vpow.pop %v5464
        %v5466 = vsel %vm4445, %v5463, 0.0
        %5467 = vadd.xlane.f32.xlu0 %v5466
        %v5468 = vpop.xlane.xlu0 %5467
        %v5469 = vsel %vm4445, %v5465, 0.0
        %5470 = vadd.xlane.f32.xlu0 %v5469
        %v5471 = vpop.xlane.xlu0 %5470
        %v5472 = vrcp.pop %v5468
        %v5473 = vmul.f32 %v5463, %v5472
        %v5474 = vrcp.pop %v5471
        %v5475 = vmul.f32 %v5465, %v5474
        %5476 = vrot.lane.b32.xlu0 %v4284, 40
        %v5477 = vpop.permute.xlu0 %5476
        %v5479 = vsel %vm2166, %v5473, 0
        %v5481 = vsel %vm2169, %v5477, 0
        %5483 = vmatprep.subr.mxu0 0.0
        %5484 = vmatpush1.msra.mxu0 %v5481
        %5485 = vmatprep.subr.mxu0 0.0
        %5486 = vmatpush1.msra.mxu0 0.0
        %5487 = vmatprep.subr.mxu0 0.0
        %5488 = vmatpush1.msra.mxu0 0.0
        %5489 = vmatprep.subr.mxu0 0.0
        %5490 = vmatpush1.msra.mxu0 0.0
        %5491 = vmatprep.subr.mxu0 0.0
        %5492 = vmatpush1.msra.mxu0 0.0
        %5493 = vmatprep.subr.mxu0 0.0
        %5494 = vmatpush1.msra.mxu0 0.0
        %5495 = vmatprep.subr.mxu0 0.0
        %5496 = vmatpush1.msra.mxu0 0.0
        %5497 = vmatprep.subr.mxu0 0.0
        %5498 = vmatpush1.msra.mxu0 0.0
        %5499 = vmatprep.subr.mxu0 0.0
        %5500 = vmatpush1.msra.mxu0 0.0
        %5501 = vmatprep.subr.mxu0 0.0
        %5502 = vmatpush1.msra.mxu0 0.0
        %5503 = vmatprep.subr.mxu0 0.0
        %5504 = vmatpush1.msra.mxu0 0.0
        %5505 = vmatprep.subr.mxu0 0.0
        %5506 = vmatpush1.msra.mxu0 0.0
        %5507 = vmatprep.subr.mxu0 0.0
        %5508 = vmatpush1.msra.mxu0 0.0
        %5509 = vmatprep.subr.mxu0 0.0
        %5510 = vmatpush1.msra.mxu0 0.0
        %5511 = vmatprep.subr.mxu0 0.0
        %5512 = vmatpush1.msra.mxu0 0.0
        %5513 = vmatprep.subr.mxu0 0.0
        %5514 = vmatpush1.msra.mxu0 0.0
        %5515 = vmatprep.subr.mxu0 0.0
        %5516 = vmatpush1.msra.mxu0 0.0
        %5517 = vmatprep.subr.mxu0 0.0
        %5518 = vmatpush1.msra.mxu0 0.0
        %5519 = vmatprep.subr.mxu0 0.0
        %5520 = vmatpush1.msra.mxu0 0.0
        %5521 = vmatprep.subr.mxu0 0.0
        %5522 = vmatpush1.msra.mxu0 0.0
        %5523 = vmatprep.subr.mxu0 0.0
        %5524 = vmatpush1.msra.mxu0 0.0
        %5525 = vmatprep.subr.mxu0 0.0
        %5526 = vmatpush1.msra.mxu0 0.0
        %5527 = vmatprep.subr.mxu0 0.0
        %5528 = vmatpush1.msra.mxu0 0.0
        %5529 = vmatprep.subr.mxu0 0.0
        %5530 = vmatpush1.msra.mxu0 0.0
        %5531 = vmatprep.subr.mxu0 0.0
        %5532 = vmatpush1.msra.mxu0 0.0
        %5533 = vmatprep.subr.mxu0 0.0
        %5534 = vmatpush1.msra.mxu0 0.0
        %5535 = vmatprep.subr.mxu0 0.0
        %5536 = vmatpush1.msra.mxu0 0.0
        %5537 = vmatprep.subr.mxu0 0.0
        %5538 = vmatpush1.msra.mxu0 0.0
        %5539 = vmatprep.subr.mxu0 0.0
        %5540 = vmatpush1.msra.mxu0 0.0
        %5541 = vmatprep.subr.mxu0 0.0
        %5542 = vmatpush1.msra.mxu0 0.0
        %5543 = vmatprep.subr.mxu0 0.0
        %5544 = vmatpush1.msra.mxu0 0.0
        %5545 = vmatprep.subr.mxu0 0.0
        %5546 = vmatpush1.msra.mxu0 0.0
        %5547 = vmatprep.mubr.f32.mxu0 0.0
        %5548 = vmatmul.mubr.f32.gmra.mrb[0].mxu0 %v5479
        %v5549 = vpop.f32.mrb[0].mxu0
        %v5550 = vadd.f32 0.0, %v5549
        %v5551 = vpop.f32.mrb[0].mxu0
        %5552 = vdwg.mxu0
        %5553 = vrot.lane.b32.xlu0 %v4288, 40
        %v5554 = vpop.permute.xlu0 %5553
        %v5556 = vsel %vm2166, %v5475, 0
        %v5558 = vsel %vm2169, %v5554, 0
        %5560 = vmatprep.subr.mxu0 0.0
        %5561 = vmatpush1.msra.mxu0 %v5558
        %5562 = vmatprep.subr.mxu0 0.0
        %5563 = vmatpush1.msra.mxu0 0.0
        %5564 = vmatprep.subr.mxu0 0.0
        %5565 = vmatpush1.msra.mxu0 0.0
        %5566 = vmatprep.subr.mxu0 0.0
        %5567 = vmatpush1.msra.mxu0 0.0
        %5568 = vmatprep.subr.mxu0 0.0
        %5569 = vmatpush1.msra.mxu0 0.0
        %5570 = vmatprep.subr.mxu0 0.0
        %5571 = vmatpush1.msra.mxu0 0.0
        %5572 = vmatprep.subr.mxu0 0.0
        %5573 = vmatpush1.msra.mxu0 0.0
        %5574 = vmatprep.subr.mxu0 0.0
        %5575 = vmatpush1.msra.mxu0 0.0
        %5576 = vmatprep.subr.mxu0 0.0
        %5577 = vmatpush1.msra.mxu0 0.0
        %5578 = vmatprep.subr.mxu0 0.0
        %5579 = vmatpush1.msra.mxu0 0.0
        %5580 = vmatprep.subr.mxu0 0.0
        %5581 = vmatpush1.msra.mxu0 0.0
        %5582 = vmatprep.subr.mxu0 0.0
        %5583 = vmatpush1.msra.mxu0 0.0
        %5584 = vmatprep.subr.mxu0 0.0
        %5585 = vmatpush1.msra.mxu0 0.0
        %5586 = vmatprep.subr.mxu0 0.0
        %5587 = vmatpush1.msra.mxu0 0.0
        %5588 = vmatprep.subr.mxu0 0.0
        %5589 = vmatpush1.msra.mxu0 0.0
        %5590 = vmatprep.subr.mxu0 0.0
        %5591 = vmatpush1.msra.mxu0 0.0
        %5592 = vmatprep.subr.mxu0 0.0
        %5593 = vmatpush1.msra.mxu0 0.0
        %5594 = vmatprep.subr.mxu0 0.0
        %5595 = vmatpush1.msra.mxu0 0.0
        %5596 = vmatprep.subr.mxu0 0.0
        %5597 = vmatpush1.msra.mxu0 0.0
        %5598 = vmatprep.subr.mxu0 0.0
        %5599 = vmatpush1.msra.mxu0 0.0
        %5600 = vmatprep.subr.mxu0 0.0
        %5601 = vmatpush1.msra.mxu0 0.0
        %5602 = vmatprep.subr.mxu0 0.0
        %5603 = vmatpush1.msra.mxu0 0.0
        %5604 = vmatprep.subr.mxu0 0.0
        %5605 = vmatpush1.msra.mxu0 0.0
        %5606 = vmatprep.subr.mxu0 0.0
        %5607 = vmatpush1.msra.mxu0 0.0
        %5608 = vmatprep.subr.mxu0 0.0
        %5609 = vmatpush1.msra.mxu0 0.0
        %5610 = vmatprep.subr.mxu0 0.0
        %5611 = vmatpush1.msra.mxu0 0.0
        %5612 = vmatprep.subr.mxu0 0.0
        %5613 = vmatpush1.msra.mxu0 0.0
        %5614 = vmatprep.subr.mxu0 0.0
        %5615 = vmatpush1.msra.mxu0 0.0
        %5616 = vmatprep.subr.mxu0 0.0
        %5617 = vmatpush1.msra.mxu0 0.0
        %5618 = vmatprep.subr.mxu0 0.0
        %5619 = vmatpush1.msra.mxu0 0.0
        %5620 = vmatprep.subr.mxu0 0.0
        %5621 = vmatpush1.msra.mxu0 0.0
        %5622 = vmatprep.subr.mxu0 0.0
        %5623 = vmatpush1.msra.mxu0 0.0
        %5624 = vmatprep.mubr.f32.mxu0 0.0
        %5625 = vmatmul.mubr.f32.gmra.mrb[0].mxu0 %v5556
        %v5626 = vpop.f32.mrb[0].mxu0
        %v5627 = vadd.f32 0.0, %v5626
        %v5628 = vpop.f32.mrb[0].mxu0
        %5629 = vdwg.mxu0
        %v5632 = vcombine.low %v4542, %v4619
        %v5636 = vcombine.low %v4878, %v4955
        %5637 = vrot.lane.b32.xlu0 %v5636, 8
        %v5638 = vpop.permute.xlu0 %5637
        %v5642 = vcombine.low %v5214, %v5291
        %5643 = vrot.lane.b32.xlu0 %v5642, 16
        %v5644 = vpop.permute.xlu0 %5643
        %v5648 = vcombine.low %v5550, %v5627
        %5649 = vrot.lane.b32.xlu0 %v5648, 24
        %v5650 = vpop.permute.xlu0 %5649
        %v5652 = vsel %vm2339, %v5632, %v5638
        %v5653 = vsel %vm3689, %v5652, %v5644
        %v5654 = vsel %vm3692, %v5653, %v5650
        %v5656 = vlaneseq
        %v5657 = vshrl.u32 %v5656, 7
        %v5658 = vsub.s32 0, %v5657
        %v5659 = vrot.slane %v2046, %v5658
        %v5662 = vsel %vm2254, %v5654, 0
        %5664 = vmatprep.subr.mxu0 0.0
        %5665 = vmatpush1.msra.mxu0 %v2047
        %5666 = vmatprep.subr.mxu0 0.0
        %5667 = vmatpush1.msra.mxu0 %v2048
        %5668 = vmatprep.subr.mxu0 0.0
        %5669 = vmatpush1.msra.mxu0 %v2049
        %5670 = vmatprep.subr.mxu0 0.0
        %5671 = vmatpush1.msra.mxu0 %v2050
        %5672 = vmatprep.subr.mxu0 0.0
        %5673 = vmatpush1.msra.mxu0 0.0
        %5674 = vmatprep.subr.mxu0 0.0
        %5675 = vmatpush1.msra.mxu0 0.0
        %5676 = vmatprep.subr.mxu0 0.0
        %5677 = vmatpush1.msra.mxu0 0.0
        %5678 = vmatprep.subr.mxu0 0.0
        %5679 = vmatpush1.msra.mxu0 0.0
        %5680 = vmatprep.subr.mxu0 0.0
        %5681 = vmatpush1.msra.mxu0 0.0
        %5682 = vmatprep.subr.mxu0 0.0
        %5683 = vmatpush1.msra.mxu0 0.0
        %5684 = vmatprep.subr.mxu0 0.0
        %5685 = vmatpush1.msra.mxu0 0.0
        %5686 = vmatprep.subr.mxu0 0.0
        %5687 = vmatpush1.msra.mxu0 0.0
        %5688 = vmatprep.subr.mxu0 0.0
        %5689 = vmatpush1.msra.mxu0 0.0
        %5690 = vmatprep.subr.mxu0 0.0
        %5691 = vmatpush1.msra.mxu0 0.0
        %5692 = vmatprep.subr.mxu0 0.0
        %5693 = vmatpush1.msra.mxu0 0.0
        %5694 = vmatprep.subr.mxu0 0.0
        %5695 = vmatpush1.msra.mxu0 0.0
        %5696 = vmatprep.subr.mxu0 0.0
        %5697 = vmatpush1.msra.mxu0 0.0
        %5698 = vmatprep.subr.mxu0 0.0
        %5699 = vmatpush1.msra.mxu0 0.0
        %5700 = vmatprep.subr.mxu0 0.0
        %5701 = vmatpush1.msra.mxu0 0.0
        %5702 = vmatprep.subr.mxu0 0.0
        %5703 = vmatpush1.msra.mxu0 0.0
        %5704 = vmatprep.subr.mxu0 0.0
        %5705 = vmatpush1.msra.mxu0 0.0
        %5706 = vmatprep.subr.mxu0 0.0
        %5707 = vmatpush1.msra.mxu0 0.0
        %5708 = vmatprep.subr.mxu0 0.0
        %5709 = vmatpush1.msra.mxu0 0.0
        %5710 = vmatprep.subr.mxu0 0.0
        %5711 = vmatpush1.msra.mxu0 0.0
        %5712 = vmatprep.subr.mxu0 0.0
        %5713 = vmatpush1.msra.mxu0 0.0
        %5714 = vmatprep.subr.mxu0 0.0
        %5715 = vmatpush1.msra.mxu0 0.0
        %5716 = vmatprep.subr.mxu0 0.0
        %5717 = vmatpush1.msra.mxu0 0.0
        %5718 = vmatprep.subr.mxu0 0.0
        %5719 = vmatpush1.msra.mxu0 0.0
        %5720 = vmatprep.subr.mxu0 0.0
        %5721 = vmatpush1.msra.mxu0 0.0
        %5722 = vmatprep.subr.mxu0 0.0
        %5723 = vmatpush1.msra.mxu0 0.0
        %5724 = vmatprep.subr.mxu0 0.0
        %5725 = vmatpush1.msra.mxu0 0.0
        %5726 = vmatprep.subr.mxu0 0.0
        %5727 = vmatpush1.msra.mxu0 0.0
        %5728 = vmatprep.mubr.f32.mxu0 0.0
        %5729 = vmatmul.mubr.f32.gmra.mrb[0].mxu0 %v5662
        %v5730 = vpop.f32.mrb[0].mxu0
        %v5731 = vadd.f32 %v5659, %v5730
        %v5732 = vpop.f32.mrb[0].mxu0
        %5733 = vdwg.mxu0
        %v5734 = vadd.f32 %v2247, %v5731
        %v5735 = vsel %vm2254, %v5734, 0.0
        %5736 = vadd.xlane.f32.xlu0 %v5735
        %v5737 = vpop.xlane.xlu0 %5736
        %v5738 = vmul.f32 %v5737, %v3790
        %v5739 = vsub.f32 %v5734, %v5738
        %v5740 = vmul.f32 %v5739, %v5739
        %v5741 = vsel %vm2254, %v5740, 0.0
        %5742 = vadd.xlane.f32.xlu0 %v5741
        %v5743 = vpop.xlane.xlu0 %5742
        %v5744 = vmul.f32 %v5743, %v3790
        %v5745 = vadd.f32 %v5744, 1e-05
        %v5746 = vrsqrt.pop %v5745
        %v5747 = vmul.f32 %v5739, %v5746
        %v5749 = vlaneseq
        %v5750 = vshrl.u32 %v5749, 7
        %v5751 = vsub.s32 0, %v5750
        %v5752 = vrot.slane %v2041, %v5751
        %v5754 = vmul.f32 %v5747, %v5752
        %v5756 = vlaneseq
        %v5757 = vshrl.u32 %v5756, 7
        %v5758 = vsub.s32 0, %v5757
        %v5759 = vrot.slane %v2040, %v5758
        %v5761 = vadd.f32 %v5754, %v5759
        %v5763 = vlaneseq
        %v5764 = vshrl.u32 %v5763, 7
        %v5765 = vsub.s32 0, %v5764
        %v5766 = vrot.slane %v2021, %v5765
        %v5769 = vsel %vm2254, %v5761, 0
        %5771 = vmatprep.subr.mxu0 0.0
        %5772 = vmatpush1.msra.mxu0 %v2022
        %5773 = vmatprep.subr.mxu0 0.0
        %5774 = vmatpush1.msra.mxu0 %v2023
        %5775 = vmatprep.subr.mxu0 0.0
        %5776 = vmatpush1.msra.mxu0 %v2024
        %5777 = vmatprep.subr.mxu0 0.0
        %5778 = vmatpush1.msra.mxu0 %v2025
        %5779 = vmatprep.subr.mxu0 0.0
        %5780 = vmatpush1.msra.mxu0 0.0
        %5781 = vmatprep.subr.mxu0 0.0
        %5782 = vmatpush1.msra.mxu0 0.0
        %5783 = vmatprep.subr.mxu0 0.0
        %5784 = vmatpush1.msra.mxu0 0.0
        %5785 = vmatprep.subr.mxu0 0.0
        %5786 = vmatpush1.msra.mxu0 0.0
        %5787 = vmatprep.subr.mxu0 0.0
        %5788 = vmatpush1.msra.mxu0 0.0
        %5789 = vmatprep.subr.mxu0 0.0
        %5790 = vmatpush1.msra.mxu0 0.0
        %5791 = vmatprep.subr.mxu0 0.0
        %5792 = vmatpush1.msra.mxu0 0.0
        %5793 = vmatprep.subr.mxu0 0.0
        %5794 = vmatpush1.msra.mxu0 0.0
        %5795 = vmatprep.subr.mxu0 0.0
        %5796 = vmatpush1.msra.mxu0 0.0
        %5797 = vmatprep.subr.mxu0 0.0
        %5798 = vmatpush1.msra.mxu0 0.0
        %5799 = vmatprep.subr.mxu0 0.0
        %5800 = vmatpush1.msra.mxu0 0.0
        %5801 = vmatprep.subr.mxu0 0.0
        %5802 = vmatpush1.msra.mxu0 0.0
        %5803 = vmatprep.subr.mxu0 0.0
        %5804 = vmatpush1.msra.mxu0 0.0
        %5805 = vmatprep.subr.mxu0 0.0
        %5806 = vmatpush1.msra.mxu0 0.0
        %5807 = vmatprep.subr.mxu0 0.0
        %5808 = vmatpush1.msra.mxu0 0.0
        %5809 = vmatprep.subr.mxu0 0.0
        %5810 = vmatpush1.msra.mxu0 0.0
        %5811 = vmatprep.subr.mxu0 0.0
        %5812 = vmatpush1.msra.mxu0 0.0
        %5813 = vmatprep.subr.mxu0 0.0
        %5814 = vmatpush1.msra.mxu0 0.0
        %5815 = vmatprep.subr.mxu0 0.0
        %5816 = vmatpush1.msra.mxu0 0.0
        %5817 = vmatprep.subr.mxu0 0.0
        %5818 = vmatpush1.msra.mxu0 0.0
        %5819 = vmatprep.subr.mxu0 0.0
        %5820 = vmatpush1.msra.mxu0 0.0
        %5821 = vmatprep.subr.mxu0 0.0
        %5822 = vmatpush1.msra.mxu0 0.0
        %5823 = vmatprep.subr.mxu0 0.0
        %5824 = vmatpush1.msra.mxu0 0.0
        %5825 = vmatprep.subr.mxu0 0.0
        %5826 = vmatpush1.msra.mxu0 0.0
        %5827 = vmatprep.subr.mxu0 0.0
        %5828 = vmatpush1.msra.mxu0 0.0
        %5829 = vmatprep.subr.mxu0 0.0
        %5830 = vmatpush1.msra.mxu0 0.0
        %5831 = vmatprep.subr.mxu0 0.0
        %5832 = vmatpush1.msra.mxu0 0.0
        %5833 = vmatprep.subr.mxu0 0.0
        %5834 = vmatpush1.msra.mxu0 0.0
        %5835 = vmatprep.mubr.f32.mxu0 0.0
        %5836 = vmatmul.mubr.f32.gmra.mrb[0].mxu0 %v5769
        %v5837 = vpop.f32.mrb[0].mxu0
        %v5838 = vadd.f32 %v5766, %v5837
        %v5839 = vpop.f32.mrb[0].mxu0
        %5840 = vdwg.mxu0
        %v5842 = vlaneseq
        %v5843 = vshrl.u32 %v5842, 7
        %v5844 = vsub.s32 0, %v5843
        %v5845 = vrot.slane %v2011, %v5844
        %v5848 = vsel %vm2254, %v4199, 0
        %5850 = vmatprep.subr.mxu0 0.0
        %5851 = vmatpush1.msra.mxu0 %v2012
        %5852 = vmatprep.subr.mxu0 0.0
        %5853 = vmatpush1.msra.mxu0 %v2013
        %5854 = vmatprep.subr.mxu0 0.0
        %5855 = vmatpush1.msra.mxu0 %v2014
        %5856 = vmatprep.subr.mxu0 0.0
        %5857 = vmatpush1.msra.mxu0 %v2015
        %5858 = vmatprep.subr.mxu0 0.0
        %5859 = vmatpush1.msra.mxu0 0.0
        %5860 = vmatprep.subr.mxu0 0.0
        %5861 = vmatpush1.msra.mxu0 0.0
        %5862 = vmatprep.subr.mxu0 0.0
        %5863 = vmatpush1.msra.mxu0 0.0
        %5864 = vmatprep.subr.mxu0 0.0
        %5865 = vmatpush1.msra.mxu0 0.0
        %5866 = vmatprep.subr.mxu0 0.0
        %5867 = vmatpush1.msra.mxu0 0.0
        %5868 = vmatprep.subr.mxu0 0.0
        %5869 = vmatpush1.msra.mxu0 0.0
        %5870 = vmatprep.subr.mxu0 0.0
        %5871 = vmatpush1.msra.mxu0 0.0
        %5872 = vmatprep.subr.mxu0 0.0
        %5873 = vmatpush1.msra.mxu0 0.0
        %5874 = vmatprep.subr.mxu0 0.0
        %5875 = vmatpush1.msra.mxu0 0.0
        %5876 = vmatprep.subr.mxu0 0.0
        %5877 = vmatpush1.msra.mxu0 0.0
        %5878 = vmatprep.subr.mxu0 0.0
        %5879 = vmatpush1.msra.mxu0 0.0
        %5880 = vmatprep.subr.mxu0 0.0
        %5881 = vmatpush1.msra.mxu0 0.0
        %5882 = vmatprep.subr.mxu0 0.0
        %5883 = vmatpush1.msra.mxu0 0.0
        %5884 = vmatprep.subr.mxu0 0.0
        %5885 = vmatpush1.msra.mxu0 0.0
        %5886 = vmatprep.subr.mxu0 0.0
        %5887 = vmatpush1.msra.mxu0 0.0
        %5888 = vmatprep.subr.mxu0 0.0
        %5889 = vmatpush1.msra.mxu0 0.0
        %5890 = vmatprep.subr.mxu0 0.0
        %5891 = vmatpush1.msra.mxu0 0.0
        %5892 = vmatprep.subr.mxu0 0.0
        %5893 = vmatpush1.msra.mxu0 0.0
        %5894 = vmatprep.subr.mxu0 0.0
        %5895 = vmatpush1.msra.mxu0 0.0
        %5896 = vmatprep.subr.mxu0 0.0
        %5897 = vmatpush1.msra.mxu0 0.0
        %5898 = vmatprep.subr.mxu0 0.0
        %5899 = vmatpush1.msra.mxu0 0.0
        %5900 = vmatprep.subr.mxu0 0.0
        %5901 = vmatpush1.msra.mxu0 0.0
        %5902 = vmatprep.subr.mxu0 0.0
        %5903 = vmatpush1.msra.mxu0 0.0
        %5904 = vmatprep.subr.mxu0 0.0
        %5905 = vmatpush1.msra.mxu0 0.0
        %5906 = vmatprep.subr.mxu0 0.0
        %5907 = vmatpush1.msra.mxu0 0.0
        %5908 = vmatprep.subr.mxu0 0.0
        %5909 = vmatpush1.msra.mxu0 0.0
        %5910 = vmatprep.subr.mxu0 0.0
        %5911 = vmatpush1.msra.mxu0 0.0
        %5912 = vmatprep.subr.mxu0 0.0
        %5913 = vmatpush1.msra.mxu0 0.0
        %5914 = vmatprep.mubr.f32.mxu0 0.0
        %5915 = vmatmul.mubr.f32.gmra.mrb[0].mxu0 %v5848
        %v5916 = vpop.f32.mrb[0].mxu0
        %v5917 = vadd.f32 %v5845, %v5916
        %v5918 = vpop.f32.mrb[0].mxu0
        %5919 = vdwg.mxu0
        %v5921 = vcombine.high %v5838, %v5838
        %v5923 = vcombine.high %v5917, %v5917
        %v5924 = vsel %vm2339, %v5838, 0
        %v5926 = vsel %vm2339, %v5917, 0
        %5928 = vmatprep.subr.mxu0 0.0
        %5929 = vmatpush1.xpose.msra.mxu0 %v5926
        %5930 = vmatprep.subr.mxu0 0.0
        %5931 = vmatpush1.xpose.msra.mxu0 0.0
        %5932 = vmatprep.subr.mxu0 0.0
        %5933 = vmatpush1.xpose.msra.mxu0 0.0
        %5934 = vmatprep.subr.mxu0 0.0
        %5935 = vmatpush1.xpose.msra.mxu0 0.0
        %5936 = vmatprep.subr.mxu0 0.0
        %5937 = vmatpush1.xpose.msra.mxu0 0.0
        %5938 = vmatprep.subr.mxu0 0.0
        %5939 = vmatpush1.xpose.msra.mxu0 0.0
        %5940 = vmatprep.subr.mxu0 0.0
        %5941 = vmatpush1.xpose.msra.mxu0 0.0
        %5942 = vmatprep.subr.mxu0 0.0
        %5943 = vmatpush1.xpose.msra.mxu0 0.0
        %5944 = vmatprep.subr.mxu0 0.0
        %5945 = vmatpush1.xpose.msra.mxu0 0.0
        %5946 = vmatprep.subr.mxu0 0.0
        %5947 = vmatpush1.xpose.msra.mxu0 0.0
        %5948 = vmatprep.subr.mxu0 0.0
        %5949 = vmatpush1.xpose.msra.mxu0 0.0
        %5950 = vmatprep.subr.mxu0 0.0
        %5951 = vmatpush1.xpose.msra.mxu0 0.0
        %5952 = vmatprep.subr.mxu0 0.0
        %5953 = vmatpush1.xpose.msra.mxu0 0.0
        %5954 = vmatprep.subr.mxu0 0.0
        %5955 = vmatpush1.xpose.msra.mxu0 0.0
        %5956 = vmatprep.subr.mxu0 0.0
        %5957 = vmatpush1.xpose.msra.mxu0 0.0
        %5958 = vmatprep.subr.mxu0 0.0
        %5959 = vmatpush1.xpose.msra.mxu0 0.0
        %5960 = vmatprep.subr.mxu0 0.0
        %5961 = vmatpush1.xpose.msra.mxu0 0.0
        %5962 = vmatprep.subr.mxu0 0.0
        %5963 = vmatpush1.xpose.msra.mxu0 0.0
        %5964 = vmatprep.subr.mxu0 0.0
        %5965 = vmatpush1.xpose.msra.mxu0 0.0
        %5966 = vmatprep.subr.mxu0 0.0
        %5967 = vmatpush1.xpose.msra.mxu0 0.0
        %5968 = vmatprep.subr.mxu0 0.0
        %5969 = vmatpush1.xpose.msra.mxu0 0.0
        %5970 = vmatprep.subr.mxu0 0.0
        %5971 = vmatpush1.xpose.msra.mxu0 0.0
        %5972 = vmatprep.subr.mxu0 0.0
        %5973 = vmatpush1.xpose.msra.mxu0 0.0
        %5974 = vmatprep.subr.mxu0 0.0
        %5975 = vmatpush1.xpose.msra.mxu0 0.0
        %5976 = vmatprep.subr.mxu0 0.0
        %5977 = vmatpush1.xpose.msra.mxu0 0.0
        %5978 = vmatprep.subr.mxu0 0.0
        %5979 = vmatpush1.xpose.msra.mxu0 0.0
        %5980 = vmatprep.subr.mxu0 0.0
        %5981 = vmatpush1.xpose.msra.mxu0 0.0
        %5982 = vmatprep.subr.mxu0 0.0
        %5983 = vmatpush1.xpose.msra.mxu0 0.0
        %5984 = vmatprep.subr.mxu0 0.0
        %5985 = vmatpush1.xpose.msra.mxu0 0.0
        %5986 = vmatprep.subr.mxu0 0.0
        %5987 = vmatpush1.xpose.msra.mxu0 0.0
        %5988 = vmatprep.subr.mxu0 0.0
        %5989 = vmatpush1.xpose.msra.mxu0 0.0
        %5990 = vmatprep.subr.mxu0 0.0
        %5991 = vmatpush1.xpose.msra.mxu0 0.0
        %5992 = vmatprep.mubr.f32.mxu0 0.0
        %5993 = vmatmul.mubr.f32.gmra.mrb[0].mxu0 %v5924
        %v5994 = vpop.f32.mrb[0].mxu0
        %v5995 = vadd.f32 0.0, %v5994
        %v5996 = vpop.f32.mrb[0].mxu0
        %5997 = vdwg.mxu0
        %v5998 = vsel %vm2339, %v5921, 0
        %v6000 = vsel %vm2339, %v5923, 0
        %6002 = vmatprep.subr.mxu0 0.0
        %6003 = vmatpush1.xpose.msra.mxu0 %v6000
        %6004 = vmatprep.subr.mxu0 0.0
        %6005 = vmatpush1.xpose.msra.mxu0 0.0
        %6006 = vmatprep.subr.mxu0 0.0
        %6007 = vmatpush1.xpose.msra.mxu0 0.0
        %6008 = vmatprep.subr.mxu0 0.0
        %6009 = vmatpush1.xpose.msra.mxu0 0.0
        %6010 = vmatprep.subr.mxu0 0.0
        %6011 = vmatpush1.xpose.msra.mxu0 0.0
        %6012 = vmatprep.subr.mxu0 0.0
        %6013 = vmatpush1.xpose.msra.mxu0 0.0
        %6014 = vmatprep.subr.mxu0 0.0
        %6015 = vmatpush1.xpose.msra.mxu0 0.0
        %6016 = vmatprep.subr.mxu0 0.0
        %6017 = vmatpush1.xpose.msra.mxu0 0.0
        %6018 = vmatprep.subr.mxu0 0.0
        %6019 = vmatpush1.xpose.msra.mxu0 0.0
        %6020 = vmatprep.subr.mxu0 0.0
        %6021 = vmatpush1.xpose.msra.mxu0 0.0
        %6022 = vmatprep.subr.mxu0 0.0
        %6023 = vmatpush1.xpose.msra.mxu0 0.0
        %6024 = vmatprep.subr.mxu0 0.0
        %6025 = vmatpush1.xpose.msra.mxu0 0.0
        %6026 = vmatprep.subr.mxu0 0.0
        %6027 = vmatpush1.xpose.msra.mxu0 0.0
        %6028 = vmatprep.subr.mxu0 0.0
        %6029 = vmatpush1.xpose.msra.mxu0 0.0
        %6030 = vmatprep.subr.mxu0 0.0
        %6031 = vmatpush1.xpose.msra.mxu0 0.0
        %6032 = vmatprep.subr.mxu0 0.0
        %6033 = vmatpush1.xpose.msra.mxu0 0.0
        %6034 = vmatprep.subr.mxu0 0.0
        %6035 = vmatpush1.xpose.msra.mxu0 0.0
        %6036 = vmatprep.subr.mxu0 0.0
        %6037 = vmatpush1.xpose.msra.mxu0 0.0
        %6038 = vmatprep.subr.mxu0 0.0
        %6039 = vmatpush1.xpose.msra.mxu0 0.0
        %6040 = vmatprep.subr.mxu0 0.0
        %6041 = vmatpush1.xpose.msra.mxu0 0.0
        %6042 = vmatprep.subr.mxu0 0.0
        %6043 = vmatpush1.xpose.msra.mxu0 0.0
        %6044 = vmatprep.subr.mxu0 0.0
        %6045 = vmatpush1.xpose.msra.mxu0 0.0
        %6046 = vmatprep.subr.mxu0 0.0
        %6047 = vmatpush1.xpose.msra.mxu0 0.0
        %6048 = vmatprep.subr.mxu0 0.0
        %6049 = vmatpush1.xpose.msra.mxu0 0.0
        %6050 = vmatprep.subr.mxu0 0.0
        %6051 = vmatpush1.xpose.msra.mxu0 0.0
        %6052 = vmatprep.subr.mxu0 0.0
        %6053 = vmatpush1.xpose.msra.mxu0 0.0
        %6054 = vmatprep.subr.mxu0 0.0
        %6055 = vmatpush1.xpose.msra.mxu0 0.0
        %6056 = vmatprep.subr.mxu0 0.0
        %6057 = vmatpush1.xpose.msra.mxu0 0.0
        %6058 = vmatprep.subr.mxu0 0.0
        %6059 = vmatpush1.xpose.msra.mxu0 0.0
        %6060 = vmatprep.subr.mxu0 0.0
        %6061 = vmatpush1.xpose.msra.mxu0 0.0
        %6062 = vmatprep.subr.mxu0 0.0
        %6063 = vmatpush1.xpose.msra.mxu0 0.0
        %6064 = vmatprep.subr.mxu0 0.0
        %6065 = vmatpush1.xpose.msra.mxu0 0.0
        %6066 = vmatprep.mubr.f32.mxu0 0.0
        %6067 = vmatmul.mubr.f32.gmra.mrb[0].mxu0 %v5998
        %v6068 = vpop.f32.mrb[0].mxu0
        %v6069 = vadd.f32 0.0, %v6068
        %v6070 = vpop.f32.mrb[0].mxu0
        %6071 = vdwg.mxu0
        %v6072 = vmul.f32 %v5995, 0.35355338
        %v6073 = vmul.f32 %v6069, 0.35355338
        %v6074 = vsel %vm4445, %v6072, -inf
        %6075 = vmax.xlane.f32.xlu0 %v6074
        %v6076 = vpop.xlane.xlu0 %6075
        %v6077 = vsel %vm4445, %v6073, -inf
        %6078 = vmax.xlane.f32.xlu0 %v6077
        %v6079 = vpop.xlane.xlu0 %6078
        %v6080 = vsub.f32 %v6072, %v6076
        %v6081 = vsub.f32 %v6073, %v6079
        %v6082 = vmul.f32 %v6080, 1.442695
        %v6083 = vpow.pop %v6082
        %v6084 = vmul.f32 %v6081, 1.442695
        %v6085 = vpow.pop %v6084
        %v6086 = vsel %vm4445, %v6083, 0.0
        %6087 = vadd.xlane.f32.xlu0 %v6086
        %v6088 = vpop.xlane.xlu0 %6087
        %v6089 = vsel %vm4445, %v6085, 0.0
        %6090 = vadd.xlane.f32.xlu0 %v6089
        %v6091 = vpop.xlane.xlu0 %6090
        %v6092 = vrcp.pop %v6088
        %v6093 = vmul.f32 %v6083, %v6092
        %v6094 = vrcp.pop %v6091
        %v6095 = vmul.f32 %v6085, %v6094
        %6096 = vrot.lane.b32.xlu0 %v5917, 96
        %v6097 = vpop.permute.xlu0 %6096
        %v6099 = vsel %vm2166, %v6093, 0
        %v6101 = vsel %vm2169, %v6097, 0
        %6103 = vmatprep.subr.mxu0 0.0
        %6104 = vmatpush1.msra.mxu0 %v6101
        %6105 = vmatprep.subr.mxu0 0.0
        %6106 = vmatpush1.msra.mxu0 0.0
        %6107 = vmatprep.subr.mxu0 0.0
        %6108 = vmatpush1.msra.mxu0 0.0
        %6109 = vmatprep.subr.mxu0 0.0
        %6110 = vmatpush1.msra.mxu0 0.0
        %6111 = vmatprep.subr.mxu0 0.0
        %6112 = vmatpush1.msra.mxu0 0.0
        %6113 = vmatprep.subr.mxu0 0.0
        %6114 = vmatpush1.msra.mxu0 0.0
        %6115 = vmatprep.subr.mxu0 0.0
        %6116 = vmatpush1.msra.mxu0 0.0
        %6117 = vmatprep.subr.mxu0 0.0
        %6118 = vmatpush1.msra.mxu0 0.0
        %6119 = vmatprep.subr.mxu0 0.0
        %6120 = vmatpush1.msra.mxu0 0.0
        %6121 = vmatprep.subr.mxu0 0.0
        %6122 = vmatpush1.msra.mxu0 0.0
        %6123 = vmatprep.subr.mxu0 0.0
        %6124 = vmatpush1.msra.mxu0 0.0
        %6125 = vmatprep.subr.mxu0 0.0
        %6126 = vmatpush1.msra.mxu0 0.0
        %6127 = vmatprep.subr.mxu0 0.0
        %6128 = vmatpush1.msra.mxu0 0.0
        %6129 = vmatprep.subr.mxu0 0.0
        %6130 = vmatpush1.msra.mxu0 0.0
        %6131 = vmatprep.subr.mxu0 0.0
        %6132 = vmatpush1.msra.mxu0 0.0
        %6133 = vmatprep.subr.mxu0 0.0
        %6134 = vmatpush1.msra.mxu0 0.0
        %6135 = vmatprep.subr.mxu0 0.0
        %6136 = vmatpush1.msra.mxu0 0.0
        %6137 = vmatprep.subr.mxu0 0.0
        %6138 = vmatpush1.msra.mxu0 0.0
        %6139 = vmatprep.subr.mxu0 0.0
        %6140 = vmatpush1.msra.mxu0 0.0
        %6141 = vmatprep.subr.mxu0 0.0
        %6142 = vmatpush1.msra.mxu0 0.0
        %6143 = vmatprep.subr.mxu0 0.0
        %6144 = vmatpush1.msra.mxu0 0.0
        %6145 = vmatprep.subr.mxu0 0.0
        %6146 = vmatpush1.msra.mxu0 0.0
        %6147 = vmatprep.subr.mxu0 0.0
        %6148 = vmatpush1.msra.mxu0 0.0
        %6149 = vmatprep.subr.mxu0 0.0
        %6150 = vmatpush1.msra.mxu0 0.0
        %6151 = vmatprep.subr.mxu0 0.0
        %6152 = vmatpush1.msra.mxu0 0.0
        %6153 = vmatprep.subr.mxu0 0.0
        %6154 = vmatpush1.msra.mxu0 0.0
        %6155 = vmatprep.subr.mxu0 0.0
        %6156 = vmatpush1.msra.mxu0 0.0
        %6157 = vmatprep.subr.mxu0 0.0
        %6158 = vmatpush1.msra.mxu0 0.0
        %6159 = vmatprep.subr.mxu0 0.0
        %6160 = vmatpush1.msra.mxu0 0.0
        %6161 = vmatprep.subr.mxu0 0.0
        %6162 = vmatpush1.msra.mxu0 0.0
        %6163 = vmatprep.subr.mxu0 0.0
        %6164 = vmatpush1.msra.mxu0 0.0
        %6165 = vmatprep.subr.mxu0 0.0
        %6166 = vmatpush1.msra.mxu0 0.0
        %6167 = vmatprep.mubr.f32.mxu0 0.0
        %6168 = vmatmul.mubr.f32.gmra.mrb[0].mxu0 %v6099
        %v6169 = vpop.f32.mrb[0].mxu0
        %v6170 = vadd.f32 0.0, %v6169
        %v6171 = vpop.f32.mrb[0].mxu0
        %6172 = vdwg.mxu0
        %6173 = vrot.lane.b32.xlu0 %v5923, 96
        %v6174 = vpop.permute.xlu0 %6173
        %v6176 = vsel %vm2166, %v6095, 0
        %v6178 = vsel %vm2169, %v6174, 0
        %6180 = vmatprep.subr.mxu0 0.0
        %6181 = vmatpush1.msra.mxu0 %v6178
        %6182 = vmatprep.subr.mxu0 0.0
        %6183 = vmatpush1.msra.mxu0 0.0
        %6184 = vmatprep.subr.mxu0 0.0
        %6185 = vmatpush1.msra.mxu0 0.0
        %6186 = vmatprep.subr.mxu0 0.0
        %6187 = vmatpush1.msra.mxu0 0.0
        %6188 = vmatprep.subr.mxu0 0.0
        %6189 = vmatpush1.msra.mxu0 0.0
        %6190 = vmatprep.subr.mxu0 0.0
        %6191 = vmatpush1.msra.mxu0 0.0
        %6192 = vmatprep.subr.mxu0 0.0
        %6193 = vmatpush1.msra.mxu0 0.0
        %6194 = vmatprep.subr.mxu0 0.0
        %6195 = vmatpush1.msra.mxu0 0.0
        %6196 = vmatprep.subr.mxu0 0.0
        %6197 = vmatpush1.msra.mxu0 0.0
        %6198 = vmatprep.subr.mxu0 0.0
        %6199 = vmatpush1.msra.mxu0 0.0
        %6200 = vmatprep.subr.mxu0 0.0
        %6201 = vmatpush1.msra.mxu0 0.0
        %6202 = vmatprep.subr.mxu0 0.0
        %6203 = vmatpush1.msra.mxu0 0.0
        %6204 = vmatprep.subr.mxu0 0.0
        %6205 = vmatpush1.msra.mxu0 0.0
        %6206 = vmatprep.subr.mxu0 0.0
        %6207 = vmatpush1.msra.mxu0 0.0
        %6208 = vmatprep.subr.mxu0 0.0
        %6209 = vmatpush1.msra.mxu0 0.0
        %6210 = vmatprep.subr.mxu0 0.0
        %6211 = vmatpush1.msra.mxu0 0.0
        %6212 = vmatprep.subr.mxu0 0.0
        %6213 = vmatpush1.msra.mxu0 0.0
        %6214 = vmatprep.subr.mxu0 0.0
        %6215 = vmatpush1.msra.mxu0 0.0
        %6216 = vmatprep.subr.mxu0 0.0
        %6217 = vmatpush1.msra.mxu0 0.0
        %6218 = vmatprep.subr.mxu0 0.0
        %6219 = vmatpush1.msra.mxu0 0.0
        %6220 = vmatprep.subr.mxu0 0.0
        %6221 = vmatpush1.msra.mxu0 0.0
        %6222 = vmatprep.subr.mxu0 0.0
        %6223 = vmatpush1.msra.mxu0 0.0
        %6224 = vmatprep.subr.mxu0 0.0
        %6225 = vmatpush1.msra.mxu0 0.0
        %6226 = vmatprep.subr.mxu0 0.0
        %6227 = vmatpush1.msra.mxu0 0.0
        %6228 = vmatprep.subr.mxu0 0.0
        %6229 = vmatpush1.msra.mxu0 0.0
        %6230 = vmatprep.subr.mxu0 0.0
        %6231 = vmatpush1.msra.mxu0 0.0
        %6232 = vmatprep.subr.mxu0 0.0
        %6233 = vmatpush1.msra.mxu0 0.0
        %6234 = vmatprep.subr.mxu0 0.0
        %6235 = vmatpush1.msra.mxu0 0.0
        %6236 = vmatprep.subr.mxu0 0.0
        %6237 = vmatpush1.msra.mxu0 0.0
        %6238 = vmatprep.subr.mxu0 0.0
        %6239 = vmatpush1.msra.mxu0 0.0
        %6240 = vmatprep.subr.mxu0 0.0
        %6241 = vmatpush1.msra.mxu0 0.0
        %6242 = vmatprep.subr.mxu0 0.0
        %6243 = vmatpush1.msra.mxu0 0.0
        %6244 = vmatprep.mubr.f32.mxu0 0.0
        %6245 = vmatmul.mubr.f32.gmra.mrb[0].mxu0 %v6176
        %v6246 = vpop.f32.mrb[0].mxu0
        %v6247 = vadd.f32 0.0, %v6246
        %v6248 = vpop.f32.mrb[0].mxu0
        %6249 = vdwg.mxu0
        %6250 = vrot.lane.b32.xlu0 %v5838, 120
        %v6251 = vpop.permute.xlu0 %6250
        %6252 = vrot.lane.b32.xlu0 %v5917, 120
        %v6253 = vpop.permute.xlu0 %6252
        %v6254 = vsel %vm2339, %v6251, 0
        %v6256 = vsel %vm2339, %v6253, 0
        %6258 = vmatprep.subr.mxu0 0.0
        %6259 = vmatpush1.xpose.msra.mxu0 %v6256
        %6260 = vmatprep.subr.mxu0 0.0
        %6261 = vmatpush1.xpose.msra.mxu0 0.0
        %6262 = vmatprep.subr.mxu0 0.0
        %6263 = vmatpush1.xpose.msra.mxu0 0.0
        %6264 = vmatprep.subr.mxu0 0.0
        %6265 = vmatpush1.xpose.msra.mxu0 0.0
        %6266 = vmatprep.subr.mxu0 0.0
        %6267 = vmatpush1.xpose.msra.mxu0 0.0
        %6268 = vmatprep.subr.mxu0 0.0
        %6269 = vmatpush1.xpose.msra.mxu0 0.0
        %6270 = vmatprep.subr.mxu0 0.0
        %6271 = vmatpush1.xpose.msra.mxu0 0.0
        %6272 = vmatprep.subr.mxu0 0.0
        %6273 = vmatpush1.xpose.msra.mxu0 0.0
        %6274 = vmatprep.subr.mxu0 0.0
        %6275 = vmatpush1.xpose.msra.mxu0 0.0
        %6276 = vmatprep.subr.mxu0 0.0
        %6277 = vmatpush1.xpose.msra.mxu0 0.0
        %6278 = vmatprep.subr.mxu0 0.0
        %6279 = vmatpush1.xpose.msra.mxu0 0.0
        %6280 = vmatprep.subr.mxu0 0.0
        %6281 = vmatpush1.xpose.msra.mxu0 0.0
        %6282 = vmatprep.subr.mxu0 0.0
        %6283 = vmatpush1.xpose.msra.mxu0 0.0
        %6284 = vmatprep.subr.mxu0 0.0
        %6285 = vmatpush1.xpose.msra.mxu0 0.0
        %6286 = vmatprep.subr.mxu0 0.0
        %6287 = vmatpush1.xpose.msra.mxu0 0.0
        %6288 = vmatprep.subr.mxu0 0.0
        %6289 = vmatpush1.xpose.msra.mxu0 0.0
        %6290 = vmatprep.subr.mxu0 0.0
        %6291 = vmatpush1.xpose.msra.mxu0 0.0
        %6292 = vmatprep.subr.mxu0 0.0
        %6293 = vmatpush1.xpose.msra.mxu0 0.0
        %6294 = vmatprep.subr.mxu0 0.0
        %6295 = vmatpush1.xpose.msra.mxu0 0.0
        %6296 = vmatprep.subr.mxu0 0.0
        %6297 = vmatpush1.xpose.msra.mxu0 0.0
        %6298 = vmatprep.subr.mxu0 0.0
        %6299 = vmatpush1.xpose.msra.mxu0 0.0
        %6300 = vmatprep.subr.mxu0 0.0
        %6301 = vmatpush1.xpose.msra.mxu0 0.0
        %6302 = vmatprep.subr.mxu0 0.0
        %6303 = vmatpush1.xpose.msra.mxu0 0.0
        %6304 = vmatprep.subr.mxu0 0.0
        %6305 = vmatpush1.xpose.msra.mxu0 0.0
        %6306 = vmatprep.subr.mxu0 0.0
        %6307 = vmatpush1.xpose.msra.mxu0 0.0
        %6308 = vmatprep.subr.mxu0 0.0
        %6309 = vmatpush1.xpose.msra.mxu0 0.0
        %6310 = vmatprep.subr.mxu0 0.0
        %6311 = vmatpush1.xpose.msra.mxu0 0.0
        %6312 = vmatprep.subr.mxu0 0.0
        %6313 = vmatpush1.xpose.msra.mxu0 0.0
        %6314 = vmatprep.subr.mxu0 0.0
        %6315 = vmatpush1.xpose.msra.mxu0 0.0
        %6316 = vmatprep.subr.mxu0 0.0
        %6317 = vmatpush1.xpose.msra.mxu0 0.0
        %6318 = vmatprep.subr.mxu0 0.0
        %6319 = vmatpush1.xpose.msra.mxu0 0.0
        %6320 = vmatprep.subr.mxu0 0.0
        %6321 = vmatpush1.xpose.msra.mxu0 0.0
        %6322 = vmatprep.mubr.f32.mxu0 0.0
        %6323 = vmatmul.mubr.f32.gmra.mrb[0].mxu0 %v6254
        %v6324 = vpop.f32.mrb[0].mxu0
        %v6325 = vadd.f32 0.0, %v6324
        %v6326 = vpop.f32.mrb[0].mxu0
        %6327 = vdwg.mxu0
        %6328 = vrot.lane.b32.xlu0 %v5921, 120
        %v6329 = vpop.permute.xlu0 %6328
        %6330 = vrot.lane.b32.xlu0 %v5923, 120
        %v6331 = vpop.permute.xlu0 %6330
        %v6332 = vsel %vm2339, %v6329, 0
        %v6334 = vsel %vm2339, %v6331, 0
        %6336 = vmatprep.subr.mxu0 0.0
        %6337 = vmatpush1.xpose.msra.mxu0 %v6334
        %6338 = vmatprep.subr.mxu0 0.0
        %6339 = vmatpush1.xpose.msra.mxu0 0.0
        %6340 = vmatprep.subr.mxu0 0.0
        %6341 = vmatpush1.xpose.msra.mxu0 0.0
        %6342 = vmatprep.subr.mxu0 0.0
        %6343 = vmatpush1.xpose.msra.mxu0 0.0
        %6344 = vmatprep.subr.mxu0 0.0
        %6345 = vmatpush1.xpose.msra.mxu0 0.0
        %6346 = vmatprep.subr.mxu0 0.0
        %6347 = vmatpush1.xpose.msra.mxu0 0.0
        %6348 = vmatprep.subr.mxu0 0.0
        %6349 = vmatpush1.xpose.msra.mxu0 0.0
        %6350 = vmatprep.subr.mxu0 0.0
        %6351 = vmatpush1.xpose.msra.mxu0 0.0
        %6352 = vmatprep.subr.mxu0 0.0
        %6353 = vmatpush1.xpose.msra.mxu0 0.0
        %6354 = vmatprep.subr.mxu0 0.0
        %6355 = vmatpush1.xpose.msra.mxu0 0.0
        %6356 = vmatprep.subr.mxu0 0.0
        %6357 = vmatpush1.xpose.msra.mxu0 0.0
        %6358 = vmatprep.subr.mxu0 0.0
        %6359 = vmatpush1.xpose.msra.mxu0 0.0
        %6360 = vmatprep.subr.mxu0 0.0
        %6361 = vmatpush1.xpose.msra.mxu0 0.0
        %6362 = vmatprep.subr.mxu0 0.0
        %6363 = vmatpush1.xpose.msra.mxu0 0.0
        %6364 = vmatprep.subr.mxu0 0.0
        %6365 = vmatpush1.xpose.msra.mxu0 0.0
        %6366 = vmatprep.subr.mxu0 0.0
        %6367 = vmatpush1.xpose.msra.mxu0 0.0
        %6368 = vmatprep.subr.mxu0 0.0
        %6369 = vmatpush1.xpose.msra.mxu0 0.0
        %6370 = vmatprep.subr.mxu0 0.0
        %6371 = vmatpush1.xpose.msra.mxu0 0.0
        %6372 = vmatprep.subr.mxu0 0.0
        %6373 = vmatpush1.xpose.msra.mxu0 0.0
        %6374 = vmatprep.subr.mxu0 0.0
        %6375 = vmatpush1.xpose.msra.mxu0 0.0
        %6376 = vmatprep.subr.mxu0 0.0
        %6377 = vmatpush1.xpose.msra.mxu0 0.0
        %6378 = vmatprep.subr.mxu0 0.0
        %6379 = vmatpush1.xpose.msra.mxu0 0.0
        %6380 = vmatprep.subr.mxu0 0.0
        %6381 = vmatpush1.xpose.msra.mxu0 0.0
        %6382 = vmatprep.subr.mxu0 0.0
        %6383 = vmatpush1.xpose.msra.mxu0 0.0
        %6384 = vmatprep.subr.mxu0 0.0
        %6385 = vmatpush1.xpose.msra.mxu0 0.0
        %6386 = vmatprep.subr.mxu0 0.0
        %6387 = vmatpush1.xpose.msra.mxu0 0.0
        %6388 = vmatprep.subr.mxu0 0.0
        %6389 = vmatpush1.xpose.msra.mxu0 0.0
        %6390 = vmatprep.subr.mxu0 0.0
        %6391 = vmatpush1.xpose.msra.mxu0 0.0
        %6392 = vmatprep.subr.mxu0 0.0
        %6393 = vmatpush1.xpose.msra.mxu0 0.0
        %6394 = vmatprep.subr.mxu0 0.0
        %6395 = vmatpush1.xpose.msra.mxu0 0.0
        %6396 = vmatprep.subr.mxu0 0.0
        %6397 = vmatpush1.xpose.msra.mxu0 0.0
        %6398 = vmatprep.subr.mxu0 0.0
        %6399 = vmatpush1.xpose.msra.mxu0 0.0
        %6400 = vmatprep.mubr.f32.mxu0 0.0
        %6401 = vmatmul.mubr.f32.gmra.mrb[0].mxu0 %v6332
        %v6402 = vpop.f32.mrb[0].mxu0
        %v6403 = vadd.f32 0.0, %v6402
        %v6404 = vpop.f32.mrb[0].mxu0
        %6405 = vdwg.mxu0
        %v6406 = vmul.f32 %v6325, 0.35355338
        %v6407 = vmul.f32 %v6403, 0.35355338
        %v6408 = vsel %vm4445, %v6406, -inf
        %6409 = vmax.xlane.f32.xlu0 %v6408
        %v6410 = vpop.xlane.xlu0 %6409
        %v6411 = vsel %vm4445, %v6407, -inf
        %6412 = vmax.xlane.f32.xlu0 %v6411
        %v6413 = vpop.xlane.xlu0 %6412
        %v6414 = vsub.f32 %v6406, %v6410
        %v6415 = vsub.f32 %v6407, %v6413
        %v6416 = vmul.f32 %v6414, 1.442695
        %v6417 = vpow.pop %v6416
        %v6418 = vmul.f32 %v6415, 1.442695
        %v6419 = vpow.pop %v6418
        %v6420 = vsel %vm4445, %v6417, 0.0
        %6421 = vadd.xlane.f32.xlu0 %v6420
        %v6422 = vpop.xlane.xlu0 %6421
        %v6423 = vsel %vm4445, %v6419, 0.0
        %6424 = vadd.xlane.f32.xlu0 %v6423
        %v6425 = vpop.xlane.xlu0 %6424
        %v6426 = vrcp.pop %v6422
        %v6427 = vmul.f32 %v6417, %v6426
        %v6428 = vrcp.pop %v6425
        %v6429 = vmul.f32 %v6419, %v6428
        %6430 = vrot.lane.b32.xlu0 %v5917, 88
        %v6431 = vpop.permute.xlu0 %6430
        %v6433 = vsel %vm2166, %v6427, 0
        %v6435 = vsel %vm2169, %v6431, 0
        %6437 = vmatprep.subr.mxu0 0.0
        %6438 = vmatpush1.msra.mxu0 %v6435
        %6439 = vmatprep.subr.mxu0 0.0
        %6440 = vmatpush1.msra.mxu0 0.0
        %6441 = vmatprep.subr.mxu0 0.0
        %6442 = vmatpush1.msra.mxu0 0.0
        %6443 = vmatprep.subr.mxu0 0.0
        %6444 = vmatpush1.msra.mxu0 0.0
        %6445 = vmatprep.subr.mxu0 0.0
        %6446 = vmatpush1.msra.mxu0 0.0
        %6447 = vmatprep.subr.mxu0 0.0
        %6448 = vmatpush1.msra.mxu0 0.0
        %6449 = vmatprep.subr.mxu0 0.0
        %6450 = vmatpush1.msra.mxu0 0.0
        %6451 = vmatprep.subr.mxu0 0.0
        %6452 = vmatpush1.msra.mxu0 0.0
        %6453 = vmatprep.subr.mxu0 0.0
        %6454 = vmatpush1.msra.mxu0 0.0
        %6455 = vmatprep.subr.mxu0 0.0
        %6456 = vmatpush1.msra.mxu0 0.0
        %6457 = vmatprep.subr.mxu0 0.0
        %6458 = vmatpush1.msra.mxu0 0.0
        %6459 = vmatprep.subr.mxu0 0.0
        %6460 = vmatpush1.msra.mxu0 0.0
        %6461 = vmatprep.subr.mxu0 0.0
        %6462 = vmatpush1.msra.mxu0 0.0
        %6463 = vmatprep.subr.mxu0 0.0
        %6464 = vmatpush1.msra.mxu0 0.0
        %6465 = vmatprep.subr.mxu0 0.0
        %6466 = vmatpush1.msra.mxu0 0.0
        %6467 = vmatprep.subr.mxu0 0.0
        %6468 = vmatpush1.msra.mxu0 0.0
        %6469 = vmatprep.subr.mxu0 0.0
        %6470 = vmatpush1.msra.mxu0 0.0
        %6471 = vmatprep.subr.mxu0 0.0
        %6472 = vmatpush1.msra.mxu0 0.0
        %6473 = vmatprep.subr.mxu0 0.0
        %6474 = vmatpush1.msra.mxu0 0.0
        %6475 = vmatprep.subr.mxu0 0.0
        %6476 = vmatpush1.msra.mxu0 0.0
        %6477 = vmatprep.subr.mxu0 0.0
        %6478 = vmatpush1.msra.mxu0 0.0
        %6479 = vmatprep.subr.mxu0 0.0
        %6480 = vmatpush1.msra.mxu0 0.0
        %6481 = vmatprep.subr.mxu0 0.0
        %6482 = vmatpush1.msra.mxu0 0.0
        %6483 = vmatprep.subr.mxu0 0.0
        %6484 = vmatpush1.msra.mxu0 0.0
        %6485 = vmatprep.subr.mxu0 0.0
        %6486 = vmatpush1.msra.mxu0 0.0
        %6487 = vmatprep.subr.mxu0 0.0
        %6488 = vmatpush1.msra.mxu0 0.0
        %6489 = vmatprep.subr.mxu0 0.0
        %6490 = vmatpush1.msra.mxu0 0.0
        %6491 = vmatprep.subr.mxu0 0.0
        %6492 = vmatpush1.msra.mxu0 0.0
        %6493 = vmatprep.subr.mxu0 0.0
        %6494 = vmatpush1.msra.mxu0 0.0
        %6495 = vmatprep.subr.mxu0 0.0
        %6496 = vmatpush1.msra.mxu0 0.0
        %6497 = vmatprep.subr.mxu0 0.0
        %6498 = vmatpush1.msra.mxu0 0.0
        %6499 = vmatprep.subr.mxu0 0.0
        %6500 = vmatpush1.msra.mxu0 0.0
        %6501 = vmatprep.mubr.f32.mxu0 0.0
        %6502 = vmatmul.mubr.f32.gmra.mrb[0].mxu0 %v6433
        %v6503 = vpop.f32.mrb[0].mxu0
        %v6504 = vadd.f32 0.0, %v6503
        %v6505 = vpop.f32.mrb[0].mxu0
        %6506 = vdwg.mxu0
        %6507 = vrot.lane.b32.xlu0 %v5923, 88
        %v6508 = vpop.permute.xlu0 %6507
        %v6510 = vsel %vm2166, %v6429, 0
        %v6512 = vsel %vm2169, %v6508, 0
        %6514 = vmatprep.subr.mxu0 0.0
        %6515 = vmatpush1.msra.mxu0 %v6512
        %6516 = vmatprep.subr.mxu0 0.0
        %6517 = vmatpush1.msra.mxu0 0.0
        %6518 = vmatprep.subr.mxu0 0.0
        %6519 = vmatpush1.msra.mxu0 0.0
        %6520 = vmatprep.subr.mxu0 0.0
        %6521 = vmatpush1.msra.mxu0 0.0
        %6522 = vmatprep.subr.mxu0 0.0
        %6523 = vmatpush1.msra.mxu0 0.0
        %6524 = vmatprep.subr.mxu0 0.0
        %6525 = vmatpush1.msra.mxu0 0.0
        %6526 = vmatprep.subr.mxu0 0.0
        %6527 = vmatpush1.msra.mxu0 0.0
        %6528 = vmatprep.subr.mxu0 0.0
        %6529 = vmatpush1.msra.mxu0 0.0
        %6530 = vmatprep.subr.mxu0 0.0
        %6531 = vmatpush1.msra.mxu0 0.0
        %6532 = vmatprep.subr.mxu0 0.0
        %6533 = vmatpush1.msra.mxu0 0.0
        %6534 = vmatprep.subr.mxu0 0.0
        %6535 = vmatpush1.msra.mxu0 0.0
        %6536 = vmatprep.subr.mxu0 0.0
        %6537 = vmatpush1.msra.mxu0 0.0
        %6538 = vmatprep.subr.mxu0 0.0
        %6539 = vmatpush1.msra.mxu0 0.0
        %6540 = vmatprep.subr.mxu0 0.0
        %6541 = vmatpush1.msra.mxu0 0.0
        %6542 = vmatprep.subr.mxu0 0.0
        %6543 = vmatpush1.msra.mxu0 0.0
        %6544 = vmatprep.subr.mxu0 0.0
        %6545 = vmatpush1.msra.mxu0 0.0
        %6546 = vmatprep.subr.mxu0 0.0
        %6547 = vmatpush1.msra.mxu0 0.0
        %6548 = vmatprep.subr.mxu0 0.0
        %6549 = vmatpush1.msra.mxu0 0.0
        %6550 = vmatprep.subr.mxu0 0.0
        %6551 = vmatpush1.msra.mxu0 0.0
        %6552 = vmatprep.subr.mxu0 0.0
        %6553 = vmatpush1.msra.mxu0 0.0
        %6554 = vmatprep.subr.mxu0 0.0
        %6555 = vmatpush1.msra.mxu0 0.0
        %6556 = vmatprep.subr.mxu0 0.0
        %6557 = vmatpush1.msra.mxu0 0.0
        %6558 = vmatprep.subr.mxu0 0.0
        %6559 = vmatpush1.msra.mxu0 0.0
        %6560 = vmatprep.subr.mxu0 0.0
        %6561 = vmatpush1.msra.mxu0 0.0
        %6562 = vmatprep.subr.mxu0 0.0
        %6563 = vmatpush1.msra.mxu0 0.0
        %6564 = vmatprep.subr.mxu0 0.0
        %6565 = vmatpush1.msra.mxu0 0.0
        %6566 = vmatprep.subr.mxu0 0.0
        %6567 = vmatpush1.msra.mxu0 0.0
        %6568 = vmatprep.subr.mxu0 0.0
        %6569 = vmatpush1.msra.mxu0 0.0
        %6570 = vmatprep.subr.mxu0 0.0
        %6571 = vmatpush1.msra.mxu0 0.0
        %6572 = vmatprep.subr.mxu0 0.0
        %6573 = vmatpush1.msra.mxu0 0.0
        %6574 = vmatprep.subr.mxu0 0.0
        %6575 = vmatpush1.msra.mxu0 0.0
        %6576 = vmatprep.subr.mxu0 0.0
        %6577 = vmatpush1.msra.mxu0 0.0
        %6578 = vmatprep.mubr.f32.mxu0 0.0
        %6579 = vmatmul.mubr.f32.gmra.mrb[0].mxu0 %v6510
        %v6580 = vpop.f32.mrb[0].mxu0
        %v6581 = vadd.f32 0.0, %v6580
        %v6582 = vpop.f32.mrb[0].mxu0
        %6583 = vdwg.mxu0
        %6584 = vrot.lane.b32.xlu0 %v5838, 112
        %v6585 = vpop.permute.xlu0 %6584
        %6586 = vrot.lane.b32.xlu0 %v5917, 112
        %v6587 = vpop.permute.xlu0 %6586
        %v6588 = vsel %vm2339, %v6585, 0
        %v6590 = vsel %vm2339, %v6587, 0
        %6592 = vmatprep.subr.mxu0 0.0
        %6593 = vmatpush1.xpose.msra.mxu0 %v6590
        %6594 = vmatprep.subr.mxu0 0.0
        %6595 = vmatpush1.xpose.msra.mxu0 0.0
        %6596 = vmatprep.subr.mxu0 0.0
        %6597 = vmatpush1.xpose.msra.mxu0 0.0
        %6598 = vmatprep.subr.mxu0 0.0
        %6599 = vmatpush1.xpose.msra.mxu0 0.0
        %6600 = vmatprep.subr.mxu0 0.0
        %6601 = vmatpush1.xpose.msra.mxu0 0.0
        %6602 = vmatprep.subr.mxu0 0.0
        %6603 = vmatpush1.xpose.msra.mxu0 0.0
        %6604 = vmatprep.subr.mxu0 0.0
        %6605 = vmatpush1.xpose.msra.mxu0 0.0
        %6606 = vmatprep.subr.mxu0 0.0
        %6607 = vmatpush1.xpose.msra.mxu0 0.0
        %6608 = vmatprep.subr.mxu0 0.0
        %6609 = vmatpush1.xpose.msra.mxu0 0.0
        %6610 = vmatprep.subr.mxu0 0.0
        %6611 = vmatpush1.xpose.msra.mxu0 0.0
        %6612 = vmatprep.subr.mxu0 0.0
        %6613 = vmatpush1.xpose.msra.mxu0 0.0
        %6614 = vmatprep.subr.mxu0 0.0
        %6615 = vmatpush1.xpose.msra.mxu0 0.0
        %6616 = vmatprep.subr.mxu0 0.0
        %6617 = vmatpush1.xpose.msra.mxu0 0.0
        %6618 = vmatprep.subr.mxu0 0.0
        %6619 = vmatpush1.xpose.msra.mxu0 0.0
        %6620 = vmatprep.subr.mxu0 0.0
        %6621 = vmatpush1.xpose.msra.mxu0 0.0
        %6622 = vmatprep.subr.mxu0 0.0
        %6623 = vmatpush1.xpose.msra.mxu0 0.0
        %6624 = vmatprep.subr.mxu0 0.0
        %6625 = vmatpush1.xpose.msra.mxu0 0.0
        %6626 = vmatprep.subr.mxu0 0.0
        %6627 = vmatpush1.xpose.msra.mxu0 0.0
        %6628 = vmatprep.subr.mxu0 0.0
        %6629 = vmatpush1.xpose.msra.mxu0 0.0
        %6630 = vmatprep.subr.mxu0 0.0
        %6631 = vmatpush1.xpose.msra.mxu0 0.0
        %6632 = vmatprep.subr.mxu0 0.0
        %6633 = vmatpush1.xpose.msra.mxu0 0.0
        %6634 = vmatprep.subr.mxu0 0.0
        %6635 = vmatpush1.xpose.msra.mxu0 0.0
        %6636 = vmatprep.subr.mxu0 0.0
        %6637 = vmatpush1.xpose.msra.mxu0 0.0
        %6638 = vmatprep.subr.mxu0 0.0
        %6639 = vmatpush1.xpose.msra.mxu0 0.0
        %6640 = vmatprep.subr.mxu0 0.0
        %6641 = vmatpush1.xpose.msra.mxu0 0.0
        %6642 = vmatprep.subr.mxu0 0.0
        %6643 = vmatpush1.xpose.msra.mxu0 0.0
        %6644 = vmatprep.subr.mxu0 0.0
        %6645 = vmatpush1.xpose.msra.mxu0 0.0
        %6646 = vmatprep.subr.mxu0 0.0
        %6647 = vmatpush1.xpose.msra.mxu0 0.0
        %6648 = vmatprep.subr.mxu0 0.0
        %6649 = vmatpush1.xpose.msra.mxu0 0.0
        %6650 = vmatprep.subr.mxu0 0.0
        %6651 = vmatpush1.xpose.msra.mxu0 0.0
        %6652 = vmatprep.subr.mxu0 0.0
        %6653 = vmatpush1.xpose.msra.mxu0 0.0
        %6654 = vmatprep.subr.mxu0 0.0
        %6655 = vmatpush1.xpose.msra.mxu0 0.0
        %6656 = vmatprep.mubr.f32.mxu0 0.0
        %6657 = vmatmul.mubr.f32.gmra.mrb[0].mxu0 %v6588
        %v6658 = vpop.f32.mrb[0].mxu0
        %v6659 = vadd.f32 0.0, %v6658
        %v6660 = vpop.f32.mrb[0].mxu0
        %6661 = vdwg.mxu0
        %6662 = vrot.lane.b32.xlu0 %v5921, 112
        %v6663 = vpop.permute.xlu0 %6662
        %6664 = vrot.lane.b32.xlu0 %v5923, 112
        %v6665 = vpop.permute.xlu0 %6664
        %v6666 = vsel %vm2339, %v6663, 0
        %v6668 = vsel %vm2339, %v6665, 0
        %6670 = vmatprep.subr.mxu0 0.0
        %6671 = vmatpush1.xpose.msra.mxu0 %v6668
        %6672 = vmatprep.subr.mxu0 0.0
        %6673 = vmatpush1.xpose.msra.mxu0 0.0
        %6674 = vmatprep.subr.mxu0 0.0
        %6675 = vmatpush1.xpose.msra.mxu0 0.0
        %6676 = vmatprep.subr.mxu0 0.0
        %6677 = vmatpush1.xpose.msra.mxu0 0.0
        %6678 = vmatprep.subr.mxu0 0.0
        %6679 = vmatpush1.xpose.msra.mxu0 0.0
        %6680 = vmatprep.subr.mxu0 0.0
        %6681 = vmatpush1.xpose.msra.mxu0 0.0
        %6682 = vmatprep.subr.mxu0 0.0
        %6683 = vmatpush1.xpose.msra.mxu0 0.0
        %6684 = vmatprep.subr.mxu0 0.0
        %6685 = vmatpush1.xpose.msra.mxu0 0.0
        %6686 = vmatprep.subr.mxu0 0.0
        %6687 = vmatpush1.xpose.msra.mxu0 0.0
        %6688 = vmatprep.subr.mxu0 0.0
        %6689 = vmatpush1.xpose.msra.mxu0 0.0
        %6690 = vmatprep.subr.mxu0 0.0
        %6691 = vmatpush1.xpose.msra.mxu0 0.0
        %6692 = vmatprep.subr.mxu0 0.0
        %6693 = vmatpush1.xpose.msra.mxu0 0.0
        %6694 = vmatprep.subr.mxu0 0.0
        %6695 = vmatpush1.xpose.msra.mxu0 0.0
        %6696 = vmatprep.subr.mxu0 0.0
        %6697 = vmatpush1.xpose.msra.mxu0 0.0
        %6698 = vmatprep.subr.mxu0 0.0
        %6699 = vmatpush1.xpose.msra.mxu0 0.0
        %6700 = vmatprep.subr.mxu0 0.0
        %6701 = vmatpush1.xpose.msra.mxu0 0.0
        %6702 = vmatprep.subr.mxu0 0.0
        %6703 = vmatpush1.xpose.msra.mxu0 0.0
        %6704 = vmatprep.subr.mxu0 0.0
        %6705 = vmatpush1.xpose.msra.mxu0 0.0
        %6706 = vmatprep.subr.mxu0 0.0
        %6707 = vmatpush1.xpose.msra.mxu0 0.0
        %6708 = vmatprep.subr.mxu0 0.0
        %6709 = vmatpush1.xpose.msra.mxu0 0.0
        %6710 = vmatprep.subr.mxu0 0.0
        %6711 = vmatpush1.xpose.msra.mxu0 0.0
        %6712 = vmatprep.subr.mxu0 0.0
        %6713 = vmatpush1.xpose.msra.mxu0 0.0
        %6714 = vmatprep.subr.mxu0 0.0
        %6715 = vmatpush1.xpose.msra.mxu0 0.0
        %6716 = vmatprep.subr.mxu0 0.0
        %6717 = vmatpush1.xpose.msra.mxu0 0.0
        %6718 = vmatprep.subr.mxu0 0.0
        %6719 = vmatpush1.xpose.msra.mxu0 0.0
        %6720 = vmatprep.subr.mxu0 0.0
        %6721 = vmatpush1.xpose.msra.mxu0 0.0
        %6722 = vmatprep.subr.mxu0 0.0
        %6723 = vmatpush1.xpose.msra.mxu0 0.0
        %6724 = vmatprep.subr.mxu0 0.0
        %6725 = vmatpush1.xpose.msra.mxu0 0.0
        %6726 = vmatprep.subr.mxu0 0.0
        %6727 = vmatpush1.xpose.msra.mxu0 0.0
        %6728 = vmatprep.subr.mxu0 0.0
        %6729 = vmatpush1.xpose.msra.mxu0 0.0
        %6730 = vmatprep.subr.mxu0 0.0
        %6731 = vmatpush1.xpose.msra.mxu0 0.0
        %6732 = vmatprep.subr.mxu0 0.0
        %6733 = vmatpush1.xpose.msra.mxu0 0.0
        %6734 = vmatprep.mubr.f32.mxu0 0.0
        %6735 = vmatmul.mubr.f32.gmra.mrb[0].mxu0 %v6666
        %v6736 = vpop.f32.mrb[0].mxu0
        %v6737 = vadd.f32 0.0, %v6736
        %v6738 = vpop.f32.mrb[0].mxu0
        %6739 = vdwg.mxu0
        %v6740 = vmul.f32 %v6659, 0.35355338
        %v6741 = vmul.f32 %v6737, 0.35355338
        %v6742 = vsel %vm4445, %v6740, -inf
        %6743 = vmax.xlane.f32.xlu0 %v6742
        %v6744 = vpop.xlane.xlu0 %6743
        %v6745 = vsel %vm4445, %v6741, -inf
        %6746 = vmax.xlane.f32.xlu0 %v6745
        %v6747 = vpop.xlane.xlu0 %6746
        %v6748 = vsub.f32 %v6740, %v6744
        %v6749 = vsub.f32 %v6741, %v6747
        %v6750 = vmul.f32 %v6748, 1.442695
        %v6751 = vpow.pop %v6750
        %v6752 = vmul.f32 %v6749, 1.442695
        %v6753 = vpow.pop %v6752
        %v6754 = vsel %vm4445, %v6751, 0.0
        %6755 = vadd.xlane.f32.xlu0 %v6754
        %v6756 = vpop.xlane.xlu0 %6755
        %v6757 = vsel %vm4445, %v6753, 0.0
        %6758 = vadd.xlane.f32.xlu0 %v6757
        %v6759 = vpop.xlane.xlu0 %6758
        %v6760 = vrcp.pop %v6756
        %v6761 = vmul.f32 %v6751, %v6760
        %v6762 = vrcp.pop %v6759
        %v6763 = vmul.f32 %v6753, %v6762
        %6764 = vrot.lane.b32.xlu0 %v5917, 80
        %v6765 = vpop.permute.xlu0 %6764
        %v6767 = vsel %vm2166, %v6761, 0
        %v6769 = vsel %vm2169, %v6765, 0
        %6771 = vmatprep.subr.mxu0 0.0
        %6772 = vmatpush1.msra.mxu0 %v6769
        %6773 = vmatprep.subr.mxu0 0.0
        %6774 = vmatpush1.msra.mxu0 0.0
        %6775 = vmatprep.subr.mxu0 0.0
        %6776 = vmatpush1.msra.mxu0 0.0
        %6777 = vmatprep.subr.mxu0 0.0
        %6778 = vmatpush1.msra.mxu0 0.0
        %6779 = vmatprep.subr.mxu0 0.0
        %6780 = vmatpush1.msra.mxu0 0.0
        %6781 = vmatprep.subr.mxu0 0.0
        %6782 = vmatpush1.msra.mxu0 0.0
        %6783 = vmatprep.subr.mxu0 0.0
        %6784 = vmatpush1.msra.mxu0 0.0
        %6785 = vmatprep.subr.mxu0 0.0
        %6786 = vmatpush1.msra.mxu0 0.0
        %6787 = vmatprep.subr.mxu0 0.0
        %6788 = vmatpush1.msra.mxu0 0.0
        %6789 = vmatprep.subr.mxu0 0.0
        %6790 = vmatpush1.msra.mxu0 0.0
        %6791 = vmatprep.subr.mxu0 0.0
        %6792 = vmatpush1.msra.mxu0 0.0
        %6793 = vmatprep.subr.mxu0 0.0
        %6794 = vmatpush1.msra.mxu0 0.0
        %6795 = vmatprep.subr.mxu0 0.0
        %6796 = vmatpush1.msra.mxu0 0.0
        %6797 = vmatprep.subr.mxu0 0.0
        %6798 = vmatpush1.msra.mxu0 0.0
        %6799 = vmatprep.subr.mxu0 0.0
        %6800 = vmatpush1.msra.mxu0 0.0
        %6801 = vmatprep.subr.mxu0 0.0
        %6802 = vmatpush1.msra.mxu0 0.0
        %6803 = vmatprep.subr.mxu0 0.0
        %6804 = vmatpush1.msra.mxu0 0.0
        %6805 = vmatprep.subr.mxu0 0.0
        %6806 = vmatpush1.msra.mxu0 0.0
        %6807 = vmatprep.subr.mxu0 0.0
        %6808 = vmatpush1.msra.mxu0 0.0
        %6809 = vmatprep.subr.mxu0 0.0
        %6810 = vmatpush1.msra.mxu0 0.0
        %6811 = vmatprep.subr.mxu0 0.0
        %6812 = vmatpush1.msra.mxu0 0.0
        %6813 = vmatprep.subr.mxu0 0.0
        %6814 = vmatpush1.msra.mxu0 0.0
        %6815 = vmatprep.subr.mxu0 0.0
        %6816 = vmatpush1.msra.mxu0 0.0
        %6817 = vmatprep.subr.mxu0 0.0
        %6818 = vmatpush1.msra.mxu0 0.0
        %6819 = vmatprep.subr.mxu0 0.0
        %6820 = vmatpush1.msra.mxu0 0.0
        %6821 = vmatprep.subr.mxu0 0.0
        %6822 = vmatpush1.msra.mxu0 0.0
        %6823 = vmatprep.subr.mxu0 0.0
        %6824 = vmatpush1.msra.mxu0 0.0
        %6825 = vmatprep.subr.mxu0 0.0
        %6826 = vmatpush1.msra.mxu0 0.0
        %6827 = vmatprep.subr.mxu0 0.0
        %6828 = vmatpush1.msra.mxu0 0.0
        %6829 = vmatprep.subr.mxu0 0.0
        %6830 = vmatpush1.msra.mxu0 0.0
        %6831 = vmatprep.subr.mxu0 0.0
        %6832 = vmatpush1.msra.mxu0 0.0
        %6833 = vmatprep.subr.mxu0 0.0
        %6834 = vmatpush1.msra.mxu0 0.0
        %6835 = vmatprep.mubr.f32.mxu0 0.0
        %6836 = vmatmul.mubr.f32.gmra.mrb[0].mxu0 %v6767
        %v6837 = vpop.f32.mrb[0].mxu0
        %v6838 = vadd.f32 0.0, %v6837
        %v6839 = vpop.f32.mrb[0].mxu0
        %6840 = vdwg.mxu0
        %6841 = vrot.lane.b32.xlu0 %v5923, 80
        %v6842 = vpop.permute.xlu0 %6841
        %v6844 = vsel %vm2166, %v6763, 0
        %v6846 = vsel %vm2169, %v6842, 0
        %6848 = vmatprep.subr.mxu0 0.0
        %6849 = vmatpush1.msra.mxu0 %v6846
        %6850 = vmatprep.subr.mxu0 0.0
        %6851 = vmatpush1.msra.mxu0 0.0
        %6852 = vmatprep.subr.mxu0 0.0
        %6853 = vmatpush1.msra.mxu0 0.0
        %6854 = vmatprep.subr.mxu0 0.0
        %6855 = vmatpush1.msra.mxu0 0.0
        %6856 = vmatprep.subr.mxu0 0.0
        %6857 = vmatpush1.msra.mxu0 0.0
        %6858 = vmatprep.subr.mxu0 0.0
        %6859 = vmatpush1.msra.mxu0 0.0
        %6860 = vmatprep.subr.mxu0 0.0
        %6861 = vmatpush1.msra.mxu0 0.0
        %6862 = vmatprep.subr.mxu0 0.0
        %6863 = vmatpush1.msra.mxu0 0.0
        %6864 = vmatprep.subr.mxu0 0.0
        %6865 = vmatpush1.msra.mxu0 0.0
        %6866 = vmatprep.subr.mxu0 0.0
        %6867 = vmatpush1.msra.mxu0 0.0
        %6868 = vmatprep.subr.mxu0 0.0
        %6869 = vmatpush1.msra.mxu0 0.0
        %6870 = vmatprep.subr.mxu0 0.0
        %6871 = vmatpush1.msra.mxu0 0.0
        %6872 = vmatprep.subr.mxu0 0.0
        %6873 = vmatpush1.msra.mxu0 0.0
        %6874 = vmatprep.subr.mxu0 0.0
        %6875 = vmatpush1.msra.mxu0 0.0
        %6876 = vmatprep.subr.mxu0 0.0
        %6877 = vmatpush1.msra.mxu0 0.0
        %6878 = vmatprep.subr.mxu0 0.0
        %6879 = vmatpush1.msra.mxu0 0.0
        %6880 = vmatprep.subr.mxu0 0.0
        %6881 = vmatpush1.msra.mxu0 0.0
        %6882 = vmatprep.subr.mxu0 0.0
        %6883 = vmatpush1.msra.mxu0 0.0
        %6884 = vmatprep.subr.mxu0 0.0
        %6885 = vmatpush1.msra.mxu0 0.0
        %6886 = vmatprep.subr.mxu0 0.0
        %6887 = vmatpush1.msra.mxu0 0.0
        %6888 = vmatprep.subr.mxu0 0.0
        %6889 = vmatpush1.msra.mxu0 0.0
        %6890 = vmatprep.subr.mxu0 0.0
        %6891 = vmatpush1.msra.mxu0 0.0
        %6892 = vmatprep.subr.mxu0 0.0
        %6893 = vmatpush1.msra.mxu0 0.0
        %6894 = vmatprep.subr.mxu0 0.0
        %6895 = vmatpush1.msra.mxu0 0.0
        %6896 = vmatprep.subr.mxu0 0.0
        %6897 = vmatpush1.msra.mxu0 0.0
        %6898 = vmatprep.subr.mxu0 0.0
        %6899 = vmatpush1.msra.mxu0 0.0
        %6900 = vmatprep.subr.mxu0 0.0
        %6901 = vmatpush1.msra.mxu0 0.0
        %6902 = vmatprep.subr.mxu0 0.0
        %6903 = vmatpush1.msra.mxu0 0.0
        %6904 = vmatprep.subr.mxu0 0.0
        %6905 = vmatpush1.msra.mxu0 0.0
        %6906 = vmatprep.subr.mxu0 0.0
        %6907 = vmatpush1.msra.mxu0 0.0
        %6908 = vmatprep.subr.mxu0 0.0
        %6909 = vmatpush1.msra.mxu0 0.0
        %6910 = vmatprep.subr.mxu0 0.0
        %6911 = vmatpush1.msra.mxu0 0.0
        %6912 = vmatprep.mubr.f32.mxu0 0.0
        %6913 = vmatmul.mubr.f32.gmra.mrb[0].mxu0 %v6844
        %v6914 = vpop.f32.mrb[0].mxu0
        %v6915 = vadd.f32 0.0, %v6914
        %v6916 = vpop.f32.mrb[0].mxu0
        %6917 = vdwg.mxu0
        %6918 = vrot.lane.b32.xlu0 %v5838, 104
        %v6919 = vpop.permute.xlu0 %6918
        %6920 = vrot.lane.b32.xlu0 %v5917, 104
        %v6921 = vpop.permute.xlu0 %6920
        %v6922 = vsel %vm2339, %v6919, 0
        %v6924 = vsel %vm2339, %v6921, 0
        %6926 = vmatprep.subr.mxu0 0.0
        %6927 = vmatpush1.xpose.msra.mxu0 %v6924
        %6928 = vmatprep.subr.mxu0 0.0
        %6929 = vmatpush1.xpose.msra.mxu0 0.0
        %6930 = vmatprep.subr.mxu0 0.0
        %6931 = vmatpush1.xpose.msra.mxu0 0.0
        %6932 = vmatprep.subr.mxu0 0.0
        %6933 = vmatpush1.xpose.msra.mxu0 0.0
        %6934 = vmatprep.subr.mxu0 0.0
        %6935 = vmatpush1.xpose.msra.mxu0 0.0
        %6936 = vmatprep.subr.mxu0 0.0
        %6937 = vmatpush1.xpose.msra.mxu0 0.0
        %6938 = vmatprep.subr.mxu0 0.0
        %6939 = vmatpush1.xpose.msra.mxu0 0.0
        %6940 = vmatprep.subr.mxu0 0.0
        %6941 = vmatpush1.xpose.msra.mxu0 0.0
        %6942 = vmatprep.subr.mxu0 0.0
        %6943 = vmatpush1.xpose.msra.mxu0 0.0
        %6944 = vmatprep.subr.mxu0 0.0
        %6945 = vmatpush1.xpose.msra.mxu0 0.0
        %6946 = vmatprep.subr.mxu0 0.0
        %6947 = vmatpush1.xpose.msra.mxu0 0.0
        %6948 = vmatprep.subr.mxu0 0.0
        %6949 = vmatpush1.xpose.msra.mxu0 0.0
        %6950 = vmatprep.subr.mxu0 0.0
        %6951 = vmatpush1.xpose.msra.mxu0 0.0
        %6952 = vmatprep.subr.mxu0 0.0
        %6953 = vmatpush1.xpose.msra.mxu0 0.0
        %6954 = vmatprep.subr.mxu0 0.0
        %6955 = vmatpush1.xpose.msra.mxu0 0.0
        %6956 = vmatprep.subr.mxu0 0.0
        %6957 = vmatpush1.xpose.msra.mxu0 0.0
        %6958 = vmatprep.subr.mxu0 0.0
        %6959 = vmatpush1.xpose.msra.mxu0 0.0
        %6960 = vmatprep.subr.mxu0 0.0
        %6961 = vmatpush1.xpose.msra.mxu0 0.0
        %6962 = vmatprep.subr.mxu0 0.0
        %6963 = vmatpush1.xpose.msra.mxu0 0.0
        %6964 = vmatprep.subr.mxu0 0.0
        %6965 = vmatpush1.xpose.msra.mxu0 0.0
        %6966 = vmatprep.subr.mxu0 0.0
        %6967 = vmatpush1.xpose.msra.mxu0 0.0
        %6968 = vmatprep.subr.mxu0 0.0
        %6969 = vmatpush1.xpose.msra.mxu0 0.0
        %6970 = vmatprep.subr.mxu0 0.0
        %6971 = vmatpush1.xpose.msra.mxu0 0.0
        %6972 = vmatprep.subr.mxu0 0.0
        %6973 = vmatpush1.xpose.msra.mxu0 0.0
        %6974 = vmatprep.subr.mxu0 0.0
        %6975 = vmatpush1.xpose.msra.mxu0 0.0
        %6976 = vmatprep.subr.mxu0 0.0
        %6977 = vmatpush1.xpose.msra.mxu0 0.0
        %6978 = vmatprep.subr.mxu0 0.0
        %6979 = vmatpush1.xpose.msra.mxu0 0.0
        %6980 = vmatprep.subr.mxu0 0.0
        %6981 = vmatpush1.xpose.msra.mxu0 0.0
        %6982 = vmatprep.subr.mxu0 0.0
        %6983 = vmatpush1.xpose.msra.mxu0 0.0
        %6984 = vmatprep.subr.mxu0 0.0
        %6985 = vmatpush1.xpose.msra.mxu0 0.0
        %6986 = vmatprep.subr.mxu0 0.0
        %6987 = vmatpush1.xpose.msra.mxu0 0.0
        %6988 = vmatprep.subr.mxu0 0.0
        %6989 = vmatpush1.xpose.msra.mxu0 0.0
        %6990 = vmatprep.mubr.f32.mxu0 0.0
        %6991 = vmatmul.mubr.f32.gmra.mrb[0].mxu0 %v6922
        %v6992 = vpop.f32.mrb[0].mxu0
        %v6993 = vadd.f32 0.0, %v6992
        %v6994 = vpop.f32.mrb[0].mxu0
        %6995 = vdwg.mxu0
        %6996 = vrot.lane.b32.xlu0 %v5921, 104
        %v6997 = vpop.permute.xlu0 %6996
        %6998 = vrot.lane.b32.xlu0 %v5923, 104
        %v6999 = vpop.permute.xlu0 %6998
        %v7000 = vsel %vm2339, %v6997, 0
        %v7002 = vsel %vm2339, %v6999, 0
        %7004 = vmatprep.subr.mxu0 0.0
        %7005 = vmatpush1.xpose.msra.mxu0 %v7002
        %7006 = vmatprep.subr.mxu0 0.0
        %7007 = vmatpush1.xpose.msra.mxu0 0.0
        %7008 = vmatprep.subr.mxu0 0.0
        %7009 = vmatpush1.xpose.msra.mxu0 0.0
        %7010 = vmatprep.subr.mxu0 0.0
        %7011 = vmatpush1.xpose.msra.mxu0 0.0
        %7012 = vmatprep.subr.mxu0 0.0
        %7013 = vmatpush1.xpose.msra.mxu0 0.0
        %7014 = vmatprep.subr.mxu0 0.0
        %7015 = vmatpush1.xpose.msra.mxu0 0.0
        %7016 = vmatprep.subr.mxu0 0.0
        %7017 = vmatpush1.xpose.msra.mxu0 0.0
        %7018 = vmatprep.subr.mxu0 0.0
        %7019 = vmatpush1.xpose.msra.mxu0 0.0
        %7020 = vmatprep.subr.mxu0 0.0
        %7021 = vmatpush1.xpose.msra.mxu0 0.0
        %7022 = vmatprep.subr.mxu0 0.0
        %7023 = vmatpush1.xpose.msra.mxu0 0.0
        %7024 = vmatprep.subr.mxu0 0.0
        %7025 = vmatpush1.xpose.msra.mxu0 0.0
        %7026 = vmatprep.subr.mxu0 0.0
        %7027 = vmatpush1.xpose.msra.mxu0 0.0
        %7028 = vmatprep.subr.mxu0 0.0
        %7029 = vmatpush1.xpose.msra.mxu0 0.0
        %7030 = vmatprep.subr.mxu0 0.0
        %7031 = vmatpush1.xpose.msra.mxu0 0.0
        %7032 = vmatprep.subr.mxu0 0.0
        %7033 = vmatpush1.xpose.msra.mxu0 0.0
        %7034 = vmatprep.subr.mxu0 0.0
        %7035 = vmatpush1.xpose.msra.mxu0 0.0
        %7036 = vmatprep.subr.mxu0 0.0
        %7037 = vmatpush1.xpose.msra.mxu0 0.0
        %7038 = vmatprep.subr.mxu0 0.0
        %7039 = vmatpush1.xpose.msra.mxu0 0.0
        %7040 = vmatprep.subr.mxu0 0.0
        %7041 = vmatpush1.xpose.msra.mxu0 0.0
        %7042 = vmatprep.subr.mxu0 0.0
        %7043 = vmatpush1.xpose.msra.mxu0 0.0
        %7044 = vmatprep.subr.mxu0 0.0
        %7045 = vmatpush1.xpose.msra.mxu0 0.0
        %7046 = vmatprep.subr.mxu0 0.0
        %7047 = vmatpush1.xpose.msra.mxu0 0.0
        %7048 = vmatprep.subr.mxu0 0.0
        %7049 = vmatpush1.xpose.msra.mxu0 0.0
        %7050 = vmatprep.subr.mxu0 0.0
        %7051 = vmatpush1.xpose.msra.mxu0 0.0
        %7052 = vmatprep.subr.mxu0 0.0
        %7053 = vmatpush1.xpose.msra.mxu0 0.0
        %7054 = vmatprep.subr.mxu0 0.0
        %7055 = vmatpush1.xpose.msra.mxu0 0.0
        %7056 = vmatprep.subr.mxu0 0.0
        %7057 = vmatpush1.xpose.msra.mxu0 0.0
        %7058 = vmatprep.subr.mxu0 0.0
        %7059 = vmatpush1.xpose.msra.mxu0 0.0
        %7060 = vmatprep.subr.mxu0 0.0
        %7061 = vmatpush1.xpose.msra.mxu0 0.0
        %7062 = vmatprep.subr.mxu0 0.0
        %7063 = vmatpush1.xpose.msra.mxu0 0.0
        %7064 = vmatprep.subr.mxu0 0.0
        %7065 = vmatpush1.xpose.msra.mxu0 0.0
        %7066 = vmatprep.subr.mxu0 0.0
        %7067 = vmatpush1.xpose.msra.mxu0 0.0
        %7068 = vmatprep.mubr.f32.mxu0 0.0
        %7069 = vmatmul.mubr.f32.gmra.mrb[0].mxu0 %v7000
        %v7070 = vpop.f32.mrb[0].mxu0
        %v7071 = vadd.f32 0.0, %v7070
        %v7072 = vpop.f32.mrb[0].mxu0
        %7073 = vdwg.mxu0
        %v7074 = vmul.f32 %v6993, 0.35355338
        %v7075 = vmul.f32 %v7071, 0.35355338
        %v7076 = vsel %vm4445, %v7074, -inf
        %7077 = vmax.xlane.f32.xlu0 %v7076
        %v7078 = vpop.xlane.xlu0 %7077
        %v7079 = vsel %vm4445, %v7075, -inf
        %7080 = vmax.xlane.f32.xlu0 %v7079
        %v7081 = vpop.xlane.xlu0 %7080
        %v7082 = vsub.f32 %v7074, %v7078
        %v7083 = vsub.f32 %v7075, %v7081
        %v7084 = vmul.f32 %v7082, 1.442695
        %v7085 = vpow.pop %v7084
        %v7086 = vmul.f32 %v7083, 1.442695
        %v7087 = vpow.pop %v7086
        %v7088 = vsel %vm4445, %v7085, 0.0
        %7089 = vadd.xlane.f32.xlu0 %v7088
        %v7090 = vpop.xlane.xlu0 %7089
        %v7091 = vsel %vm4445, %v7087, 0.0
        %7092 = vadd.xlane.f32.xlu0 %v7091
        %v7093 = vpop.xlane.xlu0 %7092
        %v7094 = vrcp.pop %v7090
        %v7095 = vmul.f32 %v7085, %v7094
        %v7096 = vrcp.pop %v7093
        %v7097 = vmul.f32 %v7087, %v7096
        %7098 = vrot.lane.b32.xlu0 %v5917, 72
        %v7099 = vpop.permute.xlu0 %7098
        %v7101 = vsel %vm2166, %v7095, 0
        %v7103 = vsel %vm2169, %v7099, 0
        %7105 = vmatprep.subr.mxu0 0.0
        %7106 = vmatpush1.msra.mxu0 %v7103
        %7107 = vmatprep.subr.mxu0 0.0
        %7108 = vmatpush1.msra.mxu0 0.0
        %7109 = vmatprep.subr.mxu0 0.0
        %7110 = vmatpush1.msra.mxu0 0.0
        %7111 = vmatprep.subr.mxu0 0.0
        %7112 = vmatpush1.msra.mxu0 0.0
        %7113 = vmatprep.subr.mxu0 0.0
        %7114 = vmatpush1.msra.mxu0 0.0
        %7115 = vmatprep.subr.mxu0 0.0
        %7116 = vmatpush1.msra.mxu0 0.0
        %7117 = vmatprep.subr.mxu0 0.0
        %7118 = vmatpush1.msra.mxu0 0.0
        %7119 = vmatprep.subr.mxu0 0.0
        %7120 = vmatpush1.msra.mxu0 0.0
        %7121 = vmatprep.subr.mxu0 0.0
        %7122 = vmatpush1.msra.mxu0 0.0
        %7123 = vmatprep.subr.mxu0 0.0
        %7124 = vmatpush1.msra.mxu0 0.0
        %7125 = vmatprep.subr.mxu0 0.0
        %7126 = vmatpush1.msra.mxu0 0.0
        %7127 = vmatprep.subr.mxu0 0.0
        %7128 = vmatpush1.msra.mxu0 0.0
        %7129 = vmatprep.subr.mxu0 0.0
        %7130 = vmatpush1.msra.mxu0 0.0
        %7131 = vmatprep.subr.mxu0 0.0
        %7132 = vmatpush1.msra.mxu0 0.0
        %7133 = vmatprep.subr.mxu0 0.0
        %7134 = vmatpush1.msra.mxu0 0.0
        %7135 = vmatprep.subr.mxu0 0.0
        %7136 = vmatpush1.msra.mxu0 0.0
        %7137 = vmatprep.subr.mxu0 0.0
        %7138 = vmatpush1.msra.mxu0 0.0
        %7139 = vmatprep.subr.mxu0 0.0
        %7140 = vmatpush1.msra.mxu0 0.0
        %7141 = vmatprep.subr.mxu0 0.0
        %7142 = vmatpush1.msra.mxu0 0.0
        %7143 = vmatprep.subr.mxu0 0.0
        %7144 = vmatpush1.msra.mxu0 0.0
        %7145 = vmatprep.subr.mxu0 0.0
        %7146 = vmatpush1.msra.mxu0 0.0
        %7147 = vmatprep.subr.mxu0 0.0
        %7148 = vmatpush1.msra.mxu0 0.0
        %7149 = vmatprep.subr.mxu0 0.0
        %7150 = vmatpush1.msra.mxu0 0.0
        %7151 = vmatprep.subr.mxu0 0.0
        %7152 = vmatpush1.msra.mxu0 0.0
        %7153 = vmatprep.subr.mxu0 0.0
        %7154 = vmatpush1.msra.mxu0 0.0
        %7155 = vmatprep.subr.mxu0 0.0
        %7156 = vmatpush1.msra.mxu0 0.0
        %7157 = vmatprep.subr.mxu0 0.0
        %7158 = vmatpush1.msra.mxu0 0.0
        %7159 = vmatprep.subr.mxu0 0.0
        %7160 = vmatpush1.msra.mxu0 0.0
        %7161 = vmatprep.subr.mxu0 0.0
        %7162 = vmatpush1.msra.mxu0 0.0
        %7163 = vmatprep.subr.mxu0 0.0
        %7164 = vmatpush1.msra.mxu0 0.0
        %7165 = vmatprep.subr.mxu0 0.0
        %7166 = vmatpush1.msra.mxu0 0.0
        %7167 = vmatprep.subr.mxu0 0.0
        %7168 = vmatpush1.msra.mxu0 0.0
        %7169 = vmatprep.mubr.f32.mxu0 0.0
        %7170 = vmatmul.mubr.f32.gmra.mrb[0].mxu0 %v7101
        %v7171 = vpop.f32.mrb[0].mxu0
        %v7172 = vadd.f32 0.0, %v7171
        %v7173 = vpop.f32.mrb[0].mxu0
        %7174 = vdwg.mxu0
        %7175 = vrot.lane.b32.xlu0 %v5923, 72
        %v7176 = vpop.permute.xlu0 %7175
        %v7178 = vsel %vm2166, %v7097, 0
        %v7180 = vsel %vm2169, %v7176, 0
        %7182 = vmatprep.subr.mxu0 0.0
        %7183 = vmatpush1.msra.mxu0 %v7180
        %7184 = vmatprep.subr.mxu0 0.0
        %7185 = vmatpush1.msra.mxu0 0.0
        %7186 = vmatprep.subr.mxu0 0.0
        %7187 = vmatpush1.msra.mxu0 0.0
        %7188 = vmatprep.subr.mxu0 0.0
        %7189 = vmatpush1.msra.mxu0 0.0
        %7190 = vmatprep.subr.mxu0 0.0
        %7191 = vmatpush1.msra.mxu0 0.0
        %7192 = vmatprep.subr.mxu0 0.0
        %7193 = vmatpush1.msra.mxu0 0.0
        %7194 = vmatprep.subr.mxu0 0.0
        %7195 = vmatpush1.msra.mxu0 0.0
        %7196 = vmatprep.subr.mxu0 0.0
        %7197 = vmatpush1.msra.mxu0 0.0
        %7198 = vmatprep.subr.mxu0 0.0
        %7199 = vmatpush1.msra.mxu0 0.0
        %7200 = vmatprep.subr.mxu0 0.0
        %7201 = vmatpush1.msra.mxu0 0.0
        %7202 = vmatprep.subr.mxu0 0.0
        %7203 = vmatpush1.msra.mxu0 0.0
        %7204 = vmatprep.subr.mxu0 0.0
        %7205 = vmatpush1.msra.mxu0 0.0
        %7206 = vmatprep.subr.mxu0 0.0
        %7207 = vmatpush1.msra.mxu0 0.0
        %7208 = vmatprep.subr.mxu0 0.0
        %7209 = vmatpush1.msra.mxu0 0.0
        %7210 = vmatprep.subr.mxu0 0.0
        %7211 = vmatpush1.msra.mxu0 0.0
        %7212 = vmatprep.subr.mxu0 0.0
        %7213 = vmatpush1.msra.mxu0 0.0
        %7214 = vmatprep.subr.mxu0 0.0
        %7215 = vmatpush1.msra.mxu0 0.0
        %7216 = vmatprep.subr.mxu0 0.0
        %7217 = vmatpush1.msra.mxu0 0.0
        %7218 = vmatprep.subr.mxu0 0.0
        %7219 = vmatpush1.msra.mxu0 0.0
        %7220 = vmatprep.subr.mxu0 0.0
        %7221 = vmatpush1.msra.mxu0 0.0
        %7222 = vmatprep.subr.mxu0 0.0
        %7223 = vmatpush1.msra.mxu0 0.0
        %7224 = vmatprep.subr.mxu0 0.0
        %7225 = vmatpush1.msra.mxu0 0.0
        %7226 = vmatprep.subr.mxu0 0.0
        %7227 = vmatpush1.msra.mxu0 0.0
        %7228 = vmatprep.subr.mxu0 0.0
        %7229 = vmatpush1.msra.mxu0 0.0
        %7230 = vmatprep.subr.mxu0 0.0
        %7231 = vmatpush1.msra.mxu0 0.0
        %7232 = vmatprep.subr.mxu0 0.0
        %7233 = vmatpush1.msra.mxu0 0.0
        %7234 = vmatprep.subr.mxu0 0.0
        %7235 = vmatpush1.msra.mxu0 0.0
        %7236 = vmatprep.subr.mxu0 0.0
        %7237 = vmatpush1.msra.mxu0 0.0
        %7238 = vmatprep.subr.mxu0 0.0
        %7239 = vmatpush1.msra.mxu0 0.0
        %7240 = vmatprep.subr.mxu0 0.0
        %7241 = vmatpush1.msra.mxu0 0.0
        %7242 = vmatprep.subr.mxu0 0.0
        %7243 = vmatpush1.msra.mxu0 0.0
        %7244 = vmatprep.subr.mxu0 0.0
        %7245 = vmatpush1.msra.mxu0 0.0
        %7246 = vmatprep.mubr.f32.mxu0 0.0
        %7247 = vmatmul.mubr.f32.gmra.mrb[0].mxu0 %v7178
        %v7248 = vpop.f32.mrb[0].mxu0
        %v7249 = vadd.f32 0.0, %v7248
        %v7250 = vpop.f32.mrb[0].mxu0
        %7251 = vdwg.mxu0
        %v7254 = vcombine.low %v6170, %v6247
        %v7258 = vcombine.low %v6504, %v6581
        %7259 = vrot.lane.b32.xlu0 %v7258, 8
        %v7260 = vpop.permute.xlu0 %7259
        %v7264 = vcombine.low %v6838, %v6915
        %7265 = vrot.lane.b32.xlu0 %v7264, 16
        %v7266 = vpop.permute.xlu0 %7265
        %v7270 = vcombine.low %v7172, %v7249
        %7271 = vrot.lane.b32.xlu0 %v7270, 24
        %v7272 = vpop.permute.xlu0 %7271
        %v7274 = vsel %vm2339, %v7254, %v7260
        %v7275 = vsel %vm3689, %v7274, %v7266
        %v7276 = vsel %vm3692, %v7275, %v7272
        %v7278 = vlaneseq
        %v7279 = vshrl.u32 %v7278, 7
        %v7280 = vsub.s32 0, %v7279
        %v7281 = vrot.slane %v2016, %v7280
        %v7284 = vsel %vm2254, %v7276, 0
        %7286 = vmatprep.subr.mxu0 0.0
        %7287 = vmatpush1.msra.mxu0 %v2017
        %7288 = vmatprep.subr.mxu0 0.0
        %7289 = vmatpush1.msra.mxu0 %v2018
        %7290 = vmatprep.subr.mxu0 0.0
        %7291 = vmatpush1.msra.mxu0 %v2019
        %7292 = vmatprep.subr.mxu0 0.0
        %7293 = vmatpush1.msra.mxu0 %v2020
        %7294 = vmatprep.subr.mxu0 0.0
        %7295 = vmatpush1.msra.mxu0 0.0
        %7296 = vmatprep.subr.mxu0 0.0
        %7297 = vmatpush1.msra.mxu0 0.0
        %7298 = vmatprep.subr.mxu0 0.0
        %7299 = vmatpush1.msra.mxu0 0.0
        %7300 = vmatprep.subr.mxu0 0.0
        %7301 = vmatpush1.msra.mxu0 0.0
        %7302 = vmatprep.subr.mxu0 0.0
        %7303 = vmatpush1.msra.mxu0 0.0
        %7304 = vmatprep.subr.mxu0 0.0
        %7305 = vmatpush1.msra.mxu0 0.0
        %7306 = vmatprep.subr.mxu0 0.0
        %7307 = vmatpush1.msra.mxu0 0.0
        %7308 = vmatprep.subr.mxu0 0.0
        %7309 = vmatpush1.msra.mxu0 0.0
        %7310 = vmatprep.subr.mxu0 0.0
        %7311 = vmatpush1.msra.mxu0 0.0
        %7312 = vmatprep.subr.mxu0 0.0
        %7313 = vmatpush1.msra.mxu0 0.0
        %7314 = vmatprep.subr.mxu0 0.0
        %7315 = vmatpush1.msra.mxu0 0.0
        %7316 = vmatprep.subr.mxu0 0.0
        %7317 = vmatpush1.msra.mxu0 0.0
        %7318 = vmatprep.subr.mxu0 0.0
        %7319 = vmatpush1.msra.mxu0 0.0
        %7320 = vmatprep.subr.mxu0 0.0
        %7321 = vmatpush1.msra.mxu0 0.0
        %7322 = vmatprep.subr.mxu0 0.0
        %7323 = vmatpush1.msra.mxu0 0.0
        %7324 = vmatprep.subr.mxu0 0.0
        %7325 = vmatpush1.msra.mxu0 0.0
        %7326 = vmatprep.subr.mxu0 0.0
        %7327 = vmatpush1.msra.mxu0 0.0
        %7328 = vmatprep.subr.mxu0 0.0
        %7329 = vmatpush1.msra.mxu0 0.0
        %7330 = vmatprep.subr.mxu0 0.0
        %7331 = vmatpush1.msra.mxu0 0.0
        %7332 = vmatprep.subr.mxu0 0.0
        %7333 = vmatpush1.msra.mxu0 0.0
        %7334 = vmatprep.subr.mxu0 0.0
        %7335 = vmatpush1.msra.mxu0 0.0
        %7336 = vmatprep.subr.mxu0 0.0
        %7337 = vmatpush1.msra.mxu0 0.0
        %7338 = vmatprep.subr.mxu0 0.0
        %7339 = vmatpush1.msra.mxu0 0.0
        %7340 = vmatprep.subr.mxu0 0.0
        %7341 = vmatpush1.msra.mxu0 0.0
        %7342 = vmatprep.subr.mxu0 0.0
        %7343 = vmatpush1.msra.mxu0 0.0
        %7344 = vmatprep.subr.mxu0 0.0
        %7345 = vmatpush1.msra.mxu0 0.0
        %7346 = vmatprep.subr.mxu0 0.0
        %7347 = vmatpush1.msra.mxu0 0.0
        %7348 = vmatprep.subr.mxu0 0.0
        %7349 = vmatpush1.msra.mxu0 0.0
        %7350 = vmatprep.mubr.f32.mxu0 0.0
        %7351 = vmatmul.mubr.f32.gmra.mrb[0].mxu0 %v7284
        %v7352 = vpop.f32.mrb[0].mxu0
        %v7353 = vadd.f32 %v7281, %v7352
        %v7354 = vpop.f32.mrb[0].mxu0
        %7355 = vdwg.mxu0
        %v7356 = vadd.f32 %v5761, %v7353
        %v7357 = vsel %vm2254, %v7356, 0.0
        %7358 = vadd.xlane.f32.xlu0 %v7357
        %v7359 = vpop.xlane.xlu0 %7358
        %v7360 = vmul.f32 %v7359, %v3790
        %v7361 = vsub.f32 %v7356, %v7360
        %v7362 = vmul.f32 %v7361, %v7361
        %v7363 = vsel %vm2254, %v7362, 0.0
        %7364 = vadd.xlane.f32.xlu0 %v7363
        %v7365 = vpop.xlane.xlu0 %7364
        %v7366 = vmul.f32 %v7365, %v3790
        %v7367 = vadd.f32 %v7366, 1e-05
        %v7368 = vrsqrt.pop %v7367
        %v7369 = vmul.f32 %v7361, %v7368
        %v7371 = vlaneseq
        %v7372 = vshrl.u32 %v7371, 7
        %v7373 = vsub.s32 0, %v7372
        %v7374 = vrot.slane %v2043, %v7373
        %v7376 = vmul.f32 %v7369, %v7374
        %v7378 = vlaneseq
        %v7379 = vshrl.u32 %v7378, 7
        %v7380 = vsub.s32 0, %v7379
        %v7381 = vrot.slane %v2042, %v7380
        %v7383 = vadd.f32 %v7376, %v7381
        %v7385 = vlaneseq
        %v7386 = vshrl.u32 %v7385, 7
        %v7387 = vsub.s32 0, %v7386
        %v7388 = vrot.slane %v2026, %v7387
        %v7391 = vsel %vm2254, %v7383, 0
        %7393 = vmatprep.subr.mxu0 0.0
        %7394 = vmatpush1.msra.mxu0 %v2027
        %7395 = vmatprep.subr.mxu0 0.0
        %7396 = vmatpush1.msra.mxu0 %v2028
        %7397 = vmatprep.subr.mxu0 0.0
        %7398 = vmatpush1.msra.mxu0 %v2029
        %7399 = vmatprep.subr.mxu0 0.0
        %7400 = vmatpush1.msra.mxu0 %v2030
        %7401 = vmatprep.subr.mxu0 0.0
        %7402 = vmatpush1.msra.mxu0 0.0
        %7403 = vmatprep.subr.mxu0 0.0
        %7404 = vmatpush1.msra.mxu0 0.0
        %7405 = vmatprep.subr.mxu0 0.0
        %7406 = vmatpush1.msra.mxu0 0.0
        %7407 = vmatprep.subr.mxu0 0.0
        %7408 = vmatpush1.msra.mxu0 0.0
        %7409 = vmatprep.subr.mxu0 0.0
        %7410 = vmatpush1.msra.mxu0 0.0
        %7411 = vmatprep.subr.mxu0 0.0
        %7412 = vmatpush1.msra.mxu0 0.0
        %7413 = vmatprep.subr.mxu0 0.0
        %7414 = vmatpush1.msra.mxu0 0.0
        %7415 = vmatprep.subr.mxu0 0.0
        %7416 = vmatpush1.msra.mxu0 0.0
        %7417 = vmatprep.subr.mxu0 0.0
        %7418 = vmatpush1.msra.mxu0 0.0
        %7419 = vmatprep.subr.mxu0 0.0
        %7420 = vmatpush1.msra.mxu0 0.0
        %7421 = vmatprep.subr.mxu0 0.0
        %7422 = vmatpush1.msra.mxu0 0.0
        %7423 = vmatprep.subr.mxu0 0.0
        %7424 = vmatpush1.msra.mxu0 0.0
        %7425 = vmatprep.subr.mxu0 0.0
        %7426 = vmatpush1.msra.mxu0 0.0
        %7427 = vmatprep.subr.mxu0 0.0
        %7428 = vmatpush1.msra.mxu0 0.0
        %7429 = vmatprep.subr.mxu0 0.0
        %7430 = vmatpush1.msra.mxu0 0.0
        %7431 = vmatprep.subr.mxu0 0.0
        %7432 = vmatpush1.msra.mxu0 0.0
        %7433 = vmatprep.subr.mxu0 0.0
        %7434 = vmatpush1.msra.mxu0 0.0
        %7435 = vmatprep.subr.mxu0 0.0
        %7436 = vmatpush1.msra.mxu0 0.0
        %7437 = vmatprep.subr.mxu0 0.0
        %7438 = vmatpush1.msra.mxu0 0.0
        %7439 = vmatprep.subr.mxu0 0.0
        %7440 = vmatpush1.msra.mxu0 0.0
        %7441 = vmatprep.subr.mxu0 0.0
        %7442 = vmatpush1.msra.mxu0 0.0
        %7443 = vmatprep.subr.mxu0 0.0
        %7444 = vmatpush1.msra.mxu0 0.0
        %7445 = vmatprep.subr.mxu0 0.0
        %7446 = vmatpush1.msra.mxu0 0.0
        %7447 = vmatprep.subr.mxu0 0.0
        %7448 = vmatpush1.msra.mxu0 0.0
        %7449 = vmatprep.subr.mxu0 0.0
        %7450 = vmatpush1.msra.mxu0 0.0
        %7451 = vmatprep.subr.mxu0 0.0
        %7452 = vmatpush1.msra.mxu0 0.0
        %7453 = vmatprep.subr.mxu0 0.0
        %7454 = vmatpush1.msra.mxu0 0.0
        %7455 = vmatprep.subr.mxu0 0.0
        %7456 = vmatpush1.msra.mxu0 0.0
        %7457 = vmatprep.mubr.f32.mxu0 0.0
        %7458 = vmatmul.mubr.f32.gmra.mrb[0].mxu0 %v7391
        %v7459 = vpop.f32.mrb[0].mxu0
        %v7460 = vadd.f32 %v7388, %v7459
        %v7461 = vpop.f32.mrb[0].mxu0
        %7462 = vdwg.mxu0
        %v7463 = vmax.f32 %v7460, 0.0
        %v7465 = vlaneseq
        %v7466 = vshrl.u32 %v7465, 7
        %v7467 = vsub.s32 0, %v7466
        %v7468 = vrot.slane %v2031, %v7467
        %v7471 = vsel %vm3922, %v7463, 0
        %7473 = vmatprep.subr.mxu0 0.0
        %7474 = vmatpush1.msra.mxu0 %v2032
        %7475 = vmatprep.subr.mxu0 0.0
        %7476 = vmatpush1.msra.mxu0 %v2033
        %7477 = vmatprep.subr.mxu0 0.0
        %7478 = vmatpush1.msra.mxu0 %v2034
        %7479 = vmatprep.subr.mxu0 0.0
        %7480 = vmatpush1.msra.mxu0 %v2035
        %7481 = vmatprep.subr.mxu0 0.0
        %7482 = vmatpush1.msra.mxu0 %v2036
        %7483 = vmatprep.subr.mxu0 0.0
        %7484 = vmatpush1.msra.mxu0 %v2037
        %7485 = vmatprep.subr.mxu0 0.0
        %7486 = vmatpush1.msra.mxu0 %v2038
        %7487 = vmatprep.subr.mxu0 0.0
        %7488 = vmatpush1.msra.mxu0 %v2039
        %7489 = vmatprep.subr.mxu0 0.0
        %7490 = vmatpush1.msra.mxu0 0.0
        %7491 = vmatprep.subr.mxu0 0.0
        %7492 = vmatpush1.msra.mxu0 0.0
        %7493 = vmatprep.subr.mxu0 0.0
        %7494 = vmatpush1.msra.mxu0 0.0
        %7495 = vmatprep.subr.mxu0 0.0
        %7496 = vmatpush1.msra.mxu0 0.0
        %7497 = vmatprep.subr.mxu0 0.0
        %7498 = vmatpush1.msra.mxu0 0.0
        %7499 = vmatprep.subr.mxu0 0.0
        %7500 = vmatpush1.msra.mxu0 0.0
        %7501 = vmatprep.subr.mxu0 0.0
        %7502 = vmatpush1.msra.mxu0 0.0
        %7503 = vmatprep.subr.mxu0 0.0
        %7504 = vmatpush1.msra.mxu0 0.0
        %7505 = vmatprep.subr.mxu0 0.0
        %7506 = vmatpush1.msra.mxu0 0.0
        %7507 = vmatprep.subr.mxu0 0.0
        %7508 = vmatpush1.msra.mxu0 0.0
        %7509 = vmatprep.subr.mxu0 0.0
        %7510 = vmatpush1.msra.mxu0 0.0
        %7511 = vmatprep.subr.mxu0 0.0
        %7512 = vmatpush1.msra.mxu0 0.0
        %7513 = vmatprep.subr.mxu0 0.0
        %7514 = vmatpush1.msra.mxu0 0.0
        %7515 = vmatprep.subr.mxu0 0.0
        %7516 = vmatpush1.msra.mxu0 0.0
        %7517 = vmatprep.subr.mxu0 0.0
        %7518 = vmatpush1.msra.mxu0 0.0
        %7519 = vmatprep.subr.mxu0 0.0
        %7520 = vmatpush1.msra.mxu0 0.0
        %7521 = vmatprep.subr.mxu0 0.0
        %7522 = vmatpush1.msra.mxu0 0.0
        %7523 = vmatprep.subr.mxu0 0.0
        %7524 = vmatpush1.msra.mxu0 0.0
        %7525 = vmatprep.subr.mxu0 0.0
        %7526 = vmatpush1.msra.mxu0 0.0
        %7527 = vmatprep.subr.mxu0 0.0
        %7528 = vmatpush1.msra.mxu0 0.0
        %7529 = vmatprep.subr.mxu0 0.0
        %7530 = vmatpush1.msra.mxu0 0.0
        %7531 = vmatprep.subr.mxu0 0.0
        %7532 = vmatpush1.msra.mxu0 0.0
        %7533 = vmatprep.subr.mxu0 0.0
        %7534 = vmatpush1.msra.mxu0 0.0
        %7535 = vmatprep.subr.mxu0 0.0
        %7536 = vmatpush1.msra.mxu0 0.0
        %7537 = vmatprep.mubr.f32.mxu0 0.0
        %7538 = vmatmul.mubr.f32.gmra.mrb[0].mxu0 %v7471
        %v7539 = vpop.f32.mrb[0].mxu0
        %v7540 = vadd.f32 %v7468, %v7539
        %v7541 = vpop.f32.mrb[0].mxu0
        %7542 = vdwg.mxu0
        %v7543 = vadd.f32 %v7383, %v7540
        %v7544 = vsel %vm2254, %v7543, 0.0
        %7545 = vadd.xlane.f32.xlu0 %v7544
        %v7546 = vpop.xlane.xlu0 %7545
        %v7547 = vmul.f32 %v7546, %v3790
        %v7548 = vsub.f32 %v7543, %v7547
        %v7549 = vmul.f32 %v7548, %v7548
        %v7550 = vsel %vm2254, %v7549, 0.0
        %7551 = vadd.xlane.f32.xlu0 %v7550
        %v7552 = vpop.xlane.xlu0 %7551
        %v7553 = vmul.f32 %v7552, %v3790
        %v7554 = vadd.f32 %v7553, 1e-05
        %v7555 = vrsqrt.pop %v7554
        %v7556 = vmul.f32 %v7548, %v7555
        %v7558 = vlaneseq
        %v7559 = vshrl.u32 %v7558, 7
        %v7560 = vsub.s32 0, %v7559
        %v7561 = vrot.slane %v2045, %v7560
        %v7563 = vmul.f32 %v7556, %v7561
        %v7565 = vlaneseq
        %v7566 = vshrl.u32 %v7565, 7
        %v7567 = vsub.s32 0, %v7566
        %v7568 = vrot.slane %v2044, %v7567
        %v7570 = vadd.f32 %v7563, %v7568
        %v7572 = vlaneseq
        %v7573 = vshrl.u32 %v7572, 7
        %v7574 = vsub.s32 0, %v7573
        %v7575 = vrot.slane %v2060, %v7574
        %v7578 = vsel %vm2254, %v7570, 0
        %7580 = vmatprep.subr.mxu0 0.0
        %7581 = vmatpush1.msra.mxu0 %v2056
        %7582 = vmatprep.subr.mxu0 0.0
        %7583 = vmatpush1.msra.mxu0 %v2057
        %7584 = vmatprep.subr.mxu0 0.0
        %7585 = vmatpush1.msra.mxu0 %v2058
        %7586 = vmatprep.subr.mxu0 0.0
        %7587 = vmatpush1.msra.mxu0 %v2059
        %7588 = vmatprep.subr.mxu0 0.0
        %7589 = vmatpush1.msra.mxu0 0.0
        %7590 = vmatprep.subr.mxu0 0.0
        %7591 = vmatpush1.msra.mxu0 0.0
        %7592 = vmatprep.subr.mxu0 0.0
        %7593 = vmatpush1.msra.mxu0 0.0
        %7594 = vmatprep.subr.mxu0 0.0
        %7595 = vmatpush1.msra.mxu0 0.0
        %7596 = vmatprep.subr.mxu0 0.0
        %7597 = vmatpush1.msra.mxu0 0.0
        %7598 = vmatprep.subr.mxu0 0.0
        %7599 = vmatpush1.msra.mxu0 0.0
        %7600 = vmatprep.subr.mxu0 0.0
        %7601 = vmatpush1.msra.mxu0 0.0
        %7602 = vmatprep.subr.mxu0 0.0
        %7603 = vmatpush1.msra.mxu0 0.0
        %7604 = vmatprep.subr.mxu0 0.0
        %7605 = vmatpush1.msra.mxu0 0.0
        %7606 = vmatprep.subr.mxu0 0.0
        %7607 = vmatpush1.msra.mxu0 0.0
        %7608 = vmatprep.subr.mxu0 0.0
        %7609 = vmatpush1.msra.mxu0 0.0
        %7610 = vmatprep.subr.mxu0 0.0
        %7611 = vmatpush1.msra.mxu0 0.0
        %7612 = vmatprep.subr.mxu0 0.0
        %7613 = vmatpush1.msra.mxu0 0.0
        %7614 = vmatprep.subr.mxu0 0.0
        %7615 = vmatpush1.msra.mxu0 0.0
        %7616 = vmatprep.subr.mxu0 0.0
        %7617 = vmatpush1.msra.mxu0 0.0
        %7618 = vmatprep.subr.mxu0 0.0
        %7619 = vmatpush1.msra.mxu0 0.0
        %7620 = vmatprep.subr.mxu0 0.0
        %7621 = vmatpush1.msra.mxu0 0.0
        %7622 = vmatprep.subr.mxu0 0.0
        %7623 = vmatpush1.msra.mxu0 0.0
        %7624 = vmatprep.subr.mxu0 0.0
        %7625 = vmatpush1.msra.mxu0 0.0
        %7626 = vmatprep.subr.mxu0 0.0
        %7627 = vmatpush1.msra.mxu0 0.0
        %7628 = vmatprep.subr.mxu0 0.0
        %7629 = vmatpush1.msra.mxu0 0.0
        %7630 = vmatprep.subr.mxu0 0.0
        %7631 = vmatpush1.msra.mxu0 0.0
        %7632 = vmatprep.subr.mxu0 0.0
        %7633 = vmatpush1.msra.mxu0 0.0
        %7634 = vmatprep.subr.mxu0 0.0
        %7635 = vmatpush1.msra.mxu0 0.0
        %7636 = vmatprep.subr.mxu0 0.0
        %7637 = vmatpush1.msra.mxu0 0.0
        %7638 = vmatprep.subr.mxu0 0.0
        %7639 = vmatpush1.msra.mxu0 0.0
        %7640 = vmatprep.subr.mxu0 0.0
        %7641 = vmatpush1.msra.mxu0 0.0
        %7642 = vmatprep.subr.mxu0 0.0
        %7643 = vmatpush1.msra.mxu0 0.0
        %7644 = vmatprep.mubr.f32.mxu0 0.0
        %7645 = vmatmul.mubr.f32.gmra.mrb[0].mxu0 %v7578
        %v7646 = vpop.f32.mrb[0].mxu0
        %v7647 = vadd.f32 %v7575, %v7646
        %v7648 = vpop.f32.mrb[0].mxu0
        %7649 = vdwg.mxu0
        %v7651 = vcombine.high %v7647, %v7647
        %v7653 = vadd.f32 %v7647, 3.0
        %v7654 = vadd.f32 %v7651, 3.0
        %v7655 = vrcp.pop 6.0
        %v7656 = vmul.f32 %v7653, %v7655
        %v7657 = vmul.f32 %v7654, %v7655
        %v7658 = vmax.f32 %v7656, 0.0
        %v7659 = vmax.f32 %v7657, 0.0
        %v7660 = vmin.f32 %v7658, 1.0
        %v7661 = vmin.f32 %v7659, 1.0
        %v7662 = vmax.f32 %v7647, 0.0
        %v7663 = vmax.f32 %v7651, 0.0
        %vm7664 = vcmp.ne.f32.partialorder %v7647, %v7647
        %vm7665 = vcmp.ne.f32.partialorder %v7651, %v7651
        %v7666 = vadd.f32 %v7647, 0.0
        %v7667 = vadd.f32 %v7651, 0.0
        %v7668 = vand.u32 2147483647, %v7647
        %v7669 = vand.u32 2147483647, %v7651
        %v7670 = vsub.f32 0.0, %v7668
        %v7671 = vsub.f32 0.0, %v7669
        %v7672 = vmul.f32 %v7670, 1.442695
        %v7673 = vpow.pop %v7672
        %v7674 = vmul.f32 %v7671, 1.442695
        %v7675 = vpow.pop %v7674
        %v7676 = vadd.f32 %v7673, 1.0
        %v7677 = vlog2.pop %v7676
        %v7678 = vmul.f32 %v7677, 0.6931472
        %v7679 = vmul.f32 -0.5, %v7673
        %v7680 = vadd.f32 %v7679, 1.0
        %v7681 = vmul.f32 %v7680, %v7673
        %v7682 = vand.u32 2147483647, %v7673
        %vm7683 = vcmp.lt.f32.partialorder %v7682, 0.0004427343
        %v7684 = vsel %vm7683, %v7681, %v7678
        %v7685 = vadd.f32 %v7675, 1.0
        %v7686 = vlog2.pop %v7685
        %v7687 = vmul.f32 %v7686, 0.6931472
        %v7688 = vmul.f32 -0.5, %v7675
        %v7689 = vadd.f32 %v7688, 1.0
        %v7690 = vmul.f32 %v7689, %v7675
        %v7691 = vand.u32 2147483647, %v7675
        %vm7692 = vcmp.lt.f32.partialorder %v7691, 0.0004427343
        %v7693 = vsel %vm7692, %v7690, %v7687
        %v7694 = vadd.f32 %v7662, %v7684
        %v7695 = vadd.f32 %v7663, %v7693
        %v7696 = vsel %vm7664, %v7666, %v7694
        %v7697 = vsel %vm7665, %v7667, %v7695
        %v7700 = vlaneseq
        %v7701 = vshrl.u32 %v7700, 7
        %v7702 = vsub.s32 0, %v7701
        %v7703 = vrot.slane %v7660, %v7702
        %v7704 = vlaneseq
        %v7705 = vshrl.u32 %v7704, 7
        %v7706 = vsub.s32 0, %v7705
        %v7707 = vrot.slane %v7661, %v7706
        %vm7708 = vcmask 1041409
        %v7709 = vsel %vm7708, %v7707, %v7703
        %v7711 = vsel %vm2166, %v7709, 0
        %v7714 = vsel %vm2169, %v2061, 0
        %7716 = vmatprep.subr.mxu0 0.0
        %7717 = vmatpush1.msra.mxu0 %v7714
        %7718 = vmatprep.subr.mxu0 0.0
        %7719 = vmatpush1.msra.mxu0 0.0
        %7720 = vmatprep.subr.mxu0 0.0
        %7721 = vmatpush1.msra.mxu0 0.0
        %7722 = vmatprep.subr.mxu0 0.0
        %7723 = vmatpush1.msra.mxu0 0.0
        %7724 = vmatprep.subr.mxu0 0.0
        %7725 = vmatpush1.msra.mxu0 0.0
        %7726 = vmatprep.subr.mxu0 0.0
        %7727 = vmatpush1.msra.mxu0 0.0
        %7728 = vmatprep.subr.mxu0 0.0
        %7729 = vmatpush1.msra.mxu0 0.0
        %7730 = vmatprep.subr.mxu0 0.0
        %7731 = vmatpush1.msra.mxu0 0.0
        %7732 = vmatprep.subr.mxu0 0.0
        %7733 = vmatpush1.msra.mxu0 0.0
        %7734 = vmatprep.subr.mxu0 0.0
        %7735 = vmatpush1.msra.mxu0 0.0
        %7736 = vmatprep.subr.mxu0 0.0
        %7737 = vmatpush1.msra.mxu0 0.0
        %7738 = vmatprep.subr.mxu0 0.0
        %7739 = vmatpush1.msra.mxu0 0.0
        %7740 = vmatprep.subr.mxu0 0.0
        %7741 = vmatpush1.msra.mxu0 0.0
        %7742 = vmatprep.subr.mxu0 0.0
        %7743 = vmatpush1.msra.mxu0 0.0
        %7744 = vmatprep.subr.mxu0 0.0
        %7745 = vmatpush1.msra.mxu0 0.0
        %7746 = vmatprep.subr.mxu0 0.0
        %7747 = vmatpush1.msra.mxu0 0.0
        %7748 = vmatprep.subr.mxu0 0.0
        %7749 = vmatpush1.msra.mxu0 0.0
        %7750 = vmatprep.subr.mxu0 0.0
        %7751 = vmatpush1.msra.mxu0 0.0
        %7752 = vmatprep.subr.mxu0 0.0
        %7753 = vmatpush1.msra.mxu0 0.0
        %7754 = vmatprep.subr.mxu0 0.0
        %7755 = vmatpush1.msra.mxu0 0.0
        %7756 = vmatprep.subr.mxu0 0.0
        %7757 = vmatpush1.msra.mxu0 0.0
        %7758 = vmatprep.subr.mxu0 0.0
        %7759 = vmatpush1.msra.mxu0 0.0
        %7760 = vmatprep.subr.mxu0 0.0
        %7761 = vmatpush1.msra.mxu0 0.0
        %7762 = vmatprep.subr.mxu0 0.0
        %7763 = vmatpush1.msra.mxu0 0.0
        %7764 = vmatprep.subr.mxu0 0.0
        %7765 = vmatpush1.msra.mxu0 0.0
        %7766 = vmatprep.subr.mxu0 0.0
        %7767 = vmatpush1.msra.mxu0 0.0
        %7768 = vmatprep.subr.mxu0 0.0
        %7769 = vmatpush1.msra.mxu0 0.0
        %7770 = vmatprep.subr.mxu0 0.0
        %7771 = vmatpush1.msra.mxu0 0.0
        %7772 = vmatprep.subr.mxu0 0.0
        %7773 = vmatpush1.msra.mxu0 0.0
        %7774 = vmatprep.subr.mxu0 0.0
        %7775 = vmatpush1.msra.mxu0 0.0
        %7776 = vmatprep.subr.mxu0 0.0
        %7777 = vmatpush1.msra.mxu0 0.0
        %7778 = vmatprep.subr.mxu0 0.0
        %7779 = vmatpush1.msra.mxu0 0.0
        %7780 = vmatprep.mubr.f32.mxu0 0.0
        %7781 = vmatmul.mubr.f32.gmra.mrb[0].mxu0 %v7711
        %v7782 = vpop.f32.mrb[0].mxu0
        %v7783 = vadd.f32 %v7709, %v7782
        %v7784 = vpop.f32.mrb[0].mxu0
        %7785 = vdwg.mxu0
        %v7787 = vlaneseq
        %v7788 = vshrl.u32 %v7787, 7
        %v7789 = vsub.s32 0, %v7788
        %v7790 = vrot.slane %v2062, %v7789
        %v7792 = vmul.f32 %v7783, %v7790
        %vm7793 = vcmask 25600
        %v7794 = vsel %vm7793, %v7792, 0.0
        %7795 = vadd.xlane.f32.xlu0 %v7794
        %v7796 = vpop.xlane.xlu0 %7795
        %v7797 = vlaneseq
        %v7798 = vshrl.u32 %v7797, 7
        %v7799 = vsub.s32 1, %v7798
        %v7800 = vrot.slane %v7660, %v7799
        %v7801 = vlaneseq
        %v7802 = vshrl.u32 %v7801, 7
        %v7803 = vsub.s32 1, %v7802
        %v7804 = vrot.slane %v7661, %v7803
        %v7805 = vsel %vm7708, %v7804, %v7800
        %v7808 = vsel %vm2166, %v7783, 0
        %7810 = vmatprep.subr.mxu0 0.0
        %7811 = vmatpush1.msra.mxu0 %v7714
        %7812 = vmatprep.subr.mxu0 0.0
        %7813 = vmatpush1.msra.mxu0 0.0
        %7814 = vmatprep.subr.mxu0 0.0
        %7815 = vmatpush1.msra.mxu0 0.0
        %7816 = vmatprep.subr.mxu0 0.0
        %7817 = vmatpush1.msra.mxu0 0.0
        %7818 = vmatprep.subr.mxu0 0.0
        %7819 = vmatpush1.msra.mxu0 0.0
        %7820 = vmatprep.subr.mxu0 0.0
        %7821 = vmatpush1.msra.mxu0 0.0
        %7822 = vmatprep.subr.mxu0 0.0
        %7823 = vmatpush1.msra.mxu0 0.0
        %7824 = vmatprep.subr.mxu0 0.0
        %7825 = vmatpush1.msra.mxu0 0.0
        %7826 = vmatprep.subr.mxu0 0.0
        %7827 = vmatpush1.msra.mxu0 0.0
        %7828 = vmatprep.subr.mxu0 0.0
        %7829 = vmatpush1.msra.mxu0 0.0
        %7830 = vmatprep.subr.mxu0 0.0
        %7831 = vmatpush1.msra.mxu0 0.0
        %7832 = vmatprep.subr.mxu0 0.0
        %7833 = vmatpush1.msra.mxu0 0.0
        %7834 = vmatprep.subr.mxu0 0.0
        %7835 = vmatpush1.msra.mxu0 0.0
        %7836 = vmatprep.subr.mxu0 0.0
        %7837 = vmatpush1.msra.mxu0 0.0
        %7838 = vmatprep.subr.mxu0 0.0
        %7839 = vmatpush1.msra.mxu0 0.0
        %7840 = vmatprep.subr.mxu0 0.0
        %7841 = vmatpush1.msra.mxu0 0.0
        %7842 = vmatprep.subr.mxu0 0.0
        %7843 = vmatpush1.msra.mxu0 0.0
        %7844 = vmatprep.subr.mxu0 0.0
        %7845 = vmatpush1.msra.mxu0 0.0
        %7846 = vmatprep.subr.mxu0 0.0
        %7847 = vmatpush1.msra.mxu0 0.0
        %7848 = vmatprep.subr.mxu0 0.0
        %7849 = vmatpush1.msra.mxu0 0.0
        %7850 = vmatprep.subr.mxu0 0.0
        %7851 = vmatpush1.msra.mxu0 0.0
        %7852 = vmatprep.subr.mxu0 0.0
        %7853 = vmatpush1.msra.mxu0 0.0
        %7854 = vmatprep.subr.mxu0 0.0
        %7855 = vmatpush1.msra.mxu0 0.0
        %7856 = vmatprep.subr.mxu0 0.0
        %7857 = vmatpush1.msra.mxu0 0.0
        %7858 = vmatprep.subr.mxu0 0.0
        %7859 = vmatpush1.msra.mxu0 0.0
        %7860 = vmatprep.subr.mxu0 0.0
        %7861 = vmatpush1.msra.mxu0 0.0
        %7862 = vmatprep.subr.mxu0 0.0
        %7863 = vmatpush1.msra.mxu0 0.0
        %7864 = vmatprep.subr.mxu0 0.0
        %7865 = vmatpush1.msra.mxu0 0.0
        %7866 = vmatprep.subr.mxu0 0.0
        %7867 = vmatpush1.msra.mxu0 0.0
        %7868 = vmatprep.subr.mxu0 0.0
        %7869 = vmatpush1.msra.mxu0 0.0
        %7870 = vmatprep.subr.mxu0 0.0
        %7871 = vmatpush1.msra.mxu0 0.0
        %7872 = vmatprep.subr.mxu0 0.0
        %7873 = vmatpush1.msra.mxu0 0.0
        %7874 = vmatprep.mubr.f32.mxu0 0.0
        %7875 = vmatmul.mubr.f32.gmra.mrb[0].mxu0 %v7808
        %v7876 = vpop.f32.mrb[0].mxu0
        %v7877 = vadd.f32 %v7805, %v7876
        %v7878 = vpop.f32.mrb[0].mxu0
        %7879 = vdwg.mxu0
        %v7880 = vmul.f32 %v7877, %v7790
        %v7881 = vsel %vm7793, %v7880, 0.0
        %7882 = vadd.xlane.f32.xlu0 %v7881
        %v7883 = vpop.xlane.xlu0 %7882
        %v7884 = vlaneseq
        %v7885 = vshrl.u32 %v7884, 7
        %v7886 = vsub.s32 2, %v7885
        %v7887 = vrot.slane %v7660, %v7886
        %v7888 = vlaneseq
        %v7889 = vshrl.u32 %v7888, 7
        %v7890 = vsub.s32 2, %v7889
        %v7891 = vrot.slane %v7661, %v7890
        %v7892 = vsel %vm7708, %v7891, %v7887
        %v7895 = vsel %vm2166, %v7877, 0
        %7897 = vmatprep.subr.mxu0 0.0
        %7898 = vmatpush1.msra.mxu0 %v7714
        %7899 = vmatprep.subr.mxu0 0.0
        %7900 = vmatpush1.msra.mxu0 0.0
        %7901 = vmatprep.subr.mxu0 0.0
        %7902 = vmatpush1.msra.mxu0 0.0
        %7903 = vmatprep.subr.mxu0 0.0
        %7904 = vmatpush1.msra.mxu0 0.0
        %7905 = vmatprep.subr.mxu0 0.0
        %7906 = vmatpush1.msra.mxu0 0.0
        %7907 = vmatprep.subr.mxu0 0.0
        %7908 = vmatpush1.msra.mxu0 0.0
        %7909 = vmatprep.subr.mxu0 0.0
        %7910 = vmatpush1.msra.mxu0 0.0
        %7911 = vmatprep.subr.mxu0 0.0
        %7912 = vmatpush1.msra.mxu0 0.0
        %7913 = vmatprep.subr.mxu0 0.0
        %7914 = vmatpush1.msra.mxu0 0.0
        %7915 = vmatprep.subr.mxu0 0.0
        %7916 = vmatpush1.msra.mxu0 0.0
        %7917 = vmatprep.subr.mxu0 0.0
        %7918 = vmatpush1.msra.mxu0 0.0
        %7919 = vmatprep.subr.mxu0 0.0
        %7920 = vmatpush1.msra.mxu0 0.0
        %7921 = vmatprep.subr.mxu0 0.0
        %7922 = vmatpush1.msra.mxu0 0.0
        %7923 = vmatprep.subr.mxu0 0.0
        %7924 = vmatpush1.msra.mxu0 0.0
        %7925 = vmatprep.subr.mxu0 0.0
        %7926 = vmatpush1.msra.mxu0 0.0
        %7927 = vmatprep.subr.mxu0 0.0
        %7928 = vmatpush1.msra.mxu0 0.0
        %7929 = vmatprep.subr.mxu0 0.0
        %7930 = vmatpush1.msra.mxu0 0.0
        %7931 = vmatprep.subr.mxu0 0.0
        %7932 = vmatpush1.msra.mxu0 0.0
        %7933 = vmatprep.subr.mxu0 0.0
        %7934 = vmatpush1.msra.mxu0 0.0
        %7935 = vmatprep.subr.mxu0 0.0
        %7936 = vmatpush1.msra.mxu0 0.0
        %7937 = vmatprep.subr.mxu0 0.0
        %7938 = vmatpush1.msra.mxu0 0.0
        %7939 = vmatprep.subr.mxu0 0.0
        %7940 = vmatpush1.msra.mxu0 0.0
        %7941 = vmatprep.subr.mxu0 0.0
        %7942 = vmatpush1.msra.mxu0 0.0
        %7943 = vmatprep.subr.mxu0 0.0
        %7944 = vmatpush1.msra.mxu0 0.0
        %7945 = vmatprep.subr.mxu0 0.0
        %7946 = vmatpush1.msra.mxu0 0.0
        %7947 = vmatprep.subr.mxu0 0.0
        %7948 = vmatpush1.msra.mxu0 0.0
        %7949 = vmatprep.subr.mxu0 0.0
        %7950 = vmatpush1.msra.mxu0 0.0
        %7951 = vmatprep.subr.mxu0 0.0
        %7952 = vmatpush1.msra.mxu0 0.0
        %7953 = vmatprep.subr.mxu0 0.0
        %7954 = vmatpush1.msra.mxu0 0.0
        %7955 = vmatprep.subr.mxu0 0.0
        %7956 = vmatpush1.msra.mxu0 0.0
        %7957 = vmatprep.subr.mxu0 0.0
        %7958 = vmatpush1.msra.mxu0 0.0
        %7959 = vmatprep.subr.mxu0 0.0
        %7960 = vmatpush1.msra.mxu0 0.0
        %7961 = vmatprep.mubr.f32.mxu0 0.0
        %7962 = vmatmul.mubr.f32.gmra.mrb[0].mxu0 %v7895
        %v7963 = vpop.f32.mrb[0].mxu0
        %v7964 = vadd.f32 %v7892, %v7963
        %v7965 = vpop.f32.mrb[0].mxu0
        %7966 = vdwg.mxu0
        %v7967 = vmul.f32 %v7964, %v7790
        %v7968 = vsel %vm7793, %v7967, 0.0
        %7969 = vadd.xlane.f32.xlu0 %v7968
        %v7970 = vpop.xlane.xlu0 %7969
        %v7971 = vlaneseq
        %v7972 = vshrl.u32 %v7971, 7
        %v7973 = vsub.s32 3, %v7972
        %v7974 = vrot.slane %v7660, %v7973
        %v7975 = vlaneseq
        %v7976 = vshrl.u32 %v7975, 7
        %v7977 = vsub.s32 3, %v7976
        %v7978 = vrot.slane %v7661, %v7977
        %v7979 = vsel %vm7708, %v7978, %v7974
        %v7982 = vsel %vm2166, %v7964, 0
        %7984 = vmatprep.subr.mxu0 0.0
        %7985 = vmatpush1.msra.mxu0 %v7714
        %7986 = vmatprep.subr.mxu0 0.0
        %7987 = vmatpush1.msra.mxu0 0.0
        %7988 = vmatprep.subr.mxu0 0.0
        %7989 = vmatpush1.msra.mxu0 0.0
        %7990 = vmatprep.subr.mxu0 0.0
        %7991 = vmatpush1.msra.mxu0 0.0
        %7992 = vmatprep.subr.mxu0 0.0
        %7993 = vmatpush1.msra.mxu0 0.0
        %7994 = vmatprep.subr.mxu0 0.0
        %7995 = vmatpush1.msra.mxu0 0.0
        %7996 = vmatprep.subr.mxu0 0.0
        %7997 = vmatpush1.msra.mxu0 0.0
        %7998 = vmatprep.subr.mxu0 0.0
        %7999 = vmatpush1.msra.mxu0 0.0
        %8000 = vmatprep.subr.mxu0 0.0
        %8001 = vmatpush1.msra.mxu0 0.0
        %8002 = vmatprep.subr.mxu0 0.0
        %8003 = vmatpush1.msra.mxu0 0.0
        %8004 = vmatprep.subr.mxu0 0.0
        %8005 = vmatpush1.msra.mxu0 0.0
        %8006 = vmatprep.subr.mxu0 0.0
        %8007 = vmatpush1.msra.mxu0 0.0
        %8008 = vmatprep.subr.mxu0 0.0
        %8009 = vmatpush1.msra.mxu0 0.0
        %8010 = vmatprep.subr.mxu0 0.0
        %8011 = vmatpush1.msra.mxu0 0.0
        %8012 = vmatprep.subr.mxu0 0.0
        %8013 = vmatpush1.msra.mxu0 0.0
        %8014 = vmatprep.subr.mxu0 0.0
        %8015 = vmatpush1.msra.mxu0 0.0
        %8016 = vmatprep.subr.mxu0 0.0
        %8017 = vmatpush1.msra.mxu0 0.0
        %8018 = vmatprep.subr.mxu0 0.0
        %8019 = vmatpush1.msra.mxu0 0.0
        %8020 = vmatprep.subr.mxu0 0.0
        %8021 = vmatpush1.msra.mxu0 0.0
        %8022 = vmatprep.subr.mxu0 0.0
        %8023 = vmatpush1.msra.mxu0 0.0
        %8024 = vmatprep.subr.mxu0 0.0
        %8025 = vmatpush1.msra.mxu0 0.0
        %8026 = vmatprep.subr.mxu0 0.0
        %8027 = vmatpush1.msra.mxu0 0.0
        %8028 = vmatprep.subr.mxu0 0.0
        %8029 = vmatpush1.msra.mxu0 0.0
        %8030 = vmatprep.subr.mxu0 0.0
        %8031 = vmatpush1.msra.mxu0 0.0
        %8032 = vmatprep.subr.mxu0 0.0
        %8033 = vmatpush1.msra.mxu0 0.0
        %8034 = vmatprep.subr.mxu0 0.0
        %8035 = vmatpush1.msra.mxu0 0.0
        %8036 = vmatprep.subr.mxu0 0.0
        %8037 = vmatpush1.msra.mxu0 0.0
        %8038 = vmatprep.subr.mxu0 0.0
        %8039 = vmatpush1.msra.mxu0 0.0
        %8040 = vmatprep.subr.mxu0 0.0
        %8041 = vmatpush1.msra.mxu0 0.0
        %8042 = vmatprep.subr.mxu0 0.0
        %8043 = vmatpush1.msra.mxu0 0.0
        %8044 = vmatprep.subr.mxu0 0.0
        %8045 = vmatpush1.msra.mxu0 0.0
        %8046 = vmatprep.subr.mxu0 0.0
        %8047 = vmatpush1.msra.mxu0 0.0
        %8048 = vmatprep.mubr.f32.mxu0 0.0
        %8049 = vmatmul.mubr.f32.gmra.mrb[0].mxu0 %v7982
        %v8050 = vpop.f32.mrb[0].mxu0
        %v8051 = vadd.f32 %v7979, %v8050
        %v8052 = vpop.f32.mrb[0].mxu0
        %8053 = vdwg.mxu0
        %v8054 = vmul.f32 %v8051, %v7790
        %v8055 = vsel %vm7793, %v8054, 0.0
        %8056 = vadd.xlane.f32.xlu0 %v8055
        %v8057 = vpop.xlane.xlu0 %8056
        %vm8058 = vcmask 7168
        %v8059 = vsel %vm8058, %v7796, %v7883
        %vm8060 = vcmask 15360
        %v8061 = vsel %vm8060, %v8059, %v7970
        %vm8062 = vcmask 23552
        %v8063 = vsel %vm8062, %v8061, %v8057
        %8066 = vset.pattern.permute.xlu0 4
        %8067 = vperm.xlu0 %8066, %v7696
        %v8068 = vpop.permute.xlu0 %8067
        %8069 = vset.pattern.permute.xlu0 4
        %8070 = vperm.xlu0 %8069, %v7697
        %v8071 = vpop.permute.xlu0 %8070
        %v8072 = vlaneseq
        %v8073 = vshrl.u32 %v8072, 7
        %v8074 = vsub.s32 %v4203, %v8073
        %v8075 = vrot.slane %v8068, %v8074
        %v8076 = vlaneseq
        %v8077 = vshrl.u32 %v8076, 7
        %v8078 = vsub.s32 %v4203, %v8077
        %v8079 = vrot.slane %v8071, %v8078
        %v8080 = vsel %vm7708, %v8079, %v8075
        %v8082 = vadd.f32 %v8063, %v8080
        %8083 = vst.msk [vmem:[%s1970] sm:$0x3] %vm7793, %v8082
        %p8084 = scmp.lt.s32.totalorder %s106, 1
        %s8085 = scalar_select %p8084, %s106, 1
        %s8086 = smul.addr %s8085, 2
        %s8087 = scalar_lea.vmem %s93, %s8086
        // Predicated region
        $region213: #{_lambda_.1} parent=203 // pred_check
          %p8088 = pneg %p1270
        $region214: #{_lambda_.1} parent=203 // pred_check_branch
          %8090 = sbr.rel (%p8088) target = $region216
        $region215: #{_lambda_.1} parent=203 // pred_region
          _
        $region216: #{_lambda_.1} parent=203 // pred_fallthru
          _
      $region204: #{_lambda_.1} parent=5 // pred_fallthru
        _
      %p8091 = scmp.le.s32.totalorder 2, %s101
      // Predicated region
      $region217: #{_lambda_.1} parent=5 // pred_check
        %p8092 = pneg %p8091
      $region218: #{_lambda_.1} parent=5 // pred_check_branch
        %8094 = sbr.rel (%p8092) target = $region220
      $region219: #{_lambda_.1} parent=5 // pred_region
        %s8095 = ssub.s32 %s101, 2
        // Predicated region
        $region221: #{_lambda_.1} parent=219 // pred_check
          %p8096 = pneg %p1276
        $region222: #{_lambda_.1} parent=219 // pred_check_branch
          %8098 = sbr.rel (%p8096) target = $region224
        $region223: #{_lambda_.1} parent=219 // pred_region
          %p8099 = scmp.lt.s32.totalorder %s107, 1
          %s8100 = scalar_select %p8099, %s107, 1
          %s8101 = smul.addr %s8100, 2
          %s8102 = scalar_lea.vmem %s93, %s8101
        $region224: #{_lambda_.1} parent=219 // pred_fallthru
          _
      $region220: #{_lambda_.1} parent=5 // pred_fallthru
        _
    $region6: #{_lambda_.1} parent=1 // loop_footer
      %s105 = sadd.s32 1, %s101
    $region7: #{_lambda_.1} parent=1 // loop_footer_branch
      %100 = sbr.rel target = $region3
    $region8: #{_lambda_.1} parent=1 // loop_exit
      _
    %8103 = vsyncpa [#allocation3], 1
    %s8104 = scalar_lea.sflag [#allocation3], 1
    %8105 = vsyncpa %s8104, 1
    %8106 = vsyncpa [#allocation5], 1

</llo_original>
